<compile_context>
chip_gen: v7x
topology: tpu7x:2x2x1
jax: 0.10.0
libtpu: 0.0.40
codegen_flags: <defaults>
</compile_context>

<pallas_src>
import jax
import jax.numpy as jnp
from jax import lax
from jax.experimental import pallas as pl
from jax.experimental.pallas import tpu as pltpu


# ----------------------------------------------------------------------------- kernel
def make_lstm_kernel(num_layers, T, Hp):
    """Kernel over one batch tile. Refs:
       x_ref(T,TB,Dp), [w_ih, w_hh, b] * num_layers, w_fc(Hp,Op), b_fc(1,Op),
       out_ref(TB,Op), seq(T,TB,Hp), h(TB,Hp), c(TB,Hp)."""

    def kernel(*refs):
        x_ref = refs[0]
        pos = 1
        layers = []
        for _ in range(num_layers):
            layers.append((refs[pos], refs[pos + 1], refs[pos + 2]))
            pos += 3
        wfc_ref, bfc_ref = refs[pos], refs[pos + 1]
        out_ref = refs[pos + 2]
        seq_ref, h_ref, c_ref = refs[pos + 3], refs[pos + 4], refs[pos + 5]

        TB = h_ref.shape[0]

        def run_layer(read_in, w_ih_ref, w_hh_ref, b_ref):
            h_ref[...] = jnp.zeros_like(h_ref)
            c_ref[...] = jnp.zeros_like(c_ref)
            # hoist the bias broadcast out of the time loop (broadcast_in_dim is not CSE'd)
            bias = jnp.broadcast_to(b_ref[...], (TB, 4 * Hp))

            def body(t, carry):
                x_t = read_in(t)                                          # (TB, Din_p)
                gates = (jnp.dot(x_t, w_ih_ref[...], preferred_element_type=jnp.float32)
                         + jnp.dot(h_ref[...], w_hh_ref[...], preferred_element_type=jnp.float32)
                         + bias)                                          # (TB, 4*Hp)
                i_g = jax.nn.sigmoid(gates[:, 0 * Hp:1 * Hp])
                f_g = jax.nn.sigmoid(gates[:, 1 * Hp:2 * Hp])
                g_g = jnp.tanh(gates[:, 2 * Hp:3 * Hp])
                o_g = jax.nn.sigmoid(gates[:, 3 * Hp:4 * Hp])
                c_new = f_g * c_ref[...] + i_g * g_g
                h_new = o_g * jnp.tanh(c_new)
                c_ref[...] = c_new
                h_ref[...] = h_new
                seq_ref[t] = h_new                                        # layer output sequence
                return carry

            lax.fori_loop(0, T, body, 0, unroll=True)

        # layer 0 reads the (padded, time-major) input; deeper layers read/overwrite seq in place
        run_layer(lambda t: x_ref[t], *layers[0])
        for l in range(1, num_layers):
            run_layer(lambda t: seq_ref[t], *layers[l])

        # fc on the last timestep's hidden state of the last layer
        out_ref[...] = (jnp.dot(h_ref[...], wfc_ref[...], preferred_element_type=jnp.float32)
                        + bfc_ref[...])

    return kernel


# ----------------------------------------------------------------------------- wrapper
def _round_up(n, m):
    return ((n + m - 1) // m) * m


def _pack_gate_matrix(w, H, in_pad, Hp):
    """PyTorch (4H, Din) gate-stacked weight -> transposed, gate-blocked, padded (in_pad, 4*Hp)."""
    din = w.shape[1]
    out = jnp.zeros((in_pad, 4 * Hp), jnp.float32)
    for g in range(4):
        out = out.at[:din, g * Hp:g * Hp + H].set(w[g * H:(g + 1) * H, :].T)
    return out


def _pack_gate_bias(b, H, Hp):
    out = jnp.zeros((1, 4 * Hp), jnp.float32)
    for g in range(4):
        out = out.at[0, g * Hp:g * Hp + H].set(b[g * H:(g + 1) * H])
    return out


def lstm_regression_forward(x, layer_params, w_fc, b_fc, *, block_b=8):
    """x:(B,T,D) f32; layer_params: list of (W_ih(4H,Din), W_hh(4H,H), b_ih(4H,), b_hh(4H,));
       w_fc:(O,H), b_fc:(O,).  Returns (B, O)."""
    B, T, D = x.shape
    H = layer_params[0][1].shape[1]
    O = w_fc.shape[0]
    num_layers = len(layer_params)

    LANE = 128
    Dp = _round_up(D, LANE)
    Hp = _round_up(H, LANE)
    Op = _round_up(O, LANE)
    TB = block_b
    Bp = _round_up(B, TB)

    # ---- hoisted constant work: pre-transpose / pad weights, fuse the two biases ----
    packed = []
    for l, (w_ih, w_hh, b_ih, b_hh) in enumerate(layer_params):
        in_p = Dp if l == 0 else Hp
        packed.append(_pack_gate_matrix(w_ih, H, in_p, Hp))
        packed.append(_pack_gate_matrix(w_hh, H, Hp, Hp))
        packed.append(_pack_gate_bias(b_ih + b_hh, H, Hp))
    wfc_p = jnp.zeros((Hp, Op), jnp.float32).at[:H, :O].set(w_fc.T)
    bfc_p = jnp.zeros((1, Op), jnp.float32).at[0, :O].set(b_fc)

    # time-major, batch/lane-padded input: (T, Bp, Dp)
    xp = jnp.zeros((T, Bp, Dp), jnp.float32).at[:, :B, :D].set(jnp.transpose(x, (1, 0, 2)))

    kernel = make_lstm_kernel(num_layers, T, Hp)

    in_specs = [pl.BlockSpec((T, TB, Dp), lambda i: (0, i, 0))]
    for arr in packed + [wfc_p, bfc_p]:
        # whole-array block with a constant index_map -> DMA'd once, stays resident
        in_specs.append(pl.BlockSpec(arr.shape, lambda i: (0, 0)))

    grid_spec = pltpu.PrefetchScalarGridSpec(
        num_scalar_prefetch=0,
        grid=(Bp // TB,),
        in_specs=in_specs,
        out_specs=pl.BlockSpec((TB, Op), lambda i: (i, 0)),
        scratch_shapes=[
            pltpu.VMEM((T, TB, Hp), jnp.float32),   # inter-layer hidden-state sequence
            pltpu.VMEM((TB, Hp), jnp.float32),      # h_t
            pltpu.VMEM((TB, Hp), jnp.float32),      # c_t
        ],
    )

    out_p = pl.pallas_call(
        kernel,
        out_shape=jax.ShapeDtypeStruct((Bp, Op), jnp.float32),
        grid_spec=grid_spec,
        compiler_params=pltpu.CompilerParams(dimension_semantics=("parallel",)),
    )(xp, *packed, wfc_p, bfc_p)

    return out_p[:B, :O]


# ----------------------------------------------------------------------------- reference
def lstm_regression_reference(x, layer_params, w_fc, b_fc):
    B, T, _ = x.shape
    seq = x
    for (w_ih, w_hh, b_ih, b_hh) in layer_params:
        H = w_hh.shape[1]
        h = jnp.zeros((B, H), jnp.float32)
        c = jnp.zeros((B, H), jnp.float32)
        outs = []
        for t in range(T):
            gates = seq[:, t, :] @ w_ih.T + b_ih + h @ w_hh.T + b_hh
            i, f, g, o = jnp.split(gates, 4, axis=1)
            i = jax.nn.sigmoid(i)
            f = jax.nn.sigmoid(f)
            g = jnp.tanh(g)
            o = jax.nn.sigmoid(o)
            c = f * c + i * g
            h = o * jnp.tanh(c)
            outs.append(h)
        seq = jnp.stack(outs, axis=1)
    return seq[:, -1, :] @ w_fc.T + b_fc


# ----------------------------------------------------------------------------- main
if __name__ == "__main__":
    key = jax.random.PRNGKey(0)
    B, T, D, H, O, L = 2, 8, 8, 32, 4, 2   # batch, seq, input_dim, hidden_dim, output_dim, num_layers

    ks = iter(jax.random.split(key, 4 * L + 3))
    x = jax.random.normal(next(ks), (B, T, D), jnp.float32)

    s = 1.0 / jnp.sqrt(jnp.float32(H))
    layer_params = []
    for l in range(L):
        din = D if l == 0 else H
        w_ih = s * jax.random.normal(next(ks), (4 * H, din), jnp.float32)
        w_hh = s * jax.random.normal(next(ks), (4 * H, H), jnp.float32)
        b_ih = s * jax.random.normal(next(ks), (4 * H,), jnp.float32)
        b_hh = s * jax.random.normal(next(ks), (4 * H,), jnp.float32)
        layer_params.append((w_ih, w_hh, b_ih, b_hh))
    w_fc = 0.1 * jax.random.normal(next(ks), (O, H), jnp.float32)
    b_fc = 0.1 * jax.random.normal(next(ks), (O,), jnp.float32)

    out = lstm_regression_forward(x, layer_params, w_fc, b_fc)
    out = jax.block_until_ready(out)

    ref = lstm_regression_reference(x, layer_params, w_fc, b_fc)
    assert out.shape == (B, O)
    assert jnp.allclose(out, ref, atol=1e-4, rtol=1e-4), "Pallas kernel mismatch vs reference"

    print("KERNEL_OK")
</pallas_src>

<mosaic_0001>
module attributes {stable_mosaic.version = 11 : i64} {
  func.func @kernel(%arg0: i32, %arg1: memref<8x8x128xf32, #tpu.memory_space<vmem>>, %arg2: memref<128x512xf32, #tpu.memory_space<vmem>>, %arg3: memref<128x512xf32, #tpu.memory_space<vmem>>, %arg4: memref<1x512xf32, #tpu.memory_space<vmem>>, %arg5: memref<128x512xf32, #tpu.memory_space<vmem>>, %arg6: memref<128x512xf32, #tpu.memory_space<vmem>>, %arg7: memref<1x512xf32, #tpu.memory_space<vmem>>, %arg8: memref<128x128xf32, #tpu.memory_space<vmem>>, %arg9: memref<1x128xf32, #tpu.memory_space<vmem>>, %arg10: memref<8x128xf32, #tpu.memory_space<vmem>>, %arg11: memref<8x8x128xf32, #tpu.memory_space<vmem>>, %arg12: memref<8x128xf32, #tpu.memory_space<vmem>>, %arg13: memref<8x128xf32, #tpu.memory_space<vmem>>) attributes {dimension_semantics = [#tpu.dimension_semantics<parallel>], iteration_bounds = array<i64: 1>, scalar_prefetch = 0 : i64, scratch_operands = 3 : i64, tpu.core_type = #tpu.core_type<tc>, window_params = [{transform_indices = @transform_0, window_bounds = array<i64: 8, 8, 128>}, {pipeline_mode = #tpu.pipeline_mode<synchronous>, transform_indices = @transform_1, window_bounds = array<i64: 128, 512>}, {pipeline_mode = #tpu.pipeline_mode<synchronous>, transform_indices = @transform_2, window_bounds = array<i64: 128, 512>}, {pipeline_mode = #tpu.pipeline_mode<synchronous>, transform_indices = @transform_3, window_bounds = array<i64: 1, 512>}, {pipeline_mode = #tpu.pipeline_mode<synchronous>, transform_indices = @transform_4, window_bounds = array<i64: 128, 512>}, {pipeline_mode = #tpu.pipeline_mode<synchronous>, transform_indices = @transform_5, window_bounds = array<i64: 128, 512>}, {pipeline_mode = #tpu.pipeline_mode<synchronous>, transform_indices = @transform_6, window_bounds = array<i64: 1, 512>}, {pipeline_mode = #tpu.pipeline_mode<synchronous>, transform_indices = @transform_7, window_bounds = array<i64: 128, 128>}, {pipeline_mode = #tpu.pipeline_mode<synchronous>, transform_indices = @transform_8, window_bounds = array<i64: 1, 128>}, {transform_indices = @transform_9, window_bounds = array<i64: 8, 128>}]} {
    %cst = arith.constant 0.000000e+00 : f32
    %0 = vector.broadcast %cst : f32 to vector<8x128xf32>
    %c0 = arith.constant 0 : index
    %c0_0 = arith.constant 0 : index
    %1 = vector.load %arg12[%c0, %c0_0] : memref<8x128xf32, #tpu.memory_space<vmem>>, vector<8x128xf32>
    tpu.vector_store %arg12[%c0, %c0_0], %0 {strides = array<i32>} : memref<8x128xf32, #tpu.memory_space<vmem>>, vector<8x128xf32>,
    %cst_1 = arith.constant 0.000000e+00 : f32
    %2 = vector.broadcast %cst_1 : f32 to vector<8x128xf32>
    %c0_2 = arith.constant 0 : index
    %c0_3 = arith.constant 0 : index
    %3 = vector.load %arg13[%c0_2, %c0_3] : memref<8x128xf32, #tpu.memory_space<vmem>>, vector<8x128xf32>
    tpu.vector_store %arg13[%c0_2, %c0_3], %2 {strides = array<i32>} : memref<8x128xf32, #tpu.memory_space<vmem>>, vector<8x128xf32>,
    %c0_4 = arith.constant 0 : index
    %c0_5 = arith.constant 0 : index
    %4 = vector.load %arg4[%c0_4, %c0_5] : memref<1x512xf32, #tpu.memory_space<vmem>>, vector<1x512xf32>
    %5 = vector.shape_cast %4 : vector<1x512xf32> to vector<1x512xf32>
    %6 = vector.broadcast %5 : vector<1x512xf32> to vector<8x512xf32>
    %c0_i32 = arith.constant 0 : i32
    %7 = arith.index_cast %c0_i32 : i32 to index
    %c0_6 = arith.constant 0 : index
    %c0_7 = arith.constant 0 : index
    %8 = vector.load %arg1[%7, %c0_6, %c0_7] : memref<8x8x128xf32, #tpu.memory_space<vmem>>, vector<1x8x128xf32>
    %9 = vector.shape_cast %8 : vector<1x8x128xf32> to vector<8x128xf32>
    %c0_8 = arith.constant 0 : index
    %c0_9 = arith.constant 0 : index
    %10 = vector.load %arg2[%c0_8, %c0_9] : memref<128x512xf32, #tpu.memory_space<vmem>>, vector<128x512xf32>
    %cst_10 = arith.constant dense<0.000000e+00> : vector<8x512xf32>
    %11 = tpu.matmul %9, %10, %cst_10 {dimension_numbers = #tpu.dot_dimension_numbers<[1], [0], [0], [1], [0, 0, 1, 1], [], []>} : vector<8x128xf32>, vector<128x512xf32>, vector<8x512xf32> -> vector<8x512xf32>
    %c0_11 = arith.constant 0 : index
    %c0_12 = arith.constant 0 : index
    %12 = vector.load %arg12[%c0_11, %c0_12] : memref<8x128xf32, #tpu.memory_space<vmem>>, vector<8x128xf32>
    %c0_13 = arith.constant 0 : index
    %c0_14 = arith.constant 0 : index
    %13 = vector.load %arg3[%c0_13, %c0_14] : memref<128x512xf32, #tpu.memory_space<vmem>>, vector<128x512xf32>
    %cst_15 = arith.constant dense<0.000000e+00> : vector<8x512xf32>
    %14 = tpu.matmul %12, %13, %cst_15 {dimension_numbers = #tpu.dot_dimension_numbers<[1], [0], [0], [1], [0, 0, 1, 1], [], []>} : vector<8x128xf32>, vector<128x512xf32>, vector<8x512xf32> -> vector<8x512xf32>
    %15 = arith.addf %11, %14 : vector<8x512xf32>
    %16 = arith.addf %15, %6 : vector<8x512xf32>
    %17 = vector.extract_strided_slice %16 {offsets = [0, 0], sizes = [8, 128], strides = [1, 1]} : vector<8x512xf32> to vector<8x128xf32>
    %18 = arith.negf %17 : vector<8x128xf32>
    %19 = math.exp %18 : vector<8x128xf32>
    %cst_16 = arith.constant 1.000000e+00 : f32
    %20 = vector.broadcast %cst_16 : f32 to vector<8x128xf32>
    %21 = arith.addf %20, %19 : vector<8x128xf32>
    %22 = arith.divf %20, %21 : vector<8x128xf32>
    %23 = vector.extract_strided_slice %16 {offsets = [0, 128], sizes = [8, 128], strides = [1, 1]} : vector<8x512xf32> to vector<8x128xf32>
    %24 = arith.negf %23 : vector<8x128xf32>
    %25 = math.exp %24 : vector<8x128xf32>
    %cst_17 = arith.constant 1.000000e+00 : f32
    %26 = vector.broadcast %cst_17 : f32 to vector<8x128xf32>
    %27 = arith.addf %26, %25 : vector<8x128xf32>
    %28 = arith.divf %26, %27 : vector<8x128xf32>
    %29 = vector.extract_strided_slice %16 {offsets = [0, 256], sizes = [8, 128], strides = [1, 1]} : vector<8x512xf32> to vector<8x128xf32>
    %30 = math.tanh %29 : vector<8x128xf32>
    %31 = vector.extract_strided_slice %16 {offsets = [0, 384], sizes = [8, 128], strides = [1, 1]} : vector<8x512xf32> to vector<8x128xf32>
    %32 = arith.negf %31 : vector<8x128xf32>
    %33 = math.exp %32 : vector<8x128xf32>
    %cst_18 = arith.constant 1.000000e+00 : f32
    %34 = vector.broadcast %cst_18 : f32 to vector<8x128xf32>
    %35 = arith.addf %34, %33 : vector<8x128xf32>
    %36 = arith.divf %34, %35 : vector<8x128xf32>
    %c0_19 = arith.constant 0 : index
    %c0_20 = arith.constant 0 : index
    %37 = vector.load %arg13[%c0_19, %c0_20] : memref<8x128xf32, #tpu.memory_space<vmem>>, vector<8x128xf32>
    %38 = arith.mulf %28, %37 : vector<8x128xf32>
    %39 = arith.mulf %22, %30 : vector<8x128xf32>
    %40 = arith.addf %38, %39 : vector<8x128xf32>
    %41 = math.tanh %40 : vector<8x128xf32>
    %42 = arith.mulf %36, %41 : vector<8x128xf32>
    %c0_21 = arith.constant 0 : index
    %c0_22 = arith.constant 0 : index
    %43 = vector.load %arg13[%c0_21, %c0_22] : memref<8x128xf32, #tpu.memory_space<vmem>>, vector<8x128xf32>
    tpu.vector_store %arg13[%c0_21, %c0_22], %40 {strides = array<i32>} : memref<8x128xf32, #tpu.memory_space<vmem>>, vector<8x128xf32>,
    %c0_23 = arith.constant 0 : index
    %c0_24 = arith.constant 0 : index
    %44 = vector.load %arg12[%c0_23, %c0_24] : memref<8x128xf32, #tpu.memory_space<vmem>>, vector<8x128xf32>
    tpu.vector_store %arg12[%c0_23, %c0_24], %42 {strides = array<i32>} : memref<8x128xf32, #tpu.memory_space<vmem>>, vector<8x128xf32>,
    %45 = arith.index_cast %c0_i32 : i32 to index
    %c0_25 = arith.constant 0 : index
    %c0_26 = arith.constant 0 : index
    %46 = vector.load %arg11[%45, %c0_25, %c0_26] : memref<8x8x128xf32, #tpu.memory_space<vmem>>, vector<1x8x128xf32>
    %47 = vector.shape_cast %46 : vector<1x8x128xf32> to vector<8x128xf32>
    %48 = vector.shape_cast %42 : vector<8x128xf32> to vector<1x8x128xf32>
    tpu.vector_store %arg11[%45, %c0_25, %c0_26], %48 {strides = array<i32>} : memref<8x8x128xf32, #tpu.memory_space<vmem>>, vector<1x8x128xf32>,
    %c1_i32 = arith.constant 1 : i32
    %49 = arith.index_cast %c1_i32 : i32 to index
    %c0_27 = arith.constant 0 : index
    %c0_28 = arith.constant 0 : index
    %50 = vector.load %arg1[%49, %c0_27, %c0_28] : memref<8x8x128xf32, #tpu.memory_space<vmem>>, vector<1x8x128xf32>
    %51 = vector.shape_cast %50 : vector<1x8x128xf32> to vector<8x128xf32>
    %c0_29 = arith.constant 0 : index
    %c0_30 = arith.constant 0 : index
    %52 = vector.load %arg2[%c0_29, %c0_30] : memref<128x512xf32, #tpu.memory_space<vmem>>, vector<128x512xf32>
    %cst_31 = arith.constant dense<0.000000e+00> : vector<8x512xf32>
    %53 = tpu.matmul %51, %52, %cst_31 {dimension_numbers = #tpu.dot_dimension_numbers<[1], [0], [0], [1], [0, 0, 1, 1], [], []>} : vector<8x128xf32>, vector<128x512xf32>, vector<8x512xf32> -> vector<8x512xf32>
    %c0_32 = arith.constant 0 : index
    %c0_33 = arith.constant 0 : index
    %54 = vector.load %arg12[%c0_32, %c0_33] : memref<8x128xf32, #tpu.memory_space<vmem>>, vector<8x128xf32>
    %c0_34 = arith.constant 0 : index
    %c0_35 = arith.constant 0 : index
    %55 = vector.load %arg3[%c0_34, %c0_35] : memref<128x512xf32, #tpu.memory_space<vmem>>, vector<128x512xf32>
    %cst_36 = arith.constant dense<0.000000e+00> : vector<8x512xf32>
    %56 = tpu.matmul %54, %55, %cst_36 {dimension_numbers = #tpu.dot_dimension_numbers<[1], [0], [0], [1], [0, 0, 1, 1], [], []>} : vector<8x128xf32>, vector<128x512xf32>, vector<8x512xf32> -> vector<8x512xf32>
    %57 = arith.addf %53, %56 : vector<8x512xf32>
    %58 = arith.addf %57, %6 : vector<8x512xf32>
    %59 = vector.extract_strided_slice %58 {offsets = [0, 0], sizes = [8, 128], strides = [1, 1]} : vector<8x512xf32> to vector<8x128xf32>
    %60 = arith.negf %59 : vector<8x128xf32>
    %61 = math.exp %60 : vector<8x128xf32>
    %cst_37 = arith.constant 1.000000e+00 : f32
    %62 = vector.broadcast %cst_37 : f32 to vector<8x128xf32>
    %63 = arith.addf %62, %61 : vector<8x128xf32>
    %64 = arith.divf %62, %63 : vector<8x128xf32>
    %65 = vector.extract_strided_slice %58 {offsets = [0, 128], sizes = [8, 128], strides = [1, 1]} : vector<8x512xf32> to vector<8x128xf32>
    %66 = arith.negf %65 : vector<8x128xf32>
    %67 = math.exp %66 : vector<8x128xf32>
    %cst_38 = arith.constant 1.000000e+00 : f32
    %68 = vector.broadcast %cst_38 : f32 to vector<8x128xf32>
    %69 = arith.addf %68, %67 : vector<8x128xf32>
    %70 = arith.divf %68, %69 : vector<8x128xf32>
    %71 = vector.extract_strided_slice %58 {offsets = [0, 256], sizes = [8, 128], strides = [1, 1]} : vector<8x512xf32> to vector<8x128xf32>
    %72 = math.tanh %71 : vector<8x128xf32>
    %73 = vector.extract_strided_slice %58 {offsets = [0, 384], sizes = [8, 128], strides = [1, 1]} : vector<8x512xf32> to vector<8x128xf32>
    %74 = arith.negf %73 : vector<8x128xf32>
    %75 = math.exp %74 : vector<8x128xf32>
    %cst_39 = arith.constant 1.000000e+00 : f32
    %76 = vector.broadcast %cst_39 : f32 to vector<8x128xf32>
    %77 = arith.addf %76, %75 : vector<8x128xf32>
    %78 = arith.divf %76, %77 : vector<8x128xf32>
    %c0_40 = arith.constant 0 : index
    %c0_41 = arith.constant 0 : index
    %79 = vector.load %arg13[%c0_40, %c0_41] : memref<8x128xf32, #tpu.memory_space<vmem>>, vector<8x128xf32>
    %80 = arith.mulf %70, %79 : vector<8x128xf32>
    %81 = arith.mulf %64, %72 : vector<8x128xf32>
    %82 = arith.addf %80, %81 : vector<8x128xf32>
    %83 = math.tanh %82 : vector<8x128xf32>
    %84 = arith.mulf %78, %83 : vector<8x128xf32>
    %c0_42 = arith.constant 0 : index
    %c0_43 = arith.constant 0 : index
    %85 = vector.load %arg13[%c0_42, %c0_43] : memref<8x128xf32, #tpu.memory_space<vmem>>, vector<8x128xf32>
    tpu.vector_store %arg13[%c0_42, %c0_43], %82 {strides = array<i32>} : memref<8x128xf32, #tpu.memory_space<vmem>>, vector<8x128xf32>,
    %c0_44 = arith.constant 0 : index
    %c0_45 = arith.constant 0 : index
    %86 = vector.load %arg12[%c0_44, %c0_45] : memref<8x128xf32, #tpu.memory_space<vmem>>, vector<8x128xf32>
    tpu.vector_store %arg12[%c0_44, %c0_45], %84 {strides = array<i32>} : memref<8x128xf32, #tpu.memory_space<vmem>>, vector<8x128xf32>,
    %87 = arith.index_cast %c1_i32 : i32 to index
    %c0_46 = arith.constant 0 : index
    %c0_47 = arith.constant 0 : index
    %88 = vector.load %arg11[%87, %c0_46, %c0_47] : memref<8x8x128xf32, #tpu.memory_space<vmem>>, vector<1x8x128xf32>
    %89 = vector.shape_cast %88 : vector<1x8x128xf32> to vector<8x128xf32>
    %90 = vector.shape_cast %84 : vector<8x128xf32> to vector<1x8x128xf32>
    tpu.vector_store %arg11[%87, %c0_46, %c0_47], %90 {strides = array<i32>} : memref<8x8x128xf32, #tpu.memory_space<vmem>>, vector<1x8x128xf32>,
    %c2_i32 = arith.constant 2 : i32
    %91 = arith.index_cast %c2_i32 : i32 to index
    %c0_48 = arith.constant 0 : index
    %c0_49 = arith.constant 0 : index
    %92 = vector.load %arg1[%91, %c0_48, %c0_49] : memref<8x8x128xf32, #tpu.memory_space<vmem>>, vector<1x8x128xf32>
    %93 = vector.shape_cast %92 : vector<1x8x128xf32> to vector<8x128xf32>
    %c0_50 = arith.constant 0 : index
    %c0_51 = arith.constant 0 : index
    %94 = vector.load %arg2[%c0_50, %c0_51] : memref<128x512xf32, #tpu.memory_space<vmem>>, vector<128x512xf32>
    %cst_52 = arith.constant dense<0.000000e+00> : vector<8x512xf32>
    %95 = tpu.matmul %93, %94, %cst_52 {dimension_numbers = #tpu.dot_dimension_numbers<[1], [0], [0], [1], [0, 0, 1, 1], [], []>} : vector<8x128xf32>, vector<128x512xf32>, vector<8x512xf32> -> vector<8x512xf32>
    %c0_53 = arith.constant 0 : index
    %c0_54 = arith.constant 0 : index
    %96 = vector.load %arg12[%c0_53, %c0_54] : memref<8x128xf32, #tpu.memory_space<vmem>>, vector<8x128xf32>
    %c0_55 = arith.constant 0 : index
    %c0_56 = arith.constant 0 : index
    %97 = vector.load %arg3[%c0_55, %c0_56] : memref<128x512xf32, #tpu.memory_space<vmem>>, vector<128x512xf32>
    %cst_57 = arith.constant dense<0.000000e+00> : vector<8x512xf32>
    %98 = tpu.matmul %96, %97, %cst_57 {dimension_numbers = #tpu.dot_dimension_numbers<[1], [0], [0], [1], [0, 0, 1, 1], [], []>} : vector<8x128xf32>, vector<128x512xf32>, vector<8x512xf32> -> vector<8x512xf32>
    %99 = arith.addf %95, %98 : vector<8x512xf32>
    %100 = arith.addf %99, %6 : vector<8x512xf32>
    %101 = vector.extract_strided_slice %100 {offsets = [0, 0], sizes = [8, 128], strides = [1, 1]} : vector<8x512xf32> to vector<8x128xf32>
    %102 = arith.negf %101 : vector<8x128xf32>
    %103 = math.exp %102 : vector<8x128xf32>
    %cst_58 = arith.constant 1.000000e+00 : f32
    %104 = vector.broadcast %cst_58 : f32 to vector<8x128xf32>
    %105 = arith.addf %104, %103 : vector<8x128xf32>
    %106 = arith.divf %104, %105 : vector<8x128xf32>
    %107 = vector.extract_strided_slice %100 {offsets = [0, 128], sizes = [8, 128], strides = [1, 1]} : vector<8x512xf32> to vector<8x128xf32>
    %108 = arith.negf %107 : vector<8x128xf32>
    %109 = math.exp %108 : vector<8x128xf32>
    %cst_59 = arith.constant 1.000000e+00 : f32
    %110 = vector.broadcast %cst_59 : f32 to vector<8x128xf32>
    %111 = arith.addf %110, %109 : vector<8x128xf32>
    %112 = arith.divf %110, %111 : vector<8x128xf32>
    %113 = vector.extract_strided_slice %100 {offsets = [0, 256], sizes = [8, 128], strides = [1, 1]} : vector<8x512xf32> to vector<8x128xf32>
    %114 = math.tanh %113 : vector<8x128xf32>
    %115 = vector.extract_strided_slice %100 {offsets = [0, 384], sizes = [8, 128], strides = [1, 1]} : vector<8x512xf32> to vector<8x128xf32>
    %116 = arith.negf %115 : vector<8x128xf32>
    %117 = math.exp %116 : vector<8x128xf32>
    %cst_60 = arith.constant 1.000000e+00 : f32
    %118 = vector.broadcast %cst_60 : f32 to vector<8x128xf32>
    %119 = arith.addf %118, %117 : vector<8x128xf32>
    %120 = arith.divf %118, %119 : vector<8x128xf32>
    %c0_61 = arith.constant 0 : index
    %c0_62 = arith.constant 0 : index
    %121 = vector.load %arg13[%c0_61, %c0_62] : memref<8x128xf32, #tpu.memory_space<vmem>>, vector<8x128xf32>
    %122 = arith.mulf %112, %121 : vector<8x128xf32>
    %123 = arith.mulf %106, %114 : vector<8x128xf32>
    %124 = arith.addf %122, %123 : vector<8x128xf32>
    %125 = math.tanh %124 : vector<8x128xf32>
    %126 = arith.mulf %120, %125 : vector<8x128xf32>
    %c0_63 = arith.constant 0 : index
    %c0_64 = arith.constant 0 : index
    %127 = vector.load %arg13[%c0_63, %c0_64] : memref<8x128xf32, #tpu.memory_space<vmem>>, vector<8x128xf32>
    tpu.vector_store %arg13[%c0_63, %c0_64], %124 {strides = array<i32>} : memref<8x128xf32, #tpu.memory_space<vmem>>, vector<8x128xf32>,
    %c0_65 = arith.constant 0 : index
    %c0_66 = arith.constant 0 : index
    %128 = vector.load %arg12[%c0_65, %c0_66] : memref<8x128xf32, #tpu.memory_space<vmem>>, vector<8x128xf32>
    tpu.vector_store %arg12[%c0_65, %c0_66], %126 {strides = array<i32>} : memref<8x128xf32, #tpu.memory_space<vmem>>, vector<8x128xf32>,
    %129 = arith.index_cast %c2_i32 : i32 to index
    %c0_67 = arith.constant 0 : index
    %c0_68 = arith.constant 0 : index
    %130 = vector.load %arg11[%129, %c0_67, %c0_68] : memref<8x8x128xf32, #tpu.memory_space<vmem>>, vector<1x8x128xf32>
    %131 = vector.shape_cast %130 : vector<1x8x128xf32> to vector<8x128xf32>
    %132 = vector.shape_cast %126 : vector<8x128xf32> to vector<1x8x128xf32>
    tpu.vector_store %arg11[%129, %c0_67, %c0_68], %132 {strides = array<i32>} : memref<8x8x128xf32, #tpu.memory_space<vmem>>, vector<1x8x128xf32>,
    %c3_i32 = arith.constant 3 : i32
    %133 = arith.index_cast %c3_i32 : i32 to index
    %c0_69 = arith.constant 0 : index
    %c0_70 = arith.constant 0 : index
    %134 = vector.load %arg1[%133, %c0_69, %c0_70] : memref<8x8x128xf32, #tpu.memory_space<vmem>>, vector<1x8x128xf32>
    %135 = vector.shape_cast %134 : vector<1x8x128xf32> to vector<8x128xf32>
    %c0_71 = arith.constant 0 : index
    %c0_72 = arith.constant 0 : index
    %136 = vector.load %arg2[%c0_71, %c0_72] : memref<128x512xf32, #tpu.memory_space<vmem>>, vector<128x512xf32>
    %cst_73 = arith.constant dense<0.000000e+00> : vector<8x512xf32>
    %137 = tpu.matmul %135, %136, %cst_73 {dimension_numbers = #tpu.dot_dimension_numbers<[1], [0], [0], [1], [0, 0, 1, 1], [], []>} : vector<8x128xf32>, vector<128x512xf32>, vector<8x512xf32> -> vector<8x512xf32>
    %c0_74 = arith.constant 0 : index
    %c0_75 = arith.constant 0 : index
    %138 = vector.load %arg12[%c0_74, %c0_75] : memref<8x128xf32, #tpu.memory_space<vmem>>, vector<8x128xf32>
    %c0_76 = arith.constant 0 : index
    %c0_77 = arith.constant 0 : index
    %139 = vector.load %arg3[%c0_76, %c0_77] : memref<128x512xf32, #tpu.memory_space<vmem>>, vector<128x512xf32>
    %cst_78 = arith.constant dense<0.000000e+00> : vector<8x512xf32>
    %140 = tpu.matmul %138, %139, %cst_78 {dimension_numbers = #tpu.dot_dimension_numbers<[1], [0], [0], [1], [0, 0, 1, 1], [], []>} : vector<8x128xf32>, vector<128x512xf32>, vector<8x512xf32> -> vector<8x512xf32>
    %141 = arith.addf %137, %140 : vector<8x512xf32>
    %142 = arith.addf %141, %6 : vector<8x512xf32>
    %143 = vector.extract_strided_slice %142 {offsets = [0, 0], sizes = [8, 128], strides = [1, 1]} : vector<8x512xf32> to vector<8x128xf32>
    %144 = arith.negf %143 : vector<8x128xf32>
    %145 = math.exp %144 : vector<8x128xf32>
    %cst_79 = arith.constant 1.000000e+00 : f32
    %146 = vector.broadcast %cst_79 : f32 to vector<8x128xf32>
    %147 = arith.addf %146, %145 : vector<8x128xf32>
    %148 = arith.divf %146, %147 : vector<8x128xf32>
    %149 = vector.extract_strided_slice %142 {offsets = [0, 128], sizes = [8, 128], strides = [1, 1]} : vector<8x512xf32> to vector<8x128xf32>
    %150 = arith.negf %149 : vector<8x128xf32>
    %151 = math.exp %150 : vector<8x128xf32>
    %cst_80 = arith.constant 1.000000e+00 : f32
    %152 = vector.broadcast %cst_80 : f32 to vector<8x128xf32>
    %153 = arith.addf %152, %151 : vector<8x128xf32>
    %154 = arith.divf %152, %153 : vector<8x128xf32>
    %155 = vector.extract_strided_slice %142 {offsets = [0, 256], sizes = [8, 128], strides = [1, 1]} : vector<8x512xf32> to vector<8x128xf32>
    %156 = math.tanh %155 : vector<8x128xf32>
    %157 = vector.extract_strided_slice %142 {offsets = [0, 384], sizes = [8, 128], strides = [1, 1]} : vector<8x512xf32> to vector<8x128xf32>
    %158 = arith.negf %157 : vector<8x128xf32>
    %159 = math.exp %158 : vector<8x128xf32>
    %cst_81 = arith.constant 1.000000e+00 : f32
    %160 = vector.broadcast %cst_81 : f32 to vector<8x128xf32>
    %161 = arith.addf %160, %159 : vector<8x128xf32>
    %162 = arith.divf %160, %161 : vector<8x128xf32>
    %c0_82 = arith.constant 0 : index
    %c0_83 = arith.constant 0 : index
    %163 = vector.load %arg13[%c0_82, %c0_83] : memref<8x128xf32, #tpu.memory_space<vmem>>, vector<8x128xf32>
    %164 = arith.mulf %154, %163 : vector<8x128xf32>
    %165 = arith.mulf %148, %156 : vector<8x128xf32>
    %166 = arith.addf %164, %165 : vector<8x128xf32>
    %167 = math.tanh %166 : vector<8x128xf32>
    %168 = arith.mulf %162, %167 : vector<8x128xf32>
    %c0_84 = arith.constant 0 : index
    %c0_85 = arith.constant 0 : index
    %169 = vector.load %arg13[%c0_84, %c0_85] : memref<8x128xf32, #tpu.memory_space<vmem>>, vector<8x128xf32>
    tpu.vector_store %arg13[%c0_84, %c0_85], %166 {strides = array<i32>} : memref<8x128xf32, #tpu.memory_space<vmem>>, vector<8x128xf32>,
    %c0_86 = arith.constant 0 : index
    %c0_87 = arith.constant 0 : index
    %170 = vector.load %arg12[%c0_86, %c0_87] : memref<8x128xf32, #tpu.memory_space<vmem>>, vector<8x128xf32>
    tpu.vector_store %arg12[%c0_86, %c0_87], %168 {strides = array<i32>} : memref<8x128xf32, #tpu.memory_space<vmem>>, vector<8x128xf32>,
    %171 = arith.index_cast %c3_i32 : i32 to index
    %c0_88 = arith.constant 0 : index
    %c0_89 = arith.constant 0 : index
    %172 = vector.load %arg11[%171, %c0_88, %c0_89] : memref<8x8x128xf32, #tpu.memory_space<vmem>>, vector<1x8x128xf32>
    %173 = vector.shape_cast %172 : vector<1x8x128xf32> to vector<8x128xf32>
    %174 = vector.shape_cast %168 : vector<8x128xf32> to vector<1x8x128xf32>
    tpu.vector_store %arg11[%171, %c0_88, %c0_89], %174 {strides = array<i32>} : memref<8x8x128xf32, #tpu.memory_space<vmem>>, vector<1x8x128xf32>,
    %c4_i32 = arith.constant 4 : i32
    %175 = arith.index_cast %c4_i32 : i32 to index
    %c0_90 = arith.constant 0 : index
    %c0_91 = arith.constant 0 : index
    %176 = vector.load %arg1[%175, %c0_90, %c0_91] : memref<8x8x128xf32, #tpu.memory_space<vmem>>, vector<1x8x128xf32>
    %177 = vector.shape_cast %176 : vector<1x8x128xf32> to vector<8x128xf32>
    %c0_92 = arith.constant 0 : index
    %c0_93 = arith.constant 0 : index
    %178 = vector.load %arg2[%c0_92, %c0_93] : memref<128x512xf32, #tpu.memory_space<vmem>>, vector<128x512xf32>
    %cst_94 = arith.constant dense<0.000000e+00> : vector<8x512xf32>
    %179 = tpu.matmul %177, %178, %cst_94 {dimension_numbers = #tpu.dot_dimension_numbers<[1], [0], [0], [1], [0, 0, 1, 1], [], []>} : vector<8x128xf32>, vector<128x512xf32>, vector<8x512xf32> -> vector<8x512xf32>
    %c0_95 = arith.constant 0 : index
    %c0_96 = arith.constant 0 : index
    %180 = vector.load %arg12[%c0_95, %c0_96] : memref<8x128xf32, #tpu.memory_space<vmem>>, vector<8x128xf32>
    %c0_97 = arith.constant 0 : index
    %c0_98 = arith.constant 0 : index
    %181 = vector.load %arg3[%c0_97, %c0_98] : memref<128x512xf32, #tpu.memory_space<vmem>>, vector<128x512xf32>
    %cst_99 = arith.constant dense<0.000000e+00> : vector<8x512xf32>
    %182 = tpu.matmul %180, %181, %cst_99 {dimension_numbers = #tpu.dot_dimension_numbers<[1], [0], [0], [1], [0, 0, 1, 1], [], []>} : vector<8x128xf32>, vector<128x512xf32>, vector<8x512xf32> -> vector<8x512xf32>
    %183 = arith.addf %179, %182 : vector<8x512xf32>
    %184 = arith.addf %183, %6 : vector<8x512xf32>
    %185 = vector.extract_strided_slice %184 {offsets = [0, 0], sizes = [8, 128], strides = [1, 1]} : vector<8x512xf32> to vector<8x128xf32>
    %186 = arith.negf %185 : vector<8x128xf32>
    %187 = math.exp %186 : vector<8x128xf32>
    %cst_100 = arith.constant 1.000000e+00 : f32
    %188 = vector.broadcast %cst_100 : f32 to vector<8x128xf32>
    %189 = arith.addf %188, %187 : vector<8x128xf32>
    %190 = arith.divf %188, %189 : vector<8x128xf32>
    %191 = vector.extract_strided_slice %184 {offsets = [0, 128], sizes = [8, 128], strides = [1, 1]} : vector<8x512xf32> to vector<8x128xf32>
    %192 = arith.negf %191 : vector<8x128xf32>
    %193 = math.exp %192 : vector<8x128xf32>
    %cst_101 = arith.constant 1.000000e+00 : f32
    %194 = vector.broadcast %cst_101 : f32 to vector<8x128xf32>
    %195 = arith.addf %194, %193 : vector<8x128xf32>
    %196 = arith.divf %194, %195 : vector<8x128xf32>
    %197 = vector.extract_strided_slice %184 {offsets = [0, 256], sizes = [8, 128], strides = [1, 1]} : vector<8x512xf32> to vector<8x128xf32>
    %198 = math.tanh %197 : vector<8x128xf32>
    %199 = vector.extract_strided_slice %184 {offsets = [0, 384], sizes = [8, 128], strides = [1, 1]} : vector<8x512xf32> to vector<8x128xf32>
    %200 = arith.negf %199 : vector<8x128xf32>
    %201 = math.exp %200 : vector<8x128xf32>
    %cst_102 = arith.constant 1.000000e+00 : f32
    %202 = vector.broadcast %cst_102 : f32 to vector<8x128xf32>
    %203 = arith.addf %202, %201 : vector<8x128xf32>
    %204 = arith.divf %202, %203 : vector<8x128xf32>
    %c0_103 = arith.constant 0 : index
    %c0_104 = arith.constant 0 : index
    %205 = vector.load %arg13[%c0_103, %c0_104] : memref<8x128xf32, #tpu.memory_space<vmem>>, vector<8x128xf32>
    %206 = arith.mulf %196, %205 : vector<8x128xf32>
    %207 = arith.mulf %190, %198 : vector<8x128xf32>
    %208 = arith.addf %206, %207 : vector<8x128xf32>
    %209 = math.tanh %208 : vector<8x128xf32>
    %210 = arith.mulf %204, %209 : vector<8x128xf32>
    %c0_105 = arith.constant 0 : index
    %c0_106 = arith.constant 0 : index
    %211 = vector.load %arg13[%c0_105, %c0_106] : memref<8x128xf32, #tpu.memory_space<vmem>>, vector<8x128xf32>
    tpu.vector_store %arg13[%c0_105, %c0_106], %208 {strides = array<i32>} : memref<8x128xf32, #tpu.memory_space<vmem>>, vector<8x128xf32>,
    %c0_107 = arith.constant 0 : index
    %c0_108 = arith.constant 0 : index
    %212 = vector.load %arg12[%c0_107, %c0_108] : memref<8x128xf32, #tpu.memory_space<vmem>>, vector<8x128xf32>
    tpu.vector_store %arg12[%c0_107, %c0_108], %210 {strides = array<i32>} : memref<8x128xf32, #tpu.memory_space<vmem>>, vector<8x128xf32>,
    %213 = arith.index_cast %c4_i32 : i32 to index
    %c0_109 = arith.constant 0 : index
    %c0_110 = arith.constant 0 : index
    %214 = vector.load %arg11[%213, %c0_109, %c0_110] : memref<8x8x128xf32, #tpu.memory_space<vmem>>, vector<1x8x128xf32>
    %215 = vector.shape_cast %214 : vector<1x8x128xf32> to vector<8x128xf32>
    %216 = vector.shape_cast %210 : vector<8x128xf32> to vector<1x8x128xf32>
    tpu.vector_store %arg11[%213, %c0_109, %c0_110], %216 {strides = array<i32>} : memref<8x8x128xf32, #tpu.memory_space<vmem>>, vector<1x8x128xf32>,
    %c5_i32 = arith.constant 5 : i32
    %217 = arith.index_cast %c5_i32 : i32 to index
    %c0_111 = arith.constant 0 : index
    %c0_112 = arith.constant 0 : index
    %218 = vector.load %arg1[%217, %c0_111, %c0_112] : memref<8x8x128xf32, #tpu.memory_space<vmem>>, vector<1x8x128xf32>
    %219 = vector.shape_cast %218 : vector<1x8x128xf32> to vector<8x128xf32>
    %c0_113 = arith.constant 0 : index
    %c0_114 = arith.constant 0 : index
    %220 = vector.load %arg2[%c0_113, %c0_114] : memref<128x512xf32, #tpu.memory_space<vmem>>, vector<128x512xf32>
    %cst_115 = arith.constant dense<0.000000e+00> : vector<8x512xf32>
    %221 = tpu.matmul %219, %220, %cst_115 {dimension_numbers = #tpu.dot_dimension_numbers<[1], [0], [0], [1], [0, 0, 1, 1], [], []>} : vector<8x128xf32>, vector<128x512xf32>, vector<8x512xf32> -> vector<8x512xf32>
    %c0_116 = arith.constant 0 : index
    %c0_117 = arith.constant 0 : index
    %222 = vector.load %arg12[%c0_116, %c0_117] : memref<8x128xf32, #tpu.memory_space<vmem>>, vector<8x128xf32>
    %c0_118 = arith.constant 0 : index
    %c0_119 = arith.constant 0 : index
    %223 = vector.load %arg3[%c0_118, %c0_119] : memref<128x512xf32, #tpu.memory_space<vmem>>, vector<128x512xf32>
    %cst_120 = arith.constant dense<0.000000e+00> : vector<8x512xf32>
    %224 = tpu.matmul %222, %223, %cst_120 {dimension_numbers = #tpu.dot_dimension_numbers<[1], [0], [0], [1], [0, 0, 1, 1], [], []>} : vector<8x128xf32>, vector<128x512xf32>, vector<8x512xf32> -> vector<8x512xf32>
    %225 = arith.addf %221, %224 : vector<8x512xf32>
    %226 = arith.addf %225, %6 : vector<8x512xf32>
    %227 = vector.extract_strided_slice %226 {offsets = [0, 0], sizes = [8, 128], strides = [1, 1]} : vector<8x512xf32> to vector<8x128xf32>
    %228 = arith.negf %227 : vector<8x128xf32>
    %229 = math.exp %228 : vector<8x128xf32>
    %cst_121 = arith.constant 1.000000e+00 : f32
    %230 = vector.broadcast %cst_121 : f32 to vector<8x128xf32>
    %231 = arith.addf %230, %229 : vector<8x128xf32>
    %232 = arith.divf %230, %231 : vector<8x128xf32>
    %233 = vector.extract_strided_slice %226 {offsets = [0, 128], sizes = [8, 128], strides = [1, 1]} : vector<8x512xf32> to vector<8x128xf32>
    %234 = arith.negf %233 : vector<8x128xf32>
    %235 = math.exp %234 : vector<8x128xf32>
    %cst_122 = arith.constant 1.000000e+00 : f32
    %236 = vector.broadcast %cst_122 : f32 to vector<8x128xf32>
    %237 = arith.addf %236, %235 : vector<8x128xf32>
    %238 = arith.divf %236, %237 : vector<8x128xf32>
    %239 = vector.extract_strided_slice %226 {offsets = [0, 256], sizes = [8, 128], strides = [1, 1]} : vector<8x512xf32> to vector<8x128xf32>
    %240 = math.tanh %239 : vector<8x128xf32>
    %241 = vector.extract_strided_slice %226 {offsets = [0, 384], sizes = [8, 128], strides = [1, 1]} : vector<8x512xf32> to vector<8x128xf32>
    %242 = arith.negf %241 : vector<8x128xf32>
    %243 = math.exp %242 : vector<8x128xf32>
    %cst_123 = arith.constant 1.000000e+00 : f32
    %244 = vector.broadcast %cst_123 : f32 to vector<8x128xf32>
    %245 = arith.addf %244, %243 : vector<8x128xf32>
    %246 = arith.divf %244, %245 : vector<8x128xf32>
    %c0_124 = arith.constant 0 : index
    %c0_125 = arith.constant 0 : index
    %247 = vector.load %arg13[%c0_124, %c0_125] : memref<8x128xf32, #tpu.memory_space<vmem>>, vector<8x128xf32>
    %248 = arith.mulf %238, %247 : vector<8x128xf32>
    %249 = arith.mulf %232, %240 : vector<8x128xf32>
    %250 = arith.addf %248, %249 : vector<8x128xf32>
    %251 = math.tanh %250 : vector<8x128xf32>
    %252 = arith.mulf %246, %251 : vector<8x128xf32>
    %c0_126 = arith.constant 0 : index
    %c0_127 = arith.constant 0 : index
    %253 = vector.load %arg13[%c0_126, %c0_127] : memref<8x128xf32, #tpu.memory_space<vmem>>, vector<8x128xf32>
    tpu.vector_store %arg13[%c0_126, %c0_127], %250 {strides = array<i32>} : memref<8x128xf32, #tpu.memory_space<vmem>>, vector<8x128xf32>,
    %c0_128 = arith.constant 0 : index
    %c0_129 = arith.constant 0 : index
    %254 = vector.load %arg12[%c0_128, %c0_129] : memref<8x128xf32, #tpu.memory_space<vmem>>, vector<8x128xf32>
    tpu.vector_store %arg12[%c0_128, %c0_129], %252 {strides = array<i32>} : memref<8x128xf32, #tpu.memory_space<vmem>>, vector<8x128xf32>,
    %255 = arith.index_cast %c5_i32 : i32 to index
    %c0_130 = arith.constant 0 : index
    %c0_131 = arith.constant 0 : index
    %256 = vector.load %arg11[%255, %c0_130, %c0_131] : memref<8x8x128xf32, #tpu.memory_space<vmem>>, vector<1x8x128xf32>
    %257 = vector.shape_cast %256 : vector<1x8x128xf32> to vector<8x128xf32>
    %258 = vector.shape_cast %252 : vector<8x128xf32> to vector<1x8x128xf32>
    tpu.vector_store %arg11[%255, %c0_130, %c0_131], %258 {strides = array<i32>} : memref<8x8x128xf32, #tpu.memory_space<vmem>>, vector<1x8x128xf32>,
    %c6_i32 = arith.constant 6 : i32
    %259 = arith.index_cast %c6_i32 : i32 to index
    %c0_132 = arith.constant 0 : index
    %c0_133 = arith.constant 0 : index
    %260 = vector.load %arg1[%259, %c0_132, %c0_133] : memref<8x8x128xf32, #tpu.memory_space<vmem>>, vector<1x8x128xf32>
    %261 = vector.shape_cast %260 : vector<1x8x128xf32> to vector<8x128xf32>
    %c0_134 = arith.constant 0 : index
    %c0_135 = arith.constant 0 : index
    %262 = vector.load %arg2[%c0_134, %c0_135] : memref<128x512xf32, #tpu.memory_space<vmem>>, vector<128x512xf32>
    %cst_136 = arith.constant dense<0.000000e+00> : vector<8x512xf32>
    %263 = tpu.matmul %261, %262, %cst_136 {dimension_numbers = #tpu.dot_dimension_numbers<[1], [0], [0], [1], [0, 0, 1, 1], [], []>} : vector<8x128xf32>, vector<128x512xf32>, vector<8x512xf32> -> vector<8x512xf32>
    %c0_137 = arith.constant 0 : index
    %c0_138 = arith.constant 0 : index
    %264 = vector.load %arg12[%c0_137, %c0_138] : memref<8x128xf32, #tpu.memory_space<vmem>>, vector<8x128xf32>
    %c0_139 = arith.constant 0 : index
    %c0_140 = arith.constant 0 : index
    %265 = vector.load %arg3[%c0_139, %c0_140] : memref<128x512xf32, #tpu.memory_space<vmem>>, vector<128x512xf32>
    %cst_141 = arith.constant dense<0.000000e+00> : vector<8x512xf32>
    %266 = tpu.matmul %264, %265, %cst_141 {dimension_numbers = #tpu.dot_dimension_numbers<[1], [0], [0], [1], [0, 0, 1, 1], [], []>} : vector<8x128xf32>, vector<128x512xf32>, vector<8x512xf32> -> vector<8x512xf32>
    %267 = arith.addf %263, %266 : vector<8x512xf32>
    %268 = arith.addf %267, %6 : vector<8x512xf32>
    %269 = vector.extract_strided_slice %268 {offsets = [0, 0], sizes = [8, 128], strides = [1, 1]} : vector<8x512xf32> to vector<8x128xf32>
    %270 = arith.negf %269 : vector<8x128xf32>
    %271 = math.exp %270 : vector<8x128xf32>
    %cst_142 = arith.constant 1.000000e+00 : f32
    %272 = vector.broadcast %cst_142 : f32 to vector<8x128xf32>
    %273 = arith.addf %272, %271 : vector<8x128xf32>
    %274 = arith.divf %272, %273 : vector<8x128xf32>
    %275 = vector.extract_strided_slice %268 {offsets = [0, 128], sizes = [8, 128], strides = [1, 1]} : vector<8x512xf32> to vector<8x128xf32>
    %276 = arith.negf %275 : vector<8x128xf32>
    %277 = math.exp %276 : vector<8x128xf32>
    %cst_143 = arith.constant 1.000000e+00 : f32
    %278 = vector.broadcast %cst_143 : f32 to vector<8x128xf32>
    %279 = arith.addf %278, %277 : vector<8x128xf32>
    %280 = arith.divf %278, %279 : vector<8x128xf32>
    %281 = vector.extract_strided_slice %268 {offsets = [0, 256], sizes = [8, 128], strides = [1, 1]} : vector<8x512xf32> to vector<8x128xf32>
    %282 = math.tanh %281 : vector<8x128xf32>
    %283 = vector.extract_strided_slice %268 {offsets = [0, 384], sizes = [8, 128], strides = [1, 1]} : vector<8x512xf32> to vector<8x128xf32>
    %284 = arith.negf %283 : vector<8x128xf32>
    %285 = math.exp %284 : vector<8x128xf32>
    %cst_144 = arith.constant 1.000000e+00 : f32
    %286 = vector.broadcast %cst_144 : f32 to vector<8x128xf32>
    %287 = arith.addf %286, %285 : vector<8x128xf32>
    %288 = arith.divf %286, %287 : vector<8x128xf32>
    %c0_145 = arith.constant 0 : index
    %c0_146 = arith.constant 0 : index
    %289 = vector.load %arg13[%c0_145, %c0_146] : memref<8x128xf32, #tpu.memory_space<vmem>>, vector<8x128xf32>
    %290 = arith.mulf %280, %289 : vector<8x128xf32>
    %291 = arith.mulf %274, %282 : vector<8x128xf32>
    %292 = arith.addf %290, %291 : vector<8x128xf32>
    %293 = math.tanh %292 : vector<8x128xf32>
    %294 = arith.mulf %288, %293 : vector<8x128xf32>
    %c0_147 = arith.constant 0 : index
    %c0_148 = arith.constant 0 : index
    %295 = vector.load %arg13[%c0_147, %c0_148] : memref<8x128xf32, #tpu.memory_space<vmem>>, vector<8x128xf32>
    tpu.vector_store %arg13[%c0_147, %c0_148], %292 {strides = array<i32>} : memref<8x128xf32, #tpu.memory_space<vmem>>, vector<8x128xf32>,
    %c0_149 = arith.constant 0 : index
    %c0_150 = arith.constant 0 : index
    %296 = vector.load %arg12[%c0_149, %c0_150] : memref<8x128xf32, #tpu.memory_space<vmem>>, vector<8x128xf32>
    tpu.vector_store %arg12[%c0_149, %c0_150], %294 {strides = array<i32>} : memref<8x128xf32, #tpu.memory_space<vmem>>, vector<8x128xf32>,
    %297 = arith.index_cast %c6_i32 : i32 to index
    %c0_151 = arith.constant 0 : index
    %c0_152 = arith.constant 0 : index
    %298 = vector.load %arg11[%297, %c0_151, %c0_152] : memref<8x8x128xf32, #tpu.memory_space<vmem>>, vector<1x8x128xf32>
    %299 = vector.shape_cast %298 : vector<1x8x128xf32> to vector<8x128xf32>
    %300 = vector.shape_cast %294 : vector<8x128xf32> to vector<1x8x128xf32>
    tpu.vector_store %arg11[%297, %c0_151, %c0_152], %300 {strides = array<i32>} : memref<8x8x128xf32, #tpu.memory_space<vmem>>, vector<1x8x128xf32>,
    %c7_i32 = arith.constant 7 : i32
    %301 = arith.index_cast %c7_i32 : i32 to index
    %c0_153 = arith.constant 0 : index
    %c0_154 = arith.constant 0 : index
    %302 = vector.load %arg1[%301, %c0_153, %c0_154] : memref<8x8x128xf32, #tpu.memory_space<vmem>>, vector<1x8x128xf32>
    %303 = vector.shape_cast %302 : vector<1x8x128xf32> to vector<8x128xf32>
    %c0_155 = arith.constant 0 : index
    %c0_156 = arith.constant 0 : index
    %304 = vector.load %arg2[%c0_155, %c0_156] : memref<128x512xf32, #tpu.memory_space<vmem>>, vector<128x512xf32>
    %cst_157 = arith.constant dense<0.000000e+00> : vector<8x512xf32>
    %305 = tpu.matmul %303, %304, %cst_157 {dimension_numbers = #tpu.dot_dimension_numbers<[1], [0], [0], [1], [0, 0, 1, 1], [], []>} : vector<8x128xf32>, vector<128x512xf32>, vector<8x512xf32> -> vector<8x512xf32>
    %c0_158 = arith.constant 0 : index
    %c0_159 = arith.constant 0 : index
    %306 = vector.load %arg12[%c0_158, %c0_159] : memref<8x128xf32, #tpu.memory_space<vmem>>, vector<8x128xf32>
    %c0_160 = arith.constant 0 : index
    %c0_161 = arith.constant 0 : index
    %307 = vector.load %arg3[%c0_160, %c0_161] : memref<128x512xf32, #tpu.memory_space<vmem>>, vector<128x512xf32>
    %cst_162 = arith.constant dense<0.000000e+00> : vector<8x512xf32>
    %308 = tpu.matmul %306, %307, %cst_162 {dimension_numbers = #tpu.dot_dimension_numbers<[1], [0], [0], [1], [0, 0, 1, 1], [], []>} : vector<8x128xf32>, vector<128x512xf32>, vector<8x512xf32> -> vector<8x512xf32>
    %309 = arith.addf %305, %308 : vector<8x512xf32>
    %310 = arith.addf %309, %6 : vector<8x512xf32>
    %311 = vector.extract_strided_slice %310 {offsets = [0, 0], sizes = [8, 128], strides = [1, 1]} : vector<8x512xf32> to vector<8x128xf32>
    %312 = arith.negf %311 : vector<8x128xf32>
    %313 = math.exp %312 : vector<8x128xf32>
    %cst_163 = arith.constant 1.000000e+00 : f32
    %314 = vector.broadcast %cst_163 : f32 to vector<8x128xf32>
    %315 = arith.addf %314, %313 : vector<8x128xf32>
    %316 = arith.divf %314, %315 : vector<8x128xf32>
    %317 = vector.extract_strided_slice %310 {offsets = [0, 128], sizes = [8, 128], strides = [1, 1]} : vector<8x512xf32> to vector<8x128xf32>
    %318 = arith.negf %317 : vector<8x128xf32>
    %319 = math.exp %318 : vector<8x128xf32>
    %cst_164 = arith.constant 1.000000e+00 : f32
    %320 = vector.broadcast %cst_164 : f32 to vector<8x128xf32>
    %321 = arith.addf %320, %319 : vector<8x128xf32>
    %322 = arith.divf %320, %321 : vector<8x128xf32>
    %323 = vector.extract_strided_slice %310 {offsets = [0, 256], sizes = [8, 128], strides = [1, 1]} : vector<8x512xf32> to vector<8x128xf32>
    %324 = math.tanh %323 : vector<8x128xf32>
    %325 = vector.extract_strided_slice %310 {offsets = [0, 384], sizes = [8, 128], strides = [1, 1]} : vector<8x512xf32> to vector<8x128xf32>
    %326 = arith.negf %325 : vector<8x128xf32>
    %327 = math.exp %326 : vector<8x128xf32>
    %cst_165 = arith.constant 1.000000e+00 : f32
    %328 = vector.broadcast %cst_165 : f32 to vector<8x128xf32>
    %329 = arith.addf %328, %327 : vector<8x128xf32>
    %330 = arith.divf %328, %329 : vector<8x128xf32>
    %c0_166 = arith.constant 0 : index
    %c0_167 = arith.constant 0 : index
    %331 = vector.load %arg13[%c0_166, %c0_167] : memref<8x128xf32, #tpu.memory_space<vmem>>, vector<8x128xf32>
    %332 = arith.mulf %322, %331 : vector<8x128xf32>
    %333 = arith.mulf %316, %324 : vector<8x128xf32>
    %334 = arith.addf %332, %333 : vector<8x128xf32>
    %335 = math.tanh %334 : vector<8x128xf32>
    %336 = arith.mulf %330, %335 : vector<8x128xf32>
    %c0_168 = arith.constant 0 : index
    %c0_169 = arith.constant 0 : index
    %337 = vector.load %arg13[%c0_168, %c0_169] : memref<8x128xf32, #tpu.memory_space<vmem>>, vector<8x128xf32>
    tpu.vector_store %arg13[%c0_168, %c0_169], %334 {strides = array<i32>} : memref<8x128xf32, #tpu.memory_space<vmem>>, vector<8x128xf32>,
    %c0_170 = arith.constant 0 : index
    %c0_171 = arith.constant 0 : index
    %338 = vector.load %arg12[%c0_170, %c0_171] : memref<8x128xf32, #tpu.memory_space<vmem>>, vector<8x128xf32>
    tpu.vector_store %arg12[%c0_170, %c0_171], %336 {strides = array<i32>} : memref<8x128xf32, #tpu.memory_space<vmem>>, vector<8x128xf32>,
    %339 = arith.index_cast %c7_i32 : i32 to index
    %c0_172 = arith.constant 0 : index
    %c0_173 = arith.constant 0 : index
    %340 = vector.load %arg11[%339, %c0_172, %c0_173] : memref<8x8x128xf32, #tpu.memory_space<vmem>>, vector<1x8x128xf32>
    %341 = vector.shape_cast %340 : vector<1x8x128xf32> to vector<8x128xf32>
    %342 = vector.shape_cast %336 : vector<8x128xf32> to vector<1x8x128xf32>
    tpu.vector_store %arg11[%339, %c0_172, %c0_173], %342 {strides = array<i32>} : memref<8x8x128xf32, #tpu.memory_space<vmem>>, vector<1x8x128xf32>,
    %c8_i32 = arith.constant 8 : i32
    %cst_174 = arith.constant 0.000000e+00 : f32
    %343 = vector.broadcast %cst_174 : f32 to vector<8x128xf32>
    %c0_175 = arith.constant 0 : index
    %c0_176 = arith.constant 0 : index
    %344 = vector.load %arg12[%c0_175, %c0_176] : memref<8x128xf32, #tpu.memory_space<vmem>>, vector<8x128xf32>
    tpu.vector_store %arg12[%c0_175, %c0_176], %343 {strides = array<i32>} : memref<8x128xf32, #tpu.memory_space<vmem>>, vector<8x128xf32>,
    %cst_177 = arith.constant 0.000000e+00 : f32
    %345 = vector.broadcast %cst_177 : f32 to vector<8x128xf32>
    %c0_178 = arith.constant 0 : index
    %c0_179 = arith.constant 0 : index
    %346 = vector.load %arg13[%c0_178, %c0_179] : memref<8x128xf32, #tpu.memory_space<vmem>>, vector<8x128xf32>
    tpu.vector_store %arg13[%c0_178, %c0_179], %345 {strides = array<i32>} : memref<8x128xf32, #tpu.memory_space<vmem>>, vector<8x128xf32>,
    %c0_180 = arith.constant 0 : index
    %c0_181 = arith.constant 0 : index
    %347 = vector.load %arg7[%c0_180, %c0_181] : memref<1x512xf32, #tpu.memory_space<vmem>>, vector<1x512xf32>
    %348 = vector.shape_cast %347 : vector<1x512xf32> to vector<1x512xf32>
    %349 = vector.broadcast %348 : vector<1x512xf32> to vector<8x512xf32>
    %c0_i32_182 = arith.constant 0 : i32
    %350 = arith.index_cast %c0_i32_182 : i32 to index
    %c0_183 = arith.constant 0 : index
    %c0_184 = arith.constant 0 : index
    %351 = vector.load %arg11[%350, %c0_183, %c0_184] : memref<8x8x128xf32, #tpu.memory_space<vmem>>, vector<1x8x128xf32>
    %352 = vector.shape_cast %351 : vector<1x8x128xf32> to vector<8x128xf32>
    %c0_185 = arith.constant 0 : index
    %c0_186 = arith.constant 0 : index
    %353 = vector.load %arg5[%c0_185, %c0_186] : memref<128x512xf32, #tpu.memory_space<vmem>>, vector<128x512xf32>
    %cst_187 = arith.constant dense<0.000000e+00> : vector<8x512xf32>
    %354 = tpu.matmul %352, %353, %cst_187 {dimension_numbers = #tpu.dot_dimension_numbers<[1], [0], [0], [1], [0, 0, 1, 1], [], []>} : vector<8x128xf32>, vector<128x512xf32>, vector<8x512xf32> -> vector<8x512xf32>
    %c0_188 = arith.constant 0 : index
    %c0_189 = arith.constant 0 : index
    %355 = vector.load %arg12[%c0_188, %c0_189] : memref<8x128xf32, #tpu.memory_space<vmem>>, vector<8x128xf32>
    %c0_190 = arith.constant 0 : index
    %c0_191 = arith.constant 0 : index
    %356 = vector.load %arg6[%c0_190, %c0_191] : memref<128x512xf32, #tpu.memory_space<vmem>>, vector<128x512xf32>
    %cst_192 = arith.constant dense<0.000000e+00> : vector<8x512xf32>
    %357 = tpu.matmul %355, %356, %cst_192 {dimension_numbers = #tpu.dot_dimension_numbers<[1], [0], [0], [1], [0, 0, 1, 1], [], []>} : vector<8x128xf32>, vector<128x512xf32>, vector<8x512xf32> -> vector<8x512xf32>
    %358 = arith.addf %354, %357 : vector<8x512xf32>
    %359 = arith.addf %358, %349 : vector<8x512xf32>
    %360 = vector.extract_strided_slice %359 {offsets = [0, 0], sizes = [8, 128], strides = [1, 1]} : vector<8x512xf32> to vector<8x128xf32>
    %361 = arith.negf %360 : vector<8x128xf32>
    %362 = math.exp %361 : vector<8x128xf32>
    %cst_193 = arith.constant 1.000000e+00 : f32
    %363 = vector.broadcast %cst_193 : f32 to vector<8x128xf32>
    %364 = arith.addf %363, %362 : vector<8x128xf32>
    %365 = arith.divf %363, %364 : vector<8x128xf32>
    %366 = vector.extract_strided_slice %359 {offsets = [0, 128], sizes = [8, 128], strides = [1, 1]} : vector<8x512xf32> to vector<8x128xf32>
    %367 = arith.negf %366 : vector<8x128xf32>
    %368 = math.exp %367 : vector<8x128xf32>
    %cst_194 = arith.constant 1.000000e+00 : f32
    %369 = vector.broadcast %cst_194 : f32 to vector<8x128xf32>
    %370 = arith.addf %369, %368 : vector<8x128xf32>
    %371 = arith.divf %369, %370 : vector<8x128xf32>
    %372 = vector.extract_strided_slice %359 {offsets = [0, 256], sizes = [8, 128], strides = [1, 1]} : vector<8x512xf32> to vector<8x128xf32>
    %373 = math.tanh %372 : vector<8x128xf32>
    %374 = vector.extract_strided_slice %359 {offsets = [0, 384], sizes = [8, 128], strides = [1, 1]} : vector<8x512xf32> to vector<8x128xf32>
    %375 = arith.negf %374 : vector<8x128xf32>
    %376 = math.exp %375 : vector<8x128xf32>
    %cst_195 = arith.constant 1.000000e+00 : f32
    %377 = vector.broadcast %cst_195 : f32 to vector<8x128xf32>
    %378 = arith.addf %377, %376 : vector<8x128xf32>
    %379 = arith.divf %377, %378 : vector<8x128xf32>
    %c0_196 = arith.constant 0 : index
    %c0_197 = arith.constant 0 : index
    %380 = vector.load %arg13[%c0_196, %c0_197] : memref<8x128xf32, #tpu.memory_space<vmem>>, vector<8x128xf32>
    %381 = arith.mulf %371, %380 : vector<8x128xf32>
    %382 = arith.mulf %365, %373 : vector<8x128xf32>
    %383 = arith.addf %381, %382 : vector<8x128xf32>
    %384 = math.tanh %383 : vector<8x128xf32>
    %385 = arith.mulf %379, %384 : vector<8x128xf32>
    %c0_198 = arith.constant 0 : index
    %c0_199 = arith.constant 0 : index
    %386 = vector.load %arg13[%c0_198, %c0_199] : memref<8x128xf32, #tpu.memory_space<vmem>>, vector<8x128xf32>
    tpu.vector_store %arg13[%c0_198, %c0_199], %383 {strides = array<i32>} : memref<8x128xf32, #tpu.memory_space<vmem>>, vector<8x128xf32>,
    %c0_200 = arith.constant 0 : index
    %c0_201 = arith.constant 0 : index
    %387 = vector.load %arg12[%c0_200, %c0_201] : memref<8x128xf32, #tpu.memory_space<vmem>>, vector<8x128xf32>
    tpu.vector_store %arg12[%c0_200, %c0_201], %385 {strides = array<i32>} : memref<8x128xf32, #tpu.memory_space<vmem>>, vector<8x128xf32>,
    %388 = arith.index_cast %c0_i32_182 : i32 to index
    %c0_202 = arith.constant 0 : index
    %c0_203 = arith.constant 0 : index
    %389 = vector.load %arg11[%388, %c0_202, %c0_203] : memref<8x8x128xf32, #tpu.memory_space<vmem>>, vector<1x8x128xf32>
    %390 = vector.shape_cast %389 : vector<1x8x128xf32> to vector<8x128xf32>
    %391 = vector.shape_cast %385 : vector<8x128xf32> to vector<1x8x128xf32>
    tpu.vector_store %arg11[%388, %c0_202, %c0_203], %391 {strides = array<i32>} : memref<8x8x128xf32, #tpu.memory_space<vmem>>, vector<1x8x128xf32>,
    %c1_i32_204 = arith.constant 1 : i32
    %392 = arith.index_cast %c1_i32_204 : i32 to index
    %c0_205 = arith.constant 0 : index
    %c0_206 = arith.constant 0 : index
    %393 = vector.load %arg11[%392, %c0_205, %c0_206] : memref<8x8x128xf32, #tpu.memory_space<vmem>>, vector<1x8x128xf32>
    %394 = vector.shape_cast %393 : vector<1x8x128xf32> to vector<8x128xf32>
    %c0_207 = arith.constant 0 : index
    %c0_208 = arith.constant 0 : index
    %395 = vector.load %arg5[%c0_207, %c0_208] : memref<128x512xf32, #tpu.memory_space<vmem>>, vector<128x512xf32>
    %cst_209 = arith.constant dense<0.000000e+00> : vector<8x512xf32>
    %396 = tpu.matmul %394, %395, %cst_209 {dimension_numbers = #tpu.dot_dimension_numbers<[1], [0], [0], [1], [0, 0, 1, 1], [], []>} : vector<8x128xf32>, vector<128x512xf32>, vector<8x512xf32> -> vector<8x512xf32>
    %c0_210 = arith.constant 0 : index
    %c0_211 = arith.constant 0 : index
    %397 = vector.load %arg12[%c0_210, %c0_211] : memref<8x128xf32, #tpu.memory_space<vmem>>, vector<8x128xf32>
    %c0_212 = arith.constant 0 : index
    %c0_213 = arith.constant 0 : index
    %398 = vector.load %arg6[%c0_212, %c0_213] : memref<128x512xf32, #tpu.memory_space<vmem>>, vector<128x512xf32>
    %cst_214 = arith.constant dense<0.000000e+00> : vector<8x512xf32>
    %399 = tpu.matmul %397, %398, %cst_214 {dimension_numbers = #tpu.dot_dimension_numbers<[1], [0], [0], [1], [0, 0, 1, 1], [], []>} : vector<8x128xf32>, vector<128x512xf32>, vector<8x512xf32> -> vector<8x512xf32>
    %400 = arith.addf %396, %399 : vector<8x512xf32>
    %401 = arith.addf %400, %349 : vector<8x512xf32>
    %402 = vector.extract_strided_slice %401 {offsets = [0, 0], sizes = [8, 128], strides = [1, 1]} : vector<8x512xf32> to vector<8x128xf32>
    %403 = arith.negf %402 : vector<8x128xf32>
    %404 = math.exp %403 : vector<8x128xf32>
    %cst_215 = arith.constant 1.000000e+00 : f32
    %405 = vector.broadcast %cst_215 : f32 to vector<8x128xf32>
    %406 = arith.addf %405, %404 : vector<8x128xf32>
    %407 = arith.divf %405, %406 : vector<8x128xf32>
    %408 = vector.extract_strided_slice %401 {offsets = [0, 128], sizes = [8, 128], strides = [1, 1]} : vector<8x512xf32> to vector<8x128xf32>
    %409 = arith.negf %408 : vector<8x128xf32>
    %410 = math.exp %409 : vector<8x128xf32>
    %cst_216 = arith.constant 1.000000e+00 : f32
    %411 = vector.broadcast %cst_216 : f32 to vector<8x128xf32>
    %412 = arith.addf %411, %410 : vector<8x128xf32>
    %413 = arith.divf %411, %412 : vector<8x128xf32>
    %414 = vector.extract_strided_slice %401 {offsets = [0, 256], sizes = [8, 128], strides = [1, 1]} : vector<8x512xf32> to vector<8x128xf32>
    %415 = math.tanh %414 : vector<8x128xf32>
    %416 = vector.extract_strided_slice %401 {offsets = [0, 384], sizes = [8, 128], strides = [1, 1]} : vector<8x512xf32> to vector<8x128xf32>
    %417 = arith.negf %416 : vector<8x128xf32>
    %418 = math.exp %417 : vector<8x128xf32>
    %cst_217 = arith.constant 1.000000e+00 : f32
    %419 = vector.broadcast %cst_217 : f32 to vector<8x128xf32>
    %420 = arith.addf %419, %418 : vector<8x128xf32>
    %421 = arith.divf %419, %420 : vector<8x128xf32>
    %c0_218 = arith.constant 0 : index
    %c0_219 = arith.constant 0 : index
    %422 = vector.load %arg13[%c0_218, %c0_219] : memref<8x128xf32, #tpu.memory_space<vmem>>, vector<8x128xf32>
    %423 = arith.mulf %413, %422 : vector<8x128xf32>
    %424 = arith.mulf %407, %415 : vector<8x128xf32>
    %425 = arith.addf %423, %424 : vector<8x128xf32>
    %426 = math.tanh %425 : vector<8x128xf32>
    %427 = arith.mulf %421, %426 : vector<8x128xf32>
    %c0_220 = arith.constant 0 : index
    %c0_221 = arith.constant 0 : index
    %428 = vector.load %arg13[%c0_220, %c0_221] : memref<8x128xf32, #tpu.memory_space<vmem>>, vector<8x128xf32>
    tpu.vector_store %arg13[%c0_220, %c0_221], %425 {strides = array<i32>} : memref<8x128xf32, #tpu.memory_space<vmem>>, vector<8x128xf32>,
    %c0_222 = arith.constant 0 : index
    %c0_223 = arith.constant 0 : index
    %429 = vector.load %arg12[%c0_222, %c0_223] : memref<8x128xf32, #tpu.memory_space<vmem>>, vector<8x128xf32>
    tpu.vector_store %arg12[%c0_222, %c0_223], %427 {strides = array<i32>} : memref<8x128xf32, #tpu.memory_space<vmem>>, vector<8x128xf32>,
    %430 = arith.index_cast %c1_i32_204 : i32 to index
    %c0_224 = arith.constant 0 : index
    %c0_225 = arith.constant 0 : index
    %431 = vector.load %arg11[%430, %c0_224, %c0_225] : memref<8x8x128xf32, #tpu.memory_space<vmem>>, vector<1x8x128xf32>
    %432 = vector.shape_cast %431 : vector<1x8x128xf32> to vector<8x128xf32>
    %433 = vector.shape_cast %427 : vector<8x128xf32> to vector<1x8x128xf32>
    tpu.vector_store %arg11[%430, %c0_224, %c0_225], %433 {strides = array<i32>} : memref<8x8x128xf32, #tpu.memory_space<vmem>>, vector<1x8x128xf32>,
    %c2_i32_226 = arith.constant 2 : i32
    %434 = arith.index_cast %c2_i32_226 : i32 to index
    %c0_227 = arith.constant 0 : index
    %c0_228 = arith.constant 0 : index
    %435 = vector.load %arg11[%434, %c0_227, %c0_228] : memref<8x8x128xf32, #tpu.memory_space<vmem>>, vector<1x8x128xf32>
    %436 = vector.shape_cast %435 : vector<1x8x128xf32> to vector<8x128xf32>
    %c0_229 = arith.constant 0 : index
    %c0_230 = arith.constant 0 : index
    %437 = vector.load %arg5[%c0_229, %c0_230] : memref<128x512xf32, #tpu.memory_space<vmem>>, vector<128x512xf32>
    %cst_231 = arith.constant dense<0.000000e+00> : vector<8x512xf32>
    %438 = tpu.matmul %436, %437, %cst_231 {dimension_numbers = #tpu.dot_dimension_numbers<[1], [0], [0], [1], [0, 0, 1, 1], [], []>} : vector<8x128xf32>, vector<128x512xf32>, vector<8x512xf32> -> vector<8x512xf32>
    %c0_232 = arith.constant 0 : index
    %c0_233 = arith.constant 0 : index
    %439 = vector.load %arg12[%c0_232, %c0_233] : memref<8x128xf32, #tpu.memory_space<vmem>>, vector<8x128xf32>
    %c0_234 = arith.constant 0 : index
    %c0_235 = arith.constant 0 : index
    %440 = vector.load %arg6[%c0_234, %c0_235] : memref<128x512xf32, #tpu.memory_space<vmem>>, vector<128x512xf32>
    %cst_236 = arith.constant dense<0.000000e+00> : vector<8x512xf32>
    %441 = tpu.matmul %439, %440, %cst_236 {dimension_numbers = #tpu.dot_dimension_numbers<[1], [0], [0], [1], [0, 0, 1, 1], [], []>} : vector<8x128xf32>, vector<128x512xf32>, vector<8x512xf32> -> vector<8x512xf32>
    %442 = arith.addf %438, %441 : vector<8x512xf32>
    %443 = arith.addf %442, %349 : vector<8x512xf32>
    %444 = vector.extract_strided_slice %443 {offsets = [0, 0], sizes = [8, 128], strides = [1, 1]} : vector<8x512xf32> to vector<8x128xf32>
    %445 = arith.negf %444 : vector<8x128xf32>
    %446 = math.exp %445 : vector<8x128xf32>
    %cst_237 = arith.constant 1.000000e+00 : f32
    %447 = vector.broadcast %cst_237 : f32 to vector<8x128xf32>
    %448 = arith.addf %447, %446 : vector<8x128xf32>
    %449 = arith.divf %447, %448 : vector<8x128xf32>
    %450 = vector.extract_strided_slice %443 {offsets = [0, 128], sizes = [8, 128], strides = [1, 1]} : vector<8x512xf32> to vector<8x128xf32>
    %451 = arith.negf %450 : vector<8x128xf32>
    %452 = math.exp %451 : vector<8x128xf32>
    %cst_238 = arith.constant 1.000000e+00 : f32
    %453 = vector.broadcast %cst_238 : f32 to vector<8x128xf32>
    %454 = arith.addf %453, %452 : vector<8x128xf32>
    %455 = arith.divf %453, %454 : vector<8x128xf32>
    %456 = vector.extract_strided_slice %443 {offsets = [0, 256], sizes = [8, 128], strides = [1, 1]} : vector<8x512xf32> to vector<8x128xf32>
    %457 = math.tanh %456 : vector<8x128xf32>
    %458 = vector.extract_strided_slice %443 {offsets = [0, 384], sizes = [8, 128], strides = [1, 1]} : vector<8x512xf32> to vector<8x128xf32>
    %459 = arith.negf %458 : vector<8x128xf32>
    %460 = math.exp %459 : vector<8x128xf32>
    %cst_239 = arith.constant 1.000000e+00 : f32
    %461 = vector.broadcast %cst_239 : f32 to vector<8x128xf32>
    %462 = arith.addf %461, %460 : vector<8x128xf32>
    %463 = arith.divf %461, %462 : vector<8x128xf32>
    %c0_240 = arith.constant 0 : index
    %c0_241 = arith.constant 0 : index
    %464 = vector.load %arg13[%c0_240, %c0_241] : memref<8x128xf32, #tpu.memory_space<vmem>>, vector<8x128xf32>
    %465 = arith.mulf %455, %464 : vector<8x128xf32>
    %466 = arith.mulf %449, %457 : vector<8x128xf32>
    %467 = arith.addf %465, %466 : vector<8x128xf32>
    %468 = math.tanh %467 : vector<8x128xf32>
    %469 = arith.mulf %463, %468 : vector<8x128xf32>
    %c0_242 = arith.constant 0 : index
    %c0_243 = arith.constant 0 : index
    %470 = vector.load %arg13[%c0_242, %c0_243] : memref<8x128xf32, #tpu.memory_space<vmem>>, vector<8x128xf32>
    tpu.vector_store %arg13[%c0_242, %c0_243], %467 {strides = array<i32>} : memref<8x128xf32, #tpu.memory_space<vmem>>, vector<8x128xf32>,
    %c0_244 = arith.constant 0 : index
    %c0_245 = arith.constant 0 : index
    %471 = vector.load %arg12[%c0_244, %c0_245] : memref<8x128xf32, #tpu.memory_space<vmem>>, vector<8x128xf32>
    tpu.vector_store %arg12[%c0_244, %c0_245], %469 {strides = array<i32>} : memref<8x128xf32, #tpu.memory_space<vmem>>, vector<8x128xf32>,
    %472 = arith.index_cast %c2_i32_226 : i32 to index
    %c0_246 = arith.constant 0 : index
    %c0_247 = arith.constant 0 : index
    %473 = vector.load %arg11[%472, %c0_246, %c0_247] : memref<8x8x128xf32, #tpu.memory_space<vmem>>, vector<1x8x128xf32>
    %474 = vector.shape_cast %473 : vector<1x8x128xf32> to vector<8x128xf32>
    %475 = vector.shape_cast %469 : vector<8x128xf32> to vector<1x8x128xf32>
    tpu.vector_store %arg11[%472, %c0_246, %c0_247], %475 {strides = array<i32>} : memref<8x8x128xf32, #tpu.memory_space<vmem>>, vector<1x8x128xf32>,
    %c3_i32_248 = arith.constant 3 : i32
    %476 = arith.index_cast %c3_i32_248 : i32 to index
    %c0_249 = arith.constant 0 : index
    %c0_250 = arith.constant 0 : index
    %477 = vector.load %arg11[%476, %c0_249, %c0_250] : memref<8x8x128xf32, #tpu.memory_space<vmem>>, vector<1x8x128xf32>
    %478 = vector.shape_cast %477 : vector<1x8x128xf32> to vector<8x128xf32>
    %c0_251 = arith.constant 0 : index
    %c0_252 = arith.constant 0 : index
    %479 = vector.load %arg5[%c0_251, %c0_252] : memref<128x512xf32, #tpu.memory_space<vmem>>, vector<128x512xf32>
    %cst_253 = arith.constant dense<0.000000e+00> : vector<8x512xf32>
    %480 = tpu.matmul %478, %479, %cst_253 {dimension_numbers = #tpu.dot_dimension_numbers<[1], [0], [0], [1], [0, 0, 1, 1], [], []>} : vector<8x128xf32>, vector<128x512xf32>, vector<8x512xf32> -> vector<8x512xf32>
    %c0_254 = arith.constant 0 : index
    %c0_255 = arith.constant 0 : index
    %481 = vector.load %arg12[%c0_254, %c0_255] : memref<8x128xf32, #tpu.memory_space<vmem>>, vector<8x128xf32>
    %c0_256 = arith.constant 0 : index
    %c0_257 = arith.constant 0 : index
    %482 = vector.load %arg6[%c0_256, %c0_257] : memref<128x512xf32, #tpu.memory_space<vmem>>, vector<128x512xf32>
    %cst_258 = arith.constant dense<0.000000e+00> : vector<8x512xf32>
    %483 = tpu.matmul %481, %482, %cst_258 {dimension_numbers = #tpu.dot_dimension_numbers<[1], [0], [0], [1], [0, 0, 1, 1], [], []>} : vector<8x128xf32>, vector<128x512xf32>, vector<8x512xf32> -> vector<8x512xf32>
    %484 = arith.addf %480, %483 : vector<8x512xf32>
    %485 = arith.addf %484, %349 : vector<8x512xf32>
    %486 = vector.extract_strided_slice %485 {offsets = [0, 0], sizes = [8, 128], strides = [1, 1]} : vector<8x512xf32> to vector<8x128xf32>
    %487 = arith.negf %486 : vector<8x128xf32>
    %488 = math.exp %487 : vector<8x128xf32>
    %cst_259 = arith.constant 1.000000e+00 : f32
    %489 = vector.broadcast %cst_259 : f32 to vector<8x128xf32>
    %490 = arith.addf %489, %488 : vector<8x128xf32>
    %491 = arith.divf %489, %490 : vector<8x128xf32>
    %492 = vector.extract_strided_slice %485 {offsets = [0, 128], sizes = [8, 128], strides = [1, 1]} : vector<8x512xf32> to vector<8x128xf32>
    %493 = arith.negf %492 : vector<8x128xf32>
    %494 = math.exp %493 : vector<8x128xf32>
    %cst_260 = arith.constant 1.000000e+00 : f32
    %495 = vector.broadcast %cst_260 : f32 to vector<8x128xf32>
    %496 = arith.addf %495, %494 : vector<8x128xf32>
    %497 = arith.divf %495, %496 : vector<8x128xf32>
    %498 = vector.extract_strided_slice %485 {offsets = [0, 256], sizes = [8, 128], strides = [1, 1]} : vector<8x512xf32> to vector<8x128xf32>
    %499 = math.tanh %498 : vector<8x128xf32>
    %500 = vector.extract_strided_slice %485 {offsets = [0, 384], sizes = [8, 128], strides = [1, 1]} : vector<8x512xf32> to vector<8x128xf32>
    %501 = arith.negf %500 : vector<8x128xf32>
    %502 = math.exp %501 : vector<8x128xf32>
    %cst_261 = arith.constant 1.000000e+00 : f32
    %503 = vector.broadcast %cst_261 : f32 to vector<8x128xf32>
    %504 = arith.addf %503, %502 : vector<8x128xf32>
    %505 = arith.divf %503, %504 : vector<8x128xf32>
    %c0_262 = arith.constant 0 : index
    %c0_263 = arith.constant 0 : index
    %506 = vector.load %arg13[%c0_262, %c0_263] : memref<8x128xf32, #tpu.memory_space<vmem>>, vector<8x128xf32>
    %507 = arith.mulf %497, %506 : vector<8x128xf32>
    %508 = arith.mulf %491, %499 : vector<8x128xf32>
    %509 = arith.addf %507, %508 : vector<8x128xf32>
    %510 = math.tanh %509 : vector<8x128xf32>
    %511 = arith.mulf %505, %510 : vector<8x128xf32>
    %c0_264 = arith.constant 0 : index
    %c0_265 = arith.constant 0 : index
    %512 = vector.load %arg13[%c0_264, %c0_265] : memref<8x128xf32, #tpu.memory_space<vmem>>, vector<8x128xf32>
    tpu.vector_store %arg13[%c0_264, %c0_265], %509 {strides = array<i32>} : memref<8x128xf32, #tpu.memory_space<vmem>>, vector<8x128xf32>,
    %c0_266 = arith.constant 0 : index
    %c0_267 = arith.constant 0 : index
    %513 = vector.load %arg12[%c0_266, %c0_267] : memref<8x128xf32, #tpu.memory_space<vmem>>, vector<8x128xf32>
    tpu.vector_store %arg12[%c0_266, %c0_267], %511 {strides = array<i32>} : memref<8x128xf32, #tpu.memory_space<vmem>>, vector<8x128xf32>,
    %514 = arith.index_cast %c3_i32_248 : i32 to index
    %c0_268 = arith.constant 0 : index
    %c0_269 = arith.constant 0 : index
    %515 = vector.load %arg11[%514, %c0_268, %c0_269] : memref<8x8x128xf32, #tpu.memory_space<vmem>>, vector<1x8x128xf32>
    %516 = vector.shape_cast %515 : vector<1x8x128xf32> to vector<8x128xf32>
    %517 = vector.shape_cast %511 : vector<8x128xf32> to vector<1x8x128xf32>
    tpu.vector_store %arg11[%514, %c0_268, %c0_269], %517 {strides = array<i32>} : memref<8x8x128xf32, #tpu.memory_space<vmem>>, vector<1x8x128xf32>,
    %c4_i32_270 = arith.constant 4 : i32
    %518 = arith.index_cast %c4_i32_270 : i32 to index
    %c0_271 = arith.constant 0 : index
    %c0_272 = arith.constant 0 : index
    %519 = vector.load %arg11[%518, %c0_271, %c0_272] : memref<8x8x128xf32, #tpu.memory_space<vmem>>, vector<1x8x128xf32>
    %520 = vector.shape_cast %519 : vector<1x8x128xf32> to vector<8x128xf32>
    %c0_273 = arith.constant 0 : index
    %c0_274 = arith.constant 0 : index
    %521 = vector.load %arg5[%c0_273, %c0_274] : memref<128x512xf32, #tpu.memory_space<vmem>>, vector<128x512xf32>
    %cst_275 = arith.constant dense<0.000000e+00> : vector<8x512xf32>
    %522 = tpu.matmul %520, %521, %cst_275 {dimension_numbers = #tpu.dot_dimension_numbers<[1], [0], [0], [1], [0, 0, 1, 1], [], []>} : vector<8x128xf32>, vector<128x512xf32>, vector<8x512xf32> -> vector<8x512xf32>
    %c0_276 = arith.constant 0 : index
    %c0_277 = arith.constant 0 : index
    %523 = vector.load %arg12[%c0_276, %c0_277] : memref<8x128xf32, #tpu.memory_space<vmem>>, vector<8x128xf32>
    %c0_278 = arith.constant 0 : index
    %c0_279 = arith.constant 0 : index
    %524 = vector.load %arg6[%c0_278, %c0_279] : memref<128x512xf32, #tpu.memory_space<vmem>>, vector<128x512xf32>
    %cst_280 = arith.constant dense<0.000000e+00> : vector<8x512xf32>
    %525 = tpu.matmul %523, %524, %cst_280 {dimension_numbers = #tpu.dot_dimension_numbers<[1], [0], [0], [1], [0, 0, 1, 1], [], []>} : vector<8x128xf32>, vector<128x512xf32>, vector<8x512xf32> -> vector<8x512xf32>
    %526 = arith.addf %522, %525 : vector<8x512xf32>
    %527 = arith.addf %526, %349 : vector<8x512xf32>
    %528 = vector.extract_strided_slice %527 {offsets = [0, 0], sizes = [8, 128], strides = [1, 1]} : vector<8x512xf32> to vector<8x128xf32>
    %529 = arith.negf %528 : vector<8x128xf32>
    %530 = math.exp %529 : vector<8x128xf32>
    %cst_281 = arith.constant 1.000000e+00 : f32
    %531 = vector.broadcast %cst_281 : f32 to vector<8x128xf32>
    %532 = arith.addf %531, %530 : vector<8x128xf32>
    %533 = arith.divf %531, %532 : vector<8x128xf32>
    %534 = vector.extract_strided_slice %527 {offsets = [0, 128], sizes = [8, 128], strides = [1, 1]} : vector<8x512xf32> to vector<8x128xf32>
    %535 = arith.negf %534 : vector<8x128xf32>
    %536 = math.exp %535 : vector<8x128xf32>
    %cst_282 = arith.constant 1.000000e+00 : f32
    %537 = vector.broadcast %cst_282 : f32 to vector<8x128xf32>
    %538 = arith.addf %537, %536 : vector<8x128xf32>
    %539 = arith.divf %537, %538 : vector<8x128xf32>
    %540 = vector.extract_strided_slice %527 {offsets = [0, 256], sizes = [8, 128], strides = [1, 1]} : vector<8x512xf32> to vector<8x128xf32>
    %541 = math.tanh %540 : vector<8x128xf32>
    %542 = vector.extract_strided_slice %527 {offsets = [0, 384], sizes = [8, 128], strides = [1, 1]} : vector<8x512xf32> to vector<8x128xf32>
    %543 = arith.negf %542 : vector<8x128xf32>
    %544 = math.exp %543 : vector<8x128xf32>
    %cst_283 = arith.constant 1.000000e+00 : f32
    %545 = vector.broadcast %cst_283 : f32 to vector<8x128xf32>
    %546 = arith.addf %545, %544 : vector<8x128xf32>
    %547 = arith.divf %545, %546 : vector<8x128xf32>
    %c0_284 = arith.constant 0 : index
    %c0_285 = arith.constant 0 : index
    %548 = vector.load %arg13[%c0_284, %c0_285] : memref<8x128xf32, #tpu.memory_space<vmem>>, vector<8x128xf32>
    %549 = arith.mulf %539, %548 : vector<8x128xf32>
    %550 = arith.mulf %533, %541 : vector<8x128xf32>
    %551 = arith.addf %549, %550 : vector<8x128xf32>
    %552 = math.tanh %551 : vector<8x128xf32>
    %553 = arith.mulf %547, %552 : vector<8x128xf32>
    %c0_286 = arith.constant 0 : index
    %c0_287 = arith.constant 0 : index
    %554 = vector.load %arg13[%c0_286, %c0_287] : memref<8x128xf32, #tpu.memory_space<vmem>>, vector<8x128xf32>
    tpu.vector_store %arg13[%c0_286, %c0_287], %551 {strides = array<i32>} : memref<8x128xf32, #tpu.memory_space<vmem>>, vector<8x128xf32>,
    %c0_288 = arith.constant 0 : index
    %c0_289 = arith.constant 0 : index
    %555 = vector.load %arg12[%c0_288, %c0_289] : memref<8x128xf32, #tpu.memory_space<vmem>>, vector<8x128xf32>
    tpu.vector_store %arg12[%c0_288, %c0_289], %553 {strides = array<i32>} : memref<8x128xf32, #tpu.memory_space<vmem>>, vector<8x128xf32>,
    %556 = arith.index_cast %c4_i32_270 : i32 to index
    %c0_290 = arith.constant 0 : index
    %c0_291 = arith.constant 0 : index
    %557 = vector.load %arg11[%556, %c0_290, %c0_291] : memref<8x8x128xf32, #tpu.memory_space<vmem>>, vector<1x8x128xf32>
    %558 = vector.shape_cast %557 : vector<1x8x128xf32> to vector<8x128xf32>
    %559 = vector.shape_cast %553 : vector<8x128xf32> to vector<1x8x128xf32>
    tpu.vector_store %arg11[%556, %c0_290, %c0_291], %559 {strides = array<i32>} : memref<8x8x128xf32, #tpu.memory_space<vmem>>, vector<1x8x128xf32>,
    %c5_i32_292 = arith.constant 5 : i32
    %560 = arith.index_cast %c5_i32_292 : i32 to index
    %c0_293 = arith.constant 0 : index
    %c0_294 = arith.constant 0 : index
    %561 = vector.load %arg11[%560, %c0_293, %c0_294] : memref<8x8x128xf32, #tpu.memory_space<vmem>>, vector<1x8x128xf32>
    %562 = vector.shape_cast %561 : vector<1x8x128xf32> to vector<8x128xf32>
    %c0_295 = arith.constant 0 : index
    %c0_296 = arith.constant 0 : index
    %563 = vector.load %arg5[%c0_295, %c0_296] : memref<128x512xf32, #tpu.memory_space<vmem>>, vector<128x512xf32>
    %cst_297 = arith.constant dense<0.000000e+00> : vector<8x512xf32>
    %564 = tpu.matmul %562, %563, %cst_297 {dimension_numbers = #tpu.dot_dimension_numbers<[1], [0], [0], [1], [0, 0, 1, 1], [], []>} : vector<8x128xf32>, vector<128x512xf32>, vector<8x512xf32> -> vector<8x512xf32>
    %c0_298 = arith.constant 0 : index
    %c0_299 = arith.constant 0 : index
    %565 = vector.load %arg12[%c0_298, %c0_299] : memref<8x128xf32, #tpu.memory_space<vmem>>, vector<8x128xf32>
    %c0_300 = arith.constant 0 : index
    %c0_301 = arith.constant 0 : index
    %566 = vector.load %arg6[%c0_300, %c0_301] : memref<128x512xf32, #tpu.memory_space<vmem>>, vector<128x512xf32>
    %cst_302 = arith.constant dense<0.000000e+00> : vector<8x512xf32>
    %567 = tpu.matmul %565, %566, %cst_302 {dimension_numbers = #tpu.dot_dimension_numbers<[1], [0], [0], [1], [0, 0, 1, 1], [], []>} : vector<8x128xf32>, vector<128x512xf32>, vector<8x512xf32> -> vector<8x512xf32>
    %568 = arith.addf %564, %567 : vector<8x512xf32>
    %569 = arith.addf %568, %349 : vector<8x512xf32>
    %570 = vector.extract_strided_slice %569 {offsets = [0, 0], sizes = [8, 128], strides = [1, 1]} : vector<8x512xf32> to vector<8x128xf32>
    %571 = arith.negf %570 : vector<8x128xf32>
    %572 = math.exp %571 : vector<8x128xf32>
    %cst_303 = arith.constant 1.000000e+00 : f32
    %573 = vector.broadcast %cst_303 : f32 to vector<8x128xf32>
    %574 = arith.addf %573, %572 : vector<8x128xf32>
    %575 = arith.divf %573, %574 : vector<8x128xf32>
    %576 = vector.extract_strided_slice %569 {offsets = [0, 128], sizes = [8, 128], strides = [1, 1]} : vector<8x512xf32> to vector<8x128xf32>
    %577 = arith.negf %576 : vector<8x128xf32>
    %578 = math.exp %577 : vector<8x128xf32>
    %cst_304 = arith.constant 1.000000e+00 : f32
    %579 = vector.broadcast %cst_304 : f32 to vector<8x128xf32>
    %580 = arith.addf %579, %578 : vector<8x128xf32>
    %581 = arith.divf %579, %580 : vector<8x128xf32>
    %582 = vector.extract_strided_slice %569 {offsets = [0, 256], sizes = [8, 128], strides = [1, 1]} : vector<8x512xf32> to vector<8x128xf32>
    %583 = math.tanh %582 : vector<8x128xf32>
    %584 = vector.extract_strided_slice %569 {offsets = [0, 384], sizes = [8, 128], strides = [1, 1]} : vector<8x512xf32> to vector<8x128xf32>
    %585 = arith.negf %584 : vector<8x128xf32>
    %586 = math.exp %585 : vector<8x128xf32>
    %cst_305 = arith.constant 1.000000e+00 : f32
    %587 = vector.broadcast %cst_305 : f32 to vector<8x128xf32>
    %588 = arith.addf %587, %586 : vector<8x128xf32>
    %589 = arith.divf %587, %588 : vector<8x128xf32>
    %c0_306 = arith.constant 0 : index
    %c0_307 = arith.constant 0 : index
    %590 = vector.load %arg13[%c0_306, %c0_307] : memref<8x128xf32, #tpu.memory_space<vmem>>, vector<8x128xf32>
    %591 = arith.mulf %581, %590 : vector<8x128xf32>
    %592 = arith.mulf %575, %583 : vector<8x128xf32>
    %593 = arith.addf %591, %592 : vector<8x128xf32>
    %594 = math.tanh %593 : vector<8x128xf32>
    %595 = arith.mulf %589, %594 : vector<8x128xf32>
    %c0_308 = arith.constant 0 : index
    %c0_309 = arith.constant 0 : index
    %596 = vector.load %arg13[%c0_308, %c0_309] : memref<8x128xf32, #tpu.memory_space<vmem>>, vector<8x128xf32>
    tpu.vector_store %arg13[%c0_308, %c0_309], %593 {strides = array<i32>} : memref<8x128xf32, #tpu.memory_space<vmem>>, vector<8x128xf32>,
    %c0_310 = arith.constant 0 : index
    %c0_311 = arith.constant 0 : index
    %597 = vector.load %arg12[%c0_310, %c0_311] : memref<8x128xf32, #tpu.memory_space<vmem>>, vector<8x128xf32>
    tpu.vector_store %arg12[%c0_310, %c0_311], %595 {strides = array<i32>} : memref<8x128xf32, #tpu.memory_space<vmem>>, vector<8x128xf32>,
    %598 = arith.index_cast %c5_i32_292 : i32 to index
    %c0_312 = arith.constant 0 : index
    %c0_313 = arith.constant 0 : index
    %599 = vector.load %arg11[%598, %c0_312, %c0_313] : memref<8x8x128xf32, #tpu.memory_space<vmem>>, vector<1x8x128xf32>
    %600 = vector.shape_cast %599 : vector<1x8x128xf32> to vector<8x128xf32>
    %601 = vector.shape_cast %595 : vector<8x128xf32> to vector<1x8x128xf32>
    tpu.vector_store %arg11[%598, %c0_312, %c0_313], %601 {strides = array<i32>} : memref<8x8x128xf32, #tpu.memory_space<vmem>>, vector<1x8x128xf32>,
    %c6_i32_314 = arith.constant 6 : i32
    %602 = arith.index_cast %c6_i32_314 : i32 to index
    %c0_315 = arith.constant 0 : index
    %c0_316 = arith.constant 0 : index
    %603 = vector.load %arg11[%602, %c0_315, %c0_316] : memref<8x8x128xf32, #tpu.memory_space<vmem>>, vector<1x8x128xf32>
    %604 = vector.shape_cast %603 : vector<1x8x128xf32> to vector<8x128xf32>
    %c0_317 = arith.constant 0 : index
    %c0_318 = arith.constant 0 : index
    %605 = vector.load %arg5[%c0_317, %c0_318] : memref<128x512xf32, #tpu.memory_space<vmem>>, vector<128x512xf32>
    %cst_319 = arith.constant dense<0.000000e+00> : vector<8x512xf32>
    %606 = tpu.matmul %604, %605, %cst_319 {dimension_numbers = #tpu.dot_dimension_numbers<[1], [0], [0], [1], [0, 0, 1, 1], [], []>} : vector<8x128xf32>, vector<128x512xf32>, vector<8x512xf32> -> vector<8x512xf32>
    %c0_320 = arith.constant 0 : index
    %c0_321 = arith.constant 0 : index
    %607 = vector.load %arg12[%c0_320, %c0_321] : memref<8x128xf32, #tpu.memory_space<vmem>>, vector<8x128xf32>
    %c0_322 = arith.constant 0 : index
    %c0_323 = arith.constant 0 : index
    %608 = vector.load %arg6[%c0_322, %c0_323] : memref<128x512xf32, #tpu.memory_space<vmem>>, vector<128x512xf32>
    %cst_324 = arith.constant dense<0.000000e+00> : vector<8x512xf32>
    %609 = tpu.matmul %607, %608, %cst_324 {dimension_numbers = #tpu.dot_dimension_numbers<[1], [0], [0], [1], [0, 0, 1, 1], [], []>} : vector<8x128xf32>, vector<128x512xf32>, vector<8x512xf32> -> vector<8x512xf32>
    %610 = arith.addf %606, %609 : vector<8x512xf32>
    %611 = arith.addf %610, %349 : vector<8x512xf32>
    %612 = vector.extract_strided_slice %611 {offsets = [0, 0], sizes = [8, 128], strides = [1, 1]} : vector<8x512xf32> to vector<8x128xf32>
    %613 = arith.negf %612 : vector<8x128xf32>
    %614 = math.exp %613 : vector<8x128xf32>
    %cst_325 = arith.constant 1.000000e+00 : f32
    %615 = vector.broadcast %cst_325 : f32 to vector<8x128xf32>
    %616 = arith.addf %615, %614 : vector<8x128xf32>
    %617 = arith.divf %615, %616 : vector<8x128xf32>
    %618 = vector.extract_strided_slice %611 {offsets = [0, 128], sizes = [8, 128], strides = [1, 1]} : vector<8x512xf32> to vector<8x128xf32>
    %619 = arith.negf %618 : vector<8x128xf32>
    %620 = math.exp %619 : vector<8x128xf32>
    %cst_326 = arith.constant 1.000000e+00 : f32
    %621 = vector.broadcast %cst_326 : f32 to vector<8x128xf32>
    %622 = arith.addf %621, %620 : vector<8x128xf32>
    %623 = arith.divf %621, %622 : vector<8x128xf32>
    %624 = vector.extract_strided_slice %611 {offsets = [0, 256], sizes = [8, 128], strides = [1, 1]} : vector<8x512xf32> to vector<8x128xf32>
    %625 = math.tanh %624 : vector<8x128xf32>
    %626 = vector.extract_strided_slice %611 {offsets = [0, 384], sizes = [8, 128], strides = [1, 1]} : vector<8x512xf32> to vector<8x128xf32>
    %627 = arith.negf %626 : vector<8x128xf32>
    %628 = math.exp %627 : vector<8x128xf32>
    %cst_327 = arith.constant 1.000000e+00 : f32
    %629 = vector.broadcast %cst_327 : f32 to vector<8x128xf32>
    %630 = arith.addf %629, %628 : vector<8x128xf32>
    %631 = arith.divf %629, %630 : vector<8x128xf32>
    %c0_328 = arith.constant 0 : index
    %c0_329 = arith.constant 0 : index
    %632 = vector.load %arg13[%c0_328, %c0_329] : memref<8x128xf32, #tpu.memory_space<vmem>>, vector<8x128xf32>
    %633 = arith.mulf %623, %632 : vector<8x128xf32>
    %634 = arith.mulf %617, %625 : vector<8x128xf32>
    %635 = arith.addf %633, %634 : vector<8x128xf32>
    %636 = math.tanh %635 : vector<8x128xf32>
    %637 = arith.mulf %631, %636 : vector<8x128xf32>
    %c0_330 = arith.constant 0 : index
    %c0_331 = arith.constant 0 : index
    %638 = vector.load %arg13[%c0_330, %c0_331] : memref<8x128xf32, #tpu.memory_space<vmem>>, vector<8x128xf32>
    tpu.vector_store %arg13[%c0_330, %c0_331], %635 {strides = array<i32>} : memref<8x128xf32, #tpu.memory_space<vmem>>, vector<8x128xf32>,
    %c0_332 = arith.constant 0 : index
    %c0_333 = arith.constant 0 : index
    %639 = vector.load %arg12[%c0_332, %c0_333] : memref<8x128xf32, #tpu.memory_space<vmem>>, vector<8x128xf32>
    tpu.vector_store %arg12[%c0_332, %c0_333], %637 {strides = array<i32>} : memref<8x128xf32, #tpu.memory_space<vmem>>, vector<8x128xf32>,
    %640 = arith.index_cast %c6_i32_314 : i32 to index
    %c0_334 = arith.constant 0 : index
    %c0_335 = arith.constant 0 : index
    %641 = vector.load %arg11[%640, %c0_334, %c0_335] : memref<8x8x128xf32, #tpu.memory_space<vmem>>, vector<1x8x128xf32>
    %642 = vector.shape_cast %641 : vector<1x8x128xf32> to vector<8x128xf32>
    %643 = vector.shape_cast %637 : vector<8x128xf32> to vector<1x8x128xf32>
    tpu.vector_store %arg11[%640, %c0_334, %c0_335], %643 {strides = array<i32>} : memref<8x8x128xf32, #tpu.memory_space<vmem>>, vector<1x8x128xf32>,
    %c7_i32_336 = arith.constant 7 : i32
    %644 = arith.index_cast %c7_i32_336 : i32 to index
    %c0_337 = arith.constant 0 : index
    %c0_338 = arith.constant 0 : index
    %645 = vector.load %arg11[%644, %c0_337, %c0_338] : memref<8x8x128xf32, #tpu.memory_space<vmem>>, vector<1x8x128xf32>
    %646 = vector.shape_cast %645 : vector<1x8x128xf32> to vector<8x128xf32>
    %c0_339 = arith.constant 0 : index
    %c0_340 = arith.constant 0 : index
    %647 = vector.load %arg5[%c0_339, %c0_340] : memref<128x512xf32, #tpu.memory_space<vmem>>, vector<128x512xf32>
    %cst_341 = arith.constant dense<0.000000e+00> : vector<8x512xf32>
    %648 = tpu.matmul %646, %647, %cst_341 {dimension_numbers = #tpu.dot_dimension_numbers<[1], [0], [0], [1], [0, 0, 1, 1], [], []>} : vector<8x128xf32>, vector<128x512xf32>, vector<8x512xf32> -> vector<8x512xf32>
    %c0_342 = arith.constant 0 : index
    %c0_343 = arith.constant 0 : index
    %649 = vector.load %arg12[%c0_342, %c0_343] : memref<8x128xf32, #tpu.memory_space<vmem>>, vector<8x128xf32>
    %c0_344 = arith.constant 0 : index
    %c0_345 = arith.constant 0 : index
    %650 = vector.load %arg6[%c0_344, %c0_345] : memref<128x512xf32, #tpu.memory_space<vmem>>, vector<128x512xf32>
    %cst_346 = arith.constant dense<0.000000e+00> : vector<8x512xf32>
    %651 = tpu.matmul %649, %650, %cst_346 {dimension_numbers = #tpu.dot_dimension_numbers<[1], [0], [0], [1], [0, 0, 1, 1], [], []>} : vector<8x128xf32>, vector<128x512xf32>, vector<8x512xf32> -> vector<8x512xf32>
    %652 = arith.addf %648, %651 : vector<8x512xf32>
    %653 = arith.addf %652, %349 : vector<8x512xf32>
    %654 = vector.extract_strided_slice %653 {offsets = [0, 0], sizes = [8, 128], strides = [1, 1]} : vector<8x512xf32> to vector<8x128xf32>
    %655 = arith.negf %654 : vector<8x128xf32>
    %656 = math.exp %655 : vector<8x128xf32>
    %cst_347 = arith.constant 1.000000e+00 : f32
    %657 = vector.broadcast %cst_347 : f32 to vector<8x128xf32>
    %658 = arith.addf %657, %656 : vector<8x128xf32>
    %659 = arith.divf %657, %658 : vector<8x128xf32>
    %660 = vector.extract_strided_slice %653 {offsets = [0, 128], sizes = [8, 128], strides = [1, 1]} : vector<8x512xf32> to vector<8x128xf32>
    %661 = arith.negf %660 : vector<8x128xf32>
    %662 = math.exp %661 : vector<8x128xf32>
    %cst_348 = arith.constant 1.000000e+00 : f32
    %663 = vector.broadcast %cst_348 : f32 to vector<8x128xf32>
    %664 = arith.addf %663, %662 : vector<8x128xf32>
    %665 = arith.divf %663, %664 : vector<8x128xf32>
    %666 = vector.extract_strided_slice %653 {offsets = [0, 256], sizes = [8, 128], strides = [1, 1]} : vector<8x512xf32> to vector<8x128xf32>
    %667 = math.tanh %666 : vector<8x128xf32>
    %668 = vector.extract_strided_slice %653 {offsets = [0, 384], sizes = [8, 128], strides = [1, 1]} : vector<8x512xf32> to vector<8x128xf32>
    %669 = arith.negf %668 : vector<8x128xf32>
    %670 = math.exp %669 : vector<8x128xf32>
    %cst_349 = arith.constant 1.000000e+00 : f32
    %671 = vector.broadcast %cst_349 : f32 to vector<8x128xf32>
    %672 = arith.addf %671, %670 : vector<8x128xf32>
    %673 = arith.divf %671, %672 : vector<8x128xf32>
    %c0_350 = arith.constant 0 : index
    %c0_351 = arith.constant 0 : index
    %674 = vector.load %arg13[%c0_350, %c0_351] : memref<8x128xf32, #tpu.memory_space<vmem>>, vector<8x128xf32>
    %675 = arith.mulf %665, %674 : vector<8x128xf32>
    %676 = arith.mulf %659, %667 : vector<8x128xf32>
    %677 = arith.addf %675, %676 : vector<8x128xf32>
    %678 = math.tanh %677 : vector<8x128xf32>
    %679 = arith.mulf %673, %678 : vector<8x128xf32>
    %c0_352 = arith.constant 0 : index
    %c0_353 = arith.constant 0 : index
    %680 = vector.load %arg13[%c0_352, %c0_353] : memref<8x128xf32, #tpu.memory_space<vmem>>, vector<8x128xf32>
    tpu.vector_store %arg13[%c0_352, %c0_353], %677 {strides = array<i32>} : memref<8x128xf32, #tpu.memory_space<vmem>>, vector<8x128xf32>,
    %c0_354 = arith.constant 0 : index
    %c0_355 = arith.constant 0 : index
    %681 = vector.load %arg12[%c0_354, %c0_355] : memref<8x128xf32, #tpu.memory_space<vmem>>, vector<8x128xf32>
    tpu.vector_store %arg12[%c0_354, %c0_355], %679 {strides = array<i32>} : memref<8x128xf32, #tpu.memory_space<vmem>>, vector<8x128xf32>,
    %682 = arith.index_cast %c7_i32_336 : i32 to index
    %c0_356 = arith.constant 0 : index
    %c0_357 = arith.constant 0 : index
    %683 = vector.load %arg11[%682, %c0_356, %c0_357] : memref<8x8x128xf32, #tpu.memory_space<vmem>>, vector<1x8x128xf32>
    %684 = vector.shape_cast %683 : vector<1x8x128xf32> to vector<8x128xf32>
    %685 = vector.shape_cast %679 : vector<8x128xf32> to vector<1x8x128xf32>
    tpu.vector_store %arg11[%682, %c0_356, %c0_357], %685 {strides = array<i32>} : memref<8x8x128xf32, #tpu.memory_space<vmem>>, vector<1x8x128xf32>,
    %c8_i32_358 = arith.constant 8 : i32
    %c0_359 = arith.constant 0 : index
    %c0_360 = arith.constant 0 : index
    %686 = vector.load %arg12[%c0_359, %c0_360] : memref<8x128xf32, #tpu.memory_space<vmem>>, vector<8x128xf32>
    %c0_361 = arith.constant 0 : index
    %c0_362 = arith.constant 0 : index
    %687 = vector.load %arg8[%c0_361, %c0_362] : memref<128x128xf32, #tpu.memory_space<vmem>>, vector<128x128xf32>
    %cst_363 = arith.constant dense<0.000000e+00> : vector<8x128xf32>
    %688 = tpu.matmul %686, %687, %cst_363 {dimension_numbers = #tpu.dot_dimension_numbers<[1], [0], [0], [1], [0, 0, 1, 1], [], []>} : vector<8x128xf32>, vector<128x128xf32>, vector<8x128xf32> -> vector<8x128xf32>
    %c0_364 = arith.constant 0 : index
    %c0_365 = arith.constant 0 : index
    %689 = vector.load %arg9[%c0_364, %c0_365] : memref<1x128xf32, #tpu.memory_space<vmem>>, vector<1x128xf32>
    %690 = vector.broadcast %689 : vector<1x128xf32> to vector<8x128xf32>
    %691 = arith.addf %688, %690 : vector<8x128xf32>
    %c0_366 = arith.constant 0 : index
    %c0_367 = arith.constant 0 : index
    %692 = vector.load %arg10[%c0_366, %c0_367] : memref<8x128xf32, #tpu.memory_space<vmem>>, vector<8x128xf32>
    tpu.vector_store %arg10[%c0_366, %c0_367], %691 {strides = array<i32>} : memref<8x128xf32, #tpu.memory_space<vmem>>, vector<8x128xf32>,
    return
  }
  func.func @transform_0(%arg0: i32) -> (i32, i32, i32) {
    %c0_i32 = arith.constant 0 : i32
    %c0_i32_0 = arith.constant 0 : i32
    %c0_i32_1 = arith.constant 0 : i32
    return %c0_i32, %arg0, %c0_i32_0 : i32, i32, i32
  }
  func.func @transform_1(%arg0: i32) -> (i32, i32) {
    %c0_i32 = arith.constant 0 : i32
    %c0_i32_0 = arith.constant 0 : i32
    %c0_i32_1 = arith.constant 0 : i32
    return %c0_i32, %c0_i32_0 : i32, i32
  }
  func.func @transform_2(%arg0: i32) -> (i32, i32) {
    %c0_i32 = arith.constant 0 : i32
    %c0_i32_0 = arith.constant 0 : i32
    %c0_i32_1 = arith.constant 0 : i32
    return %c0_i32, %c0_i32_0 : i32, i32
  }
  func.func @transform_3(%arg0: i32) -> (i32, i32) {
    %c0_i32 = arith.constant 0 : i32
    %c0_i32_0 = arith.constant 0 : i32
    %c0_i32_1 = arith.constant 0 : i32
    return %c0_i32, %c0_i32_0 : i32, i32
  }
  func.func @transform_4(%arg0: i32) -> (i32, i32) {
    %c0_i32 = arith.constant 0 : i32
    %c0_i32_0 = arith.constant 0 : i32
    %c0_i32_1 = arith.constant 0 : i32
    return %c0_i32, %c0_i32_0 : i32, i32
  }
  func.func @transform_5(%arg0: i32) -> (i32, i32) {
    %c0_i32 = arith.constant 0 : i32
    %c0_i32_0 = arith.constant 0 : i32
    %c0_i32_1 = arith.constant 0 : i32
    return %c0_i32, %c0_i32_0 : i32, i32
  }
  func.func @transform_6(%arg0: i32) -> (i32, i32) {
    %c0_i32 = arith.constant 0 : i32
    %c0_i32_0 = arith.constant 0 : i32
    %c0_i32_1 = arith.constant 0 : i32
    return %c0_i32, %c0_i32_0 : i32, i32
  }
  func.func @transform_7(%arg0: i32) -> (i32, i32) {
    %c0_i32 = arith.constant 0 : i32
    %c0_i32_0 = arith.constant 0 : i32
    %c0_i32_1 = arith.constant 0 : i32
    return %c0_i32, %c0_i32_0 : i32, i32
  }
  func.func @transform_8(%arg0: i32) -> (i32, i32) {
    %c0_i32 = arith.constant 0 : i32
    %c0_i32_0 = arith.constant 0 : i32
    %c0_i32_1 = arith.constant 0 : i32
    return %c0_i32, %c0_i32_0 : i32, i32
  }
  func.func @transform_9(%arg0: i32) -> (i32, i32) {
    %c0_i32 = arith.constant 0 : i32
    %c0_i32_0 = arith.constant 0 : i32
    return %arg0, %c0_i32 : i32, i32
  }
}

</mosaic_0001>

<llo_original>
// kernel: tpu_custom_call.1
$region0: #{tpu_custom_call.1}
  #allocation0 [shape = 'u32[]', space=smem, size = 0x4, offset = 0x4, fixed_abs, tag = 'smem constant byte address 0x4 - core index']
  #allocation1 [shape = 'u32[144,128]{1,0:T(1,128)}', space=vmem, size = 0x12000, scoped, tag = 'internal scratch']
  #allocation2 [shape = 'f32[8,8,128]{2,1,0:T(8,128)}', space=vmem, size = 0x8000, scoped, tag = 'scratch operand']
  #allocation3 [shape = 'f32[8,128]{1,0:T(8,128)}', space=vmem, size = 0x1000, scoped, tag = 'scratch operand']
  #allocation4 [shape = 'f32[8,128]{1,0:T(8,128)}', space=vmem, size = 0x1000, scoped, tag = 'scratch operand']
  %s0 = inlined_call_operand.hbm [shape: f32[8,8,128], index: 0, kind: input, shape index: {}]
  %s1 = inlined_call_operand.hbm [shape: f32[128,512], index: 1, kind: input, shape index: {}]
  %s2 = inlined_call_operand.hbm [shape: f32[128,512], index: 2, kind: input, shape index: {}]
  %s3 = inlined_call_operand.vmem [shape: f32[1,512], index: 3, kind: input, shape index: {}]
  %s4 = inlined_call_operand.hbm [shape: f32[128,512], index: 4, kind: input, shape index: {}]
  %s5 = inlined_call_operand.hbm [shape: f32[128,512], index: 5, kind: input, shape index: {}]
  %s6 = inlined_call_operand.vmem [shape: f32[1,512], index: 6, kind: input, shape index: {}]
  %s7 = inlined_call_operand.hbm [shape: f32[128,128], index: 7, kind: input, shape index: {}]
  %s8 = inlined_call_operand.vmem [shape: f32[1,128], index: 8, kind: input, shape index: {}]
  %s9 = inlined_call_operand.hbm [shape: f32[8,128], index: 9, kind: output, shape index: {}]
  %s10 = sld [smem:[#allocation0]]
  $region70: #{tpu_custom_call.1} parent=0
    _
  %s12 = ssub.s32 1, %s10
  %s13 = scalar_select 0, %s12, %s10
  $region1: #{tpu_custom_call.1} parent=0
    #allocation5 [shape = 'u8[32768]{0}', space=vmem, size = 0x8000, scoped, tag = 'input window, operand 0, single buffered']
    #allocation6 [shape = 's32[1]{0}', space=sflag, size = 0x4, scoped, tag = 'scoped memory for tpu_custom_call.1']
    #allocation7 [shape = 's32[1]{0}', space=sflag, size = 0x4, scoped, tag = 'scoped memory for tpu_custom_call.1']
    #allocation8 [shape = 'u8[262144]{0}', space=vmem, size = 0x40000, scoped, tag = 'input window, operand 1, single buffered']
    #allocation9 [shape = 's32[1]{0}', space=sflag, size = 0x4, scoped, tag = 'scoped memory for tpu_custom_call.1']
    #allocation10 [shape = 'u8[262144]{0}', space=vmem, size = 0x40000, scoped, tag = 'input window, operand 2, single buffered']
    #allocation11 [shape = 'u8[262144]{0}', space=vmem, size = 0x40000, scoped, tag = 'input window, operand 4, single buffered']
    #allocation12 [shape = 's32[1]{0}', space=sflag, size = 0x4, scoped, tag = 'scoped memory for tpu_custom_call.1']
    #allocation13 [shape = 'u8[262144]{0}', space=vmem, size = 0x40000, scoped, tag = 'input window, operand 5, single buffered']
    #allocation14 [shape = 'u8[65536]{0}', space=vmem, size = 0x10000, scoped, tag = 'input window, operand 7, single buffered']
    #allocation15 [shape = 's32[1]{0}', space=sflag, size = 0x4, scoped, tag = 'scoped memory for tpu_custom_call.1']
    #allocation16 [shape = 'u8[4096]{0}', space=vmem, size = 0x1000, scoped, tag = 'output window, operand 0, single buffered']
    %14 = vsyncpa [#allocation6], 0
    %15 = vsyncpa [#allocation9], 0
    %16 = vsyncpa [#allocation12], 0
    %17 = vsyncpa [#allocation15], 0
    %18 = vsyncpa [#allocation7], 0
    // Predicated region
    $region2: #{tpu_custom_call.1} parent=1 // pred_check
      _
    $region3: #{tpu_custom_call.1} parent=1 // pred_check_branch
      %20 = sbr.rel (0) target = $region5
    $region4: #{tpu_custom_call.1} parent=1 // pred_region
      %s22 = ssub.s32 1024, 1024
      %23 = vsyncadd [#allocation6], %s22
      %s24 = sshll.u32 [#allocation5], 4
      %s25 = int_to_ptr.vmem [resolvable:$true] %s24
      %30 = dma.hbm_to_vmem [thread:$0]  %s0, 1024, %s25, [#allocation6], 128, 128, 8
    $region5: #{tpu_custom_call.1} parent=1 // pred_fallthru
      _
    // Predicated region
    $region6: #{tpu_custom_call.1} parent=1 // pred_check
      _
    $region7: #{tpu_custom_call.1} parent=1 // pred_check_branch
      %32 = sbr.rel (0) target = $region9
    $region8: #{tpu_custom_call.1} parent=1 // pred_region
      %s34 = ssub.s32 8192, 8192
      %35 = vsyncadd [#allocation9], %s34
      %s36 = sshll.u32 [#allocation8], 4
      %s37 = int_to_ptr.vmem [resolvable:$true] %s36
      %42 = dma.hbm_to_vmem [thread:$0]  %s1, 8192, %s37, [#allocation9], 512, 512, 32
    $region9: #{tpu_custom_call.1} parent=1 // pred_fallthru
      _
    // Predicated region
    $region10: #{tpu_custom_call.1} parent=1 // pred_check
      _
    $region11: #{tpu_custom_call.1} parent=1 // pred_check_branch
      %44 = sbr.rel (0) target = $region13
    $region12: #{tpu_custom_call.1} parent=1 // pred_region
      %s46 = ssub.s32 8192, 8192
      %47 = vsyncadd [#allocation9], %s46
      %s48 = sshll.u32 [#allocation10], 4
      %s49 = int_to_ptr.vmem [resolvable:$true] %s48
      %54 = dma.hbm_to_vmem [thread:$0]  %s2, 8192, %s49, [#allocation9], 512, 512, 32
    $region13: #{tpu_custom_call.1} parent=1 // pred_fallthru
      _
    // Predicated region
    $region14: #{tpu_custom_call.1} parent=1 // pred_check
      _
    $region15: #{tpu_custom_call.1} parent=1 // pred_check_branch
      %56 = sbr.rel (0) target = $region17
    $region16: #{tpu_custom_call.1} parent=1 // pred_region
      _
    $region17: #{tpu_custom_call.1} parent=1 // pred_fallthru
      _
    // Predicated region
    $region18: #{tpu_custom_call.1} parent=1 // pred_check
      _
    $region19: #{tpu_custom_call.1} parent=1 // pred_check_branch
      %58 = sbr.rel (0) target = $region21
    $region20: #{tpu_custom_call.1} parent=1 // pred_region
      %s60 = ssub.s32 8192, 8192
      %61 = vsyncadd [#allocation12], %s60
      %s62 = sshll.u32 [#allocation11], 4
      %s63 = int_to_ptr.vmem [resolvable:$true] %s62
      %68 = dma.hbm_to_vmem [thread:$0]  %s4, 8192, %s63, [#allocation12], 512, 512, 32
    $region21: #{tpu_custom_call.1} parent=1 // pred_fallthru
      _
    // Predicated region
    $region22: #{tpu_custom_call.1} parent=1 // pred_check
      _
    $region23: #{tpu_custom_call.1} parent=1 // pred_check_branch
      %70 = sbr.rel (0) target = $region25
    $region24: #{tpu_custom_call.1} parent=1 // pred_region
      %s72 = ssub.s32 8192, 8192
      %73 = vsyncadd [#allocation12], %s72
      %s74 = sshll.u32 [#allocation13], 4
      %s75 = int_to_ptr.vmem [resolvable:$true] %s74
      %80 = dma.hbm_to_vmem [thread:$0]  %s5, 8192, %s75, [#allocation12], 512, 512, 32
    $region25: #{tpu_custom_call.1} parent=1 // pred_fallthru
      _
    // Predicated region
    $region26: #{tpu_custom_call.1} parent=1 // pred_check
      _
    $region27: #{tpu_custom_call.1} parent=1 // pred_check_branch
      %82 = sbr.rel (0) target = $region29
    $region28: #{tpu_custom_call.1} parent=1 // pred_region
      _
    $region29: #{tpu_custom_call.1} parent=1 // pred_fallthru
      _
    // Predicated region
    $region30: #{tpu_custom_call.1} parent=1 // pred_check
      _
    $region31: #{tpu_custom_call.1} parent=1 // pred_check_branch
      %84 = sbr.rel (0) target = $region33
    $region32: #{tpu_custom_call.1} parent=1 // pred_region
      %s86 = ssub.s32 2048, 2048
      %87 = vsyncadd [#allocation15], %s86
      %s88 = sshll.u32 [#allocation14], 4
      %s89 = int_to_ptr.vmem [resolvable:$true] %s88
      %94 = dma.hbm_to_vmem [thread:$0]  %s7, 2048, %s89, [#allocation15], 128, 128, 8
    $region33: #{tpu_custom_call.1} parent=1 // pred_fallthru
      _
    // Predicated region
    $region34: #{tpu_custom_call.1} parent=1 // pred_check
      _
    $region35: #{tpu_custom_call.1} parent=1 // pred_check_branch
      %96 = sbr.rel (0) target = $region37
    $region36: #{tpu_custom_call.1} parent=1 // pred_region
      _
    $region37: #{tpu_custom_call.1} parent=1 // pred_fallthru
      _
    // Predicated region
    $region38: #{tpu_custom_call.1} parent=1 // pred_check
      _
    $region39: #{tpu_custom_call.1} parent=1 // pred_check_branch
      %98 = sbr.rel (0) target = $region41
    $region40: #{tpu_custom_call.1} parent=1 // pred_region
      %99 = dma.done [#allocation6], 1024
    $region41: #{tpu_custom_call.1} parent=1 // pred_fallthru
      _
    // Predicated region
    $region42: #{tpu_custom_call.1} parent=1 // pred_check
      _
    $region43: #{tpu_custom_call.1} parent=1 // pred_check_branch
      %101 = sbr.rel (0) target = $region45
    $region44: #{tpu_custom_call.1} parent=1 // pred_region
      %102 = dma.done [#allocation9], 8192
    $region45: #{tpu_custom_call.1} parent=1 // pred_fallthru
      _
    // Predicated region
    $region46: #{tpu_custom_call.1} parent=1 // pred_check
      _
    $region47: #{tpu_custom_call.1} parent=1 // pred_check_branch
      %104 = sbr.rel (0) target = $region49
    $region48: #{tpu_custom_call.1} parent=1 // pred_region
      %105 = dma.done [#allocation9], 8192
    $region49: #{tpu_custom_call.1} parent=1 // pred_fallthru
      _
    // Predicated region
    $region50: #{tpu_custom_call.1} parent=1 // pred_check
      _
    $region51: #{tpu_custom_call.1} parent=1 // pred_check_branch
      %107 = sbr.rel (0) target = $region53
    $region52: #{tpu_custom_call.1} parent=1 // pred_region
      %108 = dma.done [#allocation12], 8192
    $region53: #{tpu_custom_call.1} parent=1 // pred_fallthru
      _
    // Predicated region
    $region54: #{tpu_custom_call.1} parent=1 // pred_check
      _
    $region55: #{tpu_custom_call.1} parent=1 // pred_check_branch
      %110 = sbr.rel (0) target = $region57
    $region56: #{tpu_custom_call.1} parent=1 // pred_region
      %111 = dma.done [#allocation12], 8192
    $region57: #{tpu_custom_call.1} parent=1 // pred_fallthru
      _
    // Predicated region
    $region58: #{tpu_custom_call.1} parent=1 // pred_check
      _
    $region59: #{tpu_custom_call.1} parent=1 // pred_check_branch
      %113 = sbr.rel (0) target = $region61
    $region60: #{tpu_custom_call.1} parent=1 // pred_region
      %114 = dma.done [#allocation15], 2048
    $region61: #{tpu_custom_call.1} parent=1 // pred_fallthru
      _
    %115 = vst [vmem:[#allocation3] sm:$0xff] 0.0
    %116 = vst [vmem:[#allocation4] sm:$0xff] 0.0
    %v117 = vld [vmem:[%s3] sm:$0xf]
    %v119 = vlaneseq
    %v120 = vshrl.u32 %v119, 7
    %v121 = vsub.s32 0, %v120
    %v122 = vrot.slane %v117, %v121
    %v123 = vlaneseq
    %v124 = vshrl.u32 %v123, 7
    %v125 = vsub.s32 1, %v124
    %v126 = vrot.slane %v117, %v125
    %v127 = vlaneseq
    %v128 = vshrl.u32 %v127, 7
    %v129 = vsub.s32 2, %v128
    %v130 = vrot.slane %v117, %v129
    %v131 = vlaneseq
    %v132 = vshrl.u32 %v131, 7
    %v133 = vsub.s32 3, %v132
    %v134 = vrot.slane %v117, %v133
    %v139 = vld [vmem:[#allocation5] sm:$0xff]
    %v140 = vld [vmem:[#allocation8] sm:$0xff]
    %v141 = vld [vmem:[#allocation8 + $0x8] sm:$0xff]
    %v142 = vld [vmem:[#allocation8 + $0x10] sm:$0xff]
    %v143 = vld [vmem:[#allocation8 + $0x18] sm:$0xff]
    %v144 = vld [vmem:[#allocation8 + $0x20] sm:$0xff]
    %v145 = vld [vmem:[#allocation8 + $0x28] sm:$0xff]
    %v146 = vld [vmem:[#allocation8 + $0x30] sm:$0xff]
    %v147 = vld [vmem:[#allocation8 + $0x38] sm:$0xff]
    %v148 = vld [vmem:[#allocation8 + $0x40] sm:$0xff]
    %v149 = vld [vmem:[#allocation8 + $0x48] sm:$0xff]
    %v150 = vld [vmem:[#allocation8 + $0x50] sm:$0xff]
    %v151 = vld [vmem:[#allocation8 + $0x58] sm:$0xff]
    %v152 = vld [vmem:[#allocation8 + $0x60] sm:$0xff]
    %v153 = vld [vmem:[#allocation8 + $0x68] sm:$0xff]
    %v154 = vld [vmem:[#allocation8 + $0x70] sm:$0xff]
    %v155 = vld [vmem:[#allocation8 + $0x78] sm:$0xff]
    %v156 = vld [vmem:[#allocation8 + $0x80] sm:$0xff]
    %v157 = vld [vmem:[#allocation8 + $0x88] sm:$0xff]
    %v158 = vld [vmem:[#allocation8 + $0x90] sm:$0xff]
    %v159 = vld [vmem:[#allocation8 + $0x98] sm:$0xff]
    %v160 = vld [vmem:[#allocation8 + $0xa0] sm:$0xff]
    %v161 = vld [vmem:[#allocation8 + $0xa8] sm:$0xff]
    %v162 = vld [vmem:[#allocation8 + $0xb0] sm:$0xff]
    %v163 = vld [vmem:[#allocation8 + $0xb8] sm:$0xff]
    %v164 = vld [vmem:[#allocation8 + $0xc0] sm:$0xff]
    %v165 = vld [vmem:[#allocation8 + $0xc8] sm:$0xff]
    %v166 = vld [vmem:[#allocation8 + $0xd0] sm:$0xff]
    %v167 = vld [vmem:[#allocation8 + $0xd8] sm:$0xff]
    %v168 = vld [vmem:[#allocation8 + $0xe0] sm:$0xff]
    %v169 = vld [vmem:[#allocation8 + $0xe8] sm:$0xff]
    %v170 = vld [vmem:[#allocation8 + $0xf0] sm:$0xff]
    %v171 = vld [vmem:[#allocation8 + $0xf8] sm:$0xff]
    %v172 = vld [vmem:[#allocation8 + $0x100] sm:$0xff]
    %v173 = vld [vmem:[#allocation8 + $0x108] sm:$0xff]
    %v174 = vld [vmem:[#allocation8 + $0x110] sm:$0xff]
    %v175 = vld [vmem:[#allocation8 + $0x118] sm:$0xff]
    %v176 = vld [vmem:[#allocation8 + $0x120] sm:$0xff]
    %v177 = vld [vmem:[#allocation8 + $0x128] sm:$0xff]
    %v178 = vld [vmem:[#allocation8 + $0x130] sm:$0xff]
    %v179 = vld [vmem:[#allocation8 + $0x138] sm:$0xff]
    %v180 = vld [vmem:[#allocation8 + $0x140] sm:$0xff]
    %v181 = vld [vmem:[#allocation8 + $0x148] sm:$0xff]
    %v182 = vld [vmem:[#allocation8 + $0x150] sm:$0xff]
    %v183 = vld [vmem:[#allocation8 + $0x158] sm:$0xff]
    %v184 = vld [vmem:[#allocation8 + $0x160] sm:$0xff]
    %v185 = vld [vmem:[#allocation8 + $0x168] sm:$0xff]
    %v186 = vld [vmem:[#allocation8 + $0x170] sm:$0xff]
    %v187 = vld [vmem:[#allocation8 + $0x178] sm:$0xff]
    %v188 = vld [vmem:[#allocation8 + $0x180] sm:$0xff]
    %v189 = vld [vmem:[#allocation8 + $0x188] sm:$0xff]
    %v190 = vld [vmem:[#allocation8 + $0x190] sm:$0xff]
    %v191 = vld [vmem:[#allocation8 + $0x198] sm:$0xff]
    %v192 = vld [vmem:[#allocation8 + $0x1a0] sm:$0xff]
    %v193 = vld [vmem:[#allocation8 + $0x1a8] sm:$0xff]
    %v194 = vld [vmem:[#allocation8 + $0x1b0] sm:$0xff]
    %v195 = vld [vmem:[#allocation8 + $0x1b8] sm:$0xff]
    %v196 = vld [vmem:[#allocation8 + $0x1c0] sm:$0xff]
    %v197 = vld [vmem:[#allocation8 + $0x1c8] sm:$0xff]
    %v198 = vld [vmem:[#allocation8 + $0x1d0] sm:$0xff]
    %v199 = vld [vmem:[#allocation8 + $0x1d8] sm:$0xff]
    %v200 = vld [vmem:[#allocation8 + $0x1e0] sm:$0xff]
    %v201 = vld [vmem:[#allocation8 + $0x1e8] sm:$0xff]
    %v202 = vld [vmem:[#allocation8 + $0x1f0] sm:$0xff]
    %v203 = vld [vmem:[#allocation8 + $0x1f8] sm:$0xff]
    %v204 = vld [vmem:[#allocation3] sm:$0xff]
    %v205 = vld [vmem:[#allocation10] sm:$0xff]
    %v206 = vld [vmem:[#allocation10 + $0x8] sm:$0xff]
    %v207 = vld [vmem:[#allocation10 + $0x10] sm:$0xff]
    %v208 = vld [vmem:[#allocation10 + $0x18] sm:$0xff]
    %v209 = vld [vmem:[#allocation10 + $0x20] sm:$0xff]
    %v210 = vld [vmem:[#allocation10 + $0x28] sm:$0xff]
    %v211 = vld [vmem:[#allocation10 + $0x30] sm:$0xff]
    %v212 = vld [vmem:[#allocation10 + $0x38] sm:$0xff]
    %v213 = vld [vmem:[#allocation10 + $0x40] sm:$0xff]
    %v214 = vld [vmem:[#allocation10 + $0x48] sm:$0xff]
    %v215 = vld [vmem:[#allocation10 + $0x50] sm:$0xff]
    %v216 = vld [vmem:[#allocation10 + $0x58] sm:$0xff]
    %v217 = vld [vmem:[#allocation10 + $0x60] sm:$0xff]
    %v218 = vld [vmem:[#allocation10 + $0x68] sm:$0xff]
    %v219 = vld [vmem:[#allocation10 + $0x70] sm:$0xff]
    %v220 = vld [vmem:[#allocation10 + $0x78] sm:$0xff]
    %v221 = vld [vmem:[#allocation10 + $0x80] sm:$0xff]
    %v222 = vld [vmem:[#allocation10 + $0x88] sm:$0xff]
    %v223 = vld [vmem:[#allocation10 + $0x90] sm:$0xff]
    %v224 = vld [vmem:[#allocation10 + $0x98] sm:$0xff]
    %v225 = vld [vmem:[#allocation10 + $0xa0] sm:$0xff]
    %v226 = vld [vmem:[#allocation10 + $0xa8] sm:$0xff]
    %v227 = vld [vmem:[#allocation10 + $0xb0] sm:$0xff]
    %v228 = vld [vmem:[#allocation10 + $0xb8] sm:$0xff]
    %v229 = vld [vmem:[#allocation10 + $0xc0] sm:$0xff]
    %v230 = vld [vmem:[#allocation10 + $0xc8] sm:$0xff]
    %v231 = vld [vmem:[#allocation10 + $0xd0] sm:$0xff]
    %v232 = vld [vmem:[#allocation10 + $0xd8] sm:$0xff]
    %v233 = vld [vmem:[#allocation10 + $0xe0] sm:$0xff]
    %v234 = vld [vmem:[#allocation10 + $0xe8] sm:$0xff]
    %v235 = vld [vmem:[#allocation10 + $0xf0] sm:$0xff]
    %v236 = vld [vmem:[#allocation10 + $0xf8] sm:$0xff]
    %v237 = vld [vmem:[#allocation10 + $0x100] sm:$0xff]
    %v238 = vld [vmem:[#allocation10 + $0x108] sm:$0xff]
    %v239 = vld [vmem:[#allocation10 + $0x110] sm:$0xff]
    %v240 = vld [vmem:[#allocation10 + $0x118] sm:$0xff]
    %v241 = vld [vmem:[#allocation10 + $0x120] sm:$0xff]
    %v242 = vld [vmem:[#allocation10 + $0x128] sm:$0xff]
    %v243 = vld [vmem:[#allocation10 + $0x130] sm:$0xff]
    %v244 = vld [vmem:[#allocation10 + $0x138] sm:$0xff]
    %v245 = vld [vmem:[#allocation10 + $0x140] sm:$0xff]
    %v246 = vld [vmem:[#allocation10 + $0x148] sm:$0xff]
    %v247 = vld [vmem:[#allocation10 + $0x150] sm:$0xff]
    %v248 = vld [vmem:[#allocation10 + $0x158] sm:$0xff]
    %v249 = vld [vmem:[#allocation10 + $0x160] sm:$0xff]
    %v250 = vld [vmem:[#allocation10 + $0x168] sm:$0xff]
    %v251 = vld [vmem:[#allocation10 + $0x170] sm:$0xff]
    %v252 = vld [vmem:[#allocation10 + $0x178] sm:$0xff]
    %v253 = vld [vmem:[#allocation10 + $0x180] sm:$0xff]
    %v254 = vld [vmem:[#allocation10 + $0x188] sm:$0xff]
    %v255 = vld [vmem:[#allocation10 + $0x190] sm:$0xff]
    %v256 = vld [vmem:[#allocation10 + $0x198] sm:$0xff]
    %v257 = vld [vmem:[#allocation10 + $0x1a0] sm:$0xff]
    %v258 = vld [vmem:[#allocation10 + $0x1a8] sm:$0xff]
    %v259 = vld [vmem:[#allocation10 + $0x1b0] sm:$0xff]
    %v260 = vld [vmem:[#allocation10 + $0x1b8] sm:$0xff]
    %v261 = vld [vmem:[#allocation10 + $0x1c0] sm:$0xff]
    %v262 = vld [vmem:[#allocation10 + $0x1c8] sm:$0xff]
    %v263 = vld [vmem:[#allocation10 + $0x1d0] sm:$0xff]
    %v264 = vld [vmem:[#allocation10 + $0x1d8] sm:$0xff]
    %v265 = vld [vmem:[#allocation10 + $0x1e0] sm:$0xff]
    %v266 = vld [vmem:[#allocation10 + $0x1e8] sm:$0xff]
    %v267 = vld [vmem:[#allocation10 + $0x1f0] sm:$0xff]
    %v268 = vld [vmem:[#allocation10 + $0x1f8] sm:$0xff]
    %269 = vmatprep.subr.mxu0 %v206
    %270 = vmatpush1.msra.mxu0 %v205
    %271 = vmatprep.subr.mxu0 %v210
    %272 = vmatpush1.msra.mxu0 %v209
    %273 = vmatprep.subr.mxu0 %v214
    %274 = vmatpush1.msra.mxu0 %v213
    %275 = vmatprep.subr.mxu0 %v218
    %276 = vmatpush1.msra.mxu0 %v217
    %277 = vmatprep.subr.mxu0 %v222
    %278 = vmatpush1.msra.mxu0 %v221
    %279 = vmatprep.subr.mxu0 %v226
    %280 = vmatpush1.msra.mxu0 %v225
    %281 = vmatprep.subr.mxu0 %v230
    %282 = vmatpush1.msra.mxu0 %v229
    %283 = vmatprep.subr.mxu0 %v234
    %284 = vmatpush1.msra.mxu0 %v233
    %285 = vmatprep.subr.mxu0 %v238
    %286 = vmatpush1.msra.mxu0 %v237
    %287 = vmatprep.subr.mxu0 %v242
    %288 = vmatpush1.msra.mxu0 %v241
    %289 = vmatprep.subr.mxu0 %v246
    %290 = vmatpush1.msra.mxu0 %v245
    %291 = vmatprep.subr.mxu0 %v250
    %292 = vmatpush1.msra.mxu0 %v249
    %293 = vmatprep.subr.mxu0 %v254
    %294 = vmatpush1.msra.mxu0 %v253
    %295 = vmatprep.subr.mxu0 %v258
    %296 = vmatpush1.msra.mxu0 %v257
    %297 = vmatprep.subr.mxu0 %v262
    %298 = vmatpush1.msra.mxu0 %v261
    %299 = vmatprep.subr.mxu0 %v266
    %300 = vmatpush1.msra.mxu0 %v265
    %301 = vmatprep.subr.mxu0 0.0
    %302 = vmatpush1.msra.mxu0 0.0
    %303 = vmatprep.subr.mxu0 0.0
    %304 = vmatpush1.msra.mxu0 0.0
    %305 = vmatprep.subr.mxu0 0.0
    %306 = vmatpush1.msra.mxu0 0.0
    %307 = vmatprep.subr.mxu0 0.0
    %308 = vmatpush1.msra.mxu0 0.0
    %309 = vmatprep.subr.mxu0 0.0
    %310 = vmatpush1.msra.mxu0 0.0
    %311 = vmatprep.subr.mxu0 0.0
    %312 = vmatpush1.msra.mxu0 0.0
    %313 = vmatprep.subr.mxu0 0.0
    %314 = vmatpush1.msra.mxu0 0.0
    %315 = vmatprep.subr.mxu0 0.0
    %316 = vmatpush1.msra.mxu0 0.0
    %317 = vmatprep.subr.mxu0 0.0
    %318 = vmatpush1.msra.mxu0 0.0
    %319 = vmatprep.subr.mxu0 0.0
    %320 = vmatpush1.msra.mxu0 0.0
    %321 = vmatprep.subr.mxu0 0.0
    %322 = vmatpush1.msra.mxu0 0.0
    %323 = vmatprep.subr.mxu0 0.0
    %324 = vmatpush1.msra.mxu0 0.0
    %325 = vmatprep.subr.mxu0 0.0
    %326 = vmatpush1.msra.mxu0 0.0
    %327 = vmatprep.subr.mxu0 0.0
    %328 = vmatpush1.msra.mxu0 0.0
    %329 = vmatprep.subr.mxu0 0.0
    %330 = vmatpush1.msra.mxu0 0.0
    %331 = vmatprep.subr.mxu0 0.0
    %332 = vmatpush1.msra.mxu0 0.0
    %333 = vmatprep.mubr.f32.mxu0 0.0
    %334 = vmatmul.mubr.f32.gmra.mrb[0].mxu0 %v204
    %v335 = vpop.f32.mrb[0].mxu0
    %v336 = vadd.f32 0.0, %v335
    %v337 = vpop.f32.mrb[0].mxu0
    %v338 = vadd.f32 0.0, %v337
    %339 = vdwg.mxu0
    %340 = vmatprep.subr.mxu0 %v208
    %341 = vmatpush1.msra.mxu0 %v207
    %342 = vmatprep.subr.mxu0 %v212
    %343 = vmatpush1.msra.mxu0 %v211
    %344 = vmatprep.subr.mxu0 %v216
    %345 = vmatpush1.msra.mxu0 %v215
    %346 = vmatprep.subr.mxu0 %v220
    %347 = vmatpush1.msra.mxu0 %v219
    %348 = vmatprep.subr.mxu0 %v224
    %349 = vmatpush1.msra.mxu0 %v223
    %350 = vmatprep.subr.mxu0 %v228
    %351 = vmatpush1.msra.mxu0 %v227
    %352 = vmatprep.subr.mxu0 %v232
    %353 = vmatpush1.msra.mxu0 %v231
    %354 = vmatprep.subr.mxu0 %v236
    %355 = vmatpush1.msra.mxu0 %v235
    %356 = vmatprep.subr.mxu0 %v240
    %357 = vmatpush1.msra.mxu0 %v239
    %358 = vmatprep.subr.mxu0 %v244
    %359 = vmatpush1.msra.mxu0 %v243
    %360 = vmatprep.subr.mxu0 %v248
    %361 = vmatpush1.msra.mxu0 %v247
    %362 = vmatprep.subr.mxu0 %v252
    %363 = vmatpush1.msra.mxu0 %v251
    %364 = vmatprep.subr.mxu0 %v256
    %365 = vmatpush1.msra.mxu0 %v255
    %366 = vmatprep.subr.mxu0 %v260
    %367 = vmatpush1.msra.mxu0 %v259
    %368 = vmatprep.subr.mxu0 %v264
    %369 = vmatpush1.msra.mxu0 %v263
    %370 = vmatprep.subr.mxu0 %v268
    %371 = vmatpush1.msra.mxu0 %v267
    %372 = vmatprep.subr.mxu0 0.0
    %373 = vmatpush1.msra.mxu0 0.0
    %374 = vmatprep.subr.mxu0 0.0
    %375 = vmatpush1.msra.mxu0 0.0
    %376 = vmatprep.subr.mxu0 0.0
    %377 = vmatpush1.msra.mxu0 0.0
    %378 = vmatprep.subr.mxu0 0.0
    %379 = vmatpush1.msra.mxu0 0.0
    %380 = vmatprep.subr.mxu0 0.0
    %381 = vmatpush1.msra.mxu0 0.0
    %382 = vmatprep.subr.mxu0 0.0
    %383 = vmatpush1.msra.mxu0 0.0
    %384 = vmatprep.subr.mxu0 0.0
    %385 = vmatpush1.msra.mxu0 0.0
    %386 = vmatprep.subr.mxu0 0.0
    %387 = vmatpush1.msra.mxu0 0.0
    %388 = vmatprep.subr.mxu0 0.0
    %389 = vmatpush1.msra.mxu0 0.0
    %390 = vmatprep.subr.mxu0 0.0
    %391 = vmatpush1.msra.mxu0 0.0
    %392 = vmatprep.subr.mxu0 0.0
    %393 = vmatpush1.msra.mxu0 0.0
    %394 = vmatprep.subr.mxu0 0.0
    %395 = vmatpush1.msra.mxu0 0.0
    %396 = vmatprep.subr.mxu0 0.0
    %397 = vmatpush1.msra.mxu0 0.0
    %398 = vmatprep.subr.mxu0 0.0
    %399 = vmatpush1.msra.mxu0 0.0
    %400 = vmatprep.subr.mxu0 0.0
    %401 = vmatpush1.msra.mxu0 0.0
    %402 = vmatprep.subr.mxu0 0.0
    %403 = vmatpush1.msra.mxu0 0.0
    %404 = vmatprep.mubr.f32.mxu0 0.0
    %405 = vmatmul.mubr.f32.gmra.mrb[0].mxu0 %v204
    %v406 = vpop.f32.mrb[0].mxu0
    %v407 = vadd.f32 0.0, %v406
    %v408 = vpop.f32.mrb[0].mxu0
    %v409 = vadd.f32 0.0, %v408
    %410 = vdwg.mxu0
    %411 = vmatprep.subr.mxu0 %v141
    %412 = vmatpush1.msra.mxu0 %v140
    %413 = vmatprep.subr.mxu0 %v145
    %414 = vmatpush1.msra.mxu0 %v144
    %415 = vmatprep.subr.mxu0 %v149
    %416 = vmatpush1.msra.mxu0 %v148
    %417 = vmatprep.subr.mxu0 %v153
    %418 = vmatpush1.msra.mxu0 %v152
    %419 = vmatprep.subr.mxu0 %v157
    %420 = vmatpush1.msra.mxu0 %v156
    %421 = vmatprep.subr.mxu0 %v161
    %422 = vmatpush1.msra.mxu0 %v160
    %423 = vmatprep.subr.mxu0 %v165
    %424 = vmatpush1.msra.mxu0 %v164
    %425 = vmatprep.subr.mxu0 %v169
    %426 = vmatpush1.msra.mxu0 %v168
    %427 = vmatprep.subr.mxu0 %v173
    %428 = vmatpush1.msra.mxu0 %v172
    %429 = vmatprep.subr.mxu0 %v177
    %430 = vmatpush1.msra.mxu0 %v176
    %431 = vmatprep.subr.mxu0 %v181
    %432 = vmatpush1.msra.mxu0 %v180
    %433 = vmatprep.subr.mxu0 %v185
    %434 = vmatpush1.msra.mxu0 %v184
    %435 = vmatprep.subr.mxu0 %v189
    %436 = vmatpush1.msra.mxu0 %v188
    %437 = vmatprep.subr.mxu0 %v193
    %438 = vmatpush1.msra.mxu0 %v192
    %439 = vmatprep.subr.mxu0 %v197
    %440 = vmatpush1.msra.mxu0 %v196
    %441 = vmatprep.subr.mxu0 %v201
    %442 = vmatpush1.msra.mxu0 %v200
    %443 = vmatprep.subr.mxu0 0.0
    %444 = vmatpush1.msra.mxu0 0.0
    %445 = vmatprep.subr.mxu0 0.0
    %446 = vmatpush1.msra.mxu0 0.0
    %447 = vmatprep.subr.mxu0 0.0
    %448 = vmatpush1.msra.mxu0 0.0
    %449 = vmatprep.subr.mxu0 0.0
    %450 = vmatpush1.msra.mxu0 0.0
    %451 = vmatprep.subr.mxu0 0.0
    %452 = vmatpush1.msra.mxu0 0.0
    %453 = vmatprep.subr.mxu0 0.0
    %454 = vmatpush1.msra.mxu0 0.0
    %455 = vmatprep.subr.mxu0 0.0
    %456 = vmatpush1.msra.mxu0 0.0
    %457 = vmatprep.subr.mxu0 0.0
    %458 = vmatpush1.msra.mxu0 0.0
    %459 = vmatprep.subr.mxu0 0.0
    %460 = vmatpush1.msra.mxu0 0.0
    %461 = vmatprep.subr.mxu0 0.0
    %462 = vmatpush1.msra.mxu0 0.0
    %463 = vmatprep.subr.mxu0 0.0
    %464 = vmatpush1.msra.mxu0 0.0
    %465 = vmatprep.subr.mxu0 0.0
    %466 = vmatpush1.msra.mxu0 0.0
    %467 = vmatprep.subr.mxu0 0.0
    %468 = vmatpush1.msra.mxu0 0.0
    %469 = vmatprep.subr.mxu0 0.0
    %470 = vmatpush1.msra.mxu0 0.0
    %471 = vmatprep.subr.mxu0 0.0
    %472 = vmatpush1.msra.mxu0 0.0
    %473 = vmatprep.subr.mxu0 0.0
    %474 = vmatpush1.msra.mxu0 0.0
    %475 = vmatprep.mubr.f32.mxu0 0.0
    %476 = vmatmul.mubr.f32.gmra.mrb[0].mxu0 %v139
    %v477 = vpop.f32.mrb[0].mxu0
    %v478 = vadd.f32 %v336, %v477
    %v479 = vpop.f32.mrb[0].mxu0
    %v480 = vadd.f32 %v338, %v479
    %481 = vdwg.mxu0
    %482 = vmatprep.subr.mxu0 %v143
    %483 = vmatpush1.msra.mxu0 %v142
    %484 = vmatprep.subr.mxu0 %v147
    %485 = vmatpush1.msra.mxu0 %v146
    %486 = vmatprep.subr.mxu0 %v151
    %487 = vmatpush1.msra.mxu0 %v150
    %488 = vmatprep.subr.mxu0 %v155
    %489 = vmatpush1.msra.mxu0 %v154
    %490 = vmatprep.subr.mxu0 %v159
    %491 = vmatpush1.msra.mxu0 %v158
    %492 = vmatprep.subr.mxu0 %v163
    %493 = vmatpush1.msra.mxu0 %v162
    %494 = vmatprep.subr.mxu0 %v167
    %495 = vmatpush1.msra.mxu0 %v166
    %496 = vmatprep.subr.mxu0 %v171
    %497 = vmatpush1.msra.mxu0 %v170
    %498 = vmatprep.subr.mxu0 %v175
    %499 = vmatpush1.msra.mxu0 %v174
    %500 = vmatprep.subr.mxu0 %v179
    %501 = vmatpush1.msra.mxu0 %v178
    %502 = vmatprep.subr.mxu0 %v183
    %503 = vmatpush1.msra.mxu0 %v182
    %504 = vmatprep.subr.mxu0 %v187
    %505 = vmatpush1.msra.mxu0 %v186
    %506 = vmatprep.subr.mxu0 %v191
    %507 = vmatpush1.msra.mxu0 %v190
    %508 = vmatprep.subr.mxu0 %v195
    %509 = vmatpush1.msra.mxu0 %v194
    %510 = vmatprep.subr.mxu0 %v199
    %511 = vmatpush1.msra.mxu0 %v198
    %512 = vmatprep.subr.mxu0 %v203
    %513 = vmatpush1.msra.mxu0 %v202
    %514 = vmatprep.subr.mxu0 0.0
    %515 = vmatpush1.msra.mxu0 0.0
    %516 = vmatprep.subr.mxu0 0.0
    %517 = vmatpush1.msra.mxu0 0.0
    %518 = vmatprep.subr.mxu0 0.0
    %519 = vmatpush1.msra.mxu0 0.0
    %520 = vmatprep.subr.mxu0 0.0
    %521 = vmatpush1.msra.mxu0 0.0
    %522 = vmatprep.subr.mxu0 0.0
    %523 = vmatpush1.msra.mxu0 0.0
    %524 = vmatprep.subr.mxu0 0.0
    %525 = vmatpush1.msra.mxu0 0.0
    %526 = vmatprep.subr.mxu0 0.0
    %527 = vmatpush1.msra.mxu0 0.0
    %528 = vmatprep.subr.mxu0 0.0
    %529 = vmatpush1.msra.mxu0 0.0
    %530 = vmatprep.subr.mxu0 0.0
    %531 = vmatpush1.msra.mxu0 0.0
    %532 = vmatprep.subr.mxu0 0.0
    %533 = vmatpush1.msra.mxu0 0.0
    %534 = vmatprep.subr.mxu0 0.0
    %535 = vmatpush1.msra.mxu0 0.0
    %536 = vmatprep.subr.mxu0 0.0
    %537 = vmatpush1.msra.mxu0 0.0
    %538 = vmatprep.subr.mxu0 0.0
    %539 = vmatpush1.msra.mxu0 0.0
    %540 = vmatprep.subr.mxu0 0.0
    %541 = vmatpush1.msra.mxu0 0.0
    %542 = vmatprep.subr.mxu0 0.0
    %543 = vmatpush1.msra.mxu0 0.0
    %544 = vmatprep.subr.mxu0 0.0
    %545 = vmatpush1.msra.mxu0 0.0
    %546 = vmatprep.mubr.f32.mxu0 0.0
    %547 = vmatmul.mubr.f32.gmra.mrb[0].mxu0 %v139
    %v548 = vpop.f32.mrb[0].mxu0
    %v549 = vadd.f32 %v407, %v548
    %v550 = vpop.f32.mrb[0].mxu0
    %v551 = vadd.f32 %v409, %v550
    %552 = vdwg.mxu0
    %v553 = vadd.f32 %v478, %v122
    %v554 = vadd.f32 %v480, %v126
    %v555 = vadd.f32 %v549, %v130
    %v556 = vadd.f32 %v551, %v134
    %v557 = vxor.u32 %v553, 2147483648
    %v558 = vmul.f32 %v557, 1.442695
    %v559 = vpow.pop %v558
    %v560 = vadd.f32 %v559, 1.0
    %v561 = vrcp.pop %v560
    %v562 = vmul.f32 1.0, %v561
    %v563 = vxor.u32 %v554, 2147483648
    %v564 = vmul.f32 %v563, 1.442695
    %v565 = vpow.pop %v564
    %v566 = vadd.f32 %v565, 1.0
    %v567 = vrcp.pop %v566
    %v568 = vmul.f32 1.0, %v567
    %v569 = vtanh.pop %v555
    %v570 = vxor.u32 %v556, 2147483648
    %v571 = vmul.f32 %v570, 1.442695
    %v572 = vpow.pop %v571
    %v573 = vadd.f32 %v572, 1.0
    %v574 = vrcp.pop %v573
    %v575 = vmul.f32 1.0, %v574
    %v576 = vld [vmem:[#allocation4] sm:$0xff]
    %v577 = vmul.f32 %v568, %v576
    %v578 = vmul.f32 %v562, %v569
    %v579 = vadd.f32 %v577, %v578
    %v580 = vtanh.pop %v579
    %v581 = vmul.f32 %v575, %v580
    %582 = vst [vmem:[#allocation4] sm:$0xff] %v579
    %583 = vst [vmem:[#allocation3] sm:$0xff] %v581
    %584 = vst [vmem:[#allocation2] sm:$0xff] %v581
    %s585 = scalar_lea.vmem [#allocation5], 8
    %v586 = vld [vmem:[%s585] sm:$0xff]
    %v587 = vld [vmem:[#allocation8] sm:$0xff]
    %v588 = vld [vmem:[#allocation8 + $0x8] sm:$0xff]
    %v589 = vld [vmem:[#allocation8 + $0x10] sm:$0xff]
    %v590 = vld [vmem:[#allocation8 + $0x18] sm:$0xff]
    %v591 = vld [vmem:[#allocation8 + $0x20] sm:$0xff]
    %v592 = vld [vmem:[#allocation8 + $0x28] sm:$0xff]
    %v593 = vld [vmem:[#allocation8 + $0x30] sm:$0xff]
    %v594 = vld [vmem:[#allocation8 + $0x38] sm:$0xff]
    %v595 = vld [vmem:[#allocation8 + $0x40] sm:$0xff]
    %v596 = vld [vmem:[#allocation8 + $0x48] sm:$0xff]
    %v597 = vld [vmem:[#allocation8 + $0x50] sm:$0xff]
    %v598 = vld [vmem:[#allocation8 + $0x58] sm:$0xff]
    %v599 = vld [vmem:[#allocation8 + $0x60] sm:$0xff]
    %v600 = vld [vmem:[#allocation8 + $0x68] sm:$0xff]
    %v601 = vld [vmem:[#allocation8 + $0x70] sm:$0xff]
    %v602 = vld [vmem:[#allocation8 + $0x78] sm:$0xff]
    %v603 = vld [vmem:[#allocation8 + $0x80] sm:$0xff]
    %v604 = vld [vmem:[#allocation8 + $0x88] sm:$0xff]
    %v605 = vld [vmem:[#allocation8 + $0x90] sm:$0xff]
    %v606 = vld [vmem:[#allocation8 + $0x98] sm:$0xff]
    %v607 = vld [vmem:[#allocation8 + $0xa0] sm:$0xff]
    %v608 = vld [vmem:[#allocation8 + $0xa8] sm:$0xff]
    %v609 = vld [vmem:[#allocation8 + $0xb0] sm:$0xff]
    %v610 = vld [vmem:[#allocation8 + $0xb8] sm:$0xff]
    %v611 = vld [vmem:[#allocation8 + $0xc0] sm:$0xff]
    %v612 = vld [vmem:[#allocation8 + $0xc8] sm:$0xff]
    %v613 = vld [vmem:[#allocation8 + $0xd0] sm:$0xff]
    %v614 = vld [vmem:[#allocation8 + $0xd8] sm:$0xff]
    %v615 = vld [vmem:[#allocation8 + $0xe0] sm:$0xff]
    %v616 = vld [vmem:[#allocation8 + $0xe8] sm:$0xff]
    %v617 = vld [vmem:[#allocation8 + $0xf0] sm:$0xff]
    %v618 = vld [vmem:[#allocation8 + $0xf8] sm:$0xff]
    %v619 = vld [vmem:[#allocation8 + $0x100] sm:$0xff]
    %v620 = vld [vmem:[#allocation8 + $0x108] sm:$0xff]
    %v621 = vld [vmem:[#allocation8 + $0x110] sm:$0xff]
    %v622 = vld [vmem:[#allocation8 + $0x118] sm:$0xff]
    %v623 = vld [vmem:[#allocation8 + $0x120] sm:$0xff]
    %v624 = vld [vmem:[#allocation8 + $0x128] sm:$0xff]
    %v625 = vld [vmem:[#allocation8 + $0x130] sm:$0xff]
    %v626 = vld [vmem:[#allocation8 + $0x138] sm:$0xff]
    %v627 = vld [vmem:[#allocation8 + $0x140] sm:$0xff]
    %v628 = vld [vmem:[#allocation8 + $0x148] sm:$0xff]
    %v629 = vld [vmem:[#allocation8 + $0x150] sm:$0xff]
    %v630 = vld [vmem:[#allocation8 + $0x158] sm:$0xff]
    %v631 = vld [vmem:[#allocation8 + $0x160] sm:$0xff]
    %v632 = vld [vmem:[#allocation8 + $0x168] sm:$0xff]
    %v633 = vld [vmem:[#allocation8 + $0x170] sm:$0xff]
    %v634 = vld [vmem:[#allocation8 + $0x178] sm:$0xff]
    %v635 = vld [vmem:[#allocation8 + $0x180] sm:$0xff]
    %v636 = vld [vmem:[#allocation8 + $0x188] sm:$0xff]
    %v637 = vld [vmem:[#allocation8 + $0x190] sm:$0xff]
    %v638 = vld [vmem:[#allocation8 + $0x198] sm:$0xff]
    %v639 = vld [vmem:[#allocation8 + $0x1a0] sm:$0xff]
    %v640 = vld [vmem:[#allocation8 + $0x1a8] sm:$0xff]
    %v641 = vld [vmem:[#allocation8 + $0x1b0] sm:$0xff]
    %v642 = vld [vmem:[#allocation8 + $0x1b8] sm:$0xff]
    %v643 = vld [vmem:[#allocation8 + $0x1c0] sm:$0xff]
    %v644 = vld [vmem:[#allocation8 + $0x1c8] sm:$0xff]
    %v645 = vld [vmem:[#allocation8 + $0x1d0] sm:$0xff]
    %v646 = vld [vmem:[#allocation8 + $0x1d8] sm:$0xff]
    %v647 = vld [vmem:[#allocation8 + $0x1e0] sm:$0xff]
    %v648 = vld [vmem:[#allocation8 + $0x1e8] sm:$0xff]
    %v649 = vld [vmem:[#allocation8 + $0x1f0] sm:$0xff]
    %v650 = vld [vmem:[#allocation8 + $0x1f8] sm:$0xff]
    %v651 = vld [vmem:[#allocation3] sm:$0xff]
    %v652 = vld [vmem:[#allocation10] sm:$0xff]
    %v653 = vld [vmem:[#allocation10 + $0x8] sm:$0xff]
    %v654 = vld [vmem:[#allocation10 + $0x10] sm:$0xff]
    %v655 = vld [vmem:[#allocation10 + $0x18] sm:$0xff]
    %v656 = vld [vmem:[#allocation10 + $0x20] sm:$0xff]
    %v657 = vld [vmem:[#allocation10 + $0x28] sm:$0xff]
    %v658 = vld [vmem:[#allocation10 + $0x30] sm:$0xff]
    %v659 = vld [vmem:[#allocation10 + $0x38] sm:$0xff]
    %v660 = vld [vmem:[#allocation10 + $0x40] sm:$0xff]
    %v661 = vld [vmem:[#allocation10 + $0x48] sm:$0xff]
    %v662 = vld [vmem:[#allocation10 + $0x50] sm:$0xff]
    %v663 = vld [vmem:[#allocation10 + $0x58] sm:$0xff]
    %v664 = vld [vmem:[#allocation10 + $0x60] sm:$0xff]
    %v665 = vld [vmem:[#allocation10 + $0x68] sm:$0xff]
    %v666 = vld [vmem:[#allocation10 + $0x70] sm:$0xff]
    %v667 = vld [vmem:[#allocation10 + $0x78] sm:$0xff]
    %v668 = vld [vmem:[#allocation10 + $0x80] sm:$0xff]
    %v669 = vld [vmem:[#allocation10 + $0x88] sm:$0xff]
    %v670 = vld [vmem:[#allocation10 + $0x90] sm:$0xff]
    %v671 = vld [vmem:[#allocation10 + $0x98] sm:$0xff]
    %v672 = vld [vmem:[#allocation10 + $0xa0] sm:$0xff]
    %v673 = vld [vmem:[#allocation10 + $0xa8] sm:$0xff]
    %v674 = vld [vmem:[#allocation10 + $0xb0] sm:$0xff]
    %v675 = vld [vmem:[#allocation10 + $0xb8] sm:$0xff]
    %v676 = vld [vmem:[#allocation10 + $0xc0] sm:$0xff]
    %v677 = vld [vmem:[#allocation10 + $0xc8] sm:$0xff]
    %v678 = vld [vmem:[#allocation10 + $0xd0] sm:$0xff]
    %v679 = vld [vmem:[#allocation10 + $0xd8] sm:$0xff]
    %v680 = vld [vmem:[#allocation10 + $0xe0] sm:$0xff]
    %v681 = vld [vmem:[#allocation10 + $0xe8] sm:$0xff]
    %v682 = vld [vmem:[#allocation10 + $0xf0] sm:$0xff]
    %v683 = vld [vmem:[#allocation10 + $0xf8] sm:$0xff]
    %v684 = vld [vmem:[#allocation10 + $0x100] sm:$0xff]
    %v685 = vld [vmem:[#allocation10 + $0x108] sm:$0xff]
    %v686 = vld [vmem:[#allocation10 + $0x110] sm:$0xff]
    %v687 = vld [vmem:[#allocation10 + $0x118] sm:$0xff]
    %v688 = vld [vmem:[#allocation10 + $0x120] sm:$0xff]
    %v689 = vld [vmem:[#allocation10 + $0x128] sm:$0xff]
    %v690 = vld [vmem:[#allocation10 + $0x130] sm:$0xff]
    %v691 = vld [vmem:[#allocation10 + $0x138] sm:$0xff]
    %v692 = vld [vmem:[#allocation10 + $0x140] sm:$0xff]
    %v693 = vld [vmem:[#allocation10 + $0x148] sm:$0xff]
    %v694 = vld [vmem:[#allocation10 + $0x150] sm:$0xff]
    %v695 = vld [vmem:[#allocation10 + $0x158] sm:$0xff]
    %v696 = vld [vmem:[#allocation10 + $0x160] sm:$0xff]
    %v697 = vld [vmem:[#allocation10 + $0x168] sm:$0xff]
    %v698 = vld [vmem:[#allocation10 + $0x170] sm:$0xff]
    %v699 = vld [vmem:[#allocation10 + $0x178] sm:$0xff]
    %v700 = vld [vmem:[#allocation10 + $0x180] sm:$0xff]
    %v701 = vld [vmem:[#allocation10 + $0x188] sm:$0xff]
    %v702 = vld [vmem:[#allocation10 + $0x190] sm:$0xff]
    %v703 = vld [vmem:[#allocation10 + $0x198] sm:$0xff]
    %v704 = vld [vmem:[#allocation10 + $0x1a0] sm:$0xff]
    %v705 = vld [vmem:[#allocation10 + $0x1a8] sm:$0xff]
    %v706 = vld [vmem:[#allocation10 + $0x1b0] sm:$0xff]
    %v707 = vld [vmem:[#allocation10 + $0x1b8] sm:$0xff]
    %v708 = vld [vmem:[#allocation10 + $0x1c0] sm:$0xff]
    %v709 = vld [vmem:[#allocation10 + $0x1c8] sm:$0xff]
    %v710 = vld [vmem:[#allocation10 + $0x1d0] sm:$0xff]
    %v711 = vld [vmem:[#allocation10 + $0x1d8] sm:$0xff]
    %v712 = vld [vmem:[#allocation10 + $0x1e0] sm:$0xff]
    %v713 = vld [vmem:[#allocation10 + $0x1e8] sm:$0xff]
    %v714 = vld [vmem:[#allocation10 + $0x1f0] sm:$0xff]
    %v715 = vld [vmem:[#allocation10 + $0x1f8] sm:$0xff]
    %716 = vmatprep.subr.mxu0 %v653
    %717 = vmatpush1.msra.mxu0 %v652
    %718 = vmatprep.subr.mxu0 %v657
    %719 = vmatpush1.msra.mxu0 %v656
    %720 = vmatprep.subr.mxu0 %v661
    %721 = vmatpush1.msra.mxu0 %v660
    %722 = vmatprep.subr.mxu0 %v665
    %723 = vmatpush1.msra.mxu0 %v664
    %724 = vmatprep.subr.mxu0 %v669
    %725 = vmatpush1.msra.mxu0 %v668
    %726 = vmatprep.subr.mxu0 %v673
    %727 = vmatpush1.msra.mxu0 %v672
    %728 = vmatprep.subr.mxu0 %v677
    %729 = vmatpush1.msra.mxu0 %v676
    %730 = vmatprep.subr.mxu0 %v681
    %731 = vmatpush1.msra.mxu0 %v680
    %732 = vmatprep.subr.mxu0 %v685
    %733 = vmatpush1.msra.mxu0 %v684
    %734 = vmatprep.subr.mxu0 %v689
    %735 = vmatpush1.msra.mxu0 %v688
    %736 = vmatprep.subr.mxu0 %v693
    %737 = vmatpush1.msra.mxu0 %v692
    %738 = vmatprep.subr.mxu0 %v697
    %739 = vmatpush1.msra.mxu0 %v696
    %740 = vmatprep.subr.mxu0 %v701
    %741 = vmatpush1.msra.mxu0 %v700
    %742 = vmatprep.subr.mxu0 %v705
    %743 = vmatpush1.msra.mxu0 %v704
    %744 = vmatprep.subr.mxu0 %v709
    %745 = vmatpush1.msra.mxu0 %v708
    %746 = vmatprep.subr.mxu0 %v713
    %747 = vmatpush1.msra.mxu0 %v712
    %748 = vmatprep.subr.mxu0 0.0
    %749 = vmatpush1.msra.mxu0 0.0
    %750 = vmatprep.subr.mxu0 0.0
    %751 = vmatpush1.msra.mxu0 0.0
    %752 = vmatprep.subr.mxu0 0.0
    %753 = vmatpush1.msra.mxu0 0.0
    %754 = vmatprep.subr.mxu0 0.0
    %755 = vmatpush1.msra.mxu0 0.0
    %756 = vmatprep.subr.mxu0 0.0
    %757 = vmatpush1.msra.mxu0 0.0
    %758 = vmatprep.subr.mxu0 0.0
    %759 = vmatpush1.msra.mxu0 0.0
    %760 = vmatprep.subr.mxu0 0.0
    %761 = vmatpush1.msra.mxu0 0.0
    %762 = vmatprep.subr.mxu0 0.0
    %763 = vmatpush1.msra.mxu0 0.0
    %764 = vmatprep.subr.mxu0 0.0
    %765 = vmatpush1.msra.mxu0 0.0
    %766 = vmatprep.subr.mxu0 0.0
    %767 = vmatpush1.msra.mxu0 0.0
    %768 = vmatprep.subr.mxu0 0.0
    %769 = vmatpush1.msra.mxu0 0.0
    %770 = vmatprep.subr.mxu0 0.0
    %771 = vmatpush1.msra.mxu0 0.0
    %772 = vmatprep.subr.mxu0 0.0
    %773 = vmatpush1.msra.mxu0 0.0
    %774 = vmatprep.subr.mxu0 0.0
    %775 = vmatpush1.msra.mxu0 0.0
    %776 = vmatprep.subr.mxu0 0.0
    %777 = vmatpush1.msra.mxu0 0.0
    %778 = vmatprep.subr.mxu0 0.0
    %779 = vmatpush1.msra.mxu0 0.0
    %780 = vmatprep.mubr.f32.mxu0 0.0
    %781 = vmatmul.mubr.f32.gmra.mrb[0].mxu0 %v651
    %v782 = vpop.f32.mrb[0].mxu0
    %v783 = vadd.f32 0.0, %v782
    %v784 = vpop.f32.mrb[0].mxu0
    %v785 = vadd.f32 0.0, %v784
    %786 = vdwg.mxu0
    %787 = vmatprep.subr.mxu0 %v655
    %788 = vmatpush1.msra.mxu0 %v654
    %789 = vmatprep.subr.mxu0 %v659
    %790 = vmatpush1.msra.mxu0 %v658
    %791 = vmatprep.subr.mxu0 %v663
    %792 = vmatpush1.msra.mxu0 %v662
    %793 = vmatprep.subr.mxu0 %v667
    %794 = vmatpush1.msra.mxu0 %v666
    %795 = vmatprep.subr.mxu0 %v671
    %796 = vmatpush1.msra.mxu0 %v670
    %797 = vmatprep.subr.mxu0 %v675
    %798 = vmatpush1.msra.mxu0 %v674
    %799 = vmatprep.subr.mxu0 %v679
    %800 = vmatpush1.msra.mxu0 %v678
    %801 = vmatprep.subr.mxu0 %v683
    %802 = vmatpush1.msra.mxu0 %v682
    %803 = vmatprep.subr.mxu0 %v687
    %804 = vmatpush1.msra.mxu0 %v686
    %805 = vmatprep.subr.mxu0 %v691
    %806 = vmatpush1.msra.mxu0 %v690
    %807 = vmatprep.subr.mxu0 %v695
    %808 = vmatpush1.msra.mxu0 %v694
    %809 = vmatprep.subr.mxu0 %v699
    %810 = vmatpush1.msra.mxu0 %v698
    %811 = vmatprep.subr.mxu0 %v703
    %812 = vmatpush1.msra.mxu0 %v702
    %813 = vmatprep.subr.mxu0 %v707
    %814 = vmatpush1.msra.mxu0 %v706
    %815 = vmatprep.subr.mxu0 %v711
    %816 = vmatpush1.msra.mxu0 %v710
    %817 = vmatprep.subr.mxu0 %v715
    %818 = vmatpush1.msra.mxu0 %v714
    %819 = vmatprep.subr.mxu0 0.0
    %820 = vmatpush1.msra.mxu0 0.0
    %821 = vmatprep.subr.mxu0 0.0
    %822 = vmatpush1.msra.mxu0 0.0
    %823 = vmatprep.subr.mxu0 0.0
    %824 = vmatpush1.msra.mxu0 0.0
    %825 = vmatprep.subr.mxu0 0.0
    %826 = vmatpush1.msra.mxu0 0.0
    %827 = vmatprep.subr.mxu0 0.0
    %828 = vmatpush1.msra.mxu0 0.0
    %829 = vmatprep.subr.mxu0 0.0
    %830 = vmatpush1.msra.mxu0 0.0
    %831 = vmatprep.subr.mxu0 0.0
    %832 = vmatpush1.msra.mxu0 0.0
    %833 = vmatprep.subr.mxu0 0.0
    %834 = vmatpush1.msra.mxu0 0.0
    %835 = vmatprep.subr.mxu0 0.0
    %836 = vmatpush1.msra.mxu0 0.0
    %837 = vmatprep.subr.mxu0 0.0
    %838 = vmatpush1.msra.mxu0 0.0
    %839 = vmatprep.subr.mxu0 0.0
    %840 = vmatpush1.msra.mxu0 0.0
    %841 = vmatprep.subr.mxu0 0.0
    %842 = vmatpush1.msra.mxu0 0.0
    %843 = vmatprep.subr.mxu0 0.0
    %844 = vmatpush1.msra.mxu0 0.0
    %845 = vmatprep.subr.mxu0 0.0
    %846 = vmatpush1.msra.mxu0 0.0
    %847 = vmatprep.subr.mxu0 0.0
    %848 = vmatpush1.msra.mxu0 0.0
    %849 = vmatprep.subr.mxu0 0.0
    %850 = vmatpush1.msra.mxu0 0.0
    %851 = vmatprep.mubr.f32.mxu0 0.0
    %852 = vmatmul.mubr.f32.gmra.mrb[0].mxu0 %v651
    %v853 = vpop.f32.mrb[0].mxu0
    %v854 = vadd.f32 0.0, %v853
    %v855 = vpop.f32.mrb[0].mxu0
    %v856 = vadd.f32 0.0, %v855
    %857 = vdwg.mxu0
    %858 = vmatprep.subr.mxu0 %v588
    %859 = vmatpush1.msra.mxu0 %v587
    %860 = vmatprep.subr.mxu0 %v592
    %861 = vmatpush1.msra.mxu0 %v591
    %862 = vmatprep.subr.mxu0 %v596
    %863 = vmatpush1.msra.mxu0 %v595
    %864 = vmatprep.subr.mxu0 %v600
    %865 = vmatpush1.msra.mxu0 %v599
    %866 = vmatprep.subr.mxu0 %v604
    %867 = vmatpush1.msra.mxu0 %v603
    %868 = vmatprep.subr.mxu0 %v608
    %869 = vmatpush1.msra.mxu0 %v607
    %870 = vmatprep.subr.mxu0 %v612
    %871 = vmatpush1.msra.mxu0 %v611
    %872 = vmatprep.subr.mxu0 %v616
    %873 = vmatpush1.msra.mxu0 %v615
    %874 = vmatprep.subr.mxu0 %v620
    %875 = vmatpush1.msra.mxu0 %v619
    %876 = vmatprep.subr.mxu0 %v624
    %877 = vmatpush1.msra.mxu0 %v623
    %878 = vmatprep.subr.mxu0 %v628
    %879 = vmatpush1.msra.mxu0 %v627
    %880 = vmatprep.subr.mxu0 %v632
    %881 = vmatpush1.msra.mxu0 %v631
    %882 = vmatprep.subr.mxu0 %v636
    %883 = vmatpush1.msra.mxu0 %v635
    %884 = vmatprep.subr.mxu0 %v640
    %885 = vmatpush1.msra.mxu0 %v639
    %886 = vmatprep.subr.mxu0 %v644
    %887 = vmatpush1.msra.mxu0 %v643
    %888 = vmatprep.subr.mxu0 %v648
    %889 = vmatpush1.msra.mxu0 %v647
    %890 = vmatprep.subr.mxu0 0.0
    %891 = vmatpush1.msra.mxu0 0.0
    %892 = vmatprep.subr.mxu0 0.0
    %893 = vmatpush1.msra.mxu0 0.0
    %894 = vmatprep.subr.mxu0 0.0
    %895 = vmatpush1.msra.mxu0 0.0
    %896 = vmatprep.subr.mxu0 0.0
    %897 = vmatpush1.msra.mxu0 0.0
    %898 = vmatprep.subr.mxu0 0.0
    %899 = vmatpush1.msra.mxu0 0.0
    %900 = vmatprep.subr.mxu0 0.0
    %901 = vmatpush1.msra.mxu0 0.0
    %902 = vmatprep.subr.mxu0 0.0
    %903 = vmatpush1.msra.mxu0 0.0
    %904 = vmatprep.subr.mxu0 0.0
    %905 = vmatpush1.msra.mxu0 0.0
    %906 = vmatprep.subr.mxu0 0.0
    %907 = vmatpush1.msra.mxu0 0.0
    %908 = vmatprep.subr.mxu0 0.0
    %909 = vmatpush1.msra.mxu0 0.0
    %910 = vmatprep.subr.mxu0 0.0
    %911 = vmatpush1.msra.mxu0 0.0
    %912 = vmatprep.subr.mxu0 0.0
    %913 = vmatpush1.msra.mxu0 0.0
    %914 = vmatprep.subr.mxu0 0.0
    %915 = vmatpush1.msra.mxu0 0.0
    %916 = vmatprep.subr.mxu0 0.0
    %917 = vmatpush1.msra.mxu0 0.0
    %918 = vmatprep.subr.mxu0 0.0
    %919 = vmatpush1.msra.mxu0 0.0
    %920 = vmatprep.subr.mxu0 0.0
    %921 = vmatpush1.msra.mxu0 0.0
    %922 = vmatprep.mubr.f32.mxu0 0.0
    %923 = vmatmul.mubr.f32.gmra.mrb[0].mxu0 %v586
    %v924 = vpop.f32.mrb[0].mxu0
    %v925 = vadd.f32 %v783, %v924
    %v926 = vpop.f32.mrb[0].mxu0
    %v927 = vadd.f32 %v785, %v926
    %928 = vdwg.mxu0
    %929 = vmatprep.subr.mxu0 %v590
    %930 = vmatpush1.msra.mxu0 %v589
    %931 = vmatprep.subr.mxu0 %v594
    %932 = vmatpush1.msra.mxu0 %v593
    %933 = vmatprep.subr.mxu0 %v598
    %934 = vmatpush1.msra.mxu0 %v597
    %935 = vmatprep.subr.mxu0 %v602
    %936 = vmatpush1.msra.mxu0 %v601
    %937 = vmatprep.subr.mxu0 %v606
    %938 = vmatpush1.msra.mxu0 %v605
    %939 = vmatprep.subr.mxu0 %v610
    %940 = vmatpush1.msra.mxu0 %v609
    %941 = vmatprep.subr.mxu0 %v614
    %942 = vmatpush1.msra.mxu0 %v613
    %943 = vmatprep.subr.mxu0 %v618
    %944 = vmatpush1.msra.mxu0 %v617
    %945 = vmatprep.subr.mxu0 %v622
    %946 = vmatpush1.msra.mxu0 %v621
    %947 = vmatprep.subr.mxu0 %v626
    %948 = vmatpush1.msra.mxu0 %v625
    %949 = vmatprep.subr.mxu0 %v630
    %950 = vmatpush1.msra.mxu0 %v629
    %951 = vmatprep.subr.mxu0 %v634
    %952 = vmatpush1.msra.mxu0 %v633
    %953 = vmatprep.subr.mxu0 %v638
    %954 = vmatpush1.msra.mxu0 %v637
    %955 = vmatprep.subr.mxu0 %v642
    %956 = vmatpush1.msra.mxu0 %v641
    %957 = vmatprep.subr.mxu0 %v646
    %958 = vmatpush1.msra.mxu0 %v645
    %959 = vmatprep.subr.mxu0 %v650
    %960 = vmatpush1.msra.mxu0 %v649
    %961 = vmatprep.subr.mxu0 0.0
    %962 = vmatpush1.msra.mxu0 0.0
    %963 = vmatprep.subr.mxu0 0.0
    %964 = vmatpush1.msra.mxu0 0.0
    %965 = vmatprep.subr.mxu0 0.0
    %966 = vmatpush1.msra.mxu0 0.0
    %967 = vmatprep.subr.mxu0 0.0
    %968 = vmatpush1.msra.mxu0 0.0
    %969 = vmatprep.subr.mxu0 0.0
    %970 = vmatpush1.msra.mxu0 0.0
    %971 = vmatprep.subr.mxu0 0.0
    %972 = vmatpush1.msra.mxu0 0.0
    %973 = vmatprep.subr.mxu0 0.0
    %974 = vmatpush1.msra.mxu0 0.0
    %975 = vmatprep.subr.mxu0 0.0
    %976 = vmatpush1.msra.mxu0 0.0
    %977 = vmatprep.subr.mxu0 0.0
    %978 = vmatpush1.msra.mxu0 0.0
    %979 = vmatprep.subr.mxu0 0.0
    %980 = vmatpush1.msra.mxu0 0.0
    %981 = vmatprep.subr.mxu0 0.0
    %982 = vmatpush1.msra.mxu0 0.0
    %983 = vmatprep.subr.mxu0 0.0
    %984 = vmatpush1.msra.mxu0 0.0
    %985 = vmatprep.subr.mxu0 0.0
    %986 = vmatpush1.msra.mxu0 0.0
    %987 = vmatprep.subr.mxu0 0.0
    %988 = vmatpush1.msra.mxu0 0.0
    %989 = vmatprep.subr.mxu0 0.0
    %990 = vmatpush1.msra.mxu0 0.0
    %991 = vmatprep.subr.mxu0 0.0
    %992 = vmatpush1.msra.mxu0 0.0
    %993 = vmatprep.mubr.f32.mxu0 0.0
    %994 = vmatmul.mubr.f32.gmra.mrb[0].mxu0 %v586
    %v995 = vpop.f32.mrb[0].mxu0
    %v996 = vadd.f32 %v854, %v995
    %v997 = vpop.f32.mrb[0].mxu0
    %v998 = vadd.f32 %v856, %v997
    %999 = vdwg.mxu0
    %v1000 = vadd.f32 %v925, %v122
    %v1001 = vadd.f32 %v927, %v126
    %v1002 = vadd.f32 %v996, %v130
    %v1003 = vadd.f32 %v998, %v134
    %v1004 = vxor.u32 %v1000, 2147483648
    %v1005 = vmul.f32 %v1004, 1.442695
    %v1006 = vpow.pop %v1005
    %v1007 = vadd.f32 %v1006, 1.0
    %v1008 = vrcp.pop %v1007
    %v1009 = vmul.f32 1.0, %v1008
    %v1010 = vxor.u32 %v1001, 2147483648
    %v1011 = vmul.f32 %v1010, 1.442695
    %v1012 = vpow.pop %v1011
    %v1013 = vadd.f32 %v1012, 1.0
    %v1014 = vrcp.pop %v1013
    %v1015 = vmul.f32 1.0, %v1014
    %v1016 = vtanh.pop %v1002
    %v1017 = vxor.u32 %v1003, 2147483648
    %v1018 = vmul.f32 %v1017, 1.442695
    %v1019 = vpow.pop %v1018
    %v1020 = vadd.f32 %v1019, 1.0
    %v1021 = vrcp.pop %v1020
    %v1022 = vmul.f32 1.0, %v1021
    %v1023 = vld [vmem:[#allocation4] sm:$0xff]
    %v1024 = vmul.f32 %v1015, %v1023
    %v1025 = vmul.f32 %v1009, %v1016
    %v1026 = vadd.f32 %v1024, %v1025
    %v1027 = vtanh.pop %v1026
    %v1028 = vmul.f32 %v1022, %v1027
    %1029 = vst [vmem:[#allocation4] sm:$0xff] %v1026
    %1030 = vst [vmem:[#allocation3] sm:$0xff] %v1028
    %s1031 = scalar_lea.vmem [#allocation2], 8
    %1032 = vst [vmem:[%s1031] sm:$0xff] %v1028
    %s1033 = scalar_lea.vmem [#allocation5], 16
    %v1034 = vld [vmem:[%s1033] sm:$0xff]
    %v1035 = vld [vmem:[#allocation8] sm:$0xff]
    %v1036 = vld [vmem:[#allocation8 + $0x8] sm:$0xff]
    %v1037 = vld [vmem:[#allocation8 + $0x10] sm:$0xff]
    %v1038 = vld [vmem:[#allocation8 + $0x18] sm:$0xff]
    %v1039 = vld [vmem:[#allocation8 + $0x20] sm:$0xff]
    %v1040 = vld [vmem:[#allocation8 + $0x28] sm:$0xff]
    %v1041 = vld [vmem:[#allocation8 + $0x30] sm:$0xff]
    %v1042 = vld [vmem:[#allocation8 + $0x38] sm:$0xff]
    %v1043 = vld [vmem:[#allocation8 + $0x40] sm:$0xff]
    %v1044 = vld [vmem:[#allocation8 + $0x48] sm:$0xff]
    %v1045 = vld [vmem:[#allocation8 + $0x50] sm:$0xff]
    %v1046 = vld [vmem:[#allocation8 + $0x58] sm:$0xff]
    %v1047 = vld [vmem:[#allocation8 + $0x60] sm:$0xff]
    %v1048 = vld [vmem:[#allocation8 + $0x68] sm:$0xff]
    %v1049 = vld [vmem:[#allocation8 + $0x70] sm:$0xff]
    %v1050 = vld [vmem:[#allocation8 + $0x78] sm:$0xff]
    %v1051 = vld [vmem:[#allocation8 + $0x80] sm:$0xff]
    %v1052 = vld [vmem:[#allocation8 + $0x88] sm:$0xff]
    %v1053 = vld [vmem:[#allocation8 + $0x90] sm:$0xff]
    %v1054 = vld [vmem:[#allocation8 + $0x98] sm:$0xff]
    %v1055 = vld [vmem:[#allocation8 + $0xa0] sm:$0xff]
    %v1056 = vld [vmem:[#allocation8 + $0xa8] sm:$0xff]
    %v1057 = vld [vmem:[#allocation8 + $0xb0] sm:$0xff]
    %v1058 = vld [vmem:[#allocation8 + $0xb8] sm:$0xff]
    %v1059 = vld [vmem:[#allocation8 + $0xc0] sm:$0xff]
    %v1060 = vld [vmem:[#allocation8 + $0xc8] sm:$0xff]
    %v1061 = vld [vmem:[#allocation8 + $0xd0] sm:$0xff]
    %v1062 = vld [vmem:[#allocation8 + $0xd8] sm:$0xff]
    %v1063 = vld [vmem:[#allocation8 + $0xe0] sm:$0xff]
    %v1064 = vld [vmem:[#allocation8 + $0xe8] sm:$0xff]
    %v1065 = vld [vmem:[#allocation8 + $0xf0] sm:$0xff]
    %v1066 = vld [vmem:[#allocation8 + $0xf8] sm:$0xff]
    %v1067 = vld [vmem:[#allocation8 + $0x100] sm:$0xff]
    %v1068 = vld [vmem:[#allocation8 + $0x108] sm:$0xff]
    %v1069 = vld [vmem:[#allocation8 + $0x110] sm:$0xff]
    %v1070 = vld [vmem:[#allocation8 + $0x118] sm:$0xff]
    %v1071 = vld [vmem:[#allocation8 + $0x120] sm:$0xff]
    %v1072 = vld [vmem:[#allocation8 + $0x128] sm:$0xff]
    %v1073 = vld [vmem:[#allocation8 + $0x130] sm:$0xff]
    %v1074 = vld [vmem:[#allocation8 + $0x138] sm:$0xff]
    %v1075 = vld [vmem:[#allocation8 + $0x140] sm:$0xff]
    %v1076 = vld [vmem:[#allocation8 + $0x148] sm:$0xff]
    %v1077 = vld [vmem:[#allocation8 + $0x150] sm:$0xff]
    %v1078 = vld [vmem:[#allocation8 + $0x158] sm:$0xff]
    %v1079 = vld [vmem:[#allocation8 + $0x160] sm:$0xff]
    %v1080 = vld [vmem:[#allocation8 + $0x168] sm:$0xff]
    %v1081 = vld [vmem:[#allocation8 + $0x170] sm:$0xff]
    %v1082 = vld [vmem:[#allocation8 + $0x178] sm:$0xff]
    %v1083 = vld [vmem:[#allocation8 + $0x180] sm:$0xff]
    %v1084 = vld [vmem:[#allocation8 + $0x188] sm:$0xff]
    %v1085 = vld [vmem:[#allocation8 + $0x190] sm:$0xff]
    %v1086 = vld [vmem:[#allocation8 + $0x198] sm:$0xff]
    %v1087 = vld [vmem:[#allocation8 + $0x1a0] sm:$0xff]
    %v1088 = vld [vmem:[#allocation8 + $0x1a8] sm:$0xff]
    %v1089 = vld [vmem:[#allocation8 + $0x1b0] sm:$0xff]
    %v1090 = vld [vmem:[#allocation8 + $0x1b8] sm:$0xff]
    %v1091 = vld [vmem:[#allocation8 + $0x1c0] sm:$0xff]
    %v1092 = vld [vmem:[#allocation8 + $0x1c8] sm:$0xff]
    %v1093 = vld [vmem:[#allocation8 + $0x1d0] sm:$0xff]
    %v1094 = vld [vmem:[#allocation8 + $0x1d8] sm:$0xff]
    %v1095 = vld [vmem:[#allocation8 + $0x1e0] sm:$0xff]
    %v1096 = vld [vmem:[#allocation8 + $0x1e8] sm:$0xff]
    %v1097 = vld [vmem:[#allocation8 + $0x1f0] sm:$0xff]
    %v1098 = vld [vmem:[#allocation8 + $0x1f8] sm:$0xff]
    %v1099 = vld [vmem:[#allocation3] sm:$0xff]
    %v1100 = vld [vmem:[#allocation10] sm:$0xff]
    %v1101 = vld [vmem:[#allocation10 + $0x8] sm:$0xff]
    %v1102 = vld [vmem:[#allocation10 + $0x10] sm:$0xff]
    %v1103 = vld [vmem:[#allocation10 + $0x18] sm:$0xff]
    %v1104 = vld [vmem:[#allocation10 + $0x20] sm:$0xff]
    %v1105 = vld [vmem:[#allocation10 + $0x28] sm:$0xff]
    %v1106 = vld [vmem:[#allocation10 + $0x30] sm:$0xff]
    %v1107 = vld [vmem:[#allocation10 + $0x38] sm:$0xff]
    %v1108 = vld [vmem:[#allocation10 + $0x40] sm:$0xff]
    %v1109 = vld [vmem:[#allocation10 + $0x48] sm:$0xff]
    %v1110 = vld [vmem:[#allocation10 + $0x50] sm:$0xff]
    %v1111 = vld [vmem:[#allocation10 + $0x58] sm:$0xff]
    %v1112 = vld [vmem:[#allocation10 + $0x60] sm:$0xff]
    %v1113 = vld [vmem:[#allocation10 + $0x68] sm:$0xff]
    %v1114 = vld [vmem:[#allocation10 + $0x70] sm:$0xff]
    %v1115 = vld [vmem:[#allocation10 + $0x78] sm:$0xff]
    %v1116 = vld [vmem:[#allocation10 + $0x80] sm:$0xff]
    %v1117 = vld [vmem:[#allocation10 + $0x88] sm:$0xff]
    %v1118 = vld [vmem:[#allocation10 + $0x90] sm:$0xff]
    %v1119 = vld [vmem:[#allocation10 + $0x98] sm:$0xff]
    %v1120 = vld [vmem:[#allocation10 + $0xa0] sm:$0xff]
    %v1121 = vld [vmem:[#allocation10 + $0xa8] sm:$0xff]
    %v1122 = vld [vmem:[#allocation10 + $0xb0] sm:$0xff]
    %v1123 = vld [vmem:[#allocation10 + $0xb8] sm:$0xff]
    %v1124 = vld [vmem:[#allocation10 + $0xc0] sm:$0xff]
    %v1125 = vld [vmem:[#allocation10 + $0xc8] sm:$0xff]
    %v1126 = vld [vmem:[#allocation10 + $0xd0] sm:$0xff]
    %v1127 = vld [vmem:[#allocation10 + $0xd8] sm:$0xff]
    %v1128 = vld [vmem:[#allocation10 + $0xe0] sm:$0xff]
    %v1129 = vld [vmem:[#allocation10 + $0xe8] sm:$0xff]
    %v1130 = vld [vmem:[#allocation10 + $0xf0] sm:$0xff]
    %v1131 = vld [vmem:[#allocation10 + $0xf8] sm:$0xff]
    %v1132 = vld [vmem:[#allocation10 + $0x100] sm:$0xff]
    %v1133 = vld [vmem:[#allocation10 + $0x108] sm:$0xff]
    %v1134 = vld [vmem:[#allocation10 + $0x110] sm:$0xff]
    %v1135 = vld [vmem:[#allocation10 + $0x118] sm:$0xff]
    %v1136 = vld [vmem:[#allocation10 + $0x120] sm:$0xff]
    %v1137 = vld [vmem:[#allocation10 + $0x128] sm:$0xff]
    %v1138 = vld [vmem:[#allocation10 + $0x130] sm:$0xff]
    %v1139 = vld [vmem:[#allocation10 + $0x138] sm:$0xff]
    %v1140 = vld [vmem:[#allocation10 + $0x140] sm:$0xff]
    %v1141 = vld [vmem:[#allocation10 + $0x148] sm:$0xff]
    %v1142 = vld [vmem:[#allocation10 + $0x150] sm:$0xff]
    %v1143 = vld [vmem:[#allocation10 + $0x158] sm:$0xff]
    %v1144 = vld [vmem:[#allocation10 + $0x160] sm:$0xff]
    %v1145 = vld [vmem:[#allocation10 + $0x168] sm:$0xff]
    %v1146 = vld [vmem:[#allocation10 + $0x170] sm:$0xff]
    %v1147 = vld [vmem:[#allocation10 + $0x178] sm:$0xff]
    %v1148 = vld [vmem:[#allocation10 + $0x180] sm:$0xff]
    %v1149 = vld [vmem:[#allocation10 + $0x188] sm:$0xff]
    %v1150 = vld [vmem:[#allocation10 + $0x190] sm:$0xff]
    %v1151 = vld [vmem:[#allocation10 + $0x198] sm:$0xff]
    %v1152 = vld [vmem:[#allocation10 + $0x1a0] sm:$0xff]
    %v1153 = vld [vmem:[#allocation10 + $0x1a8] sm:$0xff]
    %v1154 = vld [vmem:[#allocation10 + $0x1b0] sm:$0xff]
    %v1155 = vld [vmem:[#allocation10 + $0x1b8] sm:$0xff]
    %v1156 = vld [vmem:[#allocation10 + $0x1c0] sm:$0xff]
    %v1157 = vld [vmem:[#allocation10 + $0x1c8] sm:$0xff]
    %v1158 = vld [vmem:[#allocation10 + $0x1d0] sm:$0xff]
    %v1159 = vld [vmem:[#allocation10 + $0x1d8] sm:$0xff]
    %v1160 = vld [vmem:[#allocation10 + $0x1e0] sm:$0xff]
    %v1161 = vld [vmem:[#allocation10 + $0x1e8] sm:$0xff]
    %v1162 = vld [vmem:[#allocation10 + $0x1f0] sm:$0xff]
    %v1163 = vld [vmem:[#allocation10 + $0x1f8] sm:$0xff]
    %1164 = vmatprep.subr.mxu0 %v1101
    %1165 = vmatpush1.msra.mxu0 %v1100
    %1166 = vmatprep.subr.mxu0 %v1105
    %1167 = vmatpush1.msra.mxu0 %v1104
    %1168 = vmatprep.subr.mxu0 %v1109
    %1169 = vmatpush1.msra.mxu0 %v1108
    %1170 = vmatprep.subr.mxu0 %v1113
    %1171 = vmatpush1.msra.mxu0 %v1112
    %1172 = vmatprep.subr.mxu0 %v1117
    %1173 = vmatpush1.msra.mxu0 %v1116
    %1174 = vmatprep.subr.mxu0 %v1121
    %1175 = vmatpush1.msra.mxu0 %v1120
    %1176 = vmatprep.subr.mxu0 %v1125
    %1177 = vmatpush1.msra.mxu0 %v1124
    %1178 = vmatprep.subr.mxu0 %v1129
    %1179 = vmatpush1.msra.mxu0 %v1128
    %1180 = vmatprep.subr.mxu0 %v1133
    %1181 = vmatpush1.msra.mxu0 %v1132
    %1182 = vmatprep.subr.mxu0 %v1137
    %1183 = vmatpush1.msra.mxu0 %v1136
    %1184 = vmatprep.subr.mxu0 %v1141
    %1185 = vmatpush1.msra.mxu0 %v1140
    %1186 = vmatprep.subr.mxu0 %v1145
    %1187 = vmatpush1.msra.mxu0 %v1144
    %1188 = vmatprep.subr.mxu0 %v1149
    %1189 = vmatpush1.msra.mxu0 %v1148
    %1190 = vmatprep.subr.mxu0 %v1153
    %1191 = vmatpush1.msra.mxu0 %v1152
    %1192 = vmatprep.subr.mxu0 %v1157
    %1193 = vmatpush1.msra.mxu0 %v1156
    %1194 = vmatprep.subr.mxu0 %v1161
    %1195 = vmatpush1.msra.mxu0 %v1160
    %1196 = vmatprep.subr.mxu0 0.0
    %1197 = vmatpush1.msra.mxu0 0.0
    %1198 = vmatprep.subr.mxu0 0.0
    %1199 = vmatpush1.msra.mxu0 0.0
    %1200 = vmatprep.subr.mxu0 0.0
    %1201 = vmatpush1.msra.mxu0 0.0
    %1202 = vmatprep.subr.mxu0 0.0
    %1203 = vmatpush1.msra.mxu0 0.0
    %1204 = vmatprep.subr.mxu0 0.0
    %1205 = vmatpush1.msra.mxu0 0.0
    %1206 = vmatprep.subr.mxu0 0.0
    %1207 = vmatpush1.msra.mxu0 0.0
    %1208 = vmatprep.subr.mxu0 0.0
    %1209 = vmatpush1.msra.mxu0 0.0
    %1210 = vmatprep.subr.mxu0 0.0
    %1211 = vmatpush1.msra.mxu0 0.0
    %1212 = vmatprep.subr.mxu0 0.0
    %1213 = vmatpush1.msra.mxu0 0.0
    %1214 = vmatprep.subr.mxu0 0.0
    %1215 = vmatpush1.msra.mxu0 0.0
    %1216 = vmatprep.subr.mxu0 0.0
    %1217 = vmatpush1.msra.mxu0 0.0
    %1218 = vmatprep.subr.mxu0 0.0
    %1219 = vmatpush1.msra.mxu0 0.0
    %1220 = vmatprep.subr.mxu0 0.0
    %1221 = vmatpush1.msra.mxu0 0.0
    %1222 = vmatprep.subr.mxu0 0.0
    %1223 = vmatpush1.msra.mxu0 0.0
    %1224 = vmatprep.subr.mxu0 0.0
    %1225 = vmatpush1.msra.mxu0 0.0
    %1226 = vmatprep.subr.mxu0 0.0
    %1227 = vmatpush1.msra.mxu0 0.0
    %1228 = vmatprep.mubr.f32.mxu0 0.0
    %1229 = vmatmul.mubr.f32.gmra.mrb[0].mxu0 %v1099
    %v1230 = vpop.f32.mrb[0].mxu0
    %v1231 = vadd.f32 0.0, %v1230
    %v1232 = vpop.f32.mrb[0].mxu0
    %v1233 = vadd.f32 0.0, %v1232
    %1234 = vdwg.mxu0
    %1235 = vmatprep.subr.mxu0 %v1103
    %1236 = vmatpush1.msra.mxu0 %v1102
    %1237 = vmatprep.subr.mxu0 %v1107
    %1238 = vmatpush1.msra.mxu0 %v1106
    %1239 = vmatprep.subr.mxu0 %v1111
    %1240 = vmatpush1.msra.mxu0 %v1110
    %1241 = vmatprep.subr.mxu0 %v1115
    %1242 = vmatpush1.msra.mxu0 %v1114
    %1243 = vmatprep.subr.mxu0 %v1119
    %1244 = vmatpush1.msra.mxu0 %v1118
    %1245 = vmatprep.subr.mxu0 %v1123
    %1246 = vmatpush1.msra.mxu0 %v1122
    %1247 = vmatprep.subr.mxu0 %v1127
    %1248 = vmatpush1.msra.mxu0 %v1126
    %1249 = vmatprep.subr.mxu0 %v1131
    %1250 = vmatpush1.msra.mxu0 %v1130
    %1251 = vmatprep.subr.mxu0 %v1135
    %1252 = vmatpush1.msra.mxu0 %v1134
    %1253 = vmatprep.subr.mxu0 %v1139
    %1254 = vmatpush1.msra.mxu0 %v1138
    %1255 = vmatprep.subr.mxu0 %v1143
    %1256 = vmatpush1.msra.mxu0 %v1142
    %1257 = vmatprep.subr.mxu0 %v1147
    %1258 = vmatpush1.msra.mxu0 %v1146
    %1259 = vmatprep.subr.mxu0 %v1151
    %1260 = vmatpush1.msra.mxu0 %v1150
    %1261 = vmatprep.subr.mxu0 %v1155
    %1262 = vmatpush1.msra.mxu0 %v1154
    %1263 = vmatprep.subr.mxu0 %v1159
    %1264 = vmatpush1.msra.mxu0 %v1158
    %1265 = vmatprep.subr.mxu0 %v1163
    %1266 = vmatpush1.msra.mxu0 %v1162
    %1267 = vmatprep.subr.mxu0 0.0
    %1268 = vmatpush1.msra.mxu0 0.0
    %1269 = vmatprep.subr.mxu0 0.0
    %1270 = vmatpush1.msra.mxu0 0.0
    %1271 = vmatprep.subr.mxu0 0.0
    %1272 = vmatpush1.msra.mxu0 0.0
    %1273 = vmatprep.subr.mxu0 0.0
    %1274 = vmatpush1.msra.mxu0 0.0
    %1275 = vmatprep.subr.mxu0 0.0
    %1276 = vmatpush1.msra.mxu0 0.0
    %1277 = vmatprep.subr.mxu0 0.0
    %1278 = vmatpush1.msra.mxu0 0.0
    %1279 = vmatprep.subr.mxu0 0.0
    %1280 = vmatpush1.msra.mxu0 0.0
    %1281 = vmatprep.subr.mxu0 0.0
    %1282 = vmatpush1.msra.mxu0 0.0
    %1283 = vmatprep.subr.mxu0 0.0
    %1284 = vmatpush1.msra.mxu0 0.0
    %1285 = vmatprep.subr.mxu0 0.0
    %1286 = vmatpush1.msra.mxu0 0.0
    %1287 = vmatprep.subr.mxu0 0.0
    %1288 = vmatpush1.msra.mxu0 0.0
    %1289 = vmatprep.subr.mxu0 0.0
    %1290 = vmatpush1.msra.mxu0 0.0
    %1291 = vmatprep.subr.mxu0 0.0
    %1292 = vmatpush1.msra.mxu0 0.0
    %1293 = vmatprep.subr.mxu0 0.0
    %1294 = vmatpush1.msra.mxu0 0.0
    %1295 = vmatprep.subr.mxu0 0.0
    %1296 = vmatpush1.msra.mxu0 0.0
    %1297 = vmatprep.subr.mxu0 0.0
    %1298 = vmatpush1.msra.mxu0 0.0
    %1299 = vmatprep.mubr.f32.mxu0 0.0
    %1300 = vmatmul.mubr.f32.gmra.mrb[0].mxu0 %v1099
    %v1301 = vpop.f32.mrb[0].mxu0
    %v1302 = vadd.f32 0.0, %v1301
    %v1303 = vpop.f32.mrb[0].mxu0
    %v1304 = vadd.f32 0.0, %v1303
    %1305 = vdwg.mxu0
    %1306 = vmatprep.subr.mxu0 %v1036
    %1307 = vmatpush1.msra.mxu0 %v1035
    %1308 = vmatprep.subr.mxu0 %v1040
    %1309 = vmatpush1.msra.mxu0 %v1039
    %1310 = vmatprep.subr.mxu0 %v1044
    %1311 = vmatpush1.msra.mxu0 %v1043
    %1312 = vmatprep.subr.mxu0 %v1048
    %1313 = vmatpush1.msra.mxu0 %v1047
    %1314 = vmatprep.subr.mxu0 %v1052
    %1315 = vmatpush1.msra.mxu0 %v1051
    %1316 = vmatprep.subr.mxu0 %v1056
    %1317 = vmatpush1.msra.mxu0 %v1055
    %1318 = vmatprep.subr.mxu0 %v1060
    %1319 = vmatpush1.msra.mxu0 %v1059
    %1320 = vmatprep.subr.mxu0 %v1064
    %1321 = vmatpush1.msra.mxu0 %v1063
    %1322 = vmatprep.subr.mxu0 %v1068
    %1323 = vmatpush1.msra.mxu0 %v1067
    %1324 = vmatprep.subr.mxu0 %v1072
    %1325 = vmatpush1.msra.mxu0 %v1071
    %1326 = vmatprep.subr.mxu0 %v1076
    %1327 = vmatpush1.msra.mxu0 %v1075
    %1328 = vmatprep.subr.mxu0 %v1080
    %1329 = vmatpush1.msra.mxu0 %v1079
    %1330 = vmatprep.subr.mxu0 %v1084
    %1331 = vmatpush1.msra.mxu0 %v1083
    %1332 = vmatprep.subr.mxu0 %v1088
    %1333 = vmatpush1.msra.mxu0 %v1087
    %1334 = vmatprep.subr.mxu0 %v1092
    %1335 = vmatpush1.msra.mxu0 %v1091
    %1336 = vmatprep.subr.mxu0 %v1096
    %1337 = vmatpush1.msra.mxu0 %v1095
    %1338 = vmatprep.subr.mxu0 0.0
    %1339 = vmatpush1.msra.mxu0 0.0
    %1340 = vmatprep.subr.mxu0 0.0
    %1341 = vmatpush1.msra.mxu0 0.0
    %1342 = vmatprep.subr.mxu0 0.0
    %1343 = vmatpush1.msra.mxu0 0.0
    %1344 = vmatprep.subr.mxu0 0.0
    %1345 = vmatpush1.msra.mxu0 0.0
    %1346 = vmatprep.subr.mxu0 0.0
    %1347 = vmatpush1.msra.mxu0 0.0
    %1348 = vmatprep.subr.mxu0 0.0
    %1349 = vmatpush1.msra.mxu0 0.0
    %1350 = vmatprep.subr.mxu0 0.0
    %1351 = vmatpush1.msra.mxu0 0.0
    %1352 = vmatprep.subr.mxu0 0.0
    %1353 = vmatpush1.msra.mxu0 0.0
    %1354 = vmatprep.subr.mxu0 0.0
    %1355 = vmatpush1.msra.mxu0 0.0
    %1356 = vmatprep.subr.mxu0 0.0
    %1357 = vmatpush1.msra.mxu0 0.0
    %1358 = vmatprep.subr.mxu0 0.0
    %1359 = vmatpush1.msra.mxu0 0.0
    %1360 = vmatprep.subr.mxu0 0.0
    %1361 = vmatpush1.msra.mxu0 0.0
    %1362 = vmatprep.subr.mxu0 0.0
    %1363 = vmatpush1.msra.mxu0 0.0
    %1364 = vmatprep.subr.mxu0 0.0
    %1365 = vmatpush1.msra.mxu0 0.0
    %1366 = vmatprep.subr.mxu0 0.0
    %1367 = vmatpush1.msra.mxu0 0.0
    %1368 = vmatprep.subr.mxu0 0.0
    %1369 = vmatpush1.msra.mxu0 0.0
    %1370 = vmatprep.mubr.f32.mxu0 0.0
    %1371 = vmatmul.mubr.f32.gmra.mrb[0].mxu0 %v1034
    %v1372 = vpop.f32.mrb[0].mxu0
    %v1373 = vadd.f32 %v1231, %v1372
    %v1374 = vpop.f32.mrb[0].mxu0
    %v1375 = vadd.f32 %v1233, %v1374
    %1376 = vdwg.mxu0
    %1377 = vmatprep.subr.mxu0 %v1038
    %1378 = vmatpush1.msra.mxu0 %v1037
    %1379 = vmatprep.subr.mxu0 %v1042
    %1380 = vmatpush1.msra.mxu0 %v1041
    %1381 = vmatprep.subr.mxu0 %v1046
    %1382 = vmatpush1.msra.mxu0 %v1045
    %1383 = vmatprep.subr.mxu0 %v1050
    %1384 = vmatpush1.msra.mxu0 %v1049
    %1385 = vmatprep.subr.mxu0 %v1054
    %1386 = vmatpush1.msra.mxu0 %v1053
    %1387 = vmatprep.subr.mxu0 %v1058
    %1388 = vmatpush1.msra.mxu0 %v1057
    %1389 = vmatprep.subr.mxu0 %v1062
    %1390 = vmatpush1.msra.mxu0 %v1061
    %1391 = vmatprep.subr.mxu0 %v1066
    %1392 = vmatpush1.msra.mxu0 %v1065
    %1393 = vmatprep.subr.mxu0 %v1070
    %1394 = vmatpush1.msra.mxu0 %v1069
    %1395 = vmatprep.subr.mxu0 %v1074
    %1396 = vmatpush1.msra.mxu0 %v1073
    %1397 = vmatprep.subr.mxu0 %v1078
    %1398 = vmatpush1.msra.mxu0 %v1077
    %1399 = vmatprep.subr.mxu0 %v1082
    %1400 = vmatpush1.msra.mxu0 %v1081
    %1401 = vmatprep.subr.mxu0 %v1086
    %1402 = vmatpush1.msra.mxu0 %v1085
    %1403 = vmatprep.subr.mxu0 %v1090
    %1404 = vmatpush1.msra.mxu0 %v1089
    %1405 = vmatprep.subr.mxu0 %v1094
    %1406 = vmatpush1.msra.mxu0 %v1093
    %1407 = vmatprep.subr.mxu0 %v1098
    %1408 = vmatpush1.msra.mxu0 %v1097
    %1409 = vmatprep.subr.mxu0 0.0
    %1410 = vmatpush1.msra.mxu0 0.0
    %1411 = vmatprep.subr.mxu0 0.0
    %1412 = vmatpush1.msra.mxu0 0.0
    %1413 = vmatprep.subr.mxu0 0.0
    %1414 = vmatpush1.msra.mxu0 0.0
    %1415 = vmatprep.subr.mxu0 0.0
    %1416 = vmatpush1.msra.mxu0 0.0
    %1417 = vmatprep.subr.mxu0 0.0
    %1418 = vmatpush1.msra.mxu0 0.0
    %1419 = vmatprep.subr.mxu0 0.0
    %1420 = vmatpush1.msra.mxu0 0.0
    %1421 = vmatprep.subr.mxu0 0.0
    %1422 = vmatpush1.msra.mxu0 0.0
    %1423 = vmatprep.subr.mxu0 0.0
    %1424 = vmatpush1.msra.mxu0 0.0
    %1425 = vmatprep.subr.mxu0 0.0
    %1426 = vmatpush1.msra.mxu0 0.0
    %1427 = vmatprep.subr.mxu0 0.0
    %1428 = vmatpush1.msra.mxu0 0.0
    %1429 = vmatprep.subr.mxu0 0.0
    %1430 = vmatpush1.msra.mxu0 0.0
    %1431 = vmatprep.subr.mxu0 0.0
    %1432 = vmatpush1.msra.mxu0 0.0
    %1433 = vmatprep.subr.mxu0 0.0
    %1434 = vmatpush1.msra.mxu0 0.0
    %1435 = vmatprep.subr.mxu0 0.0
    %1436 = vmatpush1.msra.mxu0 0.0
    %1437 = vmatprep.subr.mxu0 0.0
    %1438 = vmatpush1.msra.mxu0 0.0
    %1439 = vmatprep.subr.mxu0 0.0
    %1440 = vmatpush1.msra.mxu0 0.0
    %1441 = vmatprep.mubr.f32.mxu0 0.0
    %1442 = vmatmul.mubr.f32.gmra.mrb[0].mxu0 %v1034
    %v1443 = vpop.f32.mrb[0].mxu0
    %v1444 = vadd.f32 %v1302, %v1443
    %v1445 = vpop.f32.mrb[0].mxu0
    %v1446 = vadd.f32 %v1304, %v1445
    %1447 = vdwg.mxu0
    %v1448 = vadd.f32 %v1373, %v122
    %v1449 = vadd.f32 %v1375, %v126
    %v1450 = vadd.f32 %v1444, %v130
    %v1451 = vadd.f32 %v1446, %v134
    %v1452 = vxor.u32 %v1448, 2147483648
    %v1453 = vmul.f32 %v1452, 1.442695
    %v1454 = vpow.pop %v1453
    %v1455 = vadd.f32 %v1454, 1.0
    %v1456 = vrcp.pop %v1455
    %v1457 = vmul.f32 1.0, %v1456
    %v1458 = vxor.u32 %v1449, 2147483648
    %v1459 = vmul.f32 %v1458, 1.442695
    %v1460 = vpow.pop %v1459
    %v1461 = vadd.f32 %v1460, 1.0
    %v1462 = vrcp.pop %v1461
    %v1463 = vmul.f32 1.0, %v1462
    %v1464 = vtanh.pop %v1450
    %v1465 = vxor.u32 %v1451, 2147483648
    %v1466 = vmul.f32 %v1465, 1.442695
    %v1467 = vpow.pop %v1466
    %v1468 = vadd.f32 %v1467, 1.0
    %v1469 = vrcp.pop %v1468
    %v1470 = vmul.f32 1.0, %v1469
    %v1471 = vld [vmem:[#allocation4] sm:$0xff]
    %v1472 = vmul.f32 %v1463, %v1471
    %v1473 = vmul.f32 %v1457, %v1464
    %v1474 = vadd.f32 %v1472, %v1473
    %v1475 = vtanh.pop %v1474
    %v1476 = vmul.f32 %v1470, %v1475
    %1477 = vst [vmem:[#allocation4] sm:$0xff] %v1474
    %1478 = vst [vmem:[#allocation3] sm:$0xff] %v1476
    %s1479 = scalar_lea.vmem [#allocation2], 16
    %1480 = vst [vmem:[%s1479] sm:$0xff] %v1476
    %s1481 = scalar_lea.vmem [#allocation5], 24
    %v1482 = vld [vmem:[%s1481] sm:$0xff]
    %v1483 = vld [vmem:[#allocation8] sm:$0xff]
    %v1484 = vld [vmem:[#allocation8 + $0x8] sm:$0xff]
    %v1485 = vld [vmem:[#allocation8 + $0x10] sm:$0xff]
    %v1486 = vld [vmem:[#allocation8 + $0x18] sm:$0xff]
    %v1487 = vld [vmem:[#allocation8 + $0x20] sm:$0xff]
    %v1488 = vld [vmem:[#allocation8 + $0x28] sm:$0xff]
    %v1489 = vld [vmem:[#allocation8 + $0x30] sm:$0xff]
    %v1490 = vld [vmem:[#allocation8 + $0x38] sm:$0xff]
    %v1491 = vld [vmem:[#allocation8 + $0x40] sm:$0xff]
    %v1492 = vld [vmem:[#allocation8 + $0x48] sm:$0xff]
    %v1493 = vld [vmem:[#allocation8 + $0x50] sm:$0xff]
    %v1494 = vld [vmem:[#allocation8 + $0x58] sm:$0xff]
    %v1495 = vld [vmem:[#allocation8 + $0x60] sm:$0xff]
    %v1496 = vld [vmem:[#allocation8 + $0x68] sm:$0xff]
    %v1497 = vld [vmem:[#allocation8 + $0x70] sm:$0xff]
    %v1498 = vld [vmem:[#allocation8 + $0x78] sm:$0xff]
    %v1499 = vld [vmem:[#allocation8 + $0x80] sm:$0xff]
    %v1500 = vld [vmem:[#allocation8 + $0x88] sm:$0xff]
    %v1501 = vld [vmem:[#allocation8 + $0x90] sm:$0xff]
    %v1502 = vld [vmem:[#allocation8 + $0x98] sm:$0xff]
    %v1503 = vld [vmem:[#allocation8 + $0xa0] sm:$0xff]
    %v1504 = vld [vmem:[#allocation8 + $0xa8] sm:$0xff]
    %v1505 = vld [vmem:[#allocation8 + $0xb0] sm:$0xff]
    %v1506 = vld [vmem:[#allocation8 + $0xb8] sm:$0xff]
    %v1507 = vld [vmem:[#allocation8 + $0xc0] sm:$0xff]
    %v1508 = vld [vmem:[#allocation8 + $0xc8] sm:$0xff]
    %v1509 = vld [vmem:[#allocation8 + $0xd0] sm:$0xff]
    %v1510 = vld [vmem:[#allocation8 + $0xd8] sm:$0xff]
    %v1511 = vld [vmem:[#allocation8 + $0xe0] sm:$0xff]
    %v1512 = vld [vmem:[#allocation8 + $0xe8] sm:$0xff]
    %v1513 = vld [vmem:[#allocation8 + $0xf0] sm:$0xff]
    %v1514 = vld [vmem:[#allocation8 + $0xf8] sm:$0xff]
    %v1515 = vld [vmem:[#allocation8 + $0x100] sm:$0xff]
    %v1516 = vld [vmem:[#allocation8 + $0x108] sm:$0xff]
    %v1517 = vld [vmem:[#allocation8 + $0x110] sm:$0xff]
    %v1518 = vld [vmem:[#allocation8 + $0x118] sm:$0xff]
    %v1519 = vld [vmem:[#allocation8 + $0x120] sm:$0xff]
    %v1520 = vld [vmem:[#allocation8 + $0x128] sm:$0xff]
    %v1521 = vld [vmem:[#allocation8 + $0x130] sm:$0xff]
    %v1522 = vld [vmem:[#allocation8 + $0x138] sm:$0xff]
    %v1523 = vld [vmem:[#allocation8 + $0x140] sm:$0xff]
    %v1524 = vld [vmem:[#allocation8 + $0x148] sm:$0xff]
    %v1525 = vld [vmem:[#allocation8 + $0x150] sm:$0xff]
    %v1526 = vld [vmem:[#allocation8 + $0x158] sm:$0xff]
    %v1527 = vld [vmem:[#allocation8 + $0x160] sm:$0xff]
    %v1528 = vld [vmem:[#allocation8 + $0x168] sm:$0xff]
    %v1529 = vld [vmem:[#allocation8 + $0x170] sm:$0xff]
    %v1530 = vld [vmem:[#allocation8 + $0x178] sm:$0xff]
    %v1531 = vld [vmem:[#allocation8 + $0x180] sm:$0xff]
    %v1532 = vld [vmem:[#allocation8 + $0x188] sm:$0xff]
    %v1533 = vld [vmem:[#allocation8 + $0x190] sm:$0xff]
    %v1534 = vld [vmem:[#allocation8 + $0x198] sm:$0xff]
    %v1535 = vld [vmem:[#allocation8 + $0x1a0] sm:$0xff]
    %v1536 = vld [vmem:[#allocation8 + $0x1a8] sm:$0xff]
    %v1537 = vld [vmem:[#allocation8 + $0x1b0] sm:$0xff]
    %v1538 = vld [vmem:[#allocation8 + $0x1b8] sm:$0xff]
    %v1539 = vld [vmem:[#allocation8 + $0x1c0] sm:$0xff]
    %v1540 = vld [vmem:[#allocation8 + $0x1c8] sm:$0xff]
    %v1541 = vld [vmem:[#allocation8 + $0x1d0] sm:$0xff]
    %v1542 = vld [vmem:[#allocation8 + $0x1d8] sm:$0xff]
    %v1543 = vld [vmem:[#allocation8 + $0x1e0] sm:$0xff]
    %v1544 = vld [vmem:[#allocation8 + $0x1e8] sm:$0xff]
    %v1545 = vld [vmem:[#allocation8 + $0x1f0] sm:$0xff]
    %v1546 = vld [vmem:[#allocation8 + $0x1f8] sm:$0xff]
    %v1547 = vld [vmem:[#allocation3] sm:$0xff]
    %v1548 = vld [vmem:[#allocation10] sm:$0xff]
    %v1549 = vld [vmem:[#allocation10 + $0x8] sm:$0xff]
    %v1550 = vld [vmem:[#allocation10 + $0x10] sm:$0xff]
    %v1551 = vld [vmem:[#allocation10 + $0x18] sm:$0xff]
    %v1552 = vld [vmem:[#allocation10 + $0x20] sm:$0xff]
    %v1553 = vld [vmem:[#allocation10 + $0x28] sm:$0xff]
    %v1554 = vld [vmem:[#allocation10 + $0x30] sm:$0xff]
    %v1555 = vld [vmem:[#allocation10 + $0x38] sm:$0xff]
    %v1556 = vld [vmem:[#allocation10 + $0x40] sm:$0xff]
    %v1557 = vld [vmem:[#allocation10 + $0x48] sm:$0xff]
    %v1558 = vld [vmem:[#allocation10 + $0x50] sm:$0xff]
    %v1559 = vld [vmem:[#allocation10 + $0x58] sm:$0xff]
    %v1560 = vld [vmem:[#allocation10 + $0x60] sm:$0xff]
    %v1561 = vld [vmem:[#allocation10 + $0x68] sm:$0xff]
    %v1562 = vld [vmem:[#allocation10 + $0x70] sm:$0xff]
    %v1563 = vld [vmem:[#allocation10 + $0x78] sm:$0xff]
    %v1564 = vld [vmem:[#allocation10 + $0x80] sm:$0xff]
    %v1565 = vld [vmem:[#allocation10 + $0x88] sm:$0xff]
    %v1566 = vld [vmem:[#allocation10 + $0x90] sm:$0xff]
    %v1567 = vld [vmem:[#allocation10 + $0x98] sm:$0xff]
    %v1568 = vld [vmem:[#allocation10 + $0xa0] sm:$0xff]
    %v1569 = vld [vmem:[#allocation10 + $0xa8] sm:$0xff]
    %v1570 = vld [vmem:[#allocation10 + $0xb0] sm:$0xff]
    %v1571 = vld [vmem:[#allocation10 + $0xb8] sm:$0xff]
    %v1572 = vld [vmem:[#allocation10 + $0xc0] sm:$0xff]
    %v1573 = vld [vmem:[#allocation10 + $0xc8] sm:$0xff]
    %v1574 = vld [vmem:[#allocation10 + $0xd0] sm:$0xff]
    %v1575 = vld [vmem:[#allocation10 + $0xd8] sm:$0xff]
    %v1576 = vld [vmem:[#allocation10 + $0xe0] sm:$0xff]
    %v1577 = vld [vmem:[#allocation10 + $0xe8] sm:$0xff]
    %v1578 = vld [vmem:[#allocation10 + $0xf0] sm:$0xff]
    %v1579 = vld [vmem:[#allocation10 + $0xf8] sm:$0xff]
    %v1580 = vld [vmem:[#allocation10 + $0x100] sm:$0xff]
    %v1581 = vld [vmem:[#allocation10 + $0x108] sm:$0xff]
    %v1582 = vld [vmem:[#allocation10 + $0x110] sm:$0xff]
    %v1583 = vld [vmem:[#allocation10 + $0x118] sm:$0xff]
    %v1584 = vld [vmem:[#allocation10 + $0x120] sm:$0xff]
    %v1585 = vld [vmem:[#allocation10 + $0x128] sm:$0xff]
    %v1586 = vld [vmem:[#allocation10 + $0x130] sm:$0xff]
    %v1587 = vld [vmem:[#allocation10 + $0x138] sm:$0xff]
    %v1588 = vld [vmem:[#allocation10 + $0x140] sm:$0xff]
    %v1589 = vld [vmem:[#allocation10 + $0x148] sm:$0xff]
    %v1590 = vld [vmem:[#allocation10 + $0x150] sm:$0xff]
    %v1591 = vld [vmem:[#allocation10 + $0x158] sm:$0xff]
    %v1592 = vld [vmem:[#allocation10 + $0x160] sm:$0xff]
    %v1593 = vld [vmem:[#allocation10 + $0x168] sm:$0xff]
    %v1594 = vld [vmem:[#allocation10 + $0x170] sm:$0xff]
    %v1595 = vld [vmem:[#allocation10 + $0x178] sm:$0xff]
    %v1596 = vld [vmem:[#allocation10 + $0x180] sm:$0xff]
    %v1597 = vld [vmem:[#allocation10 + $0x188] sm:$0xff]
    %v1598 = vld [vmem:[#allocation10 + $0x190] sm:$0xff]
    %v1599 = vld [vmem:[#allocation10 + $0x198] sm:$0xff]
    %v1600 = vld [vmem:[#allocation10 + $0x1a0] sm:$0xff]
    %v1601 = vld [vmem:[#allocation10 + $0x1a8] sm:$0xff]
    %v1602 = vld [vmem:[#allocation10 + $0x1b0] sm:$0xff]
    %v1603 = vld [vmem:[#allocation10 + $0x1b8] sm:$0xff]
    %v1604 = vld [vmem:[#allocation10 + $0x1c0] sm:$0xff]
    %v1605 = vld [vmem:[#allocation10 + $0x1c8] sm:$0xff]
    %v1606 = vld [vmem:[#allocation10 + $0x1d0] sm:$0xff]
    %v1607 = vld [vmem:[#allocation10 + $0x1d8] sm:$0xff]
    %v1608 = vld [vmem:[#allocation10 + $0x1e0] sm:$0xff]
    %v1609 = vld [vmem:[#allocation10 + $0x1e8] sm:$0xff]
    %v1610 = vld [vmem:[#allocation10 + $0x1f0] sm:$0xff]
    %v1611 = vld [vmem:[#allocation10 + $0x1f8] sm:$0xff]
    %1612 = vmatprep.subr.mxu0 %v1549
    %1613 = vmatpush1.msra.mxu0 %v1548
    %1614 = vmatprep.subr.mxu0 %v1553
    %1615 = vmatpush1.msra.mxu0 %v1552
    %1616 = vmatprep.subr.mxu0 %v1557
    %1617 = vmatpush1.msra.mxu0 %v1556
    %1618 = vmatprep.subr.mxu0 %v1561
    %1619 = vmatpush1.msra.mxu0 %v1560
    %1620 = vmatprep.subr.mxu0 %v1565
    %1621 = vmatpush1.msra.mxu0 %v1564
    %1622 = vmatprep.subr.mxu0 %v1569
    %1623 = vmatpush1.msra.mxu0 %v1568
    %1624 = vmatprep.subr.mxu0 %v1573
    %1625 = vmatpush1.msra.mxu0 %v1572
    %1626 = vmatprep.subr.mxu0 %v1577
    %1627 = vmatpush1.msra.mxu0 %v1576
    %1628 = vmatprep.subr.mxu0 %v1581
    %1629 = vmatpush1.msra.mxu0 %v1580
    %1630 = vmatprep.subr.mxu0 %v1585
    %1631 = vmatpush1.msra.mxu0 %v1584
    %1632 = vmatprep.subr.mxu0 %v1589
    %1633 = vmatpush1.msra.mxu0 %v1588
    %1634 = vmatprep.subr.mxu0 %v1593
    %1635 = vmatpush1.msra.mxu0 %v1592
    %1636 = vmatprep.subr.mxu0 %v1597
    %1637 = vmatpush1.msra.mxu0 %v1596
    %1638 = vmatprep.subr.mxu0 %v1601
    %1639 = vmatpush1.msra.mxu0 %v1600
    %1640 = vmatprep.subr.mxu0 %v1605
    %1641 = vmatpush1.msra.mxu0 %v1604
    %1642 = vmatprep.subr.mxu0 %v1609
    %1643 = vmatpush1.msra.mxu0 %v1608
    %1644 = vmatprep.subr.mxu0 0.0
    %1645 = vmatpush1.msra.mxu0 0.0
    %1646 = vmatprep.subr.mxu0 0.0
    %1647 = vmatpush1.msra.mxu0 0.0
    %1648 = vmatprep.subr.mxu0 0.0
    %1649 = vmatpush1.msra.mxu0 0.0
    %1650 = vmatprep.subr.mxu0 0.0
    %1651 = vmatpush1.msra.mxu0 0.0
    %1652 = vmatprep.subr.mxu0 0.0
    %1653 = vmatpush1.msra.mxu0 0.0
    %1654 = vmatprep.subr.mxu0 0.0
    %1655 = vmatpush1.msra.mxu0 0.0
    %1656 = vmatprep.subr.mxu0 0.0
    %1657 = vmatpush1.msra.mxu0 0.0
    %1658 = vmatprep.subr.mxu0 0.0
    %1659 = vmatpush1.msra.mxu0 0.0
    %1660 = vmatprep.subr.mxu0 0.0
    %1661 = vmatpush1.msra.mxu0 0.0
    %1662 = vmatprep.subr.mxu0 0.0
    %1663 = vmatpush1.msra.mxu0 0.0
    %1664 = vmatprep.subr.mxu0 0.0
    %1665 = vmatpush1.msra.mxu0 0.0
    %1666 = vmatprep.subr.mxu0 0.0
    %1667 = vmatpush1.msra.mxu0 0.0
    %1668 = vmatprep.subr.mxu0 0.0
    %1669 = vmatpush1.msra.mxu0 0.0
    %1670 = vmatprep.subr.mxu0 0.0
    %1671 = vmatpush1.msra.mxu0 0.0
    %1672 = vmatprep.subr.mxu0 0.0
    %1673 = vmatpush1.msra.mxu0 0.0
    %1674 = vmatprep.subr.mxu0 0.0
    %1675 = vmatpush1.msra.mxu0 0.0
    %1676 = vmatprep.mubr.f32.mxu0 0.0
    %1677 = vmatmul.mubr.f32.gmra.mrb[0].mxu0 %v1547
    %v1678 = vpop.f32.mrb[0].mxu0
    %v1679 = vadd.f32 0.0, %v1678
    %v1680 = vpop.f32.mrb[0].mxu0
    %v1681 = vadd.f32 0.0, %v1680
    %1682 = vdwg.mxu0
    %1683 = vmatprep.subr.mxu0 %v1551
    %1684 = vmatpush1.msra.mxu0 %v1550
    %1685 = vmatprep.subr.mxu0 %v1555
    %1686 = vmatpush1.msra.mxu0 %v1554
    %1687 = vmatprep.subr.mxu0 %v1559
    %1688 = vmatpush1.msra.mxu0 %v1558
    %1689 = vmatprep.subr.mxu0 %v1563
    %1690 = vmatpush1.msra.mxu0 %v1562
    %1691 = vmatprep.subr.mxu0 %v1567
    %1692 = vmatpush1.msra.mxu0 %v1566
    %1693 = vmatprep.subr.mxu0 %v1571
    %1694 = vmatpush1.msra.mxu0 %v1570
    %1695 = vmatprep.subr.mxu0 %v1575
    %1696 = vmatpush1.msra.mxu0 %v1574
    %1697 = vmatprep.subr.mxu0 %v1579
    %1698 = vmatpush1.msra.mxu0 %v1578
    %1699 = vmatprep.subr.mxu0 %v1583
    %1700 = vmatpush1.msra.mxu0 %v1582
    %1701 = vmatprep.subr.mxu0 %v1587
    %1702 = vmatpush1.msra.mxu0 %v1586
    %1703 = vmatprep.subr.mxu0 %v1591
    %1704 = vmatpush1.msra.mxu0 %v1590
    %1705 = vmatprep.subr.mxu0 %v1595
    %1706 = vmatpush1.msra.mxu0 %v1594
    %1707 = vmatprep.subr.mxu0 %v1599
    %1708 = vmatpush1.msra.mxu0 %v1598
    %1709 = vmatprep.subr.mxu0 %v1603
    %1710 = vmatpush1.msra.mxu0 %v1602
    %1711 = vmatprep.subr.mxu0 %v1607
    %1712 = vmatpush1.msra.mxu0 %v1606
    %1713 = vmatprep.subr.mxu0 %v1611
    %1714 = vmatpush1.msra.mxu0 %v1610
    %1715 = vmatprep.subr.mxu0 0.0
    %1716 = vmatpush1.msra.mxu0 0.0
    %1717 = vmatprep.subr.mxu0 0.0
    %1718 = vmatpush1.msra.mxu0 0.0
    %1719 = vmatprep.subr.mxu0 0.0
    %1720 = vmatpush1.msra.mxu0 0.0
    %1721 = vmatprep.subr.mxu0 0.0
    %1722 = vmatpush1.msra.mxu0 0.0
    %1723 = vmatprep.subr.mxu0 0.0
    %1724 = vmatpush1.msra.mxu0 0.0
    %1725 = vmatprep.subr.mxu0 0.0
    %1726 = vmatpush1.msra.mxu0 0.0
    %1727 = vmatprep.subr.mxu0 0.0
    %1728 = vmatpush1.msra.mxu0 0.0
    %1729 = vmatprep.subr.mxu0 0.0
    %1730 = vmatpush1.msra.mxu0 0.0
    %1731 = vmatprep.subr.mxu0 0.0
    %1732 = vmatpush1.msra.mxu0 0.0
    %1733 = vmatprep.subr.mxu0 0.0
    %1734 = vmatpush1.msra.mxu0 0.0
    %1735 = vmatprep.subr.mxu0 0.0
    %1736 = vmatpush1.msra.mxu0 0.0
    %1737 = vmatprep.subr.mxu0 0.0
    %1738 = vmatpush1.msra.mxu0 0.0
    %1739 = vmatprep.subr.mxu0 0.0
    %1740 = vmatpush1.msra.mxu0 0.0
    %1741 = vmatprep.subr.mxu0 0.0
    %1742 = vmatpush1.msra.mxu0 0.0
    %1743 = vmatprep.subr.mxu0 0.0
    %1744 = vmatpush1.msra.mxu0 0.0
    %1745 = vmatprep.subr.mxu0 0.0
    %1746 = vmatpush1.msra.mxu0 0.0
    %1747 = vmatprep.mubr.f32.mxu0 0.0
    %1748 = vmatmul.mubr.f32.gmra.mrb[0].mxu0 %v1547
    %v1749 = vpop.f32.mrb[0].mxu0
    %v1750 = vadd.f32 0.0, %v1749
    %v1751 = vpop.f32.mrb[0].mxu0
    %v1752 = vadd.f32 0.0, %v1751
    %1753 = vdwg.mxu0
    %1754 = vmatprep.subr.mxu0 %v1484
    %1755 = vmatpush1.msra.mxu0 %v1483
    %1756 = vmatprep.subr.mxu0 %v1488
    %1757 = vmatpush1.msra.mxu0 %v1487
    %1758 = vmatprep.subr.mxu0 %v1492
    %1759 = vmatpush1.msra.mxu0 %v1491
    %1760 = vmatprep.subr.mxu0 %v1496
    %1761 = vmatpush1.msra.mxu0 %v1495
    %1762 = vmatprep.subr.mxu0 %v1500
    %1763 = vmatpush1.msra.mxu0 %v1499
    %1764 = vmatprep.subr.mxu0 %v1504
    %1765 = vmatpush1.msra.mxu0 %v1503
    %1766 = vmatprep.subr.mxu0 %v1508
    %1767 = vmatpush1.msra.mxu0 %v1507
    %1768 = vmatprep.subr.mxu0 %v1512
    %1769 = vmatpush1.msra.mxu0 %v1511
    %1770 = vmatprep.subr.mxu0 %v1516
    %1771 = vmatpush1.msra.mxu0 %v1515
    %1772 = vmatprep.subr.mxu0 %v1520
    %1773 = vmatpush1.msra.mxu0 %v1519
    %1774 = vmatprep.subr.mxu0 %v1524
    %1775 = vmatpush1.msra.mxu0 %v1523
    %1776 = vmatprep.subr.mxu0 %v1528
    %1777 = vmatpush1.msra.mxu0 %v1527
    %1778 = vmatprep.subr.mxu0 %v1532
    %1779 = vmatpush1.msra.mxu0 %v1531
    %1780 = vmatprep.subr.mxu0 %v1536
    %1781 = vmatpush1.msra.mxu0 %v1535
    %1782 = vmatprep.subr.mxu0 %v1540
    %1783 = vmatpush1.msra.mxu0 %v1539
    %1784 = vmatprep.subr.mxu0 %v1544
    %1785 = vmatpush1.msra.mxu0 %v1543
    %1786 = vmatprep.subr.mxu0 0.0
    %1787 = vmatpush1.msra.mxu0 0.0
    %1788 = vmatprep.subr.mxu0 0.0
    %1789 = vmatpush1.msra.mxu0 0.0
    %1790 = vmatprep.subr.mxu0 0.0
    %1791 = vmatpush1.msra.mxu0 0.0
    %1792 = vmatprep.subr.mxu0 0.0
    %1793 = vmatpush1.msra.mxu0 0.0
    %1794 = vmatprep.subr.mxu0 0.0
    %1795 = vmatpush1.msra.mxu0 0.0
    %1796 = vmatprep.subr.mxu0 0.0
    %1797 = vmatpush1.msra.mxu0 0.0
    %1798 = vmatprep.subr.mxu0 0.0
    %1799 = vmatpush1.msra.mxu0 0.0
    %1800 = vmatprep.subr.mxu0 0.0
    %1801 = vmatpush1.msra.mxu0 0.0
    %1802 = vmatprep.subr.mxu0 0.0
    %1803 = vmatpush1.msra.mxu0 0.0
    %1804 = vmatprep.subr.mxu0 0.0
    %1805 = vmatpush1.msra.mxu0 0.0
    %1806 = vmatprep.subr.mxu0 0.0
    %1807 = vmatpush1.msra.mxu0 0.0
    %1808 = vmatprep.subr.mxu0 0.0
    %1809 = vmatpush1.msra.mxu0 0.0
    %1810 = vmatprep.subr.mxu0 0.0
    %1811 = vmatpush1.msra.mxu0 0.0
    %1812 = vmatprep.subr.mxu0 0.0
    %1813 = vmatpush1.msra.mxu0 0.0
    %1814 = vmatprep.subr.mxu0 0.0
    %1815 = vmatpush1.msra.mxu0 0.0
    %1816 = vmatprep.subr.mxu0 0.0
    %1817 = vmatpush1.msra.mxu0 0.0
    %1818 = vmatprep.mubr.f32.mxu0 0.0
    %1819 = vmatmul.mubr.f32.gmra.mrb[0].mxu0 %v1482
    %v1820 = vpop.f32.mrb[0].mxu0
    %v1821 = vadd.f32 %v1679, %v1820
    %v1822 = vpop.f32.mrb[0].mxu0
    %v1823 = vadd.f32 %v1681, %v1822
    %1824 = vdwg.mxu0
    %1825 = vmatprep.subr.mxu0 %v1486
    %1826 = vmatpush1.msra.mxu0 %v1485
    %1827 = vmatprep.subr.mxu0 %v1490
    %1828 = vmatpush1.msra.mxu0 %v1489
    %1829 = vmatprep.subr.mxu0 %v1494
    %1830 = vmatpush1.msra.mxu0 %v1493
    %1831 = vmatprep.subr.mxu0 %v1498
    %1832 = vmatpush1.msra.mxu0 %v1497
    %1833 = vmatprep.subr.mxu0 %v1502
    %1834 = vmatpush1.msra.mxu0 %v1501
    %1835 = vmatprep.subr.mxu0 %v1506
    %1836 = vmatpush1.msra.mxu0 %v1505
    %1837 = vmatprep.subr.mxu0 %v1510
    %1838 = vmatpush1.msra.mxu0 %v1509
    %1839 = vmatprep.subr.mxu0 %v1514
    %1840 = vmatpush1.msra.mxu0 %v1513
    %1841 = vmatprep.subr.mxu0 %v1518
    %1842 = vmatpush1.msra.mxu0 %v1517
    %1843 = vmatprep.subr.mxu0 %v1522
    %1844 = vmatpush1.msra.mxu0 %v1521
    %1845 = vmatprep.subr.mxu0 %v1526
    %1846 = vmatpush1.msra.mxu0 %v1525
    %1847 = vmatprep.subr.mxu0 %v1530
    %1848 = vmatpush1.msra.mxu0 %v1529
    %1849 = vmatprep.subr.mxu0 %v1534
    %1850 = vmatpush1.msra.mxu0 %v1533
    %1851 = vmatprep.subr.mxu0 %v1538
    %1852 = vmatpush1.msra.mxu0 %v1537
    %1853 = vmatprep.subr.mxu0 %v1542
    %1854 = vmatpush1.msra.mxu0 %v1541
    %1855 = vmatprep.subr.mxu0 %v1546
    %1856 = vmatpush1.msra.mxu0 %v1545
    %1857 = vmatprep.subr.mxu0 0.0
    %1858 = vmatpush1.msra.mxu0 0.0
    %1859 = vmatprep.subr.mxu0 0.0
    %1860 = vmatpush1.msra.mxu0 0.0
    %1861 = vmatprep.subr.mxu0 0.0
    %1862 = vmatpush1.msra.mxu0 0.0
    %1863 = vmatprep.subr.mxu0 0.0
    %1864 = vmatpush1.msra.mxu0 0.0
    %1865 = vmatprep.subr.mxu0 0.0
    %1866 = vmatpush1.msra.mxu0 0.0
    %1867 = vmatprep.subr.mxu0 0.0
    %1868 = vmatpush1.msra.mxu0 0.0
    %1869 = vmatprep.subr.mxu0 0.0
    %1870 = vmatpush1.msra.mxu0 0.0
    %1871 = vmatprep.subr.mxu0 0.0
    %1872 = vmatpush1.msra.mxu0 0.0
    %1873 = vmatprep.subr.mxu0 0.0
    %1874 = vmatpush1.msra.mxu0 0.0
    %1875 = vmatprep.subr.mxu0 0.0
    %1876 = vmatpush1.msra.mxu0 0.0
    %1877 = vmatprep.subr.mxu0 0.0
    %1878 = vmatpush1.msra.mxu0 0.0
    %1879 = vmatprep.subr.mxu0 0.0
    %1880 = vmatpush1.msra.mxu0 0.0
    %1881 = vmatprep.subr.mxu0 0.0
    %1882 = vmatpush1.msra.mxu0 0.0
    %1883 = vmatprep.subr.mxu0 0.0
    %1884 = vmatpush1.msra.mxu0 0.0
    %1885 = vmatprep.subr.mxu0 0.0
    %1886 = vmatpush1.msra.mxu0 0.0
    %1887 = vmatprep.subr.mxu0 0.0
    %1888 = vmatpush1.msra.mxu0 0.0
    %1889 = vmatprep.mubr.f32.mxu0 0.0
    %1890 = vmatmul.mubr.f32.gmra.mrb[0].mxu0 %v1482
    %v1891 = vpop.f32.mrb[0].mxu0
    %v1892 = vadd.f32 %v1750, %v1891
    %v1893 = vpop.f32.mrb[0].mxu0
    %v1894 = vadd.f32 %v1752, %v1893
    %1895 = vdwg.mxu0
    %v1896 = vadd.f32 %v1821, %v122
    %v1897 = vadd.f32 %v1823, %v126
    %v1898 = vadd.f32 %v1892, %v130
    %v1899 = vadd.f32 %v1894, %v134
    %v1900 = vxor.u32 %v1896, 2147483648
    %v1901 = vmul.f32 %v1900, 1.442695
    %v1902 = vpow.pop %v1901
    %v1903 = vadd.f32 %v1902, 1.0
    %v1904 = vrcp.pop %v1903
    %v1905 = vmul.f32 1.0, %v1904
    %v1906 = vxor.u32 %v1897, 2147483648
    %v1907 = vmul.f32 %v1906, 1.442695
    %v1908 = vpow.pop %v1907
    %v1909 = vadd.f32 %v1908, 1.0
    %v1910 = vrcp.pop %v1909
    %v1911 = vmul.f32 1.0, %v1910
    %v1912 = vtanh.pop %v1898
    %v1913 = vxor.u32 %v1899, 2147483648
    %v1914 = vmul.f32 %v1913, 1.442695
    %v1915 = vpow.pop %v1914
    %v1916 = vadd.f32 %v1915, 1.0
    %v1917 = vrcp.pop %v1916
    %v1918 = vmul.f32 1.0, %v1917
    %v1919 = vld [vmem:[#allocation4] sm:$0xff]
    %v1920 = vmul.f32 %v1911, %v1919
    %v1921 = vmul.f32 %v1905, %v1912
    %v1922 = vadd.f32 %v1920, %v1921
    %v1923 = vtanh.pop %v1922
    %v1924 = vmul.f32 %v1918, %v1923
    %1925 = vst [vmem:[#allocation4] sm:$0xff] %v1922
    %1926 = vst [vmem:[#allocation3] sm:$0xff] %v1924
    %s1927 = scalar_lea.vmem [#allocation2], 24
    %1928 = vst [vmem:[%s1927] sm:$0xff] %v1924
    %s1929 = scalar_lea.vmem [#allocation5], 32
    %v1930 = vld [vmem:[%s1929] sm:$0xff]
    %v1931 = vld [vmem:[#allocation8] sm:$0xff]
    %v1932 = vld [vmem:[#allocation8 + $0x8] sm:$0xff]
    %v1933 = vld [vmem:[#allocation8 + $0x10] sm:$0xff]
    %v1934 = vld [vmem:[#allocation8 + $0x18] sm:$0xff]
    %v1935 = vld [vmem:[#allocation8 + $0x20] sm:$0xff]
    %v1936 = vld [vmem:[#allocation8 + $0x28] sm:$0xff]
    %v1937 = vld [vmem:[#allocation8 + $0x30] sm:$0xff]
    %v1938 = vld [vmem:[#allocation8 + $0x38] sm:$0xff]
    %v1939 = vld [vmem:[#allocation8 + $0x40] sm:$0xff]
    %v1940 = vld [vmem:[#allocation8 + $0x48] sm:$0xff]
    %v1941 = vld [vmem:[#allocation8 + $0x50] sm:$0xff]
    %v1942 = vld [vmem:[#allocation8 + $0x58] sm:$0xff]
    %v1943 = vld [vmem:[#allocation8 + $0x60] sm:$0xff]
    %v1944 = vld [vmem:[#allocation8 + $0x68] sm:$0xff]
    %v1945 = vld [vmem:[#allocation8 + $0x70] sm:$0xff]
    %v1946 = vld [vmem:[#allocation8 + $0x78] sm:$0xff]
    %v1947 = vld [vmem:[#allocation8 + $0x80] sm:$0xff]
    %v1948 = vld [vmem:[#allocation8 + $0x88] sm:$0xff]
    %v1949 = vld [vmem:[#allocation8 + $0x90] sm:$0xff]
    %v1950 = vld [vmem:[#allocation8 + $0x98] sm:$0xff]
    %v1951 = vld [vmem:[#allocation8 + $0xa0] sm:$0xff]
    %v1952 = vld [vmem:[#allocation8 + $0xa8] sm:$0xff]
    %v1953 = vld [vmem:[#allocation8 + $0xb0] sm:$0xff]
    %v1954 = vld [vmem:[#allocation8 + $0xb8] sm:$0xff]
    %v1955 = vld [vmem:[#allocation8 + $0xc0] sm:$0xff]
    %v1956 = vld [vmem:[#allocation8 + $0xc8] sm:$0xff]
    %v1957 = vld [vmem:[#allocation8 + $0xd0] sm:$0xff]
    %v1958 = vld [vmem:[#allocation8 + $0xd8] sm:$0xff]
    %v1959 = vld [vmem:[#allocation8 + $0xe0] sm:$0xff]
    %v1960 = vld [vmem:[#allocation8 + $0xe8] sm:$0xff]
    %v1961 = vld [vmem:[#allocation8 + $0xf0] sm:$0xff]
    %v1962 = vld [vmem:[#allocation8 + $0xf8] sm:$0xff]
    %v1963 = vld [vmem:[#allocation8 + $0x100] sm:$0xff]
    %v1964 = vld [vmem:[#allocation8 + $0x108] sm:$0xff]
    %v1965 = vld [vmem:[#allocation8 + $0x110] sm:$0xff]
    %v1966 = vld [vmem:[#allocation8 + $0x118] sm:$0xff]
    %v1967 = vld [vmem:[#allocation8 + $0x120] sm:$0xff]
    %v1968 = vld [vmem:[#allocation8 + $0x128] sm:$0xff]
    %v1969 = vld [vmem:[#allocation8 + $0x130] sm:$0xff]
    %v1970 = vld [vmem:[#allocation8 + $0x138] sm:$0xff]
    %v1971 = vld [vmem:[#allocation8 + $0x140] sm:$0xff]
    %v1972 = vld [vmem:[#allocation8 + $0x148] sm:$0xff]
    %v1973 = vld [vmem:[#allocation8 + $0x150] sm:$0xff]
    %v1974 = vld [vmem:[#allocation8 + $0x158] sm:$0xff]
    %v1975 = vld [vmem:[#allocation8 + $0x160] sm:$0xff]
    %v1976 = vld [vmem:[#allocation8 + $0x168] sm:$0xff]
    %v1977 = vld [vmem:[#allocation8 + $0x170] sm:$0xff]
    %v1978 = vld [vmem:[#allocation8 + $0x178] sm:$0xff]
    %v1979 = vld [vmem:[#allocation8 + $0x180] sm:$0xff]
    %v1980 = vld [vmem:[#allocation8 + $0x188] sm:$0xff]
    %v1981 = vld [vmem:[#allocation8 + $0x190] sm:$0xff]
    %v1982 = vld [vmem:[#allocation8 + $0x198] sm:$0xff]
    %v1983 = vld [vmem:[#allocation8 + $0x1a0] sm:$0xff]
    %v1984 = vld [vmem:[#allocation8 + $0x1a8] sm:$0xff]
    %v1985 = vld [vmem:[#allocation8 + $0x1b0] sm:$0xff]
    %v1986 = vld [vmem:[#allocation8 + $0x1b8] sm:$0xff]
    %v1987 = vld [vmem:[#allocation8 + $0x1c0] sm:$0xff]
    %v1988 = vld [vmem:[#allocation8 + $0x1c8] sm:$0xff]
    %v1989 = vld [vmem:[#allocation8 + $0x1d0] sm:$0xff]
    %v1990 = vld [vmem:[#allocation8 + $0x1d8] sm:$0xff]
    %v1991 = vld [vmem:[#allocation8 + $0x1e0] sm:$0xff]
    %v1992 = vld [vmem:[#allocation8 + $0x1e8] sm:$0xff]
    %v1993 = vld [vmem:[#allocation8 + $0x1f0] sm:$0xff]
    %v1994 = vld [vmem:[#allocation8 + $0x1f8] sm:$0xff]
    %v1995 = vld [vmem:[#allocation3] sm:$0xff]
    %v1996 = vld [vmem:[#allocation10] sm:$0xff]
    %v1997 = vld [vmem:[#allocation10 + $0x8] sm:$0xff]
    %v1998 = vld [vmem:[#allocation10 + $0x10] sm:$0xff]
    %v1999 = vld [vmem:[#allocation10 + $0x18] sm:$0xff]
    %v2000 = vld [vmem:[#allocation10 + $0x20] sm:$0xff]
    %v2001 = vld [vmem:[#allocation10 + $0x28] sm:$0xff]
    %v2002 = vld [vmem:[#allocation10 + $0x30] sm:$0xff]
    %v2003 = vld [vmem:[#allocation10 + $0x38] sm:$0xff]
    %v2004 = vld [vmem:[#allocation10 + $0x40] sm:$0xff]
    %v2005 = vld [vmem:[#allocation10 + $0x48] sm:$0xff]
    %v2006 = vld [vmem:[#allocation10 + $0x50] sm:$0xff]
    %v2007 = vld [vmem:[#allocation10 + $0x58] sm:$0xff]
    %v2008 = vld [vmem:[#allocation10 + $0x60] sm:$0xff]
    %v2009 = vld [vmem:[#allocation10 + $0x68] sm:$0xff]
    %v2010 = vld [vmem:[#allocation10 + $0x70] sm:$0xff]
    %v2011 = vld [vmem:[#allocation10 + $0x78] sm:$0xff]
    %v2012 = vld [vmem:[#allocation10 + $0x80] sm:$0xff]
    %v2013 = vld [vmem:[#allocation10 + $0x88] sm:$0xff]
    %v2014 = vld [vmem:[#allocation10 + $0x90] sm:$0xff]
    %v2015 = vld [vmem:[#allocation10 + $0x98] sm:$0xff]
    %v2016 = vld [vmem:[#allocation10 + $0xa0] sm:$0xff]
    %v2017 = vld [vmem:[#allocation10 + $0xa8] sm:$0xff]
    %v2018 = vld [vmem:[#allocation10 + $0xb0] sm:$0xff]
    %v2019 = vld [vmem:[#allocation10 + $0xb8] sm:$0xff]
    %v2020 = vld [vmem:[#allocation10 + $0xc0] sm:$0xff]
    %v2021 = vld [vmem:[#allocation10 + $0xc8] sm:$0xff]
    %v2022 = vld [vmem:[#allocation10 + $0xd0] sm:$0xff]
    %v2023 = vld [vmem:[#allocation10 + $0xd8] sm:$0xff]
    %v2024 = vld [vmem:[#allocation10 + $0xe0] sm:$0xff]
    %v2025 = vld [vmem:[#allocation10 + $0xe8] sm:$0xff]
    %v2026 = vld [vmem:[#allocation10 + $0xf0] sm:$0xff]
    %v2027 = vld [vmem:[#allocation10 + $0xf8] sm:$0xff]
    %v2028 = vld [vmem:[#allocation10 + $0x100] sm:$0xff]
    %v2029 = vld [vmem:[#allocation10 + $0x108] sm:$0xff]
    %v2030 = vld [vmem:[#allocation10 + $0x110] sm:$0xff]
    %v2031 = vld [vmem:[#allocation10 + $0x118] sm:$0xff]
    %v2032 = vld [vmem:[#allocation10 + $0x120] sm:$0xff]
    %v2033 = vld [vmem:[#allocation10 + $0x128] sm:$0xff]
    %v2034 = vld [vmem:[#allocation10 + $0x130] sm:$0xff]
    %v2035 = vld [vmem:[#allocation10 + $0x138] sm:$0xff]
    %v2036 = vld [vmem:[#allocation10 + $0x140] sm:$0xff]
    %v2037 = vld [vmem:[#allocation10 + $0x148] sm:$0xff]
    %v2038 = vld [vmem:[#allocation10 + $0x150] sm:$0xff]
    %v2039 = vld [vmem:[#allocation10 + $0x158] sm:$0xff]
    %v2040 = vld [vmem:[#allocation10 + $0x160] sm:$0xff]
    %v2041 = vld [vmem:[#allocation10 + $0x168] sm:$0xff]
    %v2042 = vld [vmem:[#allocation10 + $0x170] sm:$0xff]
    %v2043 = vld [vmem:[#allocation10 + $0x178] sm:$0xff]
    %v2044 = vld [vmem:[#allocation10 + $0x180] sm:$0xff]
    %v2045 = vld [vmem:[#allocation10 + $0x188] sm:$0xff]
    %v2046 = vld [vmem:[#allocation10 + $0x190] sm:$0xff]
    %v2047 = vld [vmem:[#allocation10 + $0x198] sm:$0xff]
    %v2048 = vld [vmem:[#allocation10 + $0x1a0] sm:$0xff]
    %v2049 = vld [vmem:[#allocation10 + $0x1a8] sm:$0xff]
    %v2050 = vld [vmem:[#allocation10 + $0x1b0] sm:$0xff]
    %v2051 = vld [vmem:[#allocation10 + $0x1b8] sm:$0xff]
    %v2052 = vld [vmem:[#allocation10 + $0x1c0] sm:$0xff]
    %v2053 = vld [vmem:[#allocation10 + $0x1c8] sm:$0xff]
    %v2054 = vld [vmem:[#allocation10 + $0x1d0] sm:$0xff]
    %v2055 = vld [vmem:[#allocation10 + $0x1d8] sm:$0xff]
    %v2056 = vld [vmem:[#allocation10 + $0x1e0] sm:$0xff]
    %v2057 = vld [vmem:[#allocation10 + $0x1e8] sm:$0xff]
    %v2058 = vld [vmem:[#allocation10 + $0x1f0] sm:$0xff]
    %v2059 = vld [vmem:[#allocation10 + $0x1f8] sm:$0xff]
    %2060 = vmatprep.subr.mxu0 %v1997
    %2061 = vmatpush1.msra.mxu0 %v1996
    %2062 = vmatprep.subr.mxu0 %v2001
    %2063 = vmatpush1.msra.mxu0 %v2000
    %2064 = vmatprep.subr.mxu0 %v2005
    %2065 = vmatpush1.msra.mxu0 %v2004
    %2066 = vmatprep.subr.mxu0 %v2009
    %2067 = vmatpush1.msra.mxu0 %v2008
    %2068 = vmatprep.subr.mxu0 %v2013
    %2069 = vmatpush1.msra.mxu0 %v2012
    %2070 = vmatprep.subr.mxu0 %v2017
    %2071 = vmatpush1.msra.mxu0 %v2016
    %2072 = vmatprep.subr.mxu0 %v2021
    %2073 = vmatpush1.msra.mxu0 %v2020
    %2074 = vmatprep.subr.mxu0 %v2025
    %2075 = vmatpush1.msra.mxu0 %v2024
    %2076 = vmatprep.subr.mxu0 %v2029
    %2077 = vmatpush1.msra.mxu0 %v2028
    %2078 = vmatprep.subr.mxu0 %v2033
    %2079 = vmatpush1.msra.mxu0 %v2032
    %2080 = vmatprep.subr.mxu0 %v2037
    %2081 = vmatpush1.msra.mxu0 %v2036
    %2082 = vmatprep.subr.mxu0 %v2041
    %2083 = vmatpush1.msra.mxu0 %v2040
    %2084 = vmatprep.subr.mxu0 %v2045
    %2085 = vmatpush1.msra.mxu0 %v2044
    %2086 = vmatprep.subr.mxu0 %v2049
    %2087 = vmatpush1.msra.mxu0 %v2048
    %2088 = vmatprep.subr.mxu0 %v2053
    %2089 = vmatpush1.msra.mxu0 %v2052
    %2090 = vmatprep.subr.mxu0 %v2057
    %2091 = vmatpush1.msra.mxu0 %v2056
    %2092 = vmatprep.subr.mxu0 0.0
    %2093 = vmatpush1.msra.mxu0 0.0
    %2094 = vmatprep.subr.mxu0 0.0
    %2095 = vmatpush1.msra.mxu0 0.0
    %2096 = vmatprep.subr.mxu0 0.0
    %2097 = vmatpush1.msra.mxu0 0.0
    %2098 = vmatprep.subr.mxu0 0.0
    %2099 = vmatpush1.msra.mxu0 0.0
    %2100 = vmatprep.subr.mxu0 0.0
    %2101 = vmatpush1.msra.mxu0 0.0
    %2102 = vmatprep.subr.mxu0 0.0
    %2103 = vmatpush1.msra.mxu0 0.0
    %2104 = vmatprep.subr.mxu0 0.0
    %2105 = vmatpush1.msra.mxu0 0.0
    %2106 = vmatprep.subr.mxu0 0.0
    %2107 = vmatpush1.msra.mxu0 0.0
    %2108 = vmatprep.subr.mxu0 0.0
    %2109 = vmatpush1.msra.mxu0 0.0
    %2110 = vmatprep.subr.mxu0 0.0
    %2111 = vmatpush1.msra.mxu0 0.0
    %2112 = vmatprep.subr.mxu0 0.0
    %2113 = vmatpush1.msra.mxu0 0.0
    %2114 = vmatprep.subr.mxu0 0.0
    %2115 = vmatpush1.msra.mxu0 0.0
    %2116 = vmatprep.subr.mxu0 0.0
    %2117 = vmatpush1.msra.mxu0 0.0
    %2118 = vmatprep.subr.mxu0 0.0
    %2119 = vmatpush1.msra.mxu0 0.0
    %2120 = vmatprep.subr.mxu0 0.0
    %2121 = vmatpush1.msra.mxu0 0.0
    %2122 = vmatprep.subr.mxu0 0.0
    %2123 = vmatpush1.msra.mxu0 0.0
    %2124 = vmatprep.mubr.f32.mxu0 0.0
    %2125 = vmatmul.mubr.f32.gmra.mrb[0].mxu0 %v1995
    %v2126 = vpop.f32.mrb[0].mxu0
    %v2127 = vadd.f32 0.0, %v2126
    %v2128 = vpop.f32.mrb[0].mxu0
    %v2129 = vadd.f32 0.0, %v2128
    %2130 = vdwg.mxu0
    %2131 = vmatprep.subr.mxu0 %v1999
    %2132 = vmatpush1.msra.mxu0 %v1998
    %2133 = vmatprep.subr.mxu0 %v2003
    %2134 = vmatpush1.msra.mxu0 %v2002
    %2135 = vmatprep.subr.mxu0 %v2007
    %2136 = vmatpush1.msra.mxu0 %v2006
    %2137 = vmatprep.subr.mxu0 %v2011
    %2138 = vmatpush1.msra.mxu0 %v2010
    %2139 = vmatprep.subr.mxu0 %v2015
    %2140 = vmatpush1.msra.mxu0 %v2014
    %2141 = vmatprep.subr.mxu0 %v2019
    %2142 = vmatpush1.msra.mxu0 %v2018
    %2143 = vmatprep.subr.mxu0 %v2023
    %2144 = vmatpush1.msra.mxu0 %v2022
    %2145 = vmatprep.subr.mxu0 %v2027
    %2146 = vmatpush1.msra.mxu0 %v2026
    %2147 = vmatprep.subr.mxu0 %v2031
    %2148 = vmatpush1.msra.mxu0 %v2030
    %2149 = vmatprep.subr.mxu0 %v2035
    %2150 = vmatpush1.msra.mxu0 %v2034
    %2151 = vmatprep.subr.mxu0 %v2039
    %2152 = vmatpush1.msra.mxu0 %v2038
    %2153 = vmatprep.subr.mxu0 %v2043
    %2154 = vmatpush1.msra.mxu0 %v2042
    %2155 = vmatprep.subr.mxu0 %v2047
    %2156 = vmatpush1.msra.mxu0 %v2046
    %2157 = vmatprep.subr.mxu0 %v2051
    %2158 = vmatpush1.msra.mxu0 %v2050
    %2159 = vmatprep.subr.mxu0 %v2055
    %2160 = vmatpush1.msra.mxu0 %v2054
    %2161 = vmatprep.subr.mxu0 %v2059
    %2162 = vmatpush1.msra.mxu0 %v2058
    %2163 = vmatprep.subr.mxu0 0.0
    %2164 = vmatpush1.msra.mxu0 0.0
    %2165 = vmatprep.subr.mxu0 0.0
    %2166 = vmatpush1.msra.mxu0 0.0
    %2167 = vmatprep.subr.mxu0 0.0
    %2168 = vmatpush1.msra.mxu0 0.0
    %2169 = vmatprep.subr.mxu0 0.0
    %2170 = vmatpush1.msra.mxu0 0.0
    %2171 = vmatprep.subr.mxu0 0.0
    %2172 = vmatpush1.msra.mxu0 0.0
    %2173 = vmatprep.subr.mxu0 0.0
    %2174 = vmatpush1.msra.mxu0 0.0
    %2175 = vmatprep.subr.mxu0 0.0
    %2176 = vmatpush1.msra.mxu0 0.0
    %2177 = vmatprep.subr.mxu0 0.0
    %2178 = vmatpush1.msra.mxu0 0.0
    %2179 = vmatprep.subr.mxu0 0.0
    %2180 = vmatpush1.msra.mxu0 0.0
    %2181 = vmatprep.subr.mxu0 0.0
    %2182 = vmatpush1.msra.mxu0 0.0
    %2183 = vmatprep.subr.mxu0 0.0
    %2184 = vmatpush1.msra.mxu0 0.0
    %2185 = vmatprep.subr.mxu0 0.0
    %2186 = vmatpush1.msra.mxu0 0.0
    %2187 = vmatprep.subr.mxu0 0.0
    %2188 = vmatpush1.msra.mxu0 0.0
    %2189 = vmatprep.subr.mxu0 0.0
    %2190 = vmatpush1.msra.mxu0 0.0
    %2191 = vmatprep.subr.mxu0 0.0
    %2192 = vmatpush1.msra.mxu0 0.0
    %2193 = vmatprep.subr.mxu0 0.0
    %2194 = vmatpush1.msra.mxu0 0.0
    %2195 = vmatprep.mubr.f32.mxu0 0.0
    %2196 = vmatmul.mubr.f32.gmra.mrb[0].mxu0 %v1995
    %v2197 = vpop.f32.mrb[0].mxu0
    %v2198 = vadd.f32 0.0, %v2197
    %v2199 = vpop.f32.mrb[0].mxu0
    %v2200 = vadd.f32 0.0, %v2199
    %2201 = vdwg.mxu0
    %2202 = vmatprep.subr.mxu0 %v1932
    %2203 = vmatpush1.msra.mxu0 %v1931
    %2204 = vmatprep.subr.mxu0 %v1936
    %2205 = vmatpush1.msra.mxu0 %v1935
    %2206 = vmatprep.subr.mxu0 %v1940
    %2207 = vmatpush1.msra.mxu0 %v1939
    %2208 = vmatprep.subr.mxu0 %v1944
    %2209 = vmatpush1.msra.mxu0 %v1943
    %2210 = vmatprep.subr.mxu0 %v1948
    %2211 = vmatpush1.msra.mxu0 %v1947
    %2212 = vmatprep.subr.mxu0 %v1952
    %2213 = vmatpush1.msra.mxu0 %v1951
    %2214 = vmatprep.subr.mxu0 %v1956
    %2215 = vmatpush1.msra.mxu0 %v1955
    %2216 = vmatprep.subr.mxu0 %v1960
    %2217 = vmatpush1.msra.mxu0 %v1959
    %2218 = vmatprep.subr.mxu0 %v1964
    %2219 = vmatpush1.msra.mxu0 %v1963
    %2220 = vmatprep.subr.mxu0 %v1968
    %2221 = vmatpush1.msra.mxu0 %v1967
    %2222 = vmatprep.subr.mxu0 %v1972
    %2223 = vmatpush1.msra.mxu0 %v1971
    %2224 = vmatprep.subr.mxu0 %v1976
    %2225 = vmatpush1.msra.mxu0 %v1975
    %2226 = vmatprep.subr.mxu0 %v1980
    %2227 = vmatpush1.msra.mxu0 %v1979
    %2228 = vmatprep.subr.mxu0 %v1984
    %2229 = vmatpush1.msra.mxu0 %v1983
    %2230 = vmatprep.subr.mxu0 %v1988
    %2231 = vmatpush1.msra.mxu0 %v1987
    %2232 = vmatprep.subr.mxu0 %v1992
    %2233 = vmatpush1.msra.mxu0 %v1991
    %2234 = vmatprep.subr.mxu0 0.0
    %2235 = vmatpush1.msra.mxu0 0.0
    %2236 = vmatprep.subr.mxu0 0.0
    %2237 = vmatpush1.msra.mxu0 0.0
    %2238 = vmatprep.subr.mxu0 0.0
    %2239 = vmatpush1.msra.mxu0 0.0
    %2240 = vmatprep.subr.mxu0 0.0
    %2241 = vmatpush1.msra.mxu0 0.0
    %2242 = vmatprep.subr.mxu0 0.0
    %2243 = vmatpush1.msra.mxu0 0.0
    %2244 = vmatprep.subr.mxu0 0.0
    %2245 = vmatpush1.msra.mxu0 0.0
    %2246 = vmatprep.subr.mxu0 0.0
    %2247 = vmatpush1.msra.mxu0 0.0
    %2248 = vmatprep.subr.mxu0 0.0
    %2249 = vmatpush1.msra.mxu0 0.0
    %2250 = vmatprep.subr.mxu0 0.0
    %2251 = vmatpush1.msra.mxu0 0.0
    %2252 = vmatprep.subr.mxu0 0.0
    %2253 = vmatpush1.msra.mxu0 0.0
    %2254 = vmatprep.subr.mxu0 0.0
    %2255 = vmatpush1.msra.mxu0 0.0
    %2256 = vmatprep.subr.mxu0 0.0
    %2257 = vmatpush1.msra.mxu0 0.0
    %2258 = vmatprep.subr.mxu0 0.0
    %2259 = vmatpush1.msra.mxu0 0.0
    %2260 = vmatprep.subr.mxu0 0.0
    %2261 = vmatpush1.msra.mxu0 0.0
    %2262 = vmatprep.subr.mxu0 0.0
    %2263 = vmatpush1.msra.mxu0 0.0
    %2264 = vmatprep.subr.mxu0 0.0
    %2265 = vmatpush1.msra.mxu0 0.0
    %2266 = vmatprep.mubr.f32.mxu0 0.0
    %2267 = vmatmul.mubr.f32.gmra.mrb[0].mxu0 %v1930
    %v2268 = vpop.f32.mrb[0].mxu0
    %v2269 = vadd.f32 %v2127, %v2268
    %v2270 = vpop.f32.mrb[0].mxu0
    %v2271 = vadd.f32 %v2129, %v2270
    %2272 = vdwg.mxu0
    %2273 = vmatprep.subr.mxu0 %v1934
    %2274 = vmatpush1.msra.mxu0 %v1933
    %2275 = vmatprep.subr.mxu0 %v1938
    %2276 = vmatpush1.msra.mxu0 %v1937
    %2277 = vmatprep.subr.mxu0 %v1942
    %2278 = vmatpush1.msra.mxu0 %v1941
    %2279 = vmatprep.subr.mxu0 %v1946
    %2280 = vmatpush1.msra.mxu0 %v1945
    %2281 = vmatprep.subr.mxu0 %v1950
    %2282 = vmatpush1.msra.mxu0 %v1949
    %2283 = vmatprep.subr.mxu0 %v1954
    %2284 = vmatpush1.msra.mxu0 %v1953
    %2285 = vmatprep.subr.mxu0 %v1958
    %2286 = vmatpush1.msra.mxu0 %v1957
    %2287 = vmatprep.subr.mxu0 %v1962
    %2288 = vmatpush1.msra.mxu0 %v1961
    %2289 = vmatprep.subr.mxu0 %v1966
    %2290 = vmatpush1.msra.mxu0 %v1965
    %2291 = vmatprep.subr.mxu0 %v1970
    %2292 = vmatpush1.msra.mxu0 %v1969
    %2293 = vmatprep.subr.mxu0 %v1974
    %2294 = vmatpush1.msra.mxu0 %v1973
    %2295 = vmatprep.subr.mxu0 %v1978
    %2296 = vmatpush1.msra.mxu0 %v1977
    %2297 = vmatprep.subr.mxu0 %v1982
    %2298 = vmatpush1.msra.mxu0 %v1981
    %2299 = vmatprep.subr.mxu0 %v1986
    %2300 = vmatpush1.msra.mxu0 %v1985
    %2301 = vmatprep.subr.mxu0 %v1990
    %2302 = vmatpush1.msra.mxu0 %v1989
    %2303 = vmatprep.subr.mxu0 %v1994
    %2304 = vmatpush1.msra.mxu0 %v1993
    %2305 = vmatprep.subr.mxu0 0.0
    %2306 = vmatpush1.msra.mxu0 0.0
    %2307 = vmatprep.subr.mxu0 0.0
    %2308 = vmatpush1.msra.mxu0 0.0
    %2309 = vmatprep.subr.mxu0 0.0
    %2310 = vmatpush1.msra.mxu0 0.0
    %2311 = vmatprep.subr.mxu0 0.0
    %2312 = vmatpush1.msra.mxu0 0.0
    %2313 = vmatprep.subr.mxu0 0.0
    %2314 = vmatpush1.msra.mxu0 0.0
    %2315 = vmatprep.subr.mxu0 0.0
    %2316 = vmatpush1.msra.mxu0 0.0
    %2317 = vmatprep.subr.mxu0 0.0
    %2318 = vmatpush1.msra.mxu0 0.0
    %2319 = vmatprep.subr.mxu0 0.0
    %2320 = vmatpush1.msra.mxu0 0.0
    %2321 = vmatprep.subr.mxu0 0.0
    %2322 = vmatpush1.msra.mxu0 0.0
    %2323 = vmatprep.subr.mxu0 0.0
    %2324 = vmatpush1.msra.mxu0 0.0
    %2325 = vmatprep.subr.mxu0 0.0
    %2326 = vmatpush1.msra.mxu0 0.0
    %2327 = vmatprep.subr.mxu0 0.0
    %2328 = vmatpush1.msra.mxu0 0.0
    %2329 = vmatprep.subr.mxu0 0.0
    %2330 = vmatpush1.msra.mxu0 0.0
    %2331 = vmatprep.subr.mxu0 0.0
    %2332 = vmatpush1.msra.mxu0 0.0
    %2333 = vmatprep.subr.mxu0 0.0
    %2334 = vmatpush1.msra.mxu0 0.0
    %2335 = vmatprep.subr.mxu0 0.0
    %2336 = vmatpush1.msra.mxu0 0.0
    %2337 = vmatprep.mubr.f32.mxu0 0.0
    %2338 = vmatmul.mubr.f32.gmra.mrb[0].mxu0 %v1930
    %v2339 = vpop.f32.mrb[0].mxu0
    %v2340 = vadd.f32 %v2198, %v2339
    %v2341 = vpop.f32.mrb[0].mxu0
    %v2342 = vadd.f32 %v2200, %v2341
    %2343 = vdwg.mxu0
    %v2344 = vadd.f32 %v2269, %v122
    %v2345 = vadd.f32 %v2271, %v126
    %v2346 = vadd.f32 %v2340, %v130
    %v2347 = vadd.f32 %v2342, %v134
    %v2348 = vxor.u32 %v2344, 2147483648
    %v2349 = vmul.f32 %v2348, 1.442695
    %v2350 = vpow.pop %v2349
    %v2351 = vadd.f32 %v2350, 1.0
    %v2352 = vrcp.pop %v2351
    %v2353 = vmul.f32 1.0, %v2352
    %v2354 = vxor.u32 %v2345, 2147483648
    %v2355 = vmul.f32 %v2354, 1.442695
    %v2356 = vpow.pop %v2355
    %v2357 = vadd.f32 %v2356, 1.0
    %v2358 = vrcp.pop %v2357
    %v2359 = vmul.f32 1.0, %v2358
    %v2360 = vtanh.pop %v2346
    %v2361 = vxor.u32 %v2347, 2147483648
    %v2362 = vmul.f32 %v2361, 1.442695
    %v2363 = vpow.pop %v2362
    %v2364 = vadd.f32 %v2363, 1.0
    %v2365 = vrcp.pop %v2364
    %v2366 = vmul.f32 1.0, %v2365
    %v2367 = vld [vmem:[#allocation4] sm:$0xff]
    %v2368 = vmul.f32 %v2359, %v2367
    %v2369 = vmul.f32 %v2353, %v2360
    %v2370 = vadd.f32 %v2368, %v2369
    %v2371 = vtanh.pop %v2370
    %v2372 = vmul.f32 %v2366, %v2371
    %2373 = vst [vmem:[#allocation4] sm:$0xff] %v2370
    %2374 = vst [vmem:[#allocation3] sm:$0xff] %v2372
    %s2375 = scalar_lea.vmem [#allocation2], 32
    %2376 = vst [vmem:[%s2375] sm:$0xff] %v2372
    %s2377 = scalar_lea.vmem [#allocation5], 40
    %v2378 = vld [vmem:[%s2377] sm:$0xff]
    %v2379 = vld [vmem:[#allocation8] sm:$0xff]
    %v2380 = vld [vmem:[#allocation8 + $0x8] sm:$0xff]
    %v2381 = vld [vmem:[#allocation8 + $0x10] sm:$0xff]
    %v2382 = vld [vmem:[#allocation8 + $0x18] sm:$0xff]
    %v2383 = vld [vmem:[#allocation8 + $0x20] sm:$0xff]
    %v2384 = vld [vmem:[#allocation8 + $0x28] sm:$0xff]
    %v2385 = vld [vmem:[#allocation8 + $0x30] sm:$0xff]
    %v2386 = vld [vmem:[#allocation8 + $0x38] sm:$0xff]
    %v2387 = vld [vmem:[#allocation8 + $0x40] sm:$0xff]
    %v2388 = vld [vmem:[#allocation8 + $0x48] sm:$0xff]
    %v2389 = vld [vmem:[#allocation8 + $0x50] sm:$0xff]
    %v2390 = vld [vmem:[#allocation8 + $0x58] sm:$0xff]
    %v2391 = vld [vmem:[#allocation8 + $0x60] sm:$0xff]
    %v2392 = vld [vmem:[#allocation8 + $0x68] sm:$0xff]
    %v2393 = vld [vmem:[#allocation8 + $0x70] sm:$0xff]
    %v2394 = vld [vmem:[#allocation8 + $0x78] sm:$0xff]
    %v2395 = vld [vmem:[#allocation8 + $0x80] sm:$0xff]
    %v2396 = vld [vmem:[#allocation8 + $0x88] sm:$0xff]
    %v2397 = vld [vmem:[#allocation8 + $0x90] sm:$0xff]
    %v2398 = vld [vmem:[#allocation8 + $0x98] sm:$0xff]
    %v2399 = vld [vmem:[#allocation8 + $0xa0] sm:$0xff]
    %v2400 = vld [vmem:[#allocation8 + $0xa8] sm:$0xff]
    %v2401 = vld [vmem:[#allocation8 + $0xb0] sm:$0xff]
    %v2402 = vld [vmem:[#allocation8 + $0xb8] sm:$0xff]
    %v2403 = vld [vmem:[#allocation8 + $0xc0] sm:$0xff]
    %v2404 = vld [vmem:[#allocation8 + $0xc8] sm:$0xff]
    %v2405 = vld [vmem:[#allocation8 + $0xd0] sm:$0xff]
    %v2406 = vld [vmem:[#allocation8 + $0xd8] sm:$0xff]
    %v2407 = vld [vmem:[#allocation8 + $0xe0] sm:$0xff]
    %v2408 = vld [vmem:[#allocation8 + $0xe8] sm:$0xff]
    %v2409 = vld [vmem:[#allocation8 + $0xf0] sm:$0xff]
    %v2410 = vld [vmem:[#allocation8 + $0xf8] sm:$0xff]
    %v2411 = vld [vmem:[#allocation8 + $0x100] sm:$0xff]
    %v2412 = vld [vmem:[#allocation8 + $0x108] sm:$0xff]
    %v2413 = vld [vmem:[#allocation8 + $0x110] sm:$0xff]
    %v2414 = vld [vmem:[#allocation8 + $0x118] sm:$0xff]
    %v2415 = vld [vmem:[#allocation8 + $0x120] sm:$0xff]
    %v2416 = vld [vmem:[#allocation8 + $0x128] sm:$0xff]
    %v2417 = vld [vmem:[#allocation8 + $0x130] sm:$0xff]
    %v2418 = vld [vmem:[#allocation8 + $0x138] sm:$0xff]
    %v2419 = vld [vmem:[#allocation8 + $0x140] sm:$0xff]
    %v2420 = vld [vmem:[#allocation8 + $0x148] sm:$0xff]
    %v2421 = vld [vmem:[#allocation8 + $0x150] sm:$0xff]
    %v2422 = vld [vmem:[#allocation8 + $0x158] sm:$0xff]
    %v2423 = vld [vmem:[#allocation8 + $0x160] sm:$0xff]
    %v2424 = vld [vmem:[#allocation8 + $0x168] sm:$0xff]
    %v2425 = vld [vmem:[#allocation8 + $0x170] sm:$0xff]
    %v2426 = vld [vmem:[#allocation8 + $0x178] sm:$0xff]
    %v2427 = vld [vmem:[#allocation8 + $0x180] sm:$0xff]
    %v2428 = vld [vmem:[#allocation8 + $0x188] sm:$0xff]
    %v2429 = vld [vmem:[#allocation8 + $0x190] sm:$0xff]
    %v2430 = vld [vmem:[#allocation8 + $0x198] sm:$0xff]
    %v2431 = vld [vmem:[#allocation8 + $0x1a0] sm:$0xff]
    %v2432 = vld [vmem:[#allocation8 + $0x1a8] sm:$0xff]
    %v2433 = vld [vmem:[#allocation8 + $0x1b0] sm:$0xff]
    %v2434 = vld [vmem:[#allocation8 + $0x1b8] sm:$0xff]
    %v2435 = vld [vmem:[#allocation8 + $0x1c0] sm:$0xff]
    %v2436 = vld [vmem:[#allocation8 + $0x1c8] sm:$0xff]
    %v2437 = vld [vmem:[#allocation8 + $0x1d0] sm:$0xff]
    %v2438 = vld [vmem:[#allocation8 + $0x1d8] sm:$0xff]
    %v2439 = vld [vmem:[#allocation8 + $0x1e0] sm:$0xff]
    %v2440 = vld [vmem:[#allocation8 + $0x1e8] sm:$0xff]
    %v2441 = vld [vmem:[#allocation8 + $0x1f0] sm:$0xff]
    %v2442 = vld [vmem:[#allocation8 + $0x1f8] sm:$0xff]
    %v2443 = vld [vmem:[#allocation3] sm:$0xff]
    %v2444 = vld [vmem:[#allocation10] sm:$0xff]
    %v2445 = vld [vmem:[#allocation10 + $0x8] sm:$0xff]
    %v2446 = vld [vmem:[#allocation10 + $0x10] sm:$0xff]
    %v2447 = vld [vmem:[#allocation10 + $0x18] sm:$0xff]
    %v2448 = vld [vmem:[#allocation10 + $0x20] sm:$0xff]
    %v2449 = vld [vmem:[#allocation10 + $0x28] sm:$0xff]
    %v2450 = vld [vmem:[#allocation10 + $0x30] sm:$0xff]
    %v2451 = vld [vmem:[#allocation10 + $0x38] sm:$0xff]
    %v2452 = vld [vmem:[#allocation10 + $0x40] sm:$0xff]
    %v2453 = vld [vmem:[#allocation10 + $0x48] sm:$0xff]
    %v2454 = vld [vmem:[#allocation10 + $0x50] sm:$0xff]
    %v2455 = vld [vmem:[#allocation10 + $0x58] sm:$0xff]
    %v2456 = vld [vmem:[#allocation10 + $0x60] sm:$0xff]
    %v2457 = vld [vmem:[#allocation10 + $0x68] sm:$0xff]
    %v2458 = vld [vmem:[#allocation10 + $0x70] sm:$0xff]
    %v2459 = vld [vmem:[#allocation10 + $0x78] sm:$0xff]
    %v2460 = vld [vmem:[#allocation10 + $0x80] sm:$0xff]
    %v2461 = vld [vmem:[#allocation10 + $0x88] sm:$0xff]
    %v2462 = vld [vmem:[#allocation10 + $0x90] sm:$0xff]
    %v2463 = vld [vmem:[#allocation10 + $0x98] sm:$0xff]
    %v2464 = vld [vmem:[#allocation10 + $0xa0] sm:$0xff]
    %v2465 = vld [vmem:[#allocation10 + $0xa8] sm:$0xff]
    %v2466 = vld [vmem:[#allocation10 + $0xb0] sm:$0xff]
    %v2467 = vld [vmem:[#allocation10 + $0xb8] sm:$0xff]
    %v2468 = vld [vmem:[#allocation10 + $0xc0] sm:$0xff]
    %v2469 = vld [vmem:[#allocation10 + $0xc8] sm:$0xff]
    %v2470 = vld [vmem:[#allocation10 + $0xd0] sm:$0xff]
    %v2471 = vld [vmem:[#allocation10 + $0xd8] sm:$0xff]
    %v2472 = vld [vmem:[#allocation10 + $0xe0] sm:$0xff]
    %v2473 = vld [vmem:[#allocation10 + $0xe8] sm:$0xff]
    %v2474 = vld [vmem:[#allocation10 + $0xf0] sm:$0xff]
    %v2475 = vld [vmem:[#allocation10 + $0xf8] sm:$0xff]
    %v2476 = vld [vmem:[#allocation10 + $0x100] sm:$0xff]
    %v2477 = vld [vmem:[#allocation10 + $0x108] sm:$0xff]
    %v2478 = vld [vmem:[#allocation10 + $0x110] sm:$0xff]
    %v2479 = vld [vmem:[#allocation10 + $0x118] sm:$0xff]
    %v2480 = vld [vmem:[#allocation10 + $0x120] sm:$0xff]
    %v2481 = vld [vmem:[#allocation10 + $0x128] sm:$0xff]
    %v2482 = vld [vmem:[#allocation10 + $0x130] sm:$0xff]
    %v2483 = vld [vmem:[#allocation10 + $0x138] sm:$0xff]
    %v2484 = vld [vmem:[#allocation10 + $0x140] sm:$0xff]
    %v2485 = vld [vmem:[#allocation10 + $0x148] sm:$0xff]
    %v2486 = vld [vmem:[#allocation10 + $0x150] sm:$0xff]
    %v2487 = vld [vmem:[#allocation10 + $0x158] sm:$0xff]
    %v2488 = vld [vmem:[#allocation10 + $0x160] sm:$0xff]
    %v2489 = vld [vmem:[#allocation10 + $0x168] sm:$0xff]
    %v2490 = vld [vmem:[#allocation10 + $0x170] sm:$0xff]
    %v2491 = vld [vmem:[#allocation10 + $0x178] sm:$0xff]
    %v2492 = vld [vmem:[#allocation10 + $0x180] sm:$0xff]
    %v2493 = vld [vmem:[#allocation10 + $0x188] sm:$0xff]
    %v2494 = vld [vmem:[#allocation10 + $0x190] sm:$0xff]
    %v2495 = vld [vmem:[#allocation10 + $0x198] sm:$0xff]
    %v2496 = vld [vmem:[#allocation10 + $0x1a0] sm:$0xff]
    %v2497 = vld [vmem:[#allocation10 + $0x1a8] sm:$0xff]
    %v2498 = vld [vmem:[#allocation10 + $0x1b0] sm:$0xff]
    %v2499 = vld [vmem:[#allocation10 + $0x1b8] sm:$0xff]
    %v2500 = vld [vmem:[#allocation10 + $0x1c0] sm:$0xff]
    %v2501 = vld [vmem:[#allocation10 + $0x1c8] sm:$0xff]
    %v2502 = vld [vmem:[#allocation10 + $0x1d0] sm:$0xff]
    %v2503 = vld [vmem:[#allocation10 + $0x1d8] sm:$0xff]
    %v2504 = vld [vmem:[#allocation10 + $0x1e0] sm:$0xff]
    %v2505 = vld [vmem:[#allocation10 + $0x1e8] sm:$0xff]
    %v2506 = vld [vmem:[#allocation10 + $0x1f0] sm:$0xff]
    %v2507 = vld [vmem:[#allocation10 + $0x1f8] sm:$0xff]
    %2508 = vmatprep.subr.mxu0 %v2445
    %2509 = vmatpush1.msra.mxu0 %v2444
    %2510 = vmatprep.subr.mxu0 %v2449
    %2511 = vmatpush1.msra.mxu0 %v2448
    %2512 = vmatprep.subr.mxu0 %v2453
    %2513 = vmatpush1.msra.mxu0 %v2452
    %2514 = vmatprep.subr.mxu0 %v2457
    %2515 = vmatpush1.msra.mxu0 %v2456
    %2516 = vmatprep.subr.mxu0 %v2461
    %2517 = vmatpush1.msra.mxu0 %v2460
    %2518 = vmatprep.subr.mxu0 %v2465
    %2519 = vmatpush1.msra.mxu0 %v2464
    %2520 = vmatprep.subr.mxu0 %v2469
    %2521 = vmatpush1.msra.mxu0 %v2468
    %2522 = vmatprep.subr.mxu0 %v2473
    %2523 = vmatpush1.msra.mxu0 %v2472
    %2524 = vmatprep.subr.mxu0 %v2477
    %2525 = vmatpush1.msra.mxu0 %v2476
    %2526 = vmatprep.subr.mxu0 %v2481
    %2527 = vmatpush1.msra.mxu0 %v2480
    %2528 = vmatprep.subr.mxu0 %v2485
    %2529 = vmatpush1.msra.mxu0 %v2484
    %2530 = vmatprep.subr.mxu0 %v2489
    %2531 = vmatpush1.msra.mxu0 %v2488
    %2532 = vmatprep.subr.mxu0 %v2493
    %2533 = vmatpush1.msra.mxu0 %v2492
    %2534 = vmatprep.subr.mxu0 %v2497
    %2535 = vmatpush1.msra.mxu0 %v2496
    %2536 = vmatprep.subr.mxu0 %v2501
    %2537 = vmatpush1.msra.mxu0 %v2500
    %2538 = vmatprep.subr.mxu0 %v2505
    %2539 = vmatpush1.msra.mxu0 %v2504
    %2540 = vmatprep.subr.mxu0 0.0
    %2541 = vmatpush1.msra.mxu0 0.0
    %2542 = vmatprep.subr.mxu0 0.0
    %2543 = vmatpush1.msra.mxu0 0.0
    %2544 = vmatprep.subr.mxu0 0.0
    %2545 = vmatpush1.msra.mxu0 0.0
    %2546 = vmatprep.subr.mxu0 0.0
    %2547 = vmatpush1.msra.mxu0 0.0
    %2548 = vmatprep.subr.mxu0 0.0
    %2549 = vmatpush1.msra.mxu0 0.0
    %2550 = vmatprep.subr.mxu0 0.0
    %2551 = vmatpush1.msra.mxu0 0.0
    %2552 = vmatprep.subr.mxu0 0.0
    %2553 = vmatpush1.msra.mxu0 0.0
    %2554 = vmatprep.subr.mxu0 0.0
    %2555 = vmatpush1.msra.mxu0 0.0
    %2556 = vmatprep.subr.mxu0 0.0
    %2557 = vmatpush1.msra.mxu0 0.0
    %2558 = vmatprep.subr.mxu0 0.0
    %2559 = vmatpush1.msra.mxu0 0.0
    %2560 = vmatprep.subr.mxu0 0.0
    %2561 = vmatpush1.msra.mxu0 0.0
    %2562 = vmatprep.subr.mxu0 0.0
    %2563 = vmatpush1.msra.mxu0 0.0
    %2564 = vmatprep.subr.mxu0 0.0
    %2565 = vmatpush1.msra.mxu0 0.0
    %2566 = vmatprep.subr.mxu0 0.0
    %2567 = vmatpush1.msra.mxu0 0.0
    %2568 = vmatprep.subr.mxu0 0.0
    %2569 = vmatpush1.msra.mxu0 0.0
    %2570 = vmatprep.subr.mxu0 0.0
    %2571 = vmatpush1.msra.mxu0 0.0
    %2572 = vmatprep.mubr.f32.mxu0 0.0
    %2573 = vmatmul.mubr.f32.gmra.mrb[0].mxu0 %v2443
    %v2574 = vpop.f32.mrb[0].mxu0
    %v2575 = vadd.f32 0.0, %v2574
    %v2576 = vpop.f32.mrb[0].mxu0
    %v2577 = vadd.f32 0.0, %v2576
    %2578 = vdwg.mxu0
    %2579 = vmatprep.subr.mxu0 %v2447
    %2580 = vmatpush1.msra.mxu0 %v2446
    %2581 = vmatprep.subr.mxu0 %v2451
    %2582 = vmatpush1.msra.mxu0 %v2450
    %2583 = vmatprep.subr.mxu0 %v2455
    %2584 = vmatpush1.msra.mxu0 %v2454
    %2585 = vmatprep.subr.mxu0 %v2459
    %2586 = vmatpush1.msra.mxu0 %v2458
    %2587 = vmatprep.subr.mxu0 %v2463
    %2588 = vmatpush1.msra.mxu0 %v2462
    %2589 = vmatprep.subr.mxu0 %v2467
    %2590 = vmatpush1.msra.mxu0 %v2466
    %2591 = vmatprep.subr.mxu0 %v2471
    %2592 = vmatpush1.msra.mxu0 %v2470
    %2593 = vmatprep.subr.mxu0 %v2475
    %2594 = vmatpush1.msra.mxu0 %v2474
    %2595 = vmatprep.subr.mxu0 %v2479
    %2596 = vmatpush1.msra.mxu0 %v2478
    %2597 = vmatprep.subr.mxu0 %v2483
    %2598 = vmatpush1.msra.mxu0 %v2482
    %2599 = vmatprep.subr.mxu0 %v2487
    %2600 = vmatpush1.msra.mxu0 %v2486
    %2601 = vmatprep.subr.mxu0 %v2491
    %2602 = vmatpush1.msra.mxu0 %v2490
    %2603 = vmatprep.subr.mxu0 %v2495
    %2604 = vmatpush1.msra.mxu0 %v2494
    %2605 = vmatprep.subr.mxu0 %v2499
    %2606 = vmatpush1.msra.mxu0 %v2498
    %2607 = vmatprep.subr.mxu0 %v2503
    %2608 = vmatpush1.msra.mxu0 %v2502
    %2609 = vmatprep.subr.mxu0 %v2507
    %2610 = vmatpush1.msra.mxu0 %v2506
    %2611 = vmatprep.subr.mxu0 0.0
    %2612 = vmatpush1.msra.mxu0 0.0
    %2613 = vmatprep.subr.mxu0 0.0
    %2614 = vmatpush1.msra.mxu0 0.0
    %2615 = vmatprep.subr.mxu0 0.0
    %2616 = vmatpush1.msra.mxu0 0.0
    %2617 = vmatprep.subr.mxu0 0.0
    %2618 = vmatpush1.msra.mxu0 0.0
    %2619 = vmatprep.subr.mxu0 0.0
    %2620 = vmatpush1.msra.mxu0 0.0
    %2621 = vmatprep.subr.mxu0 0.0
    %2622 = vmatpush1.msra.mxu0 0.0
    %2623 = vmatprep.subr.mxu0 0.0
    %2624 = vmatpush1.msra.mxu0 0.0
    %2625 = vmatprep.subr.mxu0 0.0
    %2626 = vmatpush1.msra.mxu0 0.0
    %2627 = vmatprep.subr.mxu0 0.0
    %2628 = vmatpush1.msra.mxu0 0.0
    %2629 = vmatprep.subr.mxu0 0.0
    %2630 = vmatpush1.msra.mxu0 0.0
    %2631 = vmatprep.subr.mxu0 0.0
    %2632 = vmatpush1.msra.mxu0 0.0
    %2633 = vmatprep.subr.mxu0 0.0
    %2634 = vmatpush1.msra.mxu0 0.0
    %2635 = vmatprep.subr.mxu0 0.0
    %2636 = vmatpush1.msra.mxu0 0.0
    %2637 = vmatprep.subr.mxu0 0.0
    %2638 = vmatpush1.msra.mxu0 0.0
    %2639 = vmatprep.subr.mxu0 0.0
    %2640 = vmatpush1.msra.mxu0 0.0
    %2641 = vmatprep.subr.mxu0 0.0
    %2642 = vmatpush1.msra.mxu0 0.0
    %2643 = vmatprep.mubr.f32.mxu0 0.0
    %2644 = vmatmul.mubr.f32.gmra.mrb[0].mxu0 %v2443
    %v2645 = vpop.f32.mrb[0].mxu0
    %v2646 = vadd.f32 0.0, %v2645
    %v2647 = vpop.f32.mrb[0].mxu0
    %v2648 = vadd.f32 0.0, %v2647
    %2649 = vdwg.mxu0
    %2650 = vmatprep.subr.mxu0 %v2380
    %2651 = vmatpush1.msra.mxu0 %v2379
    %2652 = vmatprep.subr.mxu0 %v2384
    %2653 = vmatpush1.msra.mxu0 %v2383
    %2654 = vmatprep.subr.mxu0 %v2388
    %2655 = vmatpush1.msra.mxu0 %v2387
    %2656 = vmatprep.subr.mxu0 %v2392
    %2657 = vmatpush1.msra.mxu0 %v2391
    %2658 = vmatprep.subr.mxu0 %v2396
    %2659 = vmatpush1.msra.mxu0 %v2395
    %2660 = vmatprep.subr.mxu0 %v2400
    %2661 = vmatpush1.msra.mxu0 %v2399
    %2662 = vmatprep.subr.mxu0 %v2404
    %2663 = vmatpush1.msra.mxu0 %v2403
    %2664 = vmatprep.subr.mxu0 %v2408
    %2665 = vmatpush1.msra.mxu0 %v2407
    %2666 = vmatprep.subr.mxu0 %v2412
    %2667 = vmatpush1.msra.mxu0 %v2411
    %2668 = vmatprep.subr.mxu0 %v2416
    %2669 = vmatpush1.msra.mxu0 %v2415
    %2670 = vmatprep.subr.mxu0 %v2420
    %2671 = vmatpush1.msra.mxu0 %v2419
    %2672 = vmatprep.subr.mxu0 %v2424
    %2673 = vmatpush1.msra.mxu0 %v2423
    %2674 = vmatprep.subr.mxu0 %v2428
    %2675 = vmatpush1.msra.mxu0 %v2427
    %2676 = vmatprep.subr.mxu0 %v2432
    %2677 = vmatpush1.msra.mxu0 %v2431
    %2678 = vmatprep.subr.mxu0 %v2436
    %2679 = vmatpush1.msra.mxu0 %v2435
    %2680 = vmatprep.subr.mxu0 %v2440
    %2681 = vmatpush1.msra.mxu0 %v2439
    %2682 = vmatprep.subr.mxu0 0.0
    %2683 = vmatpush1.msra.mxu0 0.0
    %2684 = vmatprep.subr.mxu0 0.0
    %2685 = vmatpush1.msra.mxu0 0.0
    %2686 = vmatprep.subr.mxu0 0.0
    %2687 = vmatpush1.msra.mxu0 0.0
    %2688 = vmatprep.subr.mxu0 0.0
    %2689 = vmatpush1.msra.mxu0 0.0
    %2690 = vmatprep.subr.mxu0 0.0
    %2691 = vmatpush1.msra.mxu0 0.0
    %2692 = vmatprep.subr.mxu0 0.0
    %2693 = vmatpush1.msra.mxu0 0.0
    %2694 = vmatprep.subr.mxu0 0.0
    %2695 = vmatpush1.msra.mxu0 0.0
    %2696 = vmatprep.subr.mxu0 0.0
    %2697 = vmatpush1.msra.mxu0 0.0
    %2698 = vmatprep.subr.mxu0 0.0
    %2699 = vmatpush1.msra.mxu0 0.0
    %2700 = vmatprep.subr.mxu0 0.0
    %2701 = vmatpush1.msra.mxu0 0.0
    %2702 = vmatprep.subr.mxu0 0.0
    %2703 = vmatpush1.msra.mxu0 0.0
    %2704 = vmatprep.subr.mxu0 0.0
    %2705 = vmatpush1.msra.mxu0 0.0
    %2706 = vmatprep.subr.mxu0 0.0
    %2707 = vmatpush1.msra.mxu0 0.0
    %2708 = vmatprep.subr.mxu0 0.0
    %2709 = vmatpush1.msra.mxu0 0.0
    %2710 = vmatprep.subr.mxu0 0.0
    %2711 = vmatpush1.msra.mxu0 0.0
    %2712 = vmatprep.subr.mxu0 0.0
    %2713 = vmatpush1.msra.mxu0 0.0
    %2714 = vmatprep.mubr.f32.mxu0 0.0
    %2715 = vmatmul.mubr.f32.gmra.mrb[0].mxu0 %v2378
    %v2716 = vpop.f32.mrb[0].mxu0
    %v2717 = vadd.f32 %v2575, %v2716
    %v2718 = vpop.f32.mrb[0].mxu0
    %v2719 = vadd.f32 %v2577, %v2718
    %2720 = vdwg.mxu0
    %2721 = vmatprep.subr.mxu0 %v2382
    %2722 = vmatpush1.msra.mxu0 %v2381
    %2723 = vmatprep.subr.mxu0 %v2386
    %2724 = vmatpush1.msra.mxu0 %v2385
    %2725 = vmatprep.subr.mxu0 %v2390
    %2726 = vmatpush1.msra.mxu0 %v2389
    %2727 = vmatprep.subr.mxu0 %v2394
    %2728 = vmatpush1.msra.mxu0 %v2393
    %2729 = vmatprep.subr.mxu0 %v2398
    %2730 = vmatpush1.msra.mxu0 %v2397
    %2731 = vmatprep.subr.mxu0 %v2402
    %2732 = vmatpush1.msra.mxu0 %v2401
    %2733 = vmatprep.subr.mxu0 %v2406
    %2734 = vmatpush1.msra.mxu0 %v2405
    %2735 = vmatprep.subr.mxu0 %v2410
    %2736 = vmatpush1.msra.mxu0 %v2409
    %2737 = vmatprep.subr.mxu0 %v2414
    %2738 = vmatpush1.msra.mxu0 %v2413
    %2739 = vmatprep.subr.mxu0 %v2418
    %2740 = vmatpush1.msra.mxu0 %v2417
    %2741 = vmatprep.subr.mxu0 %v2422
    %2742 = vmatpush1.msra.mxu0 %v2421
    %2743 = vmatprep.subr.mxu0 %v2426
    %2744 = vmatpush1.msra.mxu0 %v2425
    %2745 = vmatprep.subr.mxu0 %v2430
    %2746 = vmatpush1.msra.mxu0 %v2429
    %2747 = vmatprep.subr.mxu0 %v2434
    %2748 = vmatpush1.msra.mxu0 %v2433
    %2749 = vmatprep.subr.mxu0 %v2438
    %2750 = vmatpush1.msra.mxu0 %v2437
    %2751 = vmatprep.subr.mxu0 %v2442
    %2752 = vmatpush1.msra.mxu0 %v2441
    %2753 = vmatprep.subr.mxu0 0.0
    %2754 = vmatpush1.msra.mxu0 0.0
    %2755 = vmatprep.subr.mxu0 0.0
    %2756 = vmatpush1.msra.mxu0 0.0
    %2757 = vmatprep.subr.mxu0 0.0
    %2758 = vmatpush1.msra.mxu0 0.0
    %2759 = vmatprep.subr.mxu0 0.0
    %2760 = vmatpush1.msra.mxu0 0.0
    %2761 = vmatprep.subr.mxu0 0.0
    %2762 = vmatpush1.msra.mxu0 0.0
    %2763 = vmatprep.subr.mxu0 0.0
    %2764 = vmatpush1.msra.mxu0 0.0
    %2765 = vmatprep.subr.mxu0 0.0
    %2766 = vmatpush1.msra.mxu0 0.0
    %2767 = vmatprep.subr.mxu0 0.0
    %2768 = vmatpush1.msra.mxu0 0.0
    %2769 = vmatprep.subr.mxu0 0.0
    %2770 = vmatpush1.msra.mxu0 0.0
    %2771 = vmatprep.subr.mxu0 0.0
    %2772 = vmatpush1.msra.mxu0 0.0
    %2773 = vmatprep.subr.mxu0 0.0
    %2774 = vmatpush1.msra.mxu0 0.0
    %2775 = vmatprep.subr.mxu0 0.0
    %2776 = vmatpush1.msra.mxu0 0.0
    %2777 = vmatprep.subr.mxu0 0.0
    %2778 = vmatpush1.msra.mxu0 0.0
    %2779 = vmatprep.subr.mxu0 0.0
    %2780 = vmatpush1.msra.mxu0 0.0
    %2781 = vmatprep.subr.mxu0 0.0
    %2782 = vmatpush1.msra.mxu0 0.0
    %2783 = vmatprep.subr.mxu0 0.0
    %2784 = vmatpush1.msra.mxu0 0.0
    %2785 = vmatprep.mubr.f32.mxu0 0.0
    %2786 = vmatmul.mubr.f32.gmra.mrb[0].mxu0 %v2378
    %v2787 = vpop.f32.mrb[0].mxu0
    %v2788 = vadd.f32 %v2646, %v2787
    %v2789 = vpop.f32.mrb[0].mxu0
    %v2790 = vadd.f32 %v2648, %v2789
    %2791 = vdwg.mxu0
    %v2792 = vadd.f32 %v2717, %v122
    %v2793 = vadd.f32 %v2719, %v126
    %v2794 = vadd.f32 %v2788, %v130
    %v2795 = vadd.f32 %v2790, %v134
    %v2796 = vxor.u32 %v2792, 2147483648
    %v2797 = vmul.f32 %v2796, 1.442695
    %v2798 = vpow.pop %v2797
    %v2799 = vadd.f32 %v2798, 1.0
    %v2800 = vrcp.pop %v2799
    %v2801 = vmul.f32 1.0, %v2800
    %v2802 = vxor.u32 %v2793, 2147483648
    %v2803 = vmul.f32 %v2802, 1.442695
    %v2804 = vpow.pop %v2803
    %v2805 = vadd.f32 %v2804, 1.0
    %v2806 = vrcp.pop %v2805
    %v2807 = vmul.f32 1.0, %v2806
    %v2808 = vtanh.pop %v2794
    %v2809 = vxor.u32 %v2795, 2147483648
    %v2810 = vmul.f32 %v2809, 1.442695
    %v2811 = vpow.pop %v2810
    %v2812 = vadd.f32 %v2811, 1.0
    %v2813 = vrcp.pop %v2812
    %v2814 = vmul.f32 1.0, %v2813
    %v2815 = vld [vmem:[#allocation4] sm:$0xff]
    %v2816 = vmul.f32 %v2807, %v2815
    %v2817 = vmul.f32 %v2801, %v2808
    %v2818 = vadd.f32 %v2816, %v2817
    %v2819 = vtanh.pop %v2818
    %v2820 = vmul.f32 %v2814, %v2819
    %2821 = vst [vmem:[#allocation4] sm:$0xff] %v2818
    %2822 = vst [vmem:[#allocation3] sm:$0xff] %v2820
    %s2823 = scalar_lea.vmem [#allocation2], 40
    %2824 = vst [vmem:[%s2823] sm:$0xff] %v2820
    %s2825 = scalar_lea.vmem [#allocation5], 48
    %v2826 = vld [vmem:[%s2825] sm:$0xff]
    %v2827 = vld [vmem:[#allocation8] sm:$0xff]
    %v2828 = vld [vmem:[#allocation8 + $0x8] sm:$0xff]
    %v2829 = vld [vmem:[#allocation8 + $0x10] sm:$0xff]
    %v2830 = vld [vmem:[#allocation8 + $0x18] sm:$0xff]
    %v2831 = vld [vmem:[#allocation8 + $0x20] sm:$0xff]
    %v2832 = vld [vmem:[#allocation8 + $0x28] sm:$0xff]
    %v2833 = vld [vmem:[#allocation8 + $0x30] sm:$0xff]
    %v2834 = vld [vmem:[#allocation8 + $0x38] sm:$0xff]
    %v2835 = vld [vmem:[#allocation8 + $0x40] sm:$0xff]
    %v2836 = vld [vmem:[#allocation8 + $0x48] sm:$0xff]
    %v2837 = vld [vmem:[#allocation8 + $0x50] sm:$0xff]
    %v2838 = vld [vmem:[#allocation8 + $0x58] sm:$0xff]
    %v2839 = vld [vmem:[#allocation8 + $0x60] sm:$0xff]
    %v2840 = vld [vmem:[#allocation8 + $0x68] sm:$0xff]
    %v2841 = vld [vmem:[#allocation8 + $0x70] sm:$0xff]
    %v2842 = vld [vmem:[#allocation8 + $0x78] sm:$0xff]
    %v2843 = vld [vmem:[#allocation8 + $0x80] sm:$0xff]
    %v2844 = vld [vmem:[#allocation8 + $0x88] sm:$0xff]
    %v2845 = vld [vmem:[#allocation8 + $0x90] sm:$0xff]
    %v2846 = vld [vmem:[#allocation8 + $0x98] sm:$0xff]
    %v2847 = vld [vmem:[#allocation8 + $0xa0] sm:$0xff]
    %v2848 = vld [vmem:[#allocation8 + $0xa8] sm:$0xff]
    %v2849 = vld [vmem:[#allocation8 + $0xb0] sm:$0xff]
    %v2850 = vld [vmem:[#allocation8 + $0xb8] sm:$0xff]
    %v2851 = vld [vmem:[#allocation8 + $0xc0] sm:$0xff]
    %v2852 = vld [vmem:[#allocation8 + $0xc8] sm:$0xff]
    %v2853 = vld [vmem:[#allocation8 + $0xd0] sm:$0xff]
    %v2854 = vld [vmem:[#allocation8 + $0xd8] sm:$0xff]
    %v2855 = vld [vmem:[#allocation8 + $0xe0] sm:$0xff]
    %v2856 = vld [vmem:[#allocation8 + $0xe8] sm:$0xff]
    %v2857 = vld [vmem:[#allocation8 + $0xf0] sm:$0xff]
    %v2858 = vld [vmem:[#allocation8 + $0xf8] sm:$0xff]
    %v2859 = vld [vmem:[#allocation8 + $0x100] sm:$0xff]
    %v2860 = vld [vmem:[#allocation8 + $0x108] sm:$0xff]
    %v2861 = vld [vmem:[#allocation8 + $0x110] sm:$0xff]
    %v2862 = vld [vmem:[#allocation8 + $0x118] sm:$0xff]
    %v2863 = vld [vmem:[#allocation8 + $0x120] sm:$0xff]
    %v2864 = vld [vmem:[#allocation8 + $0x128] sm:$0xff]
    %v2865 = vld [vmem:[#allocation8 + $0x130] sm:$0xff]
    %v2866 = vld [vmem:[#allocation8 + $0x138] sm:$0xff]
    %v2867 = vld [vmem:[#allocation8 + $0x140] sm:$0xff]
    %v2868 = vld [vmem:[#allocation8 + $0x148] sm:$0xff]
    %v2869 = vld [vmem:[#allocation8 + $0x150] sm:$0xff]
    %v2870 = vld [vmem:[#allocation8 + $0x158] sm:$0xff]
    %v2871 = vld [vmem:[#allocation8 + $0x160] sm:$0xff]
    %v2872 = vld [vmem:[#allocation8 + $0x168] sm:$0xff]
    %v2873 = vld [vmem:[#allocation8 + $0x170] sm:$0xff]
    %v2874 = vld [vmem:[#allocation8 + $0x178] sm:$0xff]
    %v2875 = vld [vmem:[#allocation8 + $0x180] sm:$0xff]
    %v2876 = vld [vmem:[#allocation8 + $0x188] sm:$0xff]
    %v2877 = vld [vmem:[#allocation8 + $0x190] sm:$0xff]
    %v2878 = vld [vmem:[#allocation8 + $0x198] sm:$0xff]
    %v2879 = vld [vmem:[#allocation8 + $0x1a0] sm:$0xff]
    %v2880 = vld [vmem:[#allocation8 + $0x1a8] sm:$0xff]
    %v2881 = vld [vmem:[#allocation8 + $0x1b0] sm:$0xff]
    %v2882 = vld [vmem:[#allocation8 + $0x1b8] sm:$0xff]
    %v2883 = vld [vmem:[#allocation8 + $0x1c0] sm:$0xff]
    %v2884 = vld [vmem:[#allocation8 + $0x1c8] sm:$0xff]
    %v2885 = vld [vmem:[#allocation8 + $0x1d0] sm:$0xff]
    %v2886 = vld [vmem:[#allocation8 + $0x1d8] sm:$0xff]
    %v2887 = vld [vmem:[#allocation8 + $0x1e0] sm:$0xff]
    %v2888 = vld [vmem:[#allocation8 + $0x1e8] sm:$0xff]
    %v2889 = vld [vmem:[#allocation8 + $0x1f0] sm:$0xff]
    %v2890 = vld [vmem:[#allocation8 + $0x1f8] sm:$0xff]
    %v2891 = vld [vmem:[#allocation3] sm:$0xff]
    %v2892 = vld [vmem:[#allocation10] sm:$0xff]
    %v2893 = vld [vmem:[#allocation10 + $0x8] sm:$0xff]
    %v2894 = vld [vmem:[#allocation10 + $0x10] sm:$0xff]
    %v2895 = vld [vmem:[#allocation10 + $0x18] sm:$0xff]
    %v2896 = vld [vmem:[#allocation10 + $0x20] sm:$0xff]
    %v2897 = vld [vmem:[#allocation10 + $0x28] sm:$0xff]
    %v2898 = vld [vmem:[#allocation10 + $0x30] sm:$0xff]
    %v2899 = vld [vmem:[#allocation10 + $0x38] sm:$0xff]
    %v2900 = vld [vmem:[#allocation10 + $0x40] sm:$0xff]
    %v2901 = vld [vmem:[#allocation10 + $0x48] sm:$0xff]
    %v2902 = vld [vmem:[#allocation10 + $0x50] sm:$0xff]
    %v2903 = vld [vmem:[#allocation10 + $0x58] sm:$0xff]
    %v2904 = vld [vmem:[#allocation10 + $0x60] sm:$0xff]
    %v2905 = vld [vmem:[#allocation10 + $0x68] sm:$0xff]
    %v2906 = vld [vmem:[#allocation10 + $0x70] sm:$0xff]
    %v2907 = vld [vmem:[#allocation10 + $0x78] sm:$0xff]
    %v2908 = vld [vmem:[#allocation10 + $0x80] sm:$0xff]
    %v2909 = vld [vmem:[#allocation10 + $0x88] sm:$0xff]
    %v2910 = vld [vmem:[#allocation10 + $0x90] sm:$0xff]
    %v2911 = vld [vmem:[#allocation10 + $0x98] sm:$0xff]
    %v2912 = vld [vmem:[#allocation10 + $0xa0] sm:$0xff]
    %v2913 = vld [vmem:[#allocation10 + $0xa8] sm:$0xff]
    %v2914 = vld [vmem:[#allocation10 + $0xb0] sm:$0xff]
    %v2915 = vld [vmem:[#allocation10 + $0xb8] sm:$0xff]
    %v2916 = vld [vmem:[#allocation10 + $0xc0] sm:$0xff]
    %v2917 = vld [vmem:[#allocation10 + $0xc8] sm:$0xff]
    %v2918 = vld [vmem:[#allocation10 + $0xd0] sm:$0xff]
    %v2919 = vld [vmem:[#allocation10 + $0xd8] sm:$0xff]
    %v2920 = vld [vmem:[#allocation10 + $0xe0] sm:$0xff]
    %v2921 = vld [vmem:[#allocation10 + $0xe8] sm:$0xff]
    %v2922 = vld [vmem:[#allocation10 + $0xf0] sm:$0xff]
    %v2923 = vld [vmem:[#allocation10 + $0xf8] sm:$0xff]
    %v2924 = vld [vmem:[#allocation10 + $0x100] sm:$0xff]
    %v2925 = vld [vmem:[#allocation10 + $0x108] sm:$0xff]
    %v2926 = vld [vmem:[#allocation10 + $0x110] sm:$0xff]
    %v2927 = vld [vmem:[#allocation10 + $0x118] sm:$0xff]
    %v2928 = vld [vmem:[#allocation10 + $0x120] sm:$0xff]
    %v2929 = vld [vmem:[#allocation10 + $0x128] sm:$0xff]
    %v2930 = vld [vmem:[#allocation10 + $0x130] sm:$0xff]
    %v2931 = vld [vmem:[#allocation10 + $0x138] sm:$0xff]
    %v2932 = vld [vmem:[#allocation10 + $0x140] sm:$0xff]
    %v2933 = vld [vmem:[#allocation10 + $0x148] sm:$0xff]
    %v2934 = vld [vmem:[#allocation10 + $0x150] sm:$0xff]
    %v2935 = vld [vmem:[#allocation10 + $0x158] sm:$0xff]
    %v2936 = vld [vmem:[#allocation10 + $0x160] sm:$0xff]
    %v2937 = vld [vmem:[#allocation10 + $0x168] sm:$0xff]
    %v2938 = vld [vmem:[#allocation10 + $0x170] sm:$0xff]
    %v2939 = vld [vmem:[#allocation10 + $0x178] sm:$0xff]
    %v2940 = vld [vmem:[#allocation10 + $0x180] sm:$0xff]
    %v2941 = vld [vmem:[#allocation10 + $0x188] sm:$0xff]
    %v2942 = vld [vmem:[#allocation10 + $0x190] sm:$0xff]
    %v2943 = vld [vmem:[#allocation10 + $0x198] sm:$0xff]
    %v2944 = vld [vmem:[#allocation10 + $0x1a0] sm:$0xff]
    %v2945 = vld [vmem:[#allocation10 + $0x1a8] sm:$0xff]
    %v2946 = vld [vmem:[#allocation10 + $0x1b0] sm:$0xff]
    %v2947 = vld [vmem:[#allocation10 + $0x1b8] sm:$0xff]
    %v2948 = vld [vmem:[#allocation10 + $0x1c0] sm:$0xff]
    %v2949 = vld [vmem:[#allocation10 + $0x1c8] sm:$0xff]
    %v2950 = vld [vmem:[#allocation10 + $0x1d0] sm:$0xff]
    %v2951 = vld [vmem:[#allocation10 + $0x1d8] sm:$0xff]
    %v2952 = vld [vmem:[#allocation10 + $0x1e0] sm:$0xff]
    %v2953 = vld [vmem:[#allocation10 + $0x1e8] sm:$0xff]
    %v2954 = vld [vmem:[#allocation10 + $0x1f0] sm:$0xff]
    %v2955 = vld [vmem:[#allocation10 + $0x1f8] sm:$0xff]
    %2956 = vmatprep.subr.mxu0 %v2893
    %2957 = vmatpush1.msra.mxu0 %v2892
    %2958 = vmatprep.subr.mxu0 %v2897
    %2959 = vmatpush1.msra.mxu0 %v2896
    %2960 = vmatprep.subr.mxu0 %v2901
    %2961 = vmatpush1.msra.mxu0 %v2900
    %2962 = vmatprep.subr.mxu0 %v2905
    %2963 = vmatpush1.msra.mxu0 %v2904
    %2964 = vmatprep.subr.mxu0 %v2909
    %2965 = vmatpush1.msra.mxu0 %v2908
    %2966 = vmatprep.subr.mxu0 %v2913
    %2967 = vmatpush1.msra.mxu0 %v2912
    %2968 = vmatprep.subr.mxu0 %v2917
    %2969 = vmatpush1.msra.mxu0 %v2916
    %2970 = vmatprep.subr.mxu0 %v2921
    %2971 = vmatpush1.msra.mxu0 %v2920
    %2972 = vmatprep.subr.mxu0 %v2925
    %2973 = vmatpush1.msra.mxu0 %v2924
    %2974 = vmatprep.subr.mxu0 %v2929
    %2975 = vmatpush1.msra.mxu0 %v2928
    %2976 = vmatprep.subr.mxu0 %v2933
    %2977 = vmatpush1.msra.mxu0 %v2932
    %2978 = vmatprep.subr.mxu0 %v2937
    %2979 = vmatpush1.msra.mxu0 %v2936
    %2980 = vmatprep.subr.mxu0 %v2941
    %2981 = vmatpush1.msra.mxu0 %v2940
    %2982 = vmatprep.subr.mxu0 %v2945
    %2983 = vmatpush1.msra.mxu0 %v2944
    %2984 = vmatprep.subr.mxu0 %v2949
    %2985 = vmatpush1.msra.mxu0 %v2948
    %2986 = vmatprep.subr.mxu0 %v2953
    %2987 = vmatpush1.msra.mxu0 %v2952
    %2988 = vmatprep.subr.mxu0 0.0
    %2989 = vmatpush1.msra.mxu0 0.0
    %2990 = vmatprep.subr.mxu0 0.0
    %2991 = vmatpush1.msra.mxu0 0.0
    %2992 = vmatprep.subr.mxu0 0.0
    %2993 = vmatpush1.msra.mxu0 0.0
    %2994 = vmatprep.subr.mxu0 0.0
    %2995 = vmatpush1.msra.mxu0 0.0
    %2996 = vmatprep.subr.mxu0 0.0
    %2997 = vmatpush1.msra.mxu0 0.0
    %2998 = vmatprep.subr.mxu0 0.0
    %2999 = vmatpush1.msra.mxu0 0.0
    %3000 = vmatprep.subr.mxu0 0.0
    %3001 = vmatpush1.msra.mxu0 0.0
    %3002 = vmatprep.subr.mxu0 0.0
    %3003 = vmatpush1.msra.mxu0 0.0
    %3004 = vmatprep.subr.mxu0 0.0
    %3005 = vmatpush1.msra.mxu0 0.0
    %3006 = vmatprep.subr.mxu0 0.0
    %3007 = vmatpush1.msra.mxu0 0.0
    %3008 = vmatprep.subr.mxu0 0.0
    %3009 = vmatpush1.msra.mxu0 0.0
    %3010 = vmatprep.subr.mxu0 0.0
    %3011 = vmatpush1.msra.mxu0 0.0
    %3012 = vmatprep.subr.mxu0 0.0
    %3013 = vmatpush1.msra.mxu0 0.0
    %3014 = vmatprep.subr.mxu0 0.0
    %3015 = vmatpush1.msra.mxu0 0.0
    %3016 = vmatprep.subr.mxu0 0.0
    %3017 = vmatpush1.msra.mxu0 0.0
    %3018 = vmatprep.subr.mxu0 0.0
    %3019 = vmatpush1.msra.mxu0 0.0
    %3020 = vmatprep.mubr.f32.mxu0 0.0
    %3021 = vmatmul.mubr.f32.gmra.mrb[0].mxu0 %v2891
    %v3022 = vpop.f32.mrb[0].mxu0
    %v3023 = vadd.f32 0.0, %v3022
    %v3024 = vpop.f32.mrb[0].mxu0
    %v3025 = vadd.f32 0.0, %v3024
    %3026 = vdwg.mxu0
    %3027 = vmatprep.subr.mxu0 %v2895
    %3028 = vmatpush1.msra.mxu0 %v2894
    %3029 = vmatprep.subr.mxu0 %v2899
    %3030 = vmatpush1.msra.mxu0 %v2898
    %3031 = vmatprep.subr.mxu0 %v2903
    %3032 = vmatpush1.msra.mxu0 %v2902
    %3033 = vmatprep.subr.mxu0 %v2907
    %3034 = vmatpush1.msra.mxu0 %v2906
    %3035 = vmatprep.subr.mxu0 %v2911
    %3036 = vmatpush1.msra.mxu0 %v2910
    %3037 = vmatprep.subr.mxu0 %v2915
    %3038 = vmatpush1.msra.mxu0 %v2914
    %3039 = vmatprep.subr.mxu0 %v2919
    %3040 = vmatpush1.msra.mxu0 %v2918
    %3041 = vmatprep.subr.mxu0 %v2923
    %3042 = vmatpush1.msra.mxu0 %v2922
    %3043 = vmatprep.subr.mxu0 %v2927
    %3044 = vmatpush1.msra.mxu0 %v2926
    %3045 = vmatprep.subr.mxu0 %v2931
    %3046 = vmatpush1.msra.mxu0 %v2930
    %3047 = vmatprep.subr.mxu0 %v2935
    %3048 = vmatpush1.msra.mxu0 %v2934
    %3049 = vmatprep.subr.mxu0 %v2939
    %3050 = vmatpush1.msra.mxu0 %v2938
    %3051 = vmatprep.subr.mxu0 %v2943
    %3052 = vmatpush1.msra.mxu0 %v2942
    %3053 = vmatprep.subr.mxu0 %v2947
    %3054 = vmatpush1.msra.mxu0 %v2946
    %3055 = vmatprep.subr.mxu0 %v2951
    %3056 = vmatpush1.msra.mxu0 %v2950
    %3057 = vmatprep.subr.mxu0 %v2955
    %3058 = vmatpush1.msra.mxu0 %v2954
    %3059 = vmatprep.subr.mxu0 0.0
    %3060 = vmatpush1.msra.mxu0 0.0
    %3061 = vmatprep.subr.mxu0 0.0
    %3062 = vmatpush1.msra.mxu0 0.0
    %3063 = vmatprep.subr.mxu0 0.0
    %3064 = vmatpush1.msra.mxu0 0.0
    %3065 = vmatprep.subr.mxu0 0.0
    %3066 = vmatpush1.msra.mxu0 0.0
    %3067 = vmatprep.subr.mxu0 0.0
    %3068 = vmatpush1.msra.mxu0 0.0
    %3069 = vmatprep.subr.mxu0 0.0
    %3070 = vmatpush1.msra.mxu0 0.0
    %3071 = vmatprep.subr.mxu0 0.0
    %3072 = vmatpush1.msra.mxu0 0.0
    %3073 = vmatprep.subr.mxu0 0.0
    %3074 = vmatpush1.msra.mxu0 0.0
    %3075 = vmatprep.subr.mxu0 0.0
    %3076 = vmatpush1.msra.mxu0 0.0
    %3077 = vmatprep.subr.mxu0 0.0
    %3078 = vmatpush1.msra.mxu0 0.0
    %3079 = vmatprep.subr.mxu0 0.0
    %3080 = vmatpush1.msra.mxu0 0.0
    %3081 = vmatprep.subr.mxu0 0.0
    %3082 = vmatpush1.msra.mxu0 0.0
    %3083 = vmatprep.subr.mxu0 0.0
    %3084 = vmatpush1.msra.mxu0 0.0
    %3085 = vmatprep.subr.mxu0 0.0
    %3086 = vmatpush1.msra.mxu0 0.0
    %3087 = vmatprep.subr.mxu0 0.0
    %3088 = vmatpush1.msra.mxu0 0.0
    %3089 = vmatprep.subr.mxu0 0.0
    %3090 = vmatpush1.msra.mxu0 0.0
    %3091 = vmatprep.mubr.f32.mxu0 0.0
    %3092 = vmatmul.mubr.f32.gmra.mrb[0].mxu0 %v2891
    %v3093 = vpop.f32.mrb[0].mxu0
    %v3094 = vadd.f32 0.0, %v3093
    %v3095 = vpop.f32.mrb[0].mxu0
    %v3096 = vadd.f32 0.0, %v3095
    %3097 = vdwg.mxu0
    %3098 = vmatprep.subr.mxu0 %v2828
    %3099 = vmatpush1.msra.mxu0 %v2827
    %3100 = vmatprep.subr.mxu0 %v2832
    %3101 = vmatpush1.msra.mxu0 %v2831
    %3102 = vmatprep.subr.mxu0 %v2836
    %3103 = vmatpush1.msra.mxu0 %v2835
    %3104 = vmatprep.subr.mxu0 %v2840
    %3105 = vmatpush1.msra.mxu0 %v2839
    %3106 = vmatprep.subr.mxu0 %v2844
    %3107 = vmatpush1.msra.mxu0 %v2843
    %3108 = vmatprep.subr.mxu0 %v2848
    %3109 = vmatpush1.msra.mxu0 %v2847
    %3110 = vmatprep.subr.mxu0 %v2852
    %3111 = vmatpush1.msra.mxu0 %v2851
    %3112 = vmatprep.subr.mxu0 %v2856
    %3113 = vmatpush1.msra.mxu0 %v2855
    %3114 = vmatprep.subr.mxu0 %v2860
    %3115 = vmatpush1.msra.mxu0 %v2859
    %3116 = vmatprep.subr.mxu0 %v2864
    %3117 = vmatpush1.msra.mxu0 %v2863
    %3118 = vmatprep.subr.mxu0 %v2868
    %3119 = vmatpush1.msra.mxu0 %v2867
    %3120 = vmatprep.subr.mxu0 %v2872
    %3121 = vmatpush1.msra.mxu0 %v2871
    %3122 = vmatprep.subr.mxu0 %v2876
    %3123 = vmatpush1.msra.mxu0 %v2875
    %3124 = vmatprep.subr.mxu0 %v2880
    %3125 = vmatpush1.msra.mxu0 %v2879
    %3126 = vmatprep.subr.mxu0 %v2884
    %3127 = vmatpush1.msra.mxu0 %v2883
    %3128 = vmatprep.subr.mxu0 %v2888
    %3129 = vmatpush1.msra.mxu0 %v2887
    %3130 = vmatprep.subr.mxu0 0.0
    %3131 = vmatpush1.msra.mxu0 0.0
    %3132 = vmatprep.subr.mxu0 0.0
    %3133 = vmatpush1.msra.mxu0 0.0
    %3134 = vmatprep.subr.mxu0 0.0
    %3135 = vmatpush1.msra.mxu0 0.0
    %3136 = vmatprep.subr.mxu0 0.0
    %3137 = vmatpush1.msra.mxu0 0.0
    %3138 = vmatprep.subr.mxu0 0.0
    %3139 = vmatpush1.msra.mxu0 0.0
    %3140 = vmatprep.subr.mxu0 0.0
    %3141 = vmatpush1.msra.mxu0 0.0
    %3142 = vmatprep.subr.mxu0 0.0
    %3143 = vmatpush1.msra.mxu0 0.0
    %3144 = vmatprep.subr.mxu0 0.0
    %3145 = vmatpush1.msra.mxu0 0.0
    %3146 = vmatprep.subr.mxu0 0.0
    %3147 = vmatpush1.msra.mxu0 0.0
    %3148 = vmatprep.subr.mxu0 0.0
    %3149 = vmatpush1.msra.mxu0 0.0
    %3150 = vmatprep.subr.mxu0 0.0
    %3151 = vmatpush1.msra.mxu0 0.0
    %3152 = vmatprep.subr.mxu0 0.0
    %3153 = vmatpush1.msra.mxu0 0.0
    %3154 = vmatprep.subr.mxu0 0.0
    %3155 = vmatpush1.msra.mxu0 0.0
    %3156 = vmatprep.subr.mxu0 0.0
    %3157 = vmatpush1.msra.mxu0 0.0
    %3158 = vmatprep.subr.mxu0 0.0
    %3159 = vmatpush1.msra.mxu0 0.0
    %3160 = vmatprep.subr.mxu0 0.0
    %3161 = vmatpush1.msra.mxu0 0.0
    %3162 = vmatprep.mubr.f32.mxu0 0.0
    %3163 = vmatmul.mubr.f32.gmra.mrb[0].mxu0 %v2826
    %v3164 = vpop.f32.mrb[0].mxu0
    %v3165 = vadd.f32 %v3023, %v3164
    %v3166 = vpop.f32.mrb[0].mxu0
    %v3167 = vadd.f32 %v3025, %v3166
    %3168 = vdwg.mxu0
    %3169 = vmatprep.subr.mxu0 %v2830
    %3170 = vmatpush1.msra.mxu0 %v2829
    %3171 = vmatprep.subr.mxu0 %v2834
    %3172 = vmatpush1.msra.mxu0 %v2833
    %3173 = vmatprep.subr.mxu0 %v2838
    %3174 = vmatpush1.msra.mxu0 %v2837
    %3175 = vmatprep.subr.mxu0 %v2842
    %3176 = vmatpush1.msra.mxu0 %v2841
    %3177 = vmatprep.subr.mxu0 %v2846
    %3178 = vmatpush1.msra.mxu0 %v2845
    %3179 = vmatprep.subr.mxu0 %v2850
    %3180 = vmatpush1.msra.mxu0 %v2849
    %3181 = vmatprep.subr.mxu0 %v2854
    %3182 = vmatpush1.msra.mxu0 %v2853
    %3183 = vmatprep.subr.mxu0 %v2858
    %3184 = vmatpush1.msra.mxu0 %v2857
    %3185 = vmatprep.subr.mxu0 %v2862
    %3186 = vmatpush1.msra.mxu0 %v2861
    %3187 = vmatprep.subr.mxu0 %v2866
    %3188 = vmatpush1.msra.mxu0 %v2865
    %3189 = vmatprep.subr.mxu0 %v2870
    %3190 = vmatpush1.msra.mxu0 %v2869
    %3191 = vmatprep.subr.mxu0 %v2874
    %3192 = vmatpush1.msra.mxu0 %v2873
    %3193 = vmatprep.subr.mxu0 %v2878
    %3194 = vmatpush1.msra.mxu0 %v2877
    %3195 = vmatprep.subr.mxu0 %v2882
    %3196 = vmatpush1.msra.mxu0 %v2881
    %3197 = vmatprep.subr.mxu0 %v2886
    %3198 = vmatpush1.msra.mxu0 %v2885
    %3199 = vmatprep.subr.mxu0 %v2890
    %3200 = vmatpush1.msra.mxu0 %v2889
    %3201 = vmatprep.subr.mxu0 0.0
    %3202 = vmatpush1.msra.mxu0 0.0
    %3203 = vmatprep.subr.mxu0 0.0
    %3204 = vmatpush1.msra.mxu0 0.0
    %3205 = vmatprep.subr.mxu0 0.0
    %3206 = vmatpush1.msra.mxu0 0.0
    %3207 = vmatprep.subr.mxu0 0.0
    %3208 = vmatpush1.msra.mxu0 0.0
    %3209 = vmatprep.subr.mxu0 0.0
    %3210 = vmatpush1.msra.mxu0 0.0
    %3211 = vmatprep.subr.mxu0 0.0
    %3212 = vmatpush1.msra.mxu0 0.0
    %3213 = vmatprep.subr.mxu0 0.0
    %3214 = vmatpush1.msra.mxu0 0.0
    %3215 = vmatprep.subr.mxu0 0.0
    %3216 = vmatpush1.msra.mxu0 0.0
    %3217 = vmatprep.subr.mxu0 0.0
    %3218 = vmatpush1.msra.mxu0 0.0
    %3219 = vmatprep.subr.mxu0 0.0
    %3220 = vmatpush1.msra.mxu0 0.0
    %3221 = vmatprep.subr.mxu0 0.0
    %3222 = vmatpush1.msra.mxu0 0.0
    %3223 = vmatprep.subr.mxu0 0.0
    %3224 = vmatpush1.msra.mxu0 0.0
    %3225 = vmatprep.subr.mxu0 0.0
    %3226 = vmatpush1.msra.mxu0 0.0
    %3227 = vmatprep.subr.mxu0 0.0
    %3228 = vmatpush1.msra.mxu0 0.0
    %3229 = vmatprep.subr.mxu0 0.0
    %3230 = vmatpush1.msra.mxu0 0.0
    %3231 = vmatprep.subr.mxu0 0.0
    %3232 = vmatpush1.msra.mxu0 0.0
    %3233 = vmatprep.mubr.f32.mxu0 0.0
    %3234 = vmatmul.mubr.f32.gmra.mrb[0].mxu0 %v2826
    %v3235 = vpop.f32.mrb[0].mxu0
    %v3236 = vadd.f32 %v3094, %v3235
    %v3237 = vpop.f32.mrb[0].mxu0
    %v3238 = vadd.f32 %v3096, %v3237
    %3239 = vdwg.mxu0
    %v3240 = vadd.f32 %v3165, %v122
    %v3241 = vadd.f32 %v3167, %v126
    %v3242 = vadd.f32 %v3236, %v130
    %v3243 = vadd.f32 %v3238, %v134
    %v3244 = vxor.u32 %v3240, 2147483648
    %v3245 = vmul.f32 %v3244, 1.442695
    %v3246 = vpow.pop %v3245
    %v3247 = vadd.f32 %v3246, 1.0
    %v3248 = vrcp.pop %v3247
    %v3249 = vmul.f32 1.0, %v3248
    %v3250 = vxor.u32 %v3241, 2147483648
    %v3251 = vmul.f32 %v3250, 1.442695
    %v3252 = vpow.pop %v3251
    %v3253 = vadd.f32 %v3252, 1.0
    %v3254 = vrcp.pop %v3253
    %v3255 = vmul.f32 1.0, %v3254
    %v3256 = vtanh.pop %v3242
    %v3257 = vxor.u32 %v3243, 2147483648
    %v3258 = vmul.f32 %v3257, 1.442695
    %v3259 = vpow.pop %v3258
    %v3260 = vadd.f32 %v3259, 1.0
    %v3261 = vrcp.pop %v3260
    %v3262 = vmul.f32 1.0, %v3261
    %v3263 = vld [vmem:[#allocation4] sm:$0xff]
    %v3264 = vmul.f32 %v3255, %v3263
    %v3265 = vmul.f32 %v3249, %v3256
    %v3266 = vadd.f32 %v3264, %v3265
    %v3267 = vtanh.pop %v3266
    %v3268 = vmul.f32 %v3262, %v3267
    %3269 = vst [vmem:[#allocation4] sm:$0xff] %v3266
    %3270 = vst [vmem:[#allocation3] sm:$0xff] %v3268
    %s3271 = scalar_lea.vmem [#allocation2], 48
    %3272 = vst [vmem:[%s3271] sm:$0xff] %v3268
    %s3273 = scalar_lea.vmem [#allocation5], 56
    %v3274 = vld [vmem:[%s3273] sm:$0xff]
    %v3275 = vld [vmem:[#allocation8] sm:$0xff]
    %v3276 = vld [vmem:[#allocation8 + $0x8] sm:$0xff]
    %v3277 = vld [vmem:[#allocation8 + $0x10] sm:$0xff]
    %v3278 = vld [vmem:[#allocation8 + $0x18] sm:$0xff]
    %v3279 = vld [vmem:[#allocation8 + $0x20] sm:$0xff]
    %v3280 = vld [vmem:[#allocation8 + $0x28] sm:$0xff]
    %v3281 = vld [vmem:[#allocation8 + $0x30] sm:$0xff]
    %v3282 = vld [vmem:[#allocation8 + $0x38] sm:$0xff]
    %v3283 = vld [vmem:[#allocation8 + $0x40] sm:$0xff]
    %v3284 = vld [vmem:[#allocation8 + $0x48] sm:$0xff]
    %v3285 = vld [vmem:[#allocation8 + $0x50] sm:$0xff]
    %v3286 = vld [vmem:[#allocation8 + $0x58] sm:$0xff]
    %v3287 = vld [vmem:[#allocation8 + $0x60] sm:$0xff]
    %v3288 = vld [vmem:[#allocation8 + $0x68] sm:$0xff]
    %v3289 = vld [vmem:[#allocation8 + $0x70] sm:$0xff]
    %v3290 = vld [vmem:[#allocation8 + $0x78] sm:$0xff]
    %v3291 = vld [vmem:[#allocation8 + $0x80] sm:$0xff]
    %v3292 = vld [vmem:[#allocation8 + $0x88] sm:$0xff]
    %v3293 = vld [vmem:[#allocation8 + $0x90] sm:$0xff]
    %v3294 = vld [vmem:[#allocation8 + $0x98] sm:$0xff]
    %v3295 = vld [vmem:[#allocation8 + $0xa0] sm:$0xff]
    %v3296 = vld [vmem:[#allocation8 + $0xa8] sm:$0xff]
    %v3297 = vld [vmem:[#allocation8 + $0xb0] sm:$0xff]
    %v3298 = vld [vmem:[#allocation8 + $0xb8] sm:$0xff]
    %v3299 = vld [vmem:[#allocation8 + $0xc0] sm:$0xff]
    %v3300 = vld [vmem:[#allocation8 + $0xc8] sm:$0xff]
    %v3301 = vld [vmem:[#allocation8 + $0xd0] sm:$0xff]
    %v3302 = vld [vmem:[#allocation8 + $0xd8] sm:$0xff]
    %v3303 = vld [vmem:[#allocation8 + $0xe0] sm:$0xff]
    %v3304 = vld [vmem:[#allocation8 + $0xe8] sm:$0xff]
    %v3305 = vld [vmem:[#allocation8 + $0xf0] sm:$0xff]
    %v3306 = vld [vmem:[#allocation8 + $0xf8] sm:$0xff]
    %v3307 = vld [vmem:[#allocation8 + $0x100] sm:$0xff]
    %v3308 = vld [vmem:[#allocation8 + $0x108] sm:$0xff]
    %v3309 = vld [vmem:[#allocation8 + $0x110] sm:$0xff]
    %v3310 = vld [vmem:[#allocation8 + $0x118] sm:$0xff]
    %v3311 = vld [vmem:[#allocation8 + $0x120] sm:$0xff]
    %v3312 = vld [vmem:[#allocation8 + $0x128] sm:$0xff]
    %v3313 = vld [vmem:[#allocation8 + $0x130] sm:$0xff]
    %v3314 = vld [vmem:[#allocation8 + $0x138] sm:$0xff]
    %v3315 = vld [vmem:[#allocation8 + $0x140] sm:$0xff]
    %v3316 = vld [vmem:[#allocation8 + $0x148] sm:$0xff]
    %v3317 = vld [vmem:[#allocation8 + $0x150] sm:$0xff]
    %v3318 = vld [vmem:[#allocation8 + $0x158] sm:$0xff]
    %v3319 = vld [vmem:[#allocation8 + $0x160] sm:$0xff]
    %v3320 = vld [vmem:[#allocation8 + $0x168] sm:$0xff]
    %v3321 = vld [vmem:[#allocation8 + $0x170] sm:$0xff]
    %v3322 = vld [vmem:[#allocation8 + $0x178] sm:$0xff]
    %v3323 = vld [vmem:[#allocation8 + $0x180] sm:$0xff]
    %v3324 = vld [vmem:[#allocation8 + $0x188] sm:$0xff]
    %v3325 = vld [vmem:[#allocation8 + $0x190] sm:$0xff]
    %v3326 = vld [vmem:[#allocation8 + $0x198] sm:$0xff]
    %v3327 = vld [vmem:[#allocation8 + $0x1a0] sm:$0xff]
    %v3328 = vld [vmem:[#allocation8 + $0x1a8] sm:$0xff]
    %v3329 = vld [vmem:[#allocation8 + $0x1b0] sm:$0xff]
    %v3330 = vld [vmem:[#allocation8 + $0x1b8] sm:$0xff]
    %v3331 = vld [vmem:[#allocation8 + $0x1c0] sm:$0xff]
    %v3332 = vld [vmem:[#allocation8 + $0x1c8] sm:$0xff]
    %v3333 = vld [vmem:[#allocation8 + $0x1d0] sm:$0xff]
    %v3334 = vld [vmem:[#allocation8 + $0x1d8] sm:$0xff]
    %v3335 = vld [vmem:[#allocation8 + $0x1e0] sm:$0xff]
    %v3336 = vld [vmem:[#allocation8 + $0x1e8] sm:$0xff]
    %v3337 = vld [vmem:[#allocation8 + $0x1f0] sm:$0xff]
    %v3338 = vld [vmem:[#allocation8 + $0x1f8] sm:$0xff]
    %v3339 = vld [vmem:[#allocation3] sm:$0xff]
    %v3340 = vld [vmem:[#allocation10] sm:$0xff]
    %v3341 = vld [vmem:[#allocation10 + $0x8] sm:$0xff]
    %v3342 = vld [vmem:[#allocation10 + $0x10] sm:$0xff]
    %v3343 = vld [vmem:[#allocation10 + $0x18] sm:$0xff]
    %v3344 = vld [vmem:[#allocation10 + $0x20] sm:$0xff]
    %v3345 = vld [vmem:[#allocation10 + $0x28] sm:$0xff]
    %v3346 = vld [vmem:[#allocation10 + $0x30] sm:$0xff]
    %v3347 = vld [vmem:[#allocation10 + $0x38] sm:$0xff]
    %v3348 = vld [vmem:[#allocation10 + $0x40] sm:$0xff]
    %v3349 = vld [vmem:[#allocation10 + $0x48] sm:$0xff]
    %v3350 = vld [vmem:[#allocation10 + $0x50] sm:$0xff]
    %v3351 = vld [vmem:[#allocation10 + $0x58] sm:$0xff]
    %v3352 = vld [vmem:[#allocation10 + $0x60] sm:$0xff]
    %v3353 = vld [vmem:[#allocation10 + $0x68] sm:$0xff]
    %v3354 = vld [vmem:[#allocation10 + $0x70] sm:$0xff]
    %v3355 = vld [vmem:[#allocation10 + $0x78] sm:$0xff]
    %v3356 = vld [vmem:[#allocation10 + $0x80] sm:$0xff]
    %v3357 = vld [vmem:[#allocation10 + $0x88] sm:$0xff]
    %v3358 = vld [vmem:[#allocation10 + $0x90] sm:$0xff]
    %v3359 = vld [vmem:[#allocation10 + $0x98] sm:$0xff]
    %v3360 = vld [vmem:[#allocation10 + $0xa0] sm:$0xff]
    %v3361 = vld [vmem:[#allocation10 + $0xa8] sm:$0xff]
    %v3362 = vld [vmem:[#allocation10 + $0xb0] sm:$0xff]
    %v3363 = vld [vmem:[#allocation10 + $0xb8] sm:$0xff]
    %v3364 = vld [vmem:[#allocation10 + $0xc0] sm:$0xff]
    %v3365 = vld [vmem:[#allocation10 + $0xc8] sm:$0xff]
    %v3366 = vld [vmem:[#allocation10 + $0xd0] sm:$0xff]
    %v3367 = vld [vmem:[#allocation10 + $0xd8] sm:$0xff]
    %v3368 = vld [vmem:[#allocation10 + $0xe0] sm:$0xff]
    %v3369 = vld [vmem:[#allocation10 + $0xe8] sm:$0xff]
    %v3370 = vld [vmem:[#allocation10 + $0xf0] sm:$0xff]
    %v3371 = vld [vmem:[#allocation10 + $0xf8] sm:$0xff]
    %v3372 = vld [vmem:[#allocation10 + $0x100] sm:$0xff]
    %v3373 = vld [vmem:[#allocation10 + $0x108] sm:$0xff]
    %v3374 = vld [vmem:[#allocation10 + $0x110] sm:$0xff]
    %v3375 = vld [vmem:[#allocation10 + $0x118] sm:$0xff]
    %v3376 = vld [vmem:[#allocation10 + $0x120] sm:$0xff]
    %v3377 = vld [vmem:[#allocation10 + $0x128] sm:$0xff]
    %v3378 = vld [vmem:[#allocation10 + $0x130] sm:$0xff]
    %v3379 = vld [vmem:[#allocation10 + $0x138] sm:$0xff]
    %v3380 = vld [vmem:[#allocation10 + $0x140] sm:$0xff]
    %v3381 = vld [vmem:[#allocation10 + $0x148] sm:$0xff]
    %v3382 = vld [vmem:[#allocation10 + $0x150] sm:$0xff]
    %v3383 = vld [vmem:[#allocation10 + $0x158] sm:$0xff]
    %v3384 = vld [vmem:[#allocation10 + $0x160] sm:$0xff]
    %v3385 = vld [vmem:[#allocation10 + $0x168] sm:$0xff]
    %v3386 = vld [vmem:[#allocation10 + $0x170] sm:$0xff]
    %v3387 = vld [vmem:[#allocation10 + $0x178] sm:$0xff]
    %v3388 = vld [vmem:[#allocation10 + $0x180] sm:$0xff]
    %v3389 = vld [vmem:[#allocation10 + $0x188] sm:$0xff]
    %v3390 = vld [vmem:[#allocation10 + $0x190] sm:$0xff]
    %v3391 = vld [vmem:[#allocation10 + $0x198] sm:$0xff]
    %v3392 = vld [vmem:[#allocation10 + $0x1a0] sm:$0xff]
    %v3393 = vld [vmem:[#allocation10 + $0x1a8] sm:$0xff]
    %v3394 = vld [vmem:[#allocation10 + $0x1b0] sm:$0xff]
    %v3395 = vld [vmem:[#allocation10 + $0x1b8] sm:$0xff]
    %v3396 = vld [vmem:[#allocation10 + $0x1c0] sm:$0xff]
    %v3397 = vld [vmem:[#allocation10 + $0x1c8] sm:$0xff]
    %v3398 = vld [vmem:[#allocation10 + $0x1d0] sm:$0xff]
    %v3399 = vld [vmem:[#allocation10 + $0x1d8] sm:$0xff]
    %v3400 = vld [vmem:[#allocation10 + $0x1e0] sm:$0xff]
    %v3401 = vld [vmem:[#allocation10 + $0x1e8] sm:$0xff]
    %v3402 = vld [vmem:[#allocation10 + $0x1f0] sm:$0xff]
    %v3403 = vld [vmem:[#allocation10 + $0x1f8] sm:$0xff]
    %3404 = vmatprep.subr.mxu0 %v3341
    %3405 = vmatpush1.msra.mxu0 %v3340
    %3406 = vmatprep.subr.mxu0 %v3345
    %3407 = vmatpush1.msra.mxu0 %v3344
    %3408 = vmatprep.subr.mxu0 %v3349
    %3409 = vmatpush1.msra.mxu0 %v3348
    %3410 = vmatprep.subr.mxu0 %v3353
    %3411 = vmatpush1.msra.mxu0 %v3352
    %3412 = vmatprep.subr.mxu0 %v3357
    %3413 = vmatpush1.msra.mxu0 %v3356
    %3414 = vmatprep.subr.mxu0 %v3361
    %3415 = vmatpush1.msra.mxu0 %v3360
    %3416 = vmatprep.subr.mxu0 %v3365
    %3417 = vmatpush1.msra.mxu0 %v3364
    %3418 = vmatprep.subr.mxu0 %v3369
    %3419 = vmatpush1.msra.mxu0 %v3368
    %3420 = vmatprep.subr.mxu0 %v3373
    %3421 = vmatpush1.msra.mxu0 %v3372
    %3422 = vmatprep.subr.mxu0 %v3377
    %3423 = vmatpush1.msra.mxu0 %v3376
    %3424 = vmatprep.subr.mxu0 %v3381
    %3425 = vmatpush1.msra.mxu0 %v3380
    %3426 = vmatprep.subr.mxu0 %v3385
    %3427 = vmatpush1.msra.mxu0 %v3384
    %3428 = vmatprep.subr.mxu0 %v3389
    %3429 = vmatpush1.msra.mxu0 %v3388
    %3430 = vmatprep.subr.mxu0 %v3393
    %3431 = vmatpush1.msra.mxu0 %v3392
    %3432 = vmatprep.subr.mxu0 %v3397
    %3433 = vmatpush1.msra.mxu0 %v3396
    %3434 = vmatprep.subr.mxu0 %v3401
    %3435 = vmatpush1.msra.mxu0 %v3400
    %3436 = vmatprep.subr.mxu0 0.0
    %3437 = vmatpush1.msra.mxu0 0.0
    %3438 = vmatprep.subr.mxu0 0.0
    %3439 = vmatpush1.msra.mxu0 0.0
    %3440 = vmatprep.subr.mxu0 0.0
    %3441 = vmatpush1.msra.mxu0 0.0
    %3442 = vmatprep.subr.mxu0 0.0
    %3443 = vmatpush1.msra.mxu0 0.0
    %3444 = vmatprep.subr.mxu0 0.0
    %3445 = vmatpush1.msra.mxu0 0.0
    %3446 = vmatprep.subr.mxu0 0.0
    %3447 = vmatpush1.msra.mxu0 0.0
    %3448 = vmatprep.subr.mxu0 0.0
    %3449 = vmatpush1.msra.mxu0 0.0
    %3450 = vmatprep.subr.mxu0 0.0
    %3451 = vmatpush1.msra.mxu0 0.0
    %3452 = vmatprep.subr.mxu0 0.0
    %3453 = vmatpush1.msra.mxu0 0.0
    %3454 = vmatprep.subr.mxu0 0.0
    %3455 = vmatpush1.msra.mxu0 0.0
    %3456 = vmatprep.subr.mxu0 0.0
    %3457 = vmatpush1.msra.mxu0 0.0
    %3458 = vmatprep.subr.mxu0 0.0
    %3459 = vmatpush1.msra.mxu0 0.0
    %3460 = vmatprep.subr.mxu0 0.0
    %3461 = vmatpush1.msra.mxu0 0.0
    %3462 = vmatprep.subr.mxu0 0.0
    %3463 = vmatpush1.msra.mxu0 0.0
    %3464 = vmatprep.subr.mxu0 0.0
    %3465 = vmatpush1.msra.mxu0 0.0
    %3466 = vmatprep.subr.mxu0 0.0
    %3467 = vmatpush1.msra.mxu0 0.0
    %3468 = vmatprep.mubr.f32.mxu0 0.0
    %3469 = vmatmul.mubr.f32.gmra.mrb[0].mxu0 %v3339
    %v3470 = vpop.f32.mrb[0].mxu0
    %v3471 = vadd.f32 0.0, %v3470
    %v3472 = vpop.f32.mrb[0].mxu0
    %v3473 = vadd.f32 0.0, %v3472
    %3474 = vdwg.mxu0
    %3475 = vmatprep.subr.mxu0 %v3343
    %3476 = vmatpush1.msra.mxu0 %v3342
    %3477 = vmatprep.subr.mxu0 %v3347
    %3478 = vmatpush1.msra.mxu0 %v3346
    %3479 = vmatprep.subr.mxu0 %v3351
    %3480 = vmatpush1.msra.mxu0 %v3350
    %3481 = vmatprep.subr.mxu0 %v3355
    %3482 = vmatpush1.msra.mxu0 %v3354
    %3483 = vmatprep.subr.mxu0 %v3359
    %3484 = vmatpush1.msra.mxu0 %v3358
    %3485 = vmatprep.subr.mxu0 %v3363
    %3486 = vmatpush1.msra.mxu0 %v3362
    %3487 = vmatprep.subr.mxu0 %v3367
    %3488 = vmatpush1.msra.mxu0 %v3366
    %3489 = vmatprep.subr.mxu0 %v3371
    %3490 = vmatpush1.msra.mxu0 %v3370
    %3491 = vmatprep.subr.mxu0 %v3375
    %3492 = vmatpush1.msra.mxu0 %v3374
    %3493 = vmatprep.subr.mxu0 %v3379
    %3494 = vmatpush1.msra.mxu0 %v3378
    %3495 = vmatprep.subr.mxu0 %v3383
    %3496 = vmatpush1.msra.mxu0 %v3382
    %3497 = vmatprep.subr.mxu0 %v3387
    %3498 = vmatpush1.msra.mxu0 %v3386
    %3499 = vmatprep.subr.mxu0 %v3391
    %3500 = vmatpush1.msra.mxu0 %v3390
    %3501 = vmatprep.subr.mxu0 %v3395
    %3502 = vmatpush1.msra.mxu0 %v3394
    %3503 = vmatprep.subr.mxu0 %v3399
    %3504 = vmatpush1.msra.mxu0 %v3398
    %3505 = vmatprep.subr.mxu0 %v3403
    %3506 = vmatpush1.msra.mxu0 %v3402
    %3507 = vmatprep.subr.mxu0 0.0
    %3508 = vmatpush1.msra.mxu0 0.0
    %3509 = vmatprep.subr.mxu0 0.0
    %3510 = vmatpush1.msra.mxu0 0.0
    %3511 = vmatprep.subr.mxu0 0.0
    %3512 = vmatpush1.msra.mxu0 0.0
    %3513 = vmatprep.subr.mxu0 0.0
    %3514 = vmatpush1.msra.mxu0 0.0
    %3515 = vmatprep.subr.mxu0 0.0
    %3516 = vmatpush1.msra.mxu0 0.0
    %3517 = vmatprep.subr.mxu0 0.0
    %3518 = vmatpush1.msra.mxu0 0.0
    %3519 = vmatprep.subr.mxu0 0.0
    %3520 = vmatpush1.msra.mxu0 0.0
    %3521 = vmatprep.subr.mxu0 0.0
    %3522 = vmatpush1.msra.mxu0 0.0
    %3523 = vmatprep.subr.mxu0 0.0
    %3524 = vmatpush1.msra.mxu0 0.0
    %3525 = vmatprep.subr.mxu0 0.0
    %3526 = vmatpush1.msra.mxu0 0.0
    %3527 = vmatprep.subr.mxu0 0.0
    %3528 = vmatpush1.msra.mxu0 0.0
    %3529 = vmatprep.subr.mxu0 0.0
    %3530 = vmatpush1.msra.mxu0 0.0
    %3531 = vmatprep.subr.mxu0 0.0
    %3532 = vmatpush1.msra.mxu0 0.0
    %3533 = vmatprep.subr.mxu0 0.0
    %3534 = vmatpush1.msra.mxu0 0.0
    %3535 = vmatprep.subr.mxu0 0.0
    %3536 = vmatpush1.msra.mxu0 0.0
    %3537 = vmatprep.subr.mxu0 0.0
    %3538 = vmatpush1.msra.mxu0 0.0
    %3539 = vmatprep.mubr.f32.mxu0 0.0
    %3540 = vmatmul.mubr.f32.gmra.mrb[0].mxu0 %v3339
    %v3541 = vpop.f32.mrb[0].mxu0
    %v3542 = vadd.f32 0.0, %v3541
    %v3543 = vpop.f32.mrb[0].mxu0
    %v3544 = vadd.f32 0.0, %v3543
    %3545 = vdwg.mxu0
    %3546 = vmatprep.subr.mxu0 %v3276
    %3547 = vmatpush1.msra.mxu0 %v3275
    %3548 = vmatprep.subr.mxu0 %v3280
    %3549 = vmatpush1.msra.mxu0 %v3279
    %3550 = vmatprep.subr.mxu0 %v3284
    %3551 = vmatpush1.msra.mxu0 %v3283
    %3552 = vmatprep.subr.mxu0 %v3288
    %3553 = vmatpush1.msra.mxu0 %v3287
    %3554 = vmatprep.subr.mxu0 %v3292
    %3555 = vmatpush1.msra.mxu0 %v3291
    %3556 = vmatprep.subr.mxu0 %v3296
    %3557 = vmatpush1.msra.mxu0 %v3295
    %3558 = vmatprep.subr.mxu0 %v3300
    %3559 = vmatpush1.msra.mxu0 %v3299
    %3560 = vmatprep.subr.mxu0 %v3304
    %3561 = vmatpush1.msra.mxu0 %v3303
    %3562 = vmatprep.subr.mxu0 %v3308
    %3563 = vmatpush1.msra.mxu0 %v3307
    %3564 = vmatprep.subr.mxu0 %v3312
    %3565 = vmatpush1.msra.mxu0 %v3311
    %3566 = vmatprep.subr.mxu0 %v3316
    %3567 = vmatpush1.msra.mxu0 %v3315
    %3568 = vmatprep.subr.mxu0 %v3320
    %3569 = vmatpush1.msra.mxu0 %v3319
    %3570 = vmatprep.subr.mxu0 %v3324
    %3571 = vmatpush1.msra.mxu0 %v3323
    %3572 = vmatprep.subr.mxu0 %v3328
    %3573 = vmatpush1.msra.mxu0 %v3327
    %3574 = vmatprep.subr.mxu0 %v3332
    %3575 = vmatpush1.msra.mxu0 %v3331
    %3576 = vmatprep.subr.mxu0 %v3336
    %3577 = vmatpush1.msra.mxu0 %v3335
    %3578 = vmatprep.subr.mxu0 0.0
    %3579 = vmatpush1.msra.mxu0 0.0
    %3580 = vmatprep.subr.mxu0 0.0
    %3581 = vmatpush1.msra.mxu0 0.0
    %3582 = vmatprep.subr.mxu0 0.0
    %3583 = vmatpush1.msra.mxu0 0.0
    %3584 = vmatprep.subr.mxu0 0.0
    %3585 = vmatpush1.msra.mxu0 0.0
    %3586 = vmatprep.subr.mxu0 0.0
    %3587 = vmatpush1.msra.mxu0 0.0
    %3588 = vmatprep.subr.mxu0 0.0
    %3589 = vmatpush1.msra.mxu0 0.0
    %3590 = vmatprep.subr.mxu0 0.0
    %3591 = vmatpush1.msra.mxu0 0.0
    %3592 = vmatprep.subr.mxu0 0.0
    %3593 = vmatpush1.msra.mxu0 0.0
    %3594 = vmatprep.subr.mxu0 0.0
    %3595 = vmatpush1.msra.mxu0 0.0
    %3596 = vmatprep.subr.mxu0 0.0
    %3597 = vmatpush1.msra.mxu0 0.0
    %3598 = vmatprep.subr.mxu0 0.0
    %3599 = vmatpush1.msra.mxu0 0.0
    %3600 = vmatprep.subr.mxu0 0.0
    %3601 = vmatpush1.msra.mxu0 0.0
    %3602 = vmatprep.subr.mxu0 0.0
    %3603 = vmatpush1.msra.mxu0 0.0
    %3604 = vmatprep.subr.mxu0 0.0
    %3605 = vmatpush1.msra.mxu0 0.0
    %3606 = vmatprep.subr.mxu0 0.0
    %3607 = vmatpush1.msra.mxu0 0.0
    %3608 = vmatprep.subr.mxu0 0.0
    %3609 = vmatpush1.msra.mxu0 0.0
    %3610 = vmatprep.mubr.f32.mxu0 0.0
    %3611 = vmatmul.mubr.f32.gmra.mrb[0].mxu0 %v3274
    %v3612 = vpop.f32.mrb[0].mxu0
    %v3613 = vadd.f32 %v3471, %v3612
    %v3614 = vpop.f32.mrb[0].mxu0
    %v3615 = vadd.f32 %v3473, %v3614
    %3616 = vdwg.mxu0
    %3617 = vmatprep.subr.mxu0 %v3278
    %3618 = vmatpush1.msra.mxu0 %v3277
    %3619 = vmatprep.subr.mxu0 %v3282
    %3620 = vmatpush1.msra.mxu0 %v3281
    %3621 = vmatprep.subr.mxu0 %v3286
    %3622 = vmatpush1.msra.mxu0 %v3285
    %3623 = vmatprep.subr.mxu0 %v3290
    %3624 = vmatpush1.msra.mxu0 %v3289
    %3625 = vmatprep.subr.mxu0 %v3294
    %3626 = vmatpush1.msra.mxu0 %v3293
    %3627 = vmatprep.subr.mxu0 %v3298
    %3628 = vmatpush1.msra.mxu0 %v3297
    %3629 = vmatprep.subr.mxu0 %v3302
    %3630 = vmatpush1.msra.mxu0 %v3301
    %3631 = vmatprep.subr.mxu0 %v3306
    %3632 = vmatpush1.msra.mxu0 %v3305
    %3633 = vmatprep.subr.mxu0 %v3310
    %3634 = vmatpush1.msra.mxu0 %v3309
    %3635 = vmatprep.subr.mxu0 %v3314
    %3636 = vmatpush1.msra.mxu0 %v3313
    %3637 = vmatprep.subr.mxu0 %v3318
    %3638 = vmatpush1.msra.mxu0 %v3317
    %3639 = vmatprep.subr.mxu0 %v3322
    %3640 = vmatpush1.msra.mxu0 %v3321
    %3641 = vmatprep.subr.mxu0 %v3326
    %3642 = vmatpush1.msra.mxu0 %v3325
    %3643 = vmatprep.subr.mxu0 %v3330
    %3644 = vmatpush1.msra.mxu0 %v3329
    %3645 = vmatprep.subr.mxu0 %v3334
    %3646 = vmatpush1.msra.mxu0 %v3333
    %3647 = vmatprep.subr.mxu0 %v3338
    %3648 = vmatpush1.msra.mxu0 %v3337
    %3649 = vmatprep.subr.mxu0 0.0
    %3650 = vmatpush1.msra.mxu0 0.0
    %3651 = vmatprep.subr.mxu0 0.0
    %3652 = vmatpush1.msra.mxu0 0.0
    %3653 = vmatprep.subr.mxu0 0.0
    %3654 = vmatpush1.msra.mxu0 0.0
    %3655 = vmatprep.subr.mxu0 0.0
    %3656 = vmatpush1.msra.mxu0 0.0
    %3657 = vmatprep.subr.mxu0 0.0
    %3658 = vmatpush1.msra.mxu0 0.0
    %3659 = vmatprep.subr.mxu0 0.0
    %3660 = vmatpush1.msra.mxu0 0.0
    %3661 = vmatprep.subr.mxu0 0.0
    %3662 = vmatpush1.msra.mxu0 0.0
    %3663 = vmatprep.subr.mxu0 0.0
    %3664 = vmatpush1.msra.mxu0 0.0
    %3665 = vmatprep.subr.mxu0 0.0
    %3666 = vmatpush1.msra.mxu0 0.0
    %3667 = vmatprep.subr.mxu0 0.0
    %3668 = vmatpush1.msra.mxu0 0.0
    %3669 = vmatprep.subr.mxu0 0.0
    %3670 = vmatpush1.msra.mxu0 0.0
    %3671 = vmatprep.subr.mxu0 0.0
    %3672 = vmatpush1.msra.mxu0 0.0
    %3673 = vmatprep.subr.mxu0 0.0
    %3674 = vmatpush1.msra.mxu0 0.0
    %3675 = vmatprep.subr.mxu0 0.0
    %3676 = vmatpush1.msra.mxu0 0.0
    %3677 = vmatprep.subr.mxu0 0.0
    %3678 = vmatpush1.msra.mxu0 0.0
    %3679 = vmatprep.subr.mxu0 0.0
    %3680 = vmatpush1.msra.mxu0 0.0
    %3681 = vmatprep.mubr.f32.mxu0 0.0
    %3682 = vmatmul.mubr.f32.gmra.mrb[0].mxu0 %v3274
    %v3683 = vpop.f32.mrb[0].mxu0
    %v3684 = vadd.f32 %v3542, %v3683
    %v3685 = vpop.f32.mrb[0].mxu0
    %v3686 = vadd.f32 %v3544, %v3685
    %3687 = vdwg.mxu0
    %v3688 = vadd.f32 %v3613, %v122
    %v3689 = vadd.f32 %v3615, %v126
    %v3690 = vadd.f32 %v3684, %v130
    %v3691 = vadd.f32 %v3686, %v134
    %v3692 = vxor.u32 %v3688, 2147483648
    %v3693 = vmul.f32 %v3692, 1.442695
    %v3694 = vpow.pop %v3693
    %v3695 = vadd.f32 %v3694, 1.0
    %v3696 = vrcp.pop %v3695
    %v3697 = vmul.f32 1.0, %v3696
    %v3698 = vxor.u32 %v3689, 2147483648
    %v3699 = vmul.f32 %v3698, 1.442695
    %v3700 = vpow.pop %v3699
    %v3701 = vadd.f32 %v3700, 1.0
    %v3702 = vrcp.pop %v3701
    %v3703 = vmul.f32 1.0, %v3702
    %v3704 = vtanh.pop %v3690
    %v3705 = vxor.u32 %v3691, 2147483648
    %v3706 = vmul.f32 %v3705, 1.442695
    %v3707 = vpow.pop %v3706
    %v3708 = vadd.f32 %v3707, 1.0
    %v3709 = vrcp.pop %v3708
    %v3710 = vmul.f32 1.0, %v3709
    %v3711 = vld [vmem:[#allocation4] sm:$0xff]
    %v3712 = vmul.f32 %v3703, %v3711
    %v3713 = vmul.f32 %v3697, %v3704
    %v3714 = vadd.f32 %v3712, %v3713
    %v3715 = vtanh.pop %v3714
    %v3716 = vmul.f32 %v3710, %v3715
    %3717 = vst [vmem:[#allocation4] sm:$0xff] %v3714
    %3718 = vst [vmem:[#allocation3] sm:$0xff] %v3716
    %s3719 = scalar_lea.vmem [#allocation2], 56
    %3720 = vst [vmem:[%s3719] sm:$0xff] %v3716
    %3721 = vst [vmem:[#allocation3] sm:$0xff] 0.0
    %3722 = vst [vmem:[#allocation4] sm:$0xff] 0.0
    %v3723 = vld [vmem:[%s6] sm:$0xf]
    %v3725 = vlaneseq
    %v3726 = vshrl.u32 %v3725, 7
    %v3727 = vsub.s32 0, %v3726
    %v3728 = vrot.slane %v3723, %v3727
    %v3729 = vlaneseq
    %v3730 = vshrl.u32 %v3729, 7
    %v3731 = vsub.s32 1, %v3730
    %v3732 = vrot.slane %v3723, %v3731
    %v3733 = vlaneseq
    %v3734 = vshrl.u32 %v3733, 7
    %v3735 = vsub.s32 2, %v3734
    %v3736 = vrot.slane %v3723, %v3735
    %v3737 = vlaneseq
    %v3738 = vshrl.u32 %v3737, 7
    %v3739 = vsub.s32 3, %v3738
    %v3740 = vrot.slane %v3723, %v3739
    %v3745 = vld [vmem:[#allocation2] sm:$0xff]
    %v3746 = vld [vmem:[#allocation11] sm:$0xff]
    %v3747 = vld [vmem:[#allocation11 + $0x8] sm:$0xff]
    %v3748 = vld [vmem:[#allocation11 + $0x10] sm:$0xff]
    %v3749 = vld [vmem:[#allocation11 + $0x18] sm:$0xff]
    %v3750 = vld [vmem:[#allocation11 + $0x20] sm:$0xff]
    %v3751 = vld [vmem:[#allocation11 + $0x28] sm:$0xff]
    %v3752 = vld [vmem:[#allocation11 + $0x30] sm:$0xff]
    %v3753 = vld [vmem:[#allocation11 + $0x38] sm:$0xff]
    %v3754 = vld [vmem:[#allocation11 + $0x40] sm:$0xff]
    %v3755 = vld [vmem:[#allocation11 + $0x48] sm:$0xff]
    %v3756 = vld [vmem:[#allocation11 + $0x50] sm:$0xff]
    %v3757 = vld [vmem:[#allocation11 + $0x58] sm:$0xff]
    %v3758 = vld [vmem:[#allocation11 + $0x60] sm:$0xff]
    %v3759 = vld [vmem:[#allocation11 + $0x68] sm:$0xff]
    %v3760 = vld [vmem:[#allocation11 + $0x70] sm:$0xff]
    %v3761 = vld [vmem:[#allocation11 + $0x78] sm:$0xff]
    %v3762 = vld [vmem:[#allocation11 + $0x80] sm:$0xff]
    %v3763 = vld [vmem:[#allocation11 + $0x88] sm:$0xff]
    %v3764 = vld [vmem:[#allocation11 + $0x90] sm:$0xff]
    %v3765 = vld [vmem:[#allocation11 + $0x98] sm:$0xff]
    %v3766 = vld [vmem:[#allocation11 + $0xa0] sm:$0xff]
    %v3767 = vld [vmem:[#allocation11 + $0xa8] sm:$0xff]
    %v3768 = vld [vmem:[#allocation11 + $0xb0] sm:$0xff]
    %v3769 = vld [vmem:[#allocation11 + $0xb8] sm:$0xff]
    %v3770 = vld [vmem:[#allocation11 + $0xc0] sm:$0xff]
    %v3771 = vld [vmem:[#allocation11 + $0xc8] sm:$0xff]
    %v3772 = vld [vmem:[#allocation11 + $0xd0] sm:$0xff]
    %v3773 = vld [vmem:[#allocation11 + $0xd8] sm:$0xff]
    %v3774 = vld [vmem:[#allocation11 + $0xe0] sm:$0xff]
    %v3775 = vld [vmem:[#allocation11 + $0xe8] sm:$0xff]
    %v3776 = vld [vmem:[#allocation11 + $0xf0] sm:$0xff]
    %v3777 = vld [vmem:[#allocation11 + $0xf8] sm:$0xff]
    %v3778 = vld [vmem:[#allocation11 + $0x100] sm:$0xff]
    %v3779 = vld [vmem:[#allocation11 + $0x108] sm:$0xff]
    %v3780 = vld [vmem:[#allocation11 + $0x110] sm:$0xff]
    %v3781 = vld [vmem:[#allocation11 + $0x118] sm:$0xff]
    %v3782 = vld [vmem:[#allocation11 + $0x120] sm:$0xff]
    %v3783 = vld [vmem:[#allocation11 + $0x128] sm:$0xff]
    %v3784 = vld [vmem:[#allocation11 + $0x130] sm:$0xff]
    %v3785 = vld [vmem:[#allocation11 + $0x138] sm:$0xff]
    %v3786 = vld [vmem:[#allocation11 + $0x140] sm:$0xff]
    %v3787 = vld [vmem:[#allocation11 + $0x148] sm:$0xff]
    %v3788 = vld [vmem:[#allocation11 + $0x150] sm:$0xff]
    %v3789 = vld [vmem:[#allocation11 + $0x158] sm:$0xff]
    %v3790 = vld [vmem:[#allocation11 + $0x160] sm:$0xff]
    %v3791 = vld [vmem:[#allocation11 + $0x168] sm:$0xff]
    %v3792 = vld [vmem:[#allocation11 + $0x170] sm:$0xff]
    %v3793 = vld [vmem:[#allocation11 + $0x178] sm:$0xff]
    %v3794 = vld [vmem:[#allocation11 + $0x180] sm:$0xff]
    %v3795 = vld [vmem:[#allocation11 + $0x188] sm:$0xff]
    %v3796 = vld [vmem:[#allocation11 + $0x190] sm:$0xff]
    %v3797 = vld [vmem:[#allocation11 + $0x198] sm:$0xff]
    %v3798 = vld [vmem:[#allocation11 + $0x1a0] sm:$0xff]
    %v3799 = vld [vmem:[#allocation11 + $0x1a8] sm:$0xff]
    %v3800 = vld [vmem:[#allocation11 + $0x1b0] sm:$0xff]
    %v3801 = vld [vmem:[#allocation11 + $0x1b8] sm:$0xff]
    %v3802 = vld [vmem:[#allocation11 + $0x1c0] sm:$0xff]
    %v3803 = vld [vmem:[#allocation11 + $0x1c8] sm:$0xff]
    %v3804 = vld [vmem:[#allocation11 + $0x1d0] sm:$0xff]
    %v3805 = vld [vmem:[#allocation11 + $0x1d8] sm:$0xff]
    %v3806 = vld [vmem:[#allocation11 + $0x1e0] sm:$0xff]
    %v3807 = vld [vmem:[#allocation11 + $0x1e8] sm:$0xff]
    %v3808 = vld [vmem:[#allocation11 + $0x1f0] sm:$0xff]
    %v3809 = vld [vmem:[#allocation11 + $0x1f8] sm:$0xff]
    %v3810 = vld [vmem:[#allocation3] sm:$0xff]
    %v3811 = vld [vmem:[#allocation13] sm:$0xff]
    %v3812 = vld [vmem:[#allocation13 + $0x8] sm:$0xff]
    %v3813 = vld [vmem:[#allocation13 + $0x10] sm:$0xff]
    %v3814 = vld [vmem:[#allocation13 + $0x18] sm:$0xff]
    %v3815 = vld [vmem:[#allocation13 + $0x20] sm:$0xff]
    %v3816 = vld [vmem:[#allocation13 + $0x28] sm:$0xff]
    %v3817 = vld [vmem:[#allocation13 + $0x30] sm:$0xff]
    %v3818 = vld [vmem:[#allocation13 + $0x38] sm:$0xff]
    %v3819 = vld [vmem:[#allocation13 + $0x40] sm:$0xff]
    %v3820 = vld [vmem:[#allocation13 + $0x48] sm:$0xff]
    %v3821 = vld [vmem:[#allocation13 + $0x50] sm:$0xff]
    %v3822 = vld [vmem:[#allocation13 + $0x58] sm:$0xff]
    %v3823 = vld [vmem:[#allocation13 + $0x60] sm:$0xff]
    %v3824 = vld [vmem:[#allocation13 + $0x68] sm:$0xff]
    %v3825 = vld [vmem:[#allocation13 + $0x70] sm:$0xff]
    %v3826 = vld [vmem:[#allocation13 + $0x78] sm:$0xff]
    %v3827 = vld [vmem:[#allocation13 + $0x80] sm:$0xff]
    %v3828 = vld [vmem:[#allocation13 + $0x88] sm:$0xff]
    %v3829 = vld [vmem:[#allocation13 + $0x90] sm:$0xff]
    %v3830 = vld [vmem:[#allocation13 + $0x98] sm:$0xff]
    %v3831 = vld [vmem:[#allocation13 + $0xa0] sm:$0xff]
    %v3832 = vld [vmem:[#allocation13 + $0xa8] sm:$0xff]
    %v3833 = vld [vmem:[#allocation13 + $0xb0] sm:$0xff]
    %v3834 = vld [vmem:[#allocation13 + $0xb8] sm:$0xff]
    %v3835 = vld [vmem:[#allocation13 + $0xc0] sm:$0xff]
    %v3836 = vld [vmem:[#allocation13 + $0xc8] sm:$0xff]
    %v3837 = vld [vmem:[#allocation13 + $0xd0] sm:$0xff]
    %v3838 = vld [vmem:[#allocation13 + $0xd8] sm:$0xff]
    %v3839 = vld [vmem:[#allocation13 + $0xe0] sm:$0xff]
    %v3840 = vld [vmem:[#allocation13 + $0xe8] sm:$0xff]
    %v3841 = vld [vmem:[#allocation13 + $0xf0] sm:$0xff]
    %v3842 = vld [vmem:[#allocation13 + $0xf8] sm:$0xff]
    %v3843 = vld [vmem:[#allocation13 + $0x100] sm:$0xff]
    %v3844 = vld [vmem:[#allocation13 + $0x108] sm:$0xff]
    %v3845 = vld [vmem:[#allocation13 + $0x110] sm:$0xff]
    %v3846 = vld [vmem:[#allocation13 + $0x118] sm:$0xff]
    %v3847 = vld [vmem:[#allocation13 + $0x120] sm:$0xff]
    %v3848 = vld [vmem:[#allocation13 + $0x128] sm:$0xff]
    %v3849 = vld [vmem:[#allocation13 + $0x130] sm:$0xff]
    %v3850 = vld [vmem:[#allocation13 + $0x138] sm:$0xff]
    %v3851 = vld [vmem:[#allocation13 + $0x140] sm:$0xff]
    %v3852 = vld [vmem:[#allocation13 + $0x148] sm:$0xff]
    %v3853 = vld [vmem:[#allocation13 + $0x150] sm:$0xff]
    %v3854 = vld [vmem:[#allocation13 + $0x158] sm:$0xff]
    %v3855 = vld [vmem:[#allocation13 + $0x160] sm:$0xff]
    %v3856 = vld [vmem:[#allocation13 + $0x168] sm:$0xff]
    %v3857 = vld [vmem:[#allocation13 + $0x170] sm:$0xff]
    %v3858 = vld [vmem:[#allocation13 + $0x178] sm:$0xff]
    %v3859 = vld [vmem:[#allocation13 + $0x180] sm:$0xff]
    %v3860 = vld [vmem:[#allocation13 + $0x188] sm:$0xff]
    %v3861 = vld [vmem:[#allocation13 + $0x190] sm:$0xff]
    %v3862 = vld [vmem:[#allocation13 + $0x198] sm:$0xff]
    %v3863 = vld [vmem:[#allocation13 + $0x1a0] sm:$0xff]
    %v3864 = vld [vmem:[#allocation13 + $0x1a8] sm:$0xff]
    %v3865 = vld [vmem:[#allocation13 + $0x1b0] sm:$0xff]
    %v3866 = vld [vmem:[#allocation13 + $0x1b8] sm:$0xff]
    %v3867 = vld [vmem:[#allocation13 + $0x1c0] sm:$0xff]
    %v3868 = vld [vmem:[#allocation13 + $0x1c8] sm:$0xff]
    %v3869 = vld [vmem:[#allocation13 + $0x1d0] sm:$0xff]
    %v3870 = vld [vmem:[#allocation13 + $0x1d8] sm:$0xff]
    %v3871 = vld [vmem:[#allocation13 + $0x1e0] sm:$0xff]
    %v3872 = vld [vmem:[#allocation13 + $0x1e8] sm:$0xff]
    %v3873 = vld [vmem:[#allocation13 + $0x1f0] sm:$0xff]
    %v3874 = vld [vmem:[#allocation13 + $0x1f8] sm:$0xff]
    %3875 = vmatprep.subr.mxu0 %v3812
    %3876 = vmatpush1.msra.mxu0 %v3811
    %3877 = vmatprep.subr.mxu0 %v3816
    %3878 = vmatpush1.msra.mxu0 %v3815
    %3879 = vmatprep.subr.mxu0 %v3820
    %3880 = vmatpush1.msra.mxu0 %v3819
    %3881 = vmatprep.subr.mxu0 %v3824
    %3882 = vmatpush1.msra.mxu0 %v3823
    %3883 = vmatprep.subr.mxu0 %v3828
    %3884 = vmatpush1.msra.mxu0 %v3827
    %3885 = vmatprep.subr.mxu0 %v3832
    %3886 = vmatpush1.msra.mxu0 %v3831
    %3887 = vmatprep.subr.mxu0 %v3836
    %3888 = vmatpush1.msra.mxu0 %v3835
    %3889 = vmatprep.subr.mxu0 %v3840
    %3890 = vmatpush1.msra.mxu0 %v3839
    %3891 = vmatprep.subr.mxu0 %v3844
    %3892 = vmatpush1.msra.mxu0 %v3843
    %3893 = vmatprep.subr.mxu0 %v3848
    %3894 = vmatpush1.msra.mxu0 %v3847
    %3895 = vmatprep.subr.mxu0 %v3852
    %3896 = vmatpush1.msra.mxu0 %v3851
    %3897 = vmatprep.subr.mxu0 %v3856
    %3898 = vmatpush1.msra.mxu0 %v3855
    %3899 = vmatprep.subr.mxu0 %v3860
    %3900 = vmatpush1.msra.mxu0 %v3859
    %3901 = vmatprep.subr.mxu0 %v3864
    %3902 = vmatpush1.msra.mxu0 %v3863
    %3903 = vmatprep.subr.mxu0 %v3868
    %3904 = vmatpush1.msra.mxu0 %v3867
    %3905 = vmatprep.subr.mxu0 %v3872
    %3906 = vmatpush1.msra.mxu0 %v3871
    %3907 = vmatprep.subr.mxu0 0.0
    %3908 = vmatpush1.msra.mxu0 0.0
    %3909 = vmatprep.subr.mxu0 0.0
    %3910 = vmatpush1.msra.mxu0 0.0
    %3911 = vmatprep.subr.mxu0 0.0
    %3912 = vmatpush1.msra.mxu0 0.0
    %3913 = vmatprep.subr.mxu0 0.0
    %3914 = vmatpush1.msra.mxu0 0.0
    %3915 = vmatprep.subr.mxu0 0.0
    %3916 = vmatpush1.msra.mxu0 0.0
    %3917 = vmatprep.subr.mxu0 0.0
    %3918 = vmatpush1.msra.mxu0 0.0
    %3919 = vmatprep.subr.mxu0 0.0
    %3920 = vmatpush1.msra.mxu0 0.0
    %3921 = vmatprep.subr.mxu0 0.0
    %3922 = vmatpush1.msra.mxu0 0.0
    %3923 = vmatprep.subr.mxu0 0.0
    %3924 = vmatpush1.msra.mxu0 0.0
    %3925 = vmatprep.subr.mxu0 0.0
    %3926 = vmatpush1.msra.mxu0 0.0
    %3927 = vmatprep.subr.mxu0 0.0
    %3928 = vmatpush1.msra.mxu0 0.0
    %3929 = vmatprep.subr.mxu0 0.0
    %3930 = vmatpush1.msra.mxu0 0.0
    %3931 = vmatprep.subr.mxu0 0.0
    %3932 = vmatpush1.msra.mxu0 0.0
    %3933 = vmatprep.subr.mxu0 0.0
    %3934 = vmatpush1.msra.mxu0 0.0
    %3935 = vmatprep.subr.mxu0 0.0
    %3936 = vmatpush1.msra.mxu0 0.0
    %3937 = vmatprep.subr.mxu0 0.0
    %3938 = vmatpush1.msra.mxu0 0.0
    %3939 = vmatprep.mubr.f32.mxu0 0.0
    %3940 = vmatmul.mubr.f32.gmra.mrb[0].mxu0 %v3810
    %v3941 = vpop.f32.mrb[0].mxu0
    %v3942 = vadd.f32 0.0, %v3941
    %v3943 = vpop.f32.mrb[0].mxu0
    %v3944 = vadd.f32 0.0, %v3943
    %3945 = vdwg.mxu0
    %3946 = vmatprep.subr.mxu0 %v3814
    %3947 = vmatpush1.msra.mxu0 %v3813
    %3948 = vmatprep.subr.mxu0 %v3818
    %3949 = vmatpush1.msra.mxu0 %v3817
    %3950 = vmatprep.subr.mxu0 %v3822
    %3951 = vmatpush1.msra.mxu0 %v3821
    %3952 = vmatprep.subr.mxu0 %v3826
    %3953 = vmatpush1.msra.mxu0 %v3825
    %3954 = vmatprep.subr.mxu0 %v3830
    %3955 = vmatpush1.msra.mxu0 %v3829
    %3956 = vmatprep.subr.mxu0 %v3834
    %3957 = vmatpush1.msra.mxu0 %v3833
    %3958 = vmatprep.subr.mxu0 %v3838
    %3959 = vmatpush1.msra.mxu0 %v3837
    %3960 = vmatprep.subr.mxu0 %v3842
    %3961 = vmatpush1.msra.mxu0 %v3841
    %3962 = vmatprep.subr.mxu0 %v3846
    %3963 = vmatpush1.msra.mxu0 %v3845
    %3964 = vmatprep.subr.mxu0 %v3850
    %3965 = vmatpush1.msra.mxu0 %v3849
    %3966 = vmatprep.subr.mxu0 %v3854
    %3967 = vmatpush1.msra.mxu0 %v3853
    %3968 = vmatprep.subr.mxu0 %v3858
    %3969 = vmatpush1.msra.mxu0 %v3857
    %3970 = vmatprep.subr.mxu0 %v3862
    %3971 = vmatpush1.msra.mxu0 %v3861
    %3972 = vmatprep.subr.mxu0 %v3866
    %3973 = vmatpush1.msra.mxu0 %v3865
    %3974 = vmatprep.subr.mxu0 %v3870
    %3975 = vmatpush1.msra.mxu0 %v3869
    %3976 = vmatprep.subr.mxu0 %v3874
    %3977 = vmatpush1.msra.mxu0 %v3873
    %3978 = vmatprep.subr.mxu0 0.0
    %3979 = vmatpush1.msra.mxu0 0.0
    %3980 = vmatprep.subr.mxu0 0.0
    %3981 = vmatpush1.msra.mxu0 0.0
    %3982 = vmatprep.subr.mxu0 0.0
    %3983 = vmatpush1.msra.mxu0 0.0
    %3984 = vmatprep.subr.mxu0 0.0
    %3985 = vmatpush1.msra.mxu0 0.0
    %3986 = vmatprep.subr.mxu0 0.0
    %3987 = vmatpush1.msra.mxu0 0.0
    %3988 = vmatprep.subr.mxu0 0.0
    %3989 = vmatpush1.msra.mxu0 0.0
    %3990 = vmatprep.subr.mxu0 0.0
    %3991 = vmatpush1.msra.mxu0 0.0
    %3992 = vmatprep.subr.mxu0 0.0
    %3993 = vmatpush1.msra.mxu0 0.0
    %3994 = vmatprep.subr.mxu0 0.0
    %3995 = vmatpush1.msra.mxu0 0.0
    %3996 = vmatprep.subr.mxu0 0.0
    %3997 = vmatpush1.msra.mxu0 0.0
    %3998 = vmatprep.subr.mxu0 0.0
    %3999 = vmatpush1.msra.mxu0 0.0
    %4000 = vmatprep.subr.mxu0 0.0
    %4001 = vmatpush1.msra.mxu0 0.0
    %4002 = vmatprep.subr.mxu0 0.0
    %4003 = vmatpush1.msra.mxu0 0.0
    %4004 = vmatprep.subr.mxu0 0.0
    %4005 = vmatpush1.msra.mxu0 0.0
    %4006 = vmatprep.subr.mxu0 0.0
    %4007 = vmatpush1.msra.mxu0 0.0
    %4008 = vmatprep.subr.mxu0 0.0
    %4009 = vmatpush1.msra.mxu0 0.0
    %4010 = vmatprep.mubr.f32.mxu0 0.0
    %4011 = vmatmul.mubr.f32.gmra.mrb[0].mxu0 %v3810
    %v4012 = vpop.f32.mrb[0].mxu0
    %v4013 = vadd.f32 0.0, %v4012
    %v4014 = vpop.f32.mrb[0].mxu0
    %v4015 = vadd.f32 0.0, %v4014
    %4016 = vdwg.mxu0
    %4017 = vmatprep.subr.mxu0 %v3747
    %4018 = vmatpush1.msra.mxu0 %v3746
    %4019 = vmatprep.subr.mxu0 %v3751
    %4020 = vmatpush1.msra.mxu0 %v3750
    %4021 = vmatprep.subr.mxu0 %v3755
    %4022 = vmatpush1.msra.mxu0 %v3754
    %4023 = vmatprep.subr.mxu0 %v3759
    %4024 = vmatpush1.msra.mxu0 %v3758
    %4025 = vmatprep.subr.mxu0 %v3763
    %4026 = vmatpush1.msra.mxu0 %v3762
    %4027 = vmatprep.subr.mxu0 %v3767
    %4028 = vmatpush1.msra.mxu0 %v3766
    %4029 = vmatprep.subr.mxu0 %v3771
    %4030 = vmatpush1.msra.mxu0 %v3770
    %4031 = vmatprep.subr.mxu0 %v3775
    %4032 = vmatpush1.msra.mxu0 %v3774
    %4033 = vmatprep.subr.mxu0 %v3779
    %4034 = vmatpush1.msra.mxu0 %v3778
    %4035 = vmatprep.subr.mxu0 %v3783
    %4036 = vmatpush1.msra.mxu0 %v3782
    %4037 = vmatprep.subr.mxu0 %v3787
    %4038 = vmatpush1.msra.mxu0 %v3786
    %4039 = vmatprep.subr.mxu0 %v3791
    %4040 = vmatpush1.msra.mxu0 %v3790
    %4041 = vmatprep.subr.mxu0 %v3795
    %4042 = vmatpush1.msra.mxu0 %v3794
    %4043 = vmatprep.subr.mxu0 %v3799
    %4044 = vmatpush1.msra.mxu0 %v3798
    %4045 = vmatprep.subr.mxu0 %v3803
    %4046 = vmatpush1.msra.mxu0 %v3802
    %4047 = vmatprep.subr.mxu0 %v3807
    %4048 = vmatpush1.msra.mxu0 %v3806
    %4049 = vmatprep.subr.mxu0 0.0
    %4050 = vmatpush1.msra.mxu0 0.0
    %4051 = vmatprep.subr.mxu0 0.0
    %4052 = vmatpush1.msra.mxu0 0.0
    %4053 = vmatprep.subr.mxu0 0.0
    %4054 = vmatpush1.msra.mxu0 0.0
    %4055 = vmatprep.subr.mxu0 0.0
    %4056 = vmatpush1.msra.mxu0 0.0
    %4057 = vmatprep.subr.mxu0 0.0
    %4058 = vmatpush1.msra.mxu0 0.0
    %4059 = vmatprep.subr.mxu0 0.0
    %4060 = vmatpush1.msra.mxu0 0.0
    %4061 = vmatprep.subr.mxu0 0.0
    %4062 = vmatpush1.msra.mxu0 0.0
    %4063 = vmatprep.subr.mxu0 0.0
    %4064 = vmatpush1.msra.mxu0 0.0
    %4065 = vmatprep.subr.mxu0 0.0
    %4066 = vmatpush1.msra.mxu0 0.0
    %4067 = vmatprep.subr.mxu0 0.0
    %4068 = vmatpush1.msra.mxu0 0.0
    %4069 = vmatprep.subr.mxu0 0.0
    %4070 = vmatpush1.msra.mxu0 0.0
    %4071 = vmatprep.subr.mxu0 0.0
    %4072 = vmatpush1.msra.mxu0 0.0
    %4073 = vmatprep.subr.mxu0 0.0
    %4074 = vmatpush1.msra.mxu0 0.0
    %4075 = vmatprep.subr.mxu0 0.0
    %4076 = vmatpush1.msra.mxu0 0.0
    %4077 = vmatprep.subr.mxu0 0.0
    %4078 = vmatpush1.msra.mxu0 0.0
    %4079 = vmatprep.subr.mxu0 0.0
    %4080 = vmatpush1.msra.mxu0 0.0
    %4081 = vmatprep.mubr.f32.mxu0 0.0
    %4082 = vmatmul.mubr.f32.gmra.mrb[0].mxu0 %v3745
    %v4083 = vpop.f32.mrb[0].mxu0
    %v4084 = vadd.f32 %v3942, %v4083
    %v4085 = vpop.f32.mrb[0].mxu0
    %v4086 = vadd.f32 %v3944, %v4085
    %4087 = vdwg.mxu0
    %4088 = vmatprep.subr.mxu0 %v3749
    %4089 = vmatpush1.msra.mxu0 %v3748
    %4090 = vmatprep.subr.mxu0 %v3753
    %4091 = vmatpush1.msra.mxu0 %v3752
    %4092 = vmatprep.subr.mxu0 %v3757
    %4093 = vmatpush1.msra.mxu0 %v3756
    %4094 = vmatprep.subr.mxu0 %v3761
    %4095 = vmatpush1.msra.mxu0 %v3760
    %4096 = vmatprep.subr.mxu0 %v3765
    %4097 = vmatpush1.msra.mxu0 %v3764
    %4098 = vmatprep.subr.mxu0 %v3769
    %4099 = vmatpush1.msra.mxu0 %v3768
    %4100 = vmatprep.subr.mxu0 %v3773
    %4101 = vmatpush1.msra.mxu0 %v3772
    %4102 = vmatprep.subr.mxu0 %v3777
    %4103 = vmatpush1.msra.mxu0 %v3776
    %4104 = vmatprep.subr.mxu0 %v3781
    %4105 = vmatpush1.msra.mxu0 %v3780
    %4106 = vmatprep.subr.mxu0 %v3785
    %4107 = vmatpush1.msra.mxu0 %v3784
    %4108 = vmatprep.subr.mxu0 %v3789
    %4109 = vmatpush1.msra.mxu0 %v3788
    %4110 = vmatprep.subr.mxu0 %v3793
    %4111 = vmatpush1.msra.mxu0 %v3792
    %4112 = vmatprep.subr.mxu0 %v3797
    %4113 = vmatpush1.msra.mxu0 %v3796
    %4114 = vmatprep.subr.mxu0 %v3801
    %4115 = vmatpush1.msra.mxu0 %v3800
    %4116 = vmatprep.subr.mxu0 %v3805
    %4117 = vmatpush1.msra.mxu0 %v3804
    %4118 = vmatprep.subr.mxu0 %v3809
    %4119 = vmatpush1.msra.mxu0 %v3808
    %4120 = vmatprep.subr.mxu0 0.0
    %4121 = vmatpush1.msra.mxu0 0.0
    %4122 = vmatprep.subr.mxu0 0.0
    %4123 = vmatpush1.msra.mxu0 0.0
    %4124 = vmatprep.subr.mxu0 0.0
    %4125 = vmatpush1.msra.mxu0 0.0
    %4126 = vmatprep.subr.mxu0 0.0
    %4127 = vmatpush1.msra.mxu0 0.0
    %4128 = vmatprep.subr.mxu0 0.0
    %4129 = vmatpush1.msra.mxu0 0.0
    %4130 = vmatprep.subr.mxu0 0.0
    %4131 = vmatpush1.msra.mxu0 0.0
    %4132 = vmatprep.subr.mxu0 0.0
    %4133 = vmatpush1.msra.mxu0 0.0
    %4134 = vmatprep.subr.mxu0 0.0
    %4135 = vmatpush1.msra.mxu0 0.0
    %4136 = vmatprep.subr.mxu0 0.0
    %4137 = vmatpush1.msra.mxu0 0.0
    %4138 = vmatprep.subr.mxu0 0.0
    %4139 = vmatpush1.msra.mxu0 0.0
    %4140 = vmatprep.subr.mxu0 0.0
    %4141 = vmatpush1.msra.mxu0 0.0
    %4142 = vmatprep.subr.mxu0 0.0
    %4143 = vmatpush1.msra.mxu0 0.0
    %4144 = vmatprep.subr.mxu0 0.0
    %4145 = vmatpush1.msra.mxu0 0.0
    %4146 = vmatprep.subr.mxu0 0.0
    %4147 = vmatpush1.msra.mxu0 0.0
    %4148 = vmatprep.subr.mxu0 0.0
    %4149 = vmatpush1.msra.mxu0 0.0
    %4150 = vmatprep.subr.mxu0 0.0
    %4151 = vmatpush1.msra.mxu0 0.0
    %4152 = vmatprep.mubr.f32.mxu0 0.0
    %4153 = vmatmul.mubr.f32.gmra.mrb[0].mxu0 %v3745
    %v4154 = vpop.f32.mrb[0].mxu0
    %v4155 = vadd.f32 %v4013, %v4154
    %v4156 = vpop.f32.mrb[0].mxu0
    %v4157 = vadd.f32 %v4015, %v4156
    %4158 = vdwg.mxu0
    %v4159 = vadd.f32 %v4084, %v3728
    %v4160 = vadd.f32 %v4086, %v3732
    %v4161 = vadd.f32 %v4155, %v3736
    %v4162 = vadd.f32 %v4157, %v3740
    %v4163 = vxor.u32 %v4159, 2147483648
    %v4164 = vmul.f32 %v4163, 1.442695
    %v4165 = vpow.pop %v4164
    %v4166 = vadd.f32 %v4165, 1.0
    %v4167 = vrcp.pop %v4166
    %v4168 = vmul.f32 1.0, %v4167
    %v4169 = vxor.u32 %v4160, 2147483648
    %v4170 = vmul.f32 %v4169, 1.442695
    %v4171 = vpow.pop %v4170
    %v4172 = vadd.f32 %v4171, 1.0
    %v4173 = vrcp.pop %v4172
    %v4174 = vmul.f32 1.0, %v4173
    %v4175 = vtanh.pop %v4161
    %v4176 = vxor.u32 %v4162, 2147483648
    %v4177 = vmul.f32 %v4176, 1.442695
    %v4178 = vpow.pop %v4177
    %v4179 = vadd.f32 %v4178, 1.0
    %v4180 = vrcp.pop %v4179
    %v4181 = vmul.f32 1.0, %v4180
    %v4182 = vld [vmem:[#allocation4] sm:$0xff]
    %v4183 = vmul.f32 %v4174, %v4182
    %v4184 = vmul.f32 %v4168, %v4175
    %v4185 = vadd.f32 %v4183, %v4184
    %v4186 = vtanh.pop %v4185
    %v4187 = vmul.f32 %v4181, %v4186
    %4188 = vst [vmem:[#allocation4] sm:$0xff] %v4185
    %4189 = vst [vmem:[#allocation3] sm:$0xff] %v4187
    %4190 = vst [vmem:[#allocation2] sm:$0xff] %v4187
    %v4191 = vld [vmem:[%s1031] sm:$0xff]
    %v4192 = vld [vmem:[#allocation11] sm:$0xff]
    %v4193 = vld [vmem:[#allocation11 + $0x8] sm:$0xff]
    %v4194 = vld [vmem:[#allocation11 + $0x10] sm:$0xff]
    %v4195 = vld [vmem:[#allocation11 + $0x18] sm:$0xff]
    %v4196 = vld [vmem:[#allocation11 + $0x20] sm:$0xff]
    %v4197 = vld [vmem:[#allocation11 + $0x28] sm:$0xff]
    %v4198 = vld [vmem:[#allocation11 + $0x30] sm:$0xff]
    %v4199 = vld [vmem:[#allocation11 + $0x38] sm:$0xff]
    %v4200 = vld [vmem:[#allocation11 + $0x40] sm:$0xff]
    %v4201 = vld [vmem:[#allocation11 + $0x48] sm:$0xff]
    %v4202 = vld [vmem:[#allocation11 + $0x50] sm:$0xff]
    %v4203 = vld [vmem:[#allocation11 + $0x58] sm:$0xff]
    %v4204 = vld [vmem:[#allocation11 + $0x60] sm:$0xff]
    %v4205 = vld [vmem:[#allocation11 + $0x68] sm:$0xff]
    %v4206 = vld [vmem:[#allocation11 + $0x70] sm:$0xff]
    %v4207 = vld [vmem:[#allocation11 + $0x78] sm:$0xff]
    %v4208 = vld [vmem:[#allocation11 + $0x80] sm:$0xff]
    %v4209 = vld [vmem:[#allocation11 + $0x88] sm:$0xff]
    %v4210 = vld [vmem:[#allocation11 + $0x90] sm:$0xff]
    %v4211 = vld [vmem:[#allocation11 + $0x98] sm:$0xff]
    %v4212 = vld [vmem:[#allocation11 + $0xa0] sm:$0xff]
    %v4213 = vld [vmem:[#allocation11 + $0xa8] sm:$0xff]
    %v4214 = vld [vmem:[#allocation11 + $0xb0] sm:$0xff]
    %v4215 = vld [vmem:[#allocation11 + $0xb8] sm:$0xff]
    %v4216 = vld [vmem:[#allocation11 + $0xc0] sm:$0xff]
    %v4217 = vld [vmem:[#allocation11 + $0xc8] sm:$0xff]
    %v4218 = vld [vmem:[#allocation11 + $0xd0] sm:$0xff]
    %v4219 = vld [vmem:[#allocation11 + $0xd8] sm:$0xff]
    %v4220 = vld [vmem:[#allocation11 + $0xe0] sm:$0xff]
    %v4221 = vld [vmem:[#allocation11 + $0xe8] sm:$0xff]
    %v4222 = vld [vmem:[#allocation11 + $0xf0] sm:$0xff]
    %v4223 = vld [vmem:[#allocation11 + $0xf8] sm:$0xff]
    %v4224 = vld [vmem:[#allocation11 + $0x100] sm:$0xff]
    %v4225 = vld [vmem:[#allocation11 + $0x108] sm:$0xff]
    %v4226 = vld [vmem:[#allocation11 + $0x110] sm:$0xff]
    %v4227 = vld [vmem:[#allocation11 + $0x118] sm:$0xff]
    %v4228 = vld [vmem:[#allocation11 + $0x120] sm:$0xff]
    %v4229 = vld [vmem:[#allocation11 + $0x128] sm:$0xff]
    %v4230 = vld [vmem:[#allocation11 + $0x130] sm:$0xff]
    %v4231 = vld [vmem:[#allocation11 + $0x138] sm:$0xff]
    %v4232 = vld [vmem:[#allocation11 + $0x140] sm:$0xff]
    %v4233 = vld [vmem:[#allocation11 + $0x148] sm:$0xff]
    %v4234 = vld [vmem:[#allocation11 + $0x150] sm:$0xff]
    %v4235 = vld [vmem:[#allocation11 + $0x158] sm:$0xff]
    %v4236 = vld [vmem:[#allocation11 + $0x160] sm:$0xff]
    %v4237 = vld [vmem:[#allocation11 + $0x168] sm:$0xff]
    %v4238 = vld [vmem:[#allocation11 + $0x170] sm:$0xff]
    %v4239 = vld [vmem:[#allocation11 + $0x178] sm:$0xff]
    %v4240 = vld [vmem:[#allocation11 + $0x180] sm:$0xff]
    %v4241 = vld [vmem:[#allocation11 + $0x188] sm:$0xff]
    %v4242 = vld [vmem:[#allocation11 + $0x190] sm:$0xff]
    %v4243 = vld [vmem:[#allocation11 + $0x198] sm:$0xff]
    %v4244 = vld [vmem:[#allocation11 + $0x1a0] sm:$0xff]
    %v4245 = vld [vmem:[#allocation11 + $0x1a8] sm:$0xff]
    %v4246 = vld [vmem:[#allocation11 + $0x1b0] sm:$0xff]
    %v4247 = vld [vmem:[#allocation11 + $0x1b8] sm:$0xff]
    %v4248 = vld [vmem:[#allocation11 + $0x1c0] sm:$0xff]
    %v4249 = vld [vmem:[#allocation11 + $0x1c8] sm:$0xff]
    %v4250 = vld [vmem:[#allocation11 + $0x1d0] sm:$0xff]
    %v4251 = vld [vmem:[#allocation11 + $0x1d8] sm:$0xff]
    %v4252 = vld [vmem:[#allocation11 + $0x1e0] sm:$0xff]
    %v4253 = vld [vmem:[#allocation11 + $0x1e8] sm:$0xff]
    %v4254 = vld [vmem:[#allocation11 + $0x1f0] sm:$0xff]
    %v4255 = vld [vmem:[#allocation11 + $0x1f8] sm:$0xff]
    %v4256 = vld [vmem:[#allocation3] sm:$0xff]
    %v4257 = vld [vmem:[#allocation13] sm:$0xff]
    %v4258 = vld [vmem:[#allocation13 + $0x8] sm:$0xff]
    %v4259 = vld [vmem:[#allocation13 + $0x10] sm:$0xff]
    %v4260 = vld [vmem:[#allocation13 + $0x18] sm:$0xff]
    %v4261 = vld [vmem:[#allocation13 + $0x20] sm:$0xff]
    %v4262 = vld [vmem:[#allocation13 + $0x28] sm:$0xff]
    %v4263 = vld [vmem:[#allocation13 + $0x30] sm:$0xff]
    %v4264 = vld [vmem:[#allocation13 + $0x38] sm:$0xff]
    %v4265 = vld [vmem:[#allocation13 + $0x40] sm:$0xff]
    %v4266 = vld [vmem:[#allocation13 + $0x48] sm:$0xff]
    %v4267 = vld [vmem:[#allocation13 + $0x50] sm:$0xff]
    %v4268 = vld [vmem:[#allocation13 + $0x58] sm:$0xff]
    %v4269 = vld [vmem:[#allocation13 + $0x60] sm:$0xff]
    %v4270 = vld [vmem:[#allocation13 + $0x68] sm:$0xff]
    %v4271 = vld [vmem:[#allocation13 + $0x70] sm:$0xff]
    %v4272 = vld [vmem:[#allocation13 + $0x78] sm:$0xff]
    %v4273 = vld [vmem:[#allocation13 + $0x80] sm:$0xff]
    %v4274 = vld [vmem:[#allocation13 + $0x88] sm:$0xff]
    %v4275 = vld [vmem:[#allocation13 + $0x90] sm:$0xff]
    %v4276 = vld [vmem:[#allocation13 + $0x98] sm:$0xff]
    %v4277 = vld [vmem:[#allocation13 + $0xa0] sm:$0xff]
    %v4278 = vld [vmem:[#allocation13 + $0xa8] sm:$0xff]
    %v4279 = vld [vmem:[#allocation13 + $0xb0] sm:$0xff]
    %v4280 = vld [vmem:[#allocation13 + $0xb8] sm:$0xff]
    %v4281 = vld [vmem:[#allocation13 + $0xc0] sm:$0xff]
    %v4282 = vld [vmem:[#allocation13 + $0xc8] sm:$0xff]
    %v4283 = vld [vmem:[#allocation13 + $0xd0] sm:$0xff]
    %v4284 = vld [vmem:[#allocation13 + $0xd8] sm:$0xff]
    %v4285 = vld [vmem:[#allocation13 + $0xe0] sm:$0xff]
    %v4286 = vld [vmem:[#allocation13 + $0xe8] sm:$0xff]
    %v4287 = vld [vmem:[#allocation13 + $0xf0] sm:$0xff]
    %v4288 = vld [vmem:[#allocation13 + $0xf8] sm:$0xff]
    %v4289 = vld [vmem:[#allocation13 + $0x100] sm:$0xff]
    %v4290 = vld [vmem:[#allocation13 + $0x108] sm:$0xff]
    %v4291 = vld [vmem:[#allocation13 + $0x110] sm:$0xff]
    %v4292 = vld [vmem:[#allocation13 + $0x118] sm:$0xff]
    %v4293 = vld [vmem:[#allocation13 + $0x120] sm:$0xff]
    %v4294 = vld [vmem:[#allocation13 + $0x128] sm:$0xff]
    %v4295 = vld [vmem:[#allocation13 + $0x130] sm:$0xff]
    %v4296 = vld [vmem:[#allocation13 + $0x138] sm:$0xff]
    %v4297 = vld [vmem:[#allocation13 + $0x140] sm:$0xff]
    %v4298 = vld [vmem:[#allocation13 + $0x148] sm:$0xff]
    %v4299 = vld [vmem:[#allocation13 + $0x150] sm:$0xff]
    %v4300 = vld [vmem:[#allocation13 + $0x158] sm:$0xff]
    %v4301 = vld [vmem:[#allocation13 + $0x160] sm:$0xff]
    %v4302 = vld [vmem:[#allocation13 + $0x168] sm:$0xff]
    %v4303 = vld [vmem:[#allocation13 + $0x170] sm:$0xff]
    %v4304 = vld [vmem:[#allocation13 + $0x178] sm:$0xff]
    %v4305 = vld [vmem:[#allocation13 + $0x180] sm:$0xff]
    %v4306 = vld [vmem:[#allocation13 + $0x188] sm:$0xff]
    %v4307 = vld [vmem:[#allocation13 + $0x190] sm:$0xff]
    %v4308 = vld [vmem:[#allocation13 + $0x198] sm:$0xff]
    %v4309 = vld [vmem:[#allocation13 + $0x1a0] sm:$0xff]
    %v4310 = vld [vmem:[#allocation13 + $0x1a8] sm:$0xff]
    %v4311 = vld [vmem:[#allocation13 + $0x1b0] sm:$0xff]
    %v4312 = vld [vmem:[#allocation13 + $0x1b8] sm:$0xff]
    %v4313 = vld [vmem:[#allocation13 + $0x1c0] sm:$0xff]
    %v4314 = vld [vmem:[#allocation13 + $0x1c8] sm:$0xff]
    %v4315 = vld [vmem:[#allocation13 + $0x1d0] sm:$0xff]
    %v4316 = vld [vmem:[#allocation13 + $0x1d8] sm:$0xff]
    %v4317 = vld [vmem:[#allocation13 + $0x1e0] sm:$0xff]
    %v4318 = vld [vmem:[#allocation13 + $0x1e8] sm:$0xff]
    %v4319 = vld [vmem:[#allocation13 + $0x1f0] sm:$0xff]
    %v4320 = vld [vmem:[#allocation13 + $0x1f8] sm:$0xff]
    %4321 = vmatprep.subr.mxu0 %v4258
    %4322 = vmatpush1.msra.mxu0 %v4257
    %4323 = vmatprep.subr.mxu0 %v4262
    %4324 = vmatpush1.msra.mxu0 %v4261
    %4325 = vmatprep.subr.mxu0 %v4266
    %4326 = vmatpush1.msra.mxu0 %v4265
    %4327 = vmatprep.subr.mxu0 %v4270
    %4328 = vmatpush1.msra.mxu0 %v4269
    %4329 = vmatprep.subr.mxu0 %v4274
    %4330 = vmatpush1.msra.mxu0 %v4273
    %4331 = vmatprep.subr.mxu0 %v4278
    %4332 = vmatpush1.msra.mxu0 %v4277
    %4333 = vmatprep.subr.mxu0 %v4282
    %4334 = vmatpush1.msra.mxu0 %v4281
    %4335 = vmatprep.subr.mxu0 %v4286
    %4336 = vmatpush1.msra.mxu0 %v4285
    %4337 = vmatprep.subr.mxu0 %v4290
    %4338 = vmatpush1.msra.mxu0 %v4289
    %4339 = vmatprep.subr.mxu0 %v4294
    %4340 = vmatpush1.msra.mxu0 %v4293
    %4341 = vmatprep.subr.mxu0 %v4298
    %4342 = vmatpush1.msra.mxu0 %v4297
    %4343 = vmatprep.subr.mxu0 %v4302
    %4344 = vmatpush1.msra.mxu0 %v4301
    %4345 = vmatprep.subr.mxu0 %v4306
    %4346 = vmatpush1.msra.mxu0 %v4305
    %4347 = vmatprep.subr.mxu0 %v4310
    %4348 = vmatpush1.msra.mxu0 %v4309
    %4349 = vmatprep.subr.mxu0 %v4314
    %4350 = vmatpush1.msra.mxu0 %v4313
    %4351 = vmatprep.subr.mxu0 %v4318
    %4352 = vmatpush1.msra.mxu0 %v4317
    %4353 = vmatprep.subr.mxu0 0.0
    %4354 = vmatpush1.msra.mxu0 0.0
    %4355 = vmatprep.subr.mxu0 0.0
    %4356 = vmatpush1.msra.mxu0 0.0
    %4357 = vmatprep.subr.mxu0 0.0
    %4358 = vmatpush1.msra.mxu0 0.0
    %4359 = vmatprep.subr.mxu0 0.0
    %4360 = vmatpush1.msra.mxu0 0.0
    %4361 = vmatprep.subr.mxu0 0.0
    %4362 = vmatpush1.msra.mxu0 0.0
    %4363 = vmatprep.subr.mxu0 0.0
    %4364 = vmatpush1.msra.mxu0 0.0
    %4365 = vmatprep.subr.mxu0 0.0
    %4366 = vmatpush1.msra.mxu0 0.0
    %4367 = vmatprep.subr.mxu0 0.0
    %4368 = vmatpush1.msra.mxu0 0.0
    %4369 = vmatprep.subr.mxu0 0.0
    %4370 = vmatpush1.msra.mxu0 0.0
    %4371 = vmatprep.subr.mxu0 0.0
    %4372 = vmatpush1.msra.mxu0 0.0
    %4373 = vmatprep.subr.mxu0 0.0
    %4374 = vmatpush1.msra.mxu0 0.0
    %4375 = vmatprep.subr.mxu0 0.0
    %4376 = vmatpush1.msra.mxu0 0.0
    %4377 = vmatprep.subr.mxu0 0.0
    %4378 = vmatpush1.msra.mxu0 0.0
    %4379 = vmatprep.subr.mxu0 0.0
    %4380 = vmatpush1.msra.mxu0 0.0
    %4381 = vmatprep.subr.mxu0 0.0
    %4382 = vmatpush1.msra.mxu0 0.0
    %4383 = vmatprep.subr.mxu0 0.0
    %4384 = vmatpush1.msra.mxu0 0.0
    %4385 = vmatprep.mubr.f32.mxu0 0.0
    %4386 = vmatmul.mubr.f32.gmra.mrb[0].mxu0 %v4256
    %v4387 = vpop.f32.mrb[0].mxu0
    %v4388 = vadd.f32 0.0, %v4387
    %v4389 = vpop.f32.mrb[0].mxu0
    %v4390 = vadd.f32 0.0, %v4389
    %4391 = vdwg.mxu0
    %4392 = vmatprep.subr.mxu0 %v4260
    %4393 = vmatpush1.msra.mxu0 %v4259
    %4394 = vmatprep.subr.mxu0 %v4264
    %4395 = vmatpush1.msra.mxu0 %v4263
    %4396 = vmatprep.subr.mxu0 %v4268
    %4397 = vmatpush1.msra.mxu0 %v4267
    %4398 = vmatprep.subr.mxu0 %v4272
    %4399 = vmatpush1.msra.mxu0 %v4271
    %4400 = vmatprep.subr.mxu0 %v4276
    %4401 = vmatpush1.msra.mxu0 %v4275
    %4402 = vmatprep.subr.mxu0 %v4280
    %4403 = vmatpush1.msra.mxu0 %v4279
    %4404 = vmatprep.subr.mxu0 %v4284
    %4405 = vmatpush1.msra.mxu0 %v4283
    %4406 = vmatprep.subr.mxu0 %v4288
    %4407 = vmatpush1.msra.mxu0 %v4287
    %4408 = vmatprep.subr.mxu0 %v4292
    %4409 = vmatpush1.msra.mxu0 %v4291
    %4410 = vmatprep.subr.mxu0 %v4296
    %4411 = vmatpush1.msra.mxu0 %v4295
    %4412 = vmatprep.subr.mxu0 %v4300
    %4413 = vmatpush1.msra.mxu0 %v4299
    %4414 = vmatprep.subr.mxu0 %v4304
    %4415 = vmatpush1.msra.mxu0 %v4303
    %4416 = vmatprep.subr.mxu0 %v4308
    %4417 = vmatpush1.msra.mxu0 %v4307
    %4418 = vmatprep.subr.mxu0 %v4312
    %4419 = vmatpush1.msra.mxu0 %v4311
    %4420 = vmatprep.subr.mxu0 %v4316
    %4421 = vmatpush1.msra.mxu0 %v4315
    %4422 = vmatprep.subr.mxu0 %v4320
    %4423 = vmatpush1.msra.mxu0 %v4319
    %4424 = vmatprep.subr.mxu0 0.0
    %4425 = vmatpush1.msra.mxu0 0.0
    %4426 = vmatprep.subr.mxu0 0.0
    %4427 = vmatpush1.msra.mxu0 0.0
    %4428 = vmatprep.subr.mxu0 0.0
    %4429 = vmatpush1.msra.mxu0 0.0
    %4430 = vmatprep.subr.mxu0 0.0
    %4431 = vmatpush1.msra.mxu0 0.0
    %4432 = vmatprep.subr.mxu0 0.0
    %4433 = vmatpush1.msra.mxu0 0.0
    %4434 = vmatprep.subr.mxu0 0.0
    %4435 = vmatpush1.msra.mxu0 0.0
    %4436 = vmatprep.subr.mxu0 0.0
    %4437 = vmatpush1.msra.mxu0 0.0
    %4438 = vmatprep.subr.mxu0 0.0
    %4439 = vmatpush1.msra.mxu0 0.0
    %4440 = vmatprep.subr.mxu0 0.0
    %4441 = vmatpush1.msra.mxu0 0.0
    %4442 = vmatprep.subr.mxu0 0.0
    %4443 = vmatpush1.msra.mxu0 0.0
    %4444 = vmatprep.subr.mxu0 0.0
    %4445 = vmatpush1.msra.mxu0 0.0
    %4446 = vmatprep.subr.mxu0 0.0
    %4447 = vmatpush1.msra.mxu0 0.0
    %4448 = vmatprep.subr.mxu0 0.0
    %4449 = vmatpush1.msra.mxu0 0.0
    %4450 = vmatprep.subr.mxu0 0.0
    %4451 = vmatpush1.msra.mxu0 0.0
    %4452 = vmatprep.subr.mxu0 0.0
    %4453 = vmatpush1.msra.mxu0 0.0
    %4454 = vmatprep.subr.mxu0 0.0
    %4455 = vmatpush1.msra.mxu0 0.0
    %4456 = vmatprep.mubr.f32.mxu0 0.0
    %4457 = vmatmul.mubr.f32.gmra.mrb[0].mxu0 %v4256
    %v4458 = vpop.f32.mrb[0].mxu0
    %v4459 = vadd.f32 0.0, %v4458
    %v4460 = vpop.f32.mrb[0].mxu0
    %v4461 = vadd.f32 0.0, %v4460
    %4462 = vdwg.mxu0
    %4463 = vmatprep.subr.mxu0 %v4193
    %4464 = vmatpush1.msra.mxu0 %v4192
    %4465 = vmatprep.subr.mxu0 %v4197
    %4466 = vmatpush1.msra.mxu0 %v4196
    %4467 = vmatprep.subr.mxu0 %v4201
    %4468 = vmatpush1.msra.mxu0 %v4200
    %4469 = vmatprep.subr.mxu0 %v4205
    %4470 = vmatpush1.msra.mxu0 %v4204
    %4471 = vmatprep.subr.mxu0 %v4209
    %4472 = vmatpush1.msra.mxu0 %v4208
    %4473 = vmatprep.subr.mxu0 %v4213
    %4474 = vmatpush1.msra.mxu0 %v4212
    %4475 = vmatprep.subr.mxu0 %v4217
    %4476 = vmatpush1.msra.mxu0 %v4216
    %4477 = vmatprep.subr.mxu0 %v4221
    %4478 = vmatpush1.msra.mxu0 %v4220
    %4479 = vmatprep.subr.mxu0 %v4225
    %4480 = vmatpush1.msra.mxu0 %v4224
    %4481 = vmatprep.subr.mxu0 %v4229
    %4482 = vmatpush1.msra.mxu0 %v4228
    %4483 = vmatprep.subr.mxu0 %v4233
    %4484 = vmatpush1.msra.mxu0 %v4232
    %4485 = vmatprep.subr.mxu0 %v4237
    %4486 = vmatpush1.msra.mxu0 %v4236
    %4487 = vmatprep.subr.mxu0 %v4241
    %4488 = vmatpush1.msra.mxu0 %v4240
    %4489 = vmatprep.subr.mxu0 %v4245
    %4490 = vmatpush1.msra.mxu0 %v4244
    %4491 = vmatprep.subr.mxu0 %v4249
    %4492 = vmatpush1.msra.mxu0 %v4248
    %4493 = vmatprep.subr.mxu0 %v4253
    %4494 = vmatpush1.msra.mxu0 %v4252
    %4495 = vmatprep.subr.mxu0 0.0
    %4496 = vmatpush1.msra.mxu0 0.0
    %4497 = vmatprep.subr.mxu0 0.0
    %4498 = vmatpush1.msra.mxu0 0.0
    %4499 = vmatprep.subr.mxu0 0.0
    %4500 = vmatpush1.msra.mxu0 0.0
    %4501 = vmatprep.subr.mxu0 0.0
    %4502 = vmatpush1.msra.mxu0 0.0
    %4503 = vmatprep.subr.mxu0 0.0
    %4504 = vmatpush1.msra.mxu0 0.0
    %4505 = vmatprep.subr.mxu0 0.0
    %4506 = vmatpush1.msra.mxu0 0.0
    %4507 = vmatprep.subr.mxu0 0.0
    %4508 = vmatpush1.msra.mxu0 0.0
    %4509 = vmatprep.subr.mxu0 0.0
    %4510 = vmatpush1.msra.mxu0 0.0
    %4511 = vmatprep.subr.mxu0 0.0
    %4512 = vmatpush1.msra.mxu0 0.0
    %4513 = vmatprep.subr.mxu0 0.0
    %4514 = vmatpush1.msra.mxu0 0.0
    %4515 = vmatprep.subr.mxu0 0.0
    %4516 = vmatpush1.msra.mxu0 0.0
    %4517 = vmatprep.subr.mxu0 0.0
    %4518 = vmatpush1.msra.mxu0 0.0
    %4519 = vmatprep.subr.mxu0 0.0
    %4520 = vmatpush1.msra.mxu0 0.0
    %4521 = vmatprep.subr.mxu0 0.0
    %4522 = vmatpush1.msra.mxu0 0.0
    %4523 = vmatprep.subr.mxu0 0.0
    %4524 = vmatpush1.msra.mxu0 0.0
    %4525 = vmatprep.subr.mxu0 0.0
    %4526 = vmatpush1.msra.mxu0 0.0
    %4527 = vmatprep.mubr.f32.mxu0 0.0
    %4528 = vmatmul.mubr.f32.gmra.mrb[0].mxu0 %v4191
    %v4529 = vpop.f32.mrb[0].mxu0
    %v4530 = vadd.f32 %v4388, %v4529
    %v4531 = vpop.f32.mrb[0].mxu0
    %v4532 = vadd.f32 %v4390, %v4531
    %4533 = vdwg.mxu0
    %4534 = vmatprep.subr.mxu0 %v4195
    %4535 = vmatpush1.msra.mxu0 %v4194
    %4536 = vmatprep.subr.mxu0 %v4199
    %4537 = vmatpush1.msra.mxu0 %v4198
    %4538 = vmatprep.subr.mxu0 %v4203
    %4539 = vmatpush1.msra.mxu0 %v4202
    %4540 = vmatprep.subr.mxu0 %v4207
    %4541 = vmatpush1.msra.mxu0 %v4206
    %4542 = vmatprep.subr.mxu0 %v4211
    %4543 = vmatpush1.msra.mxu0 %v4210
    %4544 = vmatprep.subr.mxu0 %v4215
    %4545 = vmatpush1.msra.mxu0 %v4214
    %4546 = vmatprep.subr.mxu0 %v4219
    %4547 = vmatpush1.msra.mxu0 %v4218
    %4548 = vmatprep.subr.mxu0 %v4223
    %4549 = vmatpush1.msra.mxu0 %v4222
    %4550 = vmatprep.subr.mxu0 %v4227
    %4551 = vmatpush1.msra.mxu0 %v4226
    %4552 = vmatprep.subr.mxu0 %v4231
    %4553 = vmatpush1.msra.mxu0 %v4230
    %4554 = vmatprep.subr.mxu0 %v4235
    %4555 = vmatpush1.msra.mxu0 %v4234
    %4556 = vmatprep.subr.mxu0 %v4239
    %4557 = vmatpush1.msra.mxu0 %v4238
    %4558 = vmatprep.subr.mxu0 %v4243
    %4559 = vmatpush1.msra.mxu0 %v4242
    %4560 = vmatprep.subr.mxu0 %v4247
    %4561 = vmatpush1.msra.mxu0 %v4246
    %4562 = vmatprep.subr.mxu0 %v4251
    %4563 = vmatpush1.msra.mxu0 %v4250
    %4564 = vmatprep.subr.mxu0 %v4255
    %4565 = vmatpush1.msra.mxu0 %v4254
    %4566 = vmatprep.subr.mxu0 0.0
    %4567 = vmatpush1.msra.mxu0 0.0
    %4568 = vmatprep.subr.mxu0 0.0
    %4569 = vmatpush1.msra.mxu0 0.0
    %4570 = vmatprep.subr.mxu0 0.0
    %4571 = vmatpush1.msra.mxu0 0.0
    %4572 = vmatprep.subr.mxu0 0.0
    %4573 = vmatpush1.msra.mxu0 0.0
    %4574 = vmatprep.subr.mxu0 0.0
    %4575 = vmatpush1.msra.mxu0 0.0
    %4576 = vmatprep.subr.mxu0 0.0
    %4577 = vmatpush1.msra.mxu0 0.0
    %4578 = vmatprep.subr.mxu0 0.0
    %4579 = vmatpush1.msra.mxu0 0.0
    %4580 = vmatprep.subr.mxu0 0.0
    %4581 = vmatpush1.msra.mxu0 0.0
    %4582 = vmatprep.subr.mxu0 0.0
    %4583 = vmatpush1.msra.mxu0 0.0
    %4584 = vmatprep.subr.mxu0 0.0
    %4585 = vmatpush1.msra.mxu0 0.0
    %4586 = vmatprep.subr.mxu0 0.0
    %4587 = vmatpush1.msra.mxu0 0.0
    %4588 = vmatprep.subr.mxu0 0.0
    %4589 = vmatpush1.msra.mxu0 0.0
    %4590 = vmatprep.subr.mxu0 0.0
    %4591 = vmatpush1.msra.mxu0 0.0
    %4592 = vmatprep.subr.mxu0 0.0
    %4593 = vmatpush1.msra.mxu0 0.0
    %4594 = vmatprep.subr.mxu0 0.0
    %4595 = vmatpush1.msra.mxu0 0.0
    %4596 = vmatprep.subr.mxu0 0.0
    %4597 = vmatpush1.msra.mxu0 0.0
    %4598 = vmatprep.mubr.f32.mxu0 0.0
    %4599 = vmatmul.mubr.f32.gmra.mrb[0].mxu0 %v4191
    %v4600 = vpop.f32.mrb[0].mxu0
    %v4601 = vadd.f32 %v4459, %v4600
    %v4602 = vpop.f32.mrb[0].mxu0
    %v4603 = vadd.f32 %v4461, %v4602
    %4604 = vdwg.mxu0
    %v4605 = vadd.f32 %v4530, %v3728
    %v4606 = vadd.f32 %v4532, %v3732
    %v4607 = vadd.f32 %v4601, %v3736
    %v4608 = vadd.f32 %v4603, %v3740
    %v4609 = vxor.u32 %v4605, 2147483648
    %v4610 = vmul.f32 %v4609, 1.442695
    %v4611 = vpow.pop %v4610
    %v4612 = vadd.f32 %v4611, 1.0
    %v4613 = vrcp.pop %v4612
    %v4614 = vmul.f32 1.0, %v4613
    %v4615 = vxor.u32 %v4606, 2147483648
    %v4616 = vmul.f32 %v4615, 1.442695
    %v4617 = vpow.pop %v4616
    %v4618 = vadd.f32 %v4617, 1.0
    %v4619 = vrcp.pop %v4618
    %v4620 = vmul.f32 1.0, %v4619
    %v4621 = vtanh.pop %v4607
    %v4622 = vxor.u32 %v4608, 2147483648
    %v4623 = vmul.f32 %v4622, 1.442695
    %v4624 = vpow.pop %v4623
    %v4625 = vadd.f32 %v4624, 1.0
    %v4626 = vrcp.pop %v4625
    %v4627 = vmul.f32 1.0, %v4626
    %v4628 = vld [vmem:[#allocation4] sm:$0xff]
    %v4629 = vmul.f32 %v4620, %v4628
    %v4630 = vmul.f32 %v4614, %v4621
    %v4631 = vadd.f32 %v4629, %v4630
    %v4632 = vtanh.pop %v4631
    %v4633 = vmul.f32 %v4627, %v4632
    %4634 = vst [vmem:[#allocation4] sm:$0xff] %v4631
    %4635 = vst [vmem:[#allocation3] sm:$0xff] %v4633
    %4636 = vst [vmem:[%s1031] sm:$0xff] %v4633
    %v4637 = vld [vmem:[%s1479] sm:$0xff]
    %v4638 = vld [vmem:[#allocation11] sm:$0xff]
    %v4639 = vld [vmem:[#allocation11 + $0x8] sm:$0xff]
    %v4640 = vld [vmem:[#allocation11 + $0x10] sm:$0xff]
    %v4641 = vld [vmem:[#allocation11 + $0x18] sm:$0xff]
    %v4642 = vld [vmem:[#allocation11 + $0x20] sm:$0xff]
    %v4643 = vld [vmem:[#allocation11 + $0x28] sm:$0xff]
    %v4644 = vld [vmem:[#allocation11 + $0x30] sm:$0xff]
    %v4645 = vld [vmem:[#allocation11 + $0x38] sm:$0xff]
    %v4646 = vld [vmem:[#allocation11 + $0x40] sm:$0xff]
    %v4647 = vld [vmem:[#allocation11 + $0x48] sm:$0xff]
    %v4648 = vld [vmem:[#allocation11 + $0x50] sm:$0xff]
    %v4649 = vld [vmem:[#allocation11 + $0x58] sm:$0xff]
    %v4650 = vld [vmem:[#allocation11 + $0x60] sm:$0xff]
    %v4651 = vld [vmem:[#allocation11 + $0x68] sm:$0xff]
    %v4652 = vld [vmem:[#allocation11 + $0x70] sm:$0xff]
    %v4653 = vld [vmem:[#allocation11 + $0x78] sm:$0xff]
    %v4654 = vld [vmem:[#allocation11 + $0x80] sm:$0xff]
    %v4655 = vld [vmem:[#allocation11 + $0x88] sm:$0xff]
    %v4656 = vld [vmem:[#allocation11 + $0x90] sm:$0xff]
    %v4657 = vld [vmem:[#allocation11 + $0x98] sm:$0xff]
    %v4658 = vld [vmem:[#allocation11 + $0xa0] sm:$0xff]
    %v4659 = vld [vmem:[#allocation11 + $0xa8] sm:$0xff]
    %v4660 = vld [vmem:[#allocation11 + $0xb0] sm:$0xff]
    %v4661 = vld [vmem:[#allocation11 + $0xb8] sm:$0xff]
    %v4662 = vld [vmem:[#allocation11 + $0xc0] sm:$0xff]
    %v4663 = vld [vmem:[#allocation11 + $0xc8] sm:$0xff]
    %v4664 = vld [vmem:[#allocation11 + $0xd0] sm:$0xff]
    %v4665 = vld [vmem:[#allocation11 + $0xd8] sm:$0xff]
    %v4666 = vld [vmem:[#allocation11 + $0xe0] sm:$0xff]
    %v4667 = vld [vmem:[#allocation11 + $0xe8] sm:$0xff]
    %v4668 = vld [vmem:[#allocation11 + $0xf0] sm:$0xff]
    %v4669 = vld [vmem:[#allocation11 + $0xf8] sm:$0xff]
    %v4670 = vld [vmem:[#allocation11 + $0x100] sm:$0xff]
    %v4671 = vld [vmem:[#allocation11 + $0x108] sm:$0xff]
    %v4672 = vld [vmem:[#allocation11 + $0x110] sm:$0xff]
    %v4673 = vld [vmem:[#allocation11 + $0x118] sm:$0xff]
    %v4674 = vld [vmem:[#allocation11 + $0x120] sm:$0xff]
    %v4675 = vld [vmem:[#allocation11 + $0x128] sm:$0xff]
    %v4676 = vld [vmem:[#allocation11 + $0x130] sm:$0xff]
    %v4677 = vld [vmem:[#allocation11 + $0x138] sm:$0xff]
    %v4678 = vld [vmem:[#allocation11 + $0x140] sm:$0xff]
    %v4679 = vld [vmem:[#allocation11 + $0x148] sm:$0xff]
    %v4680 = vld [vmem:[#allocation11 + $0x150] sm:$0xff]
    %v4681 = vld [vmem:[#allocation11 + $0x158] sm:$0xff]
    %v4682 = vld [vmem:[#allocation11 + $0x160] sm:$0xff]
    %v4683 = vld [vmem:[#allocation11 + $0x168] sm:$0xff]
    %v4684 = vld [vmem:[#allocation11 + $0x170] sm:$0xff]
    %v4685 = vld [vmem:[#allocation11 + $0x178] sm:$0xff]
    %v4686 = vld [vmem:[#allocation11 + $0x180] sm:$0xff]
    %v4687 = vld [vmem:[#allocation11 + $0x188] sm:$0xff]
    %v4688 = vld [vmem:[#allocation11 + $0x190] sm:$0xff]
    %v4689 = vld [vmem:[#allocation11 + $0x198] sm:$0xff]
    %v4690 = vld [vmem:[#allocation11 + $0x1a0] sm:$0xff]
    %v4691 = vld [vmem:[#allocation11 + $0x1a8] sm:$0xff]
    %v4692 = vld [vmem:[#allocation11 + $0x1b0] sm:$0xff]
    %v4693 = vld [vmem:[#allocation11 + $0x1b8] sm:$0xff]
    %v4694 = vld [vmem:[#allocation11 + $0x1c0] sm:$0xff]
    %v4695 = vld [vmem:[#allocation11 + $0x1c8] sm:$0xff]
    %v4696 = vld [vmem:[#allocation11 + $0x1d0] sm:$0xff]
    %v4697 = vld [vmem:[#allocation11 + $0x1d8] sm:$0xff]
    %v4698 = vld [vmem:[#allocation11 + $0x1e0] sm:$0xff]
    %v4699 = vld [vmem:[#allocation11 + $0x1e8] sm:$0xff]
    %v4700 = vld [vmem:[#allocation11 + $0x1f0] sm:$0xff]
    %v4701 = vld [vmem:[#allocation11 + $0x1f8] sm:$0xff]
    %v4702 = vld [vmem:[#allocation3] sm:$0xff]
    %v4703 = vld [vmem:[#allocation13] sm:$0xff]
    %v4704 = vld [vmem:[#allocation13 + $0x8] sm:$0xff]
    %v4705 = vld [vmem:[#allocation13 + $0x10] sm:$0xff]
    %v4706 = vld [vmem:[#allocation13 + $0x18] sm:$0xff]
    %v4707 = vld [vmem:[#allocation13 + $0x20] sm:$0xff]
    %v4708 = vld [vmem:[#allocation13 + $0x28] sm:$0xff]
    %v4709 = vld [vmem:[#allocation13 + $0x30] sm:$0xff]
    %v4710 = vld [vmem:[#allocation13 + $0x38] sm:$0xff]
    %v4711 = vld [vmem:[#allocation13 + $0x40] sm:$0xff]
    %v4712 = vld [vmem:[#allocation13 + $0x48] sm:$0xff]
    %v4713 = vld [vmem:[#allocation13 + $0x50] sm:$0xff]
    %v4714 = vld [vmem:[#allocation13 + $0x58] sm:$0xff]
    %v4715 = vld [vmem:[#allocation13 + $0x60] sm:$0xff]
    %v4716 = vld [vmem:[#allocation13 + $0x68] sm:$0xff]
    %v4717 = vld [vmem:[#allocation13 + $0x70] sm:$0xff]
    %v4718 = vld [vmem:[#allocation13 + $0x78] sm:$0xff]
    %v4719 = vld [vmem:[#allocation13 + $0x80] sm:$0xff]
    %v4720 = vld [vmem:[#allocation13 + $0x88] sm:$0xff]
    %v4721 = vld [vmem:[#allocation13 + $0x90] sm:$0xff]
    %v4722 = vld [vmem:[#allocation13 + $0x98] sm:$0xff]
    %v4723 = vld [vmem:[#allocation13 + $0xa0] sm:$0xff]
    %v4724 = vld [vmem:[#allocation13 + $0xa8] sm:$0xff]
    %v4725 = vld [vmem:[#allocation13 + $0xb0] sm:$0xff]
    %v4726 = vld [vmem:[#allocation13 + $0xb8] sm:$0xff]
    %v4727 = vld [vmem:[#allocation13 + $0xc0] sm:$0xff]
    %v4728 = vld [vmem:[#allocation13 + $0xc8] sm:$0xff]
    %v4729 = vld [vmem:[#allocation13 + $0xd0] sm:$0xff]
    %v4730 = vld [vmem:[#allocation13 + $0xd8] sm:$0xff]
    %v4731 = vld [vmem:[#allocation13 + $0xe0] sm:$0xff]
    %v4732 = vld [vmem:[#allocation13 + $0xe8] sm:$0xff]
    %v4733 = vld [vmem:[#allocation13 + $0xf0] sm:$0xff]
    %v4734 = vld [vmem:[#allocation13 + $0xf8] sm:$0xff]
    %v4735 = vld [vmem:[#allocation13 + $0x100] sm:$0xff]
    %v4736 = vld [vmem:[#allocation13 + $0x108] sm:$0xff]
    %v4737 = vld [vmem:[#allocation13 + $0x110] sm:$0xff]
    %v4738 = vld [vmem:[#allocation13 + $0x118] sm:$0xff]
    %v4739 = vld [vmem:[#allocation13 + $0x120] sm:$0xff]
    %v4740 = vld [vmem:[#allocation13 + $0x128] sm:$0xff]
    %v4741 = vld [vmem:[#allocation13 + $0x130] sm:$0xff]
    %v4742 = vld [vmem:[#allocation13 + $0x138] sm:$0xff]
    %v4743 = vld [vmem:[#allocation13 + $0x140] sm:$0xff]
    %v4744 = vld [vmem:[#allocation13 + $0x148] sm:$0xff]
    %v4745 = vld [vmem:[#allocation13 + $0x150] sm:$0xff]
    %v4746 = vld [vmem:[#allocation13 + $0x158] sm:$0xff]
    %v4747 = vld [vmem:[#allocation13 + $0x160] sm:$0xff]
    %v4748 = vld [vmem:[#allocation13 + $0x168] sm:$0xff]
    %v4749 = vld [vmem:[#allocation13 + $0x170] sm:$0xff]
    %v4750 = vld [vmem:[#allocation13 + $0x178] sm:$0xff]
    %v4751 = vld [vmem:[#allocation13 + $0x180] sm:$0xff]
    %v4752 = vld [vmem:[#allocation13 + $0x188] sm:$0xff]
    %v4753 = vld [vmem:[#allocation13 + $0x190] sm:$0xff]
    %v4754 = vld [vmem:[#allocation13 + $0x198] sm:$0xff]
    %v4755 = vld [vmem:[#allocation13 + $0x1a0] sm:$0xff]
    %v4756 = vld [vmem:[#allocation13 + $0x1a8] sm:$0xff]
    %v4757 = vld [vmem:[#allocation13 + $0x1b0] sm:$0xff]
    %v4758 = vld [vmem:[#allocation13 + $0x1b8] sm:$0xff]
    %v4759 = vld [vmem:[#allocation13 + $0x1c0] sm:$0xff]
    %v4760 = vld [vmem:[#allocation13 + $0x1c8] sm:$0xff]
    %v4761 = vld [vmem:[#allocation13 + $0x1d0] sm:$0xff]
    %v4762 = vld [vmem:[#allocation13 + $0x1d8] sm:$0xff]
    %v4763 = vld [vmem:[#allocation13 + $0x1e0] sm:$0xff]
    %v4764 = vld [vmem:[#allocation13 + $0x1e8] sm:$0xff]
    %v4765 = vld [vmem:[#allocation13 + $0x1f0] sm:$0xff]
    %v4766 = vld [vmem:[#allocation13 + $0x1f8] sm:$0xff]
    %4767 = vmatprep.subr.mxu0 %v4704
    %4768 = vmatpush1.msra.mxu0 %v4703
    %4769 = vmatprep.subr.mxu0 %v4708
    %4770 = vmatpush1.msra.mxu0 %v4707
    %4771 = vmatprep.subr.mxu0 %v4712
    %4772 = vmatpush1.msra.mxu0 %v4711
    %4773 = vmatprep.subr.mxu0 %v4716
    %4774 = vmatpush1.msra.mxu0 %v4715
    %4775 = vmatprep.subr.mxu0 %v4720
    %4776 = vmatpush1.msra.mxu0 %v4719
    %4777 = vmatprep.subr.mxu0 %v4724
    %4778 = vmatpush1.msra.mxu0 %v4723
    %4779 = vmatprep.subr.mxu0 %v4728
    %4780 = vmatpush1.msra.mxu0 %v4727
    %4781 = vmatprep.subr.mxu0 %v4732
    %4782 = vmatpush1.msra.mxu0 %v4731
    %4783 = vmatprep.subr.mxu0 %v4736
    %4784 = vmatpush1.msra.mxu0 %v4735
    %4785 = vmatprep.subr.mxu0 %v4740
    %4786 = vmatpush1.msra.mxu0 %v4739
    %4787 = vmatprep.subr.mxu0 %v4744
    %4788 = vmatpush1.msra.mxu0 %v4743
    %4789 = vmatprep.subr.mxu0 %v4748
    %4790 = vmatpush1.msra.mxu0 %v4747
    %4791 = vmatprep.subr.mxu0 %v4752
    %4792 = vmatpush1.msra.mxu0 %v4751
    %4793 = vmatprep.subr.mxu0 %v4756
    %4794 = vmatpush1.msra.mxu0 %v4755
    %4795 = vmatprep.subr.mxu0 %v4760
    %4796 = vmatpush1.msra.mxu0 %v4759
    %4797 = vmatprep.subr.mxu0 %v4764
    %4798 = vmatpush1.msra.mxu0 %v4763
    %4799 = vmatprep.subr.mxu0 0.0
    %4800 = vmatpush1.msra.mxu0 0.0
    %4801 = vmatprep.subr.mxu0 0.0
    %4802 = vmatpush1.msra.mxu0 0.0
    %4803 = vmatprep.subr.mxu0 0.0
    %4804 = vmatpush1.msra.mxu0 0.0
    %4805 = vmatprep.subr.mxu0 0.0
    %4806 = vmatpush1.msra.mxu0 0.0
    %4807 = vmatprep.subr.mxu0 0.0
    %4808 = vmatpush1.msra.mxu0 0.0
    %4809 = vmatprep.subr.mxu0 0.0
    %4810 = vmatpush1.msra.mxu0 0.0
    %4811 = vmatprep.subr.mxu0 0.0
    %4812 = vmatpush1.msra.mxu0 0.0
    %4813 = vmatprep.subr.mxu0 0.0
    %4814 = vmatpush1.msra.mxu0 0.0
    %4815 = vmatprep.subr.mxu0 0.0
    %4816 = vmatpush1.msra.mxu0 0.0
    %4817 = vmatprep.subr.mxu0 0.0
    %4818 = vmatpush1.msra.mxu0 0.0
    %4819 = vmatprep.subr.mxu0 0.0
    %4820 = vmatpush1.msra.mxu0 0.0
    %4821 = vmatprep.subr.mxu0 0.0
    %4822 = vmatpush1.msra.mxu0 0.0
    %4823 = vmatprep.subr.mxu0 0.0
    %4824 = vmatpush1.msra.mxu0 0.0
    %4825 = vmatprep.subr.mxu0 0.0
    %4826 = vmatpush1.msra.mxu0 0.0
    %4827 = vmatprep.subr.mxu0 0.0
    %4828 = vmatpush1.msra.mxu0 0.0
    %4829 = vmatprep.subr.mxu0 0.0
    %4830 = vmatpush1.msra.mxu0 0.0
    %4831 = vmatprep.mubr.f32.mxu0 0.0
    %4832 = vmatmul.mubr.f32.gmra.mrb[0].mxu0 %v4702
    %v4833 = vpop.f32.mrb[0].mxu0
    %v4834 = vadd.f32 0.0, %v4833
    %v4835 = vpop.f32.mrb[0].mxu0
    %v4836 = vadd.f32 0.0, %v4835
    %4837 = vdwg.mxu0
    %4838 = vmatprep.subr.mxu0 %v4706
    %4839 = vmatpush1.msra.mxu0 %v4705
    %4840 = vmatprep.subr.mxu0 %v4710
    %4841 = vmatpush1.msra.mxu0 %v4709
    %4842 = vmatprep.subr.mxu0 %v4714
    %4843 = vmatpush1.msra.mxu0 %v4713
    %4844 = vmatprep.subr.mxu0 %v4718
    %4845 = vmatpush1.msra.mxu0 %v4717
    %4846 = vmatprep.subr.mxu0 %v4722
    %4847 = vmatpush1.msra.mxu0 %v4721
    %4848 = vmatprep.subr.mxu0 %v4726
    %4849 = vmatpush1.msra.mxu0 %v4725
    %4850 = vmatprep.subr.mxu0 %v4730
    %4851 = vmatpush1.msra.mxu0 %v4729
    %4852 = vmatprep.subr.mxu0 %v4734
    %4853 = vmatpush1.msra.mxu0 %v4733
    %4854 = vmatprep.subr.mxu0 %v4738
    %4855 = vmatpush1.msra.mxu0 %v4737
    %4856 = vmatprep.subr.mxu0 %v4742
    %4857 = vmatpush1.msra.mxu0 %v4741
    %4858 = vmatprep.subr.mxu0 %v4746
    %4859 = vmatpush1.msra.mxu0 %v4745
    %4860 = vmatprep.subr.mxu0 %v4750
    %4861 = vmatpush1.msra.mxu0 %v4749
    %4862 = vmatprep.subr.mxu0 %v4754
    %4863 = vmatpush1.msra.mxu0 %v4753
    %4864 = vmatprep.subr.mxu0 %v4758
    %4865 = vmatpush1.msra.mxu0 %v4757
    %4866 = vmatprep.subr.mxu0 %v4762
    %4867 = vmatpush1.msra.mxu0 %v4761
    %4868 = vmatprep.subr.mxu0 %v4766
    %4869 = vmatpush1.msra.mxu0 %v4765
    %4870 = vmatprep.subr.mxu0 0.0
    %4871 = vmatpush1.msra.mxu0 0.0
    %4872 = vmatprep.subr.mxu0 0.0
    %4873 = vmatpush1.msra.mxu0 0.0
    %4874 = vmatprep.subr.mxu0 0.0
    %4875 = vmatpush1.msra.mxu0 0.0
    %4876 = vmatprep.subr.mxu0 0.0
    %4877 = vmatpush1.msra.mxu0 0.0
    %4878 = vmatprep.subr.mxu0 0.0
    %4879 = vmatpush1.msra.mxu0 0.0
    %4880 = vmatprep.subr.mxu0 0.0
    %4881 = vmatpush1.msra.mxu0 0.0
    %4882 = vmatprep.subr.mxu0 0.0
    %4883 = vmatpush1.msra.mxu0 0.0
    %4884 = vmatprep.subr.mxu0 0.0
    %4885 = vmatpush1.msra.mxu0 0.0
    %4886 = vmatprep.subr.mxu0 0.0
    %4887 = vmatpush1.msra.mxu0 0.0
    %4888 = vmatprep.subr.mxu0 0.0
    %4889 = vmatpush1.msra.mxu0 0.0
    %4890 = vmatprep.subr.mxu0 0.0
    %4891 = vmatpush1.msra.mxu0 0.0
    %4892 = vmatprep.subr.mxu0 0.0
    %4893 = vmatpush1.msra.mxu0 0.0
    %4894 = vmatprep.subr.mxu0 0.0
    %4895 = vmatpush1.msra.mxu0 0.0
    %4896 = vmatprep.subr.mxu0 0.0
    %4897 = vmatpush1.msra.mxu0 0.0
    %4898 = vmatprep.subr.mxu0 0.0
    %4899 = vmatpush1.msra.mxu0 0.0
    %4900 = vmatprep.subr.mxu0 0.0
    %4901 = vmatpush1.msra.mxu0 0.0
    %4902 = vmatprep.mubr.f32.mxu0 0.0
    %4903 = vmatmul.mubr.f32.gmra.mrb[0].mxu0 %v4702
    %v4904 = vpop.f32.mrb[0].mxu0
    %v4905 = vadd.f32 0.0, %v4904
    %v4906 = vpop.f32.mrb[0].mxu0
    %v4907 = vadd.f32 0.0, %v4906
    %4908 = vdwg.mxu0
    %4909 = vmatprep.subr.mxu0 %v4639
    %4910 = vmatpush1.msra.mxu0 %v4638
    %4911 = vmatprep.subr.mxu0 %v4643
    %4912 = vmatpush1.msra.mxu0 %v4642
    %4913 = vmatprep.subr.mxu0 %v4647
    %4914 = vmatpush1.msra.mxu0 %v4646
    %4915 = vmatprep.subr.mxu0 %v4651
    %4916 = vmatpush1.msra.mxu0 %v4650
    %4917 = vmatprep.subr.mxu0 %v4655
    %4918 = vmatpush1.msra.mxu0 %v4654
    %4919 = vmatprep.subr.mxu0 %v4659
    %4920 = vmatpush1.msra.mxu0 %v4658
    %4921 = vmatprep.subr.mxu0 %v4663
    %4922 = vmatpush1.msra.mxu0 %v4662
    %4923 = vmatprep.subr.mxu0 %v4667
    %4924 = vmatpush1.msra.mxu0 %v4666
    %4925 = vmatprep.subr.mxu0 %v4671
    %4926 = vmatpush1.msra.mxu0 %v4670
    %4927 = vmatprep.subr.mxu0 %v4675
    %4928 = vmatpush1.msra.mxu0 %v4674
    %4929 = vmatprep.subr.mxu0 %v4679
    %4930 = vmatpush1.msra.mxu0 %v4678
    %4931 = vmatprep.subr.mxu0 %v4683
    %4932 = vmatpush1.msra.mxu0 %v4682
    %4933 = vmatprep.subr.mxu0 %v4687
    %4934 = vmatpush1.msra.mxu0 %v4686
    %4935 = vmatprep.subr.mxu0 %v4691
    %4936 = vmatpush1.msra.mxu0 %v4690
    %4937 = vmatprep.subr.mxu0 %v4695
    %4938 = vmatpush1.msra.mxu0 %v4694
    %4939 = vmatprep.subr.mxu0 %v4699
    %4940 = vmatpush1.msra.mxu0 %v4698
    %4941 = vmatprep.subr.mxu0 0.0
    %4942 = vmatpush1.msra.mxu0 0.0
    %4943 = vmatprep.subr.mxu0 0.0
    %4944 = vmatpush1.msra.mxu0 0.0
    %4945 = vmatprep.subr.mxu0 0.0
    %4946 = vmatpush1.msra.mxu0 0.0
    %4947 = vmatprep.subr.mxu0 0.0
    %4948 = vmatpush1.msra.mxu0 0.0
    %4949 = vmatprep.subr.mxu0 0.0
    %4950 = vmatpush1.msra.mxu0 0.0
    %4951 = vmatprep.subr.mxu0 0.0
    %4952 = vmatpush1.msra.mxu0 0.0
    %4953 = vmatprep.subr.mxu0 0.0
    %4954 = vmatpush1.msra.mxu0 0.0
    %4955 = vmatprep.subr.mxu0 0.0
    %4956 = vmatpush1.msra.mxu0 0.0
    %4957 = vmatprep.subr.mxu0 0.0
    %4958 = vmatpush1.msra.mxu0 0.0
    %4959 = vmatprep.subr.mxu0 0.0
    %4960 = vmatpush1.msra.mxu0 0.0
    %4961 = vmatprep.subr.mxu0 0.0
    %4962 = vmatpush1.msra.mxu0 0.0
    %4963 = vmatprep.subr.mxu0 0.0
    %4964 = vmatpush1.msra.mxu0 0.0
    %4965 = vmatprep.subr.mxu0 0.0
    %4966 = vmatpush1.msra.mxu0 0.0
    %4967 = vmatprep.subr.mxu0 0.0
    %4968 = vmatpush1.msra.mxu0 0.0
    %4969 = vmatprep.subr.mxu0 0.0
    %4970 = vmatpush1.msra.mxu0 0.0
    %4971 = vmatprep.subr.mxu0 0.0
    %4972 = vmatpush1.msra.mxu0 0.0
    %4973 = vmatprep.mubr.f32.mxu0 0.0
    %4974 = vmatmul.mubr.f32.gmra.mrb[0].mxu0 %v4637
    %v4975 = vpop.f32.mrb[0].mxu0
    %v4976 = vadd.f32 %v4834, %v4975
    %v4977 = vpop.f32.mrb[0].mxu0
    %v4978 = vadd.f32 %v4836, %v4977
    %4979 = vdwg.mxu0
    %4980 = vmatprep.subr.mxu0 %v4641
    %4981 = vmatpush1.msra.mxu0 %v4640
    %4982 = vmatprep.subr.mxu0 %v4645
    %4983 = vmatpush1.msra.mxu0 %v4644
    %4984 = vmatprep.subr.mxu0 %v4649
    %4985 = vmatpush1.msra.mxu0 %v4648
    %4986 = vmatprep.subr.mxu0 %v4653
    %4987 = vmatpush1.msra.mxu0 %v4652
    %4988 = vmatprep.subr.mxu0 %v4657
    %4989 = vmatpush1.msra.mxu0 %v4656
    %4990 = vmatprep.subr.mxu0 %v4661
    %4991 = vmatpush1.msra.mxu0 %v4660
    %4992 = vmatprep.subr.mxu0 %v4665
    %4993 = vmatpush1.msra.mxu0 %v4664
    %4994 = vmatprep.subr.mxu0 %v4669
    %4995 = vmatpush1.msra.mxu0 %v4668
    %4996 = vmatprep.subr.mxu0 %v4673
    %4997 = vmatpush1.msra.mxu0 %v4672
    %4998 = vmatprep.subr.mxu0 %v4677
    %4999 = vmatpush1.msra.mxu0 %v4676
    %5000 = vmatprep.subr.mxu0 %v4681
    %5001 = vmatpush1.msra.mxu0 %v4680
    %5002 = vmatprep.subr.mxu0 %v4685
    %5003 = vmatpush1.msra.mxu0 %v4684
    %5004 = vmatprep.subr.mxu0 %v4689
    %5005 = vmatpush1.msra.mxu0 %v4688
    %5006 = vmatprep.subr.mxu0 %v4693
    %5007 = vmatpush1.msra.mxu0 %v4692
    %5008 = vmatprep.subr.mxu0 %v4697
    %5009 = vmatpush1.msra.mxu0 %v4696
    %5010 = vmatprep.subr.mxu0 %v4701
    %5011 = vmatpush1.msra.mxu0 %v4700
    %5012 = vmatprep.subr.mxu0 0.0
    %5013 = vmatpush1.msra.mxu0 0.0
    %5014 = vmatprep.subr.mxu0 0.0
    %5015 = vmatpush1.msra.mxu0 0.0
    %5016 = vmatprep.subr.mxu0 0.0
    %5017 = vmatpush1.msra.mxu0 0.0
    %5018 = vmatprep.subr.mxu0 0.0
    %5019 = vmatpush1.msra.mxu0 0.0
    %5020 = vmatprep.subr.mxu0 0.0
    %5021 = vmatpush1.msra.mxu0 0.0
    %5022 = vmatprep.subr.mxu0 0.0
    %5023 = vmatpush1.msra.mxu0 0.0
    %5024 = vmatprep.subr.mxu0 0.0
    %5025 = vmatpush1.msra.mxu0 0.0
    %5026 = vmatprep.subr.mxu0 0.0
    %5027 = vmatpush1.msra.mxu0 0.0
    %5028 = vmatprep.subr.mxu0 0.0
    %5029 = vmatpush1.msra.mxu0 0.0
    %5030 = vmatprep.subr.mxu0 0.0
    %5031 = vmatpush1.msra.mxu0 0.0
    %5032 = vmatprep.subr.mxu0 0.0
    %5033 = vmatpush1.msra.mxu0 0.0
    %5034 = vmatprep.subr.mxu0 0.0
    %5035 = vmatpush1.msra.mxu0 0.0
    %5036 = vmatprep.subr.mxu0 0.0
    %5037 = vmatpush1.msra.mxu0 0.0
    %5038 = vmatprep.subr.mxu0 0.0
    %5039 = vmatpush1.msra.mxu0 0.0
    %5040 = vmatprep.subr.mxu0 0.0
    %5041 = vmatpush1.msra.mxu0 0.0
    %5042 = vmatprep.subr.mxu0 0.0
    %5043 = vmatpush1.msra.mxu0 0.0
    %5044 = vmatprep.mubr.f32.mxu0 0.0
    %5045 = vmatmul.mubr.f32.gmra.mrb[0].mxu0 %v4637
    %v5046 = vpop.f32.mrb[0].mxu0
    %v5047 = vadd.f32 %v4905, %v5046
    %v5048 = vpop.f32.mrb[0].mxu0
    %v5049 = vadd.f32 %v4907, %v5048
    %5050 = vdwg.mxu0
    %v5051 = vadd.f32 %v4976, %v3728
    %v5052 = vadd.f32 %v4978, %v3732
    %v5053 = vadd.f32 %v5047, %v3736
    %v5054 = vadd.f32 %v5049, %v3740
    %v5055 = vxor.u32 %v5051, 2147483648
    %v5056 = vmul.f32 %v5055, 1.442695
    %v5057 = vpow.pop %v5056
    %v5058 = vadd.f32 %v5057, 1.0
    %v5059 = vrcp.pop %v5058
    %v5060 = vmul.f32 1.0, %v5059
    %v5061 = vxor.u32 %v5052, 2147483648
    %v5062 = vmul.f32 %v5061, 1.442695
    %v5063 = vpow.pop %v5062
    %v5064 = vadd.f32 %v5063, 1.0
    %v5065 = vrcp.pop %v5064
    %v5066 = vmul.f32 1.0, %v5065
    %v5067 = vtanh.pop %v5053
    %v5068 = vxor.u32 %v5054, 2147483648
    %v5069 = vmul.f32 %v5068, 1.442695
    %v5070 = vpow.pop %v5069
    %v5071 = vadd.f32 %v5070, 1.0
    %v5072 = vrcp.pop %v5071
    %v5073 = vmul.f32 1.0, %v5072
    %v5074 = vld [vmem:[#allocation4] sm:$0xff]
    %v5075 = vmul.f32 %v5066, %v5074
    %v5076 = vmul.f32 %v5060, %v5067
    %v5077 = vadd.f32 %v5075, %v5076
    %v5078 = vtanh.pop %v5077
    %v5079 = vmul.f32 %v5073, %v5078
    %5080 = vst [vmem:[#allocation4] sm:$0xff] %v5077
    %5081 = vst [vmem:[#allocation3] sm:$0xff] %v5079
    %5082 = vst [vmem:[%s1479] sm:$0xff] %v5079
    %v5083 = vld [vmem:[%s1927] sm:$0xff]
    %v5084 = vld [vmem:[#allocation11] sm:$0xff]
    %v5085 = vld [vmem:[#allocation11 + $0x8] sm:$0xff]
    %v5086 = vld [vmem:[#allocation11 + $0x10] sm:$0xff]
    %v5087 = vld [vmem:[#allocation11 + $0x18] sm:$0xff]
    %v5088 = vld [vmem:[#allocation11 + $0x20] sm:$0xff]
    %v5089 = vld [vmem:[#allocation11 + $0x28] sm:$0xff]
    %v5090 = vld [vmem:[#allocation11 + $0x30] sm:$0xff]
    %v5091 = vld [vmem:[#allocation11 + $0x38] sm:$0xff]
    %v5092 = vld [vmem:[#allocation11 + $0x40] sm:$0xff]
    %v5093 = vld [vmem:[#allocation11 + $0x48] sm:$0xff]
    %v5094 = vld [vmem:[#allocation11 + $0x50] sm:$0xff]
    %v5095 = vld [vmem:[#allocation11 + $0x58] sm:$0xff]
    %v5096 = vld [vmem:[#allocation11 + $0x60] sm:$0xff]
    %v5097 = vld [vmem:[#allocation11 + $0x68] sm:$0xff]
    %v5098 = vld [vmem:[#allocation11 + $0x70] sm:$0xff]
    %v5099 = vld [vmem:[#allocation11 + $0x78] sm:$0xff]
    %v5100 = vld [vmem:[#allocation11 + $0x80] sm:$0xff]
    %v5101 = vld [vmem:[#allocation11 + $0x88] sm:$0xff]
    %v5102 = vld [vmem:[#allocation11 + $0x90] sm:$0xff]
    %v5103 = vld [vmem:[#allocation11 + $0x98] sm:$0xff]
    %v5104 = vld [vmem:[#allocation11 + $0xa0] sm:$0xff]
    %v5105 = vld [vmem:[#allocation11 + $0xa8] sm:$0xff]
    %v5106 = vld [vmem:[#allocation11 + $0xb0] sm:$0xff]
    %v5107 = vld [vmem:[#allocation11 + $0xb8] sm:$0xff]
    %v5108 = vld [vmem:[#allocation11 + $0xc0] sm:$0xff]
    %v5109 = vld [vmem:[#allocation11 + $0xc8] sm:$0xff]
    %v5110 = vld [vmem:[#allocation11 + $0xd0] sm:$0xff]
    %v5111 = vld [vmem:[#allocation11 + $0xd8] sm:$0xff]
    %v5112 = vld [vmem:[#allocation11 + $0xe0] sm:$0xff]
    %v5113 = vld [vmem:[#allocation11 + $0xe8] sm:$0xff]
    %v5114 = vld [vmem:[#allocation11 + $0xf0] sm:$0xff]
    %v5115 = vld [vmem:[#allocation11 + $0xf8] sm:$0xff]
    %v5116 = vld [vmem:[#allocation11 + $0x100] sm:$0xff]
    %v5117 = vld [vmem:[#allocation11 + $0x108] sm:$0xff]
    %v5118 = vld [vmem:[#allocation11 + $0x110] sm:$0xff]
    %v5119 = vld [vmem:[#allocation11 + $0x118] sm:$0xff]
    %v5120 = vld [vmem:[#allocation11 + $0x120] sm:$0xff]
    %v5121 = vld [vmem:[#allocation11 + $0x128] sm:$0xff]
    %v5122 = vld [vmem:[#allocation11 + $0x130] sm:$0xff]
    %v5123 = vld [vmem:[#allocation11 + $0x138] sm:$0xff]
    %v5124 = vld [vmem:[#allocation11 + $0x140] sm:$0xff]
    %v5125 = vld [vmem:[#allocation11 + $0x148] sm:$0xff]
    %v5126 = vld [vmem:[#allocation11 + $0x150] sm:$0xff]
    %v5127 = vld [vmem:[#allocation11 + $0x158] sm:$0xff]
    %v5128 = vld [vmem:[#allocation11 + $0x160] sm:$0xff]
    %v5129 = vld [vmem:[#allocation11 + $0x168] sm:$0xff]
    %v5130 = vld [vmem:[#allocation11 + $0x170] sm:$0xff]
    %v5131 = vld [vmem:[#allocation11 + $0x178] sm:$0xff]
    %v5132 = vld [vmem:[#allocation11 + $0x180] sm:$0xff]
    %v5133 = vld [vmem:[#allocation11 + $0x188] sm:$0xff]
    %v5134 = vld [vmem:[#allocation11 + $0x190] sm:$0xff]
    %v5135 = vld [vmem:[#allocation11 + $0x198] sm:$0xff]
    %v5136 = vld [vmem:[#allocation11 + $0x1a0] sm:$0xff]
    %v5137 = vld [vmem:[#allocation11 + $0x1a8] sm:$0xff]
    %v5138 = vld [vmem:[#allocation11 + $0x1b0] sm:$0xff]
    %v5139 = vld [vmem:[#allocation11 + $0x1b8] sm:$0xff]
    %v5140 = vld [vmem:[#allocation11 + $0x1c0] sm:$0xff]
    %v5141 = vld [vmem:[#allocation11 + $0x1c8] sm:$0xff]
    %v5142 = vld [vmem:[#allocation11 + $0x1d0] sm:$0xff]
    %v5143 = vld [vmem:[#allocation11 + $0x1d8] sm:$0xff]
    %v5144 = vld [vmem:[#allocation11 + $0x1e0] sm:$0xff]
    %v5145 = vld [vmem:[#allocation11 + $0x1e8] sm:$0xff]
    %v5146 = vld [vmem:[#allocation11 + $0x1f0] sm:$0xff]
    %v5147 = vld [vmem:[#allocation11 + $0x1f8] sm:$0xff]
    %v5148 = vld [vmem:[#allocation3] sm:$0xff]
    %v5149 = vld [vmem:[#allocation13] sm:$0xff]
    %v5150 = vld [vmem:[#allocation13 + $0x8] sm:$0xff]
    %v5151 = vld [vmem:[#allocation13 + $0x10] sm:$0xff]
    %v5152 = vld [vmem:[#allocation13 + $0x18] sm:$0xff]
    %v5153 = vld [vmem:[#allocation13 + $0x20] sm:$0xff]
    %v5154 = vld [vmem:[#allocation13 + $0x28] sm:$0xff]
    %v5155 = vld [vmem:[#allocation13 + $0x30] sm:$0xff]
    %v5156 = vld [vmem:[#allocation13 + $0x38] sm:$0xff]
    %v5157 = vld [vmem:[#allocation13 + $0x40] sm:$0xff]
    %v5158 = vld [vmem:[#allocation13 + $0x48] sm:$0xff]
    %v5159 = vld [vmem:[#allocation13 + $0x50] sm:$0xff]
    %v5160 = vld [vmem:[#allocation13 + $0x58] sm:$0xff]
    %v5161 = vld [vmem:[#allocation13 + $0x60] sm:$0xff]
    %v5162 = vld [vmem:[#allocation13 + $0x68] sm:$0xff]
    %v5163 = vld [vmem:[#allocation13 + $0x70] sm:$0xff]
    %v5164 = vld [vmem:[#allocation13 + $0x78] sm:$0xff]
    %v5165 = vld [vmem:[#allocation13 + $0x80] sm:$0xff]
    %v5166 = vld [vmem:[#allocation13 + $0x88] sm:$0xff]
    %v5167 = vld [vmem:[#allocation13 + $0x90] sm:$0xff]
    %v5168 = vld [vmem:[#allocation13 + $0x98] sm:$0xff]
    %v5169 = vld [vmem:[#allocation13 + $0xa0] sm:$0xff]
    %v5170 = vld [vmem:[#allocation13 + $0xa8] sm:$0xff]
    %v5171 = vld [vmem:[#allocation13 + $0xb0] sm:$0xff]
    %v5172 = vld [vmem:[#allocation13 + $0xb8] sm:$0xff]
    %v5173 = vld [vmem:[#allocation13 + $0xc0] sm:$0xff]
    %v5174 = vld [vmem:[#allocation13 + $0xc8] sm:$0xff]
    %v5175 = vld [vmem:[#allocation13 + $0xd0] sm:$0xff]
    %v5176 = vld [vmem:[#allocation13 + $0xd8] sm:$0xff]
    %v5177 = vld [vmem:[#allocation13 + $0xe0] sm:$0xff]
    %v5178 = vld [vmem:[#allocation13 + $0xe8] sm:$0xff]
    %v5179 = vld [vmem:[#allocation13 + $0xf0] sm:$0xff]
    %v5180 = vld [vmem:[#allocation13 + $0xf8] sm:$0xff]
    %v5181 = vld [vmem:[#allocation13 + $0x100] sm:$0xff]
    %v5182 = vld [vmem:[#allocation13 + $0x108] sm:$0xff]
    %v5183 = vld [vmem:[#allocation13 + $0x110] sm:$0xff]
    %v5184 = vld [vmem:[#allocation13 + $0x118] sm:$0xff]
    %v5185 = vld [vmem:[#allocation13 + $0x120] sm:$0xff]
    %v5186 = vld [vmem:[#allocation13 + $0x128] sm:$0xff]
    %v5187 = vld [vmem:[#allocation13 + $0x130] sm:$0xff]
    %v5188 = vld [vmem:[#allocation13 + $0x138] sm:$0xff]
    %v5189 = vld [vmem:[#allocation13 + $0x140] sm:$0xff]
    %v5190 = vld [vmem:[#allocation13 + $0x148] sm:$0xff]
    %v5191 = vld [vmem:[#allocation13 + $0x150] sm:$0xff]
    %v5192 = vld [vmem:[#allocation13 + $0x158] sm:$0xff]
    %v5193 = vld [vmem:[#allocation13 + $0x160] sm:$0xff]
    %v5194 = vld [vmem:[#allocation13 + $0x168] sm:$0xff]
    %v5195 = vld [vmem:[#allocation13 + $0x170] sm:$0xff]
    %v5196 = vld [vmem:[#allocation13 + $0x178] sm:$0xff]
    %v5197 = vld [vmem:[#allocation13 + $0x180] sm:$0xff]
    %v5198 = vld [vmem:[#allocation13 + $0x188] sm:$0xff]
    %v5199 = vld [vmem:[#allocation13 + $0x190] sm:$0xff]
    %v5200 = vld [vmem:[#allocation13 + $0x198] sm:$0xff]
    %v5201 = vld [vmem:[#allocation13 + $0x1a0] sm:$0xff]
    %v5202 = vld [vmem:[#allocation13 + $0x1a8] sm:$0xff]
    %v5203 = vld [vmem:[#allocation13 + $0x1b0] sm:$0xff]
    %v5204 = vld [vmem:[#allocation13 + $0x1b8] sm:$0xff]
    %v5205 = vld [vmem:[#allocation13 + $0x1c0] sm:$0xff]
    %v5206 = vld [vmem:[#allocation13 + $0x1c8] sm:$0xff]
    %v5207 = vld [vmem:[#allocation13 + $0x1d0] sm:$0xff]
    %v5208 = vld [vmem:[#allocation13 + $0x1d8] sm:$0xff]
    %v5209 = vld [vmem:[#allocation13 + $0x1e0] sm:$0xff]
    %v5210 = vld [vmem:[#allocation13 + $0x1e8] sm:$0xff]
    %v5211 = vld [vmem:[#allocation13 + $0x1f0] sm:$0xff]
    %v5212 = vld [vmem:[#allocation13 + $0x1f8] sm:$0xff]
    %5213 = vmatprep.subr.mxu0 %v5150
    %5214 = vmatpush1.msra.mxu0 %v5149
    %5215 = vmatprep.subr.mxu0 %v5154
    %5216 = vmatpush1.msra.mxu0 %v5153
    %5217 = vmatprep.subr.mxu0 %v5158
    %5218 = vmatpush1.msra.mxu0 %v5157
    %5219 = vmatprep.subr.mxu0 %v5162
    %5220 = vmatpush1.msra.mxu0 %v5161
    %5221 = vmatprep.subr.mxu0 %v5166
    %5222 = vmatpush1.msra.mxu0 %v5165
    %5223 = vmatprep.subr.mxu0 %v5170
    %5224 = vmatpush1.msra.mxu0 %v5169
    %5225 = vmatprep.subr.mxu0 %v5174
    %5226 = vmatpush1.msra.mxu0 %v5173
    %5227 = vmatprep.subr.mxu0 %v5178
    %5228 = vmatpush1.msra.mxu0 %v5177
    %5229 = vmatprep.subr.mxu0 %v5182
    %5230 = vmatpush1.msra.mxu0 %v5181
    %5231 = vmatprep.subr.mxu0 %v5186
    %5232 = vmatpush1.msra.mxu0 %v5185
    %5233 = vmatprep.subr.mxu0 %v5190
    %5234 = vmatpush1.msra.mxu0 %v5189
    %5235 = vmatprep.subr.mxu0 %v5194
    %5236 = vmatpush1.msra.mxu0 %v5193
    %5237 = vmatprep.subr.mxu0 %v5198
    %5238 = vmatpush1.msra.mxu0 %v5197
    %5239 = vmatprep.subr.mxu0 %v5202
    %5240 = vmatpush1.msra.mxu0 %v5201
    %5241 = vmatprep.subr.mxu0 %v5206
    %5242 = vmatpush1.msra.mxu0 %v5205
    %5243 = vmatprep.subr.mxu0 %v5210
    %5244 = vmatpush1.msra.mxu0 %v5209
    %5245 = vmatprep.subr.mxu0 0.0
    %5246 = vmatpush1.msra.mxu0 0.0
    %5247 = vmatprep.subr.mxu0 0.0
    %5248 = vmatpush1.msra.mxu0 0.0
    %5249 = vmatprep.subr.mxu0 0.0
    %5250 = vmatpush1.msra.mxu0 0.0
    %5251 = vmatprep.subr.mxu0 0.0
    %5252 = vmatpush1.msra.mxu0 0.0
    %5253 = vmatprep.subr.mxu0 0.0
    %5254 = vmatpush1.msra.mxu0 0.0
    %5255 = vmatprep.subr.mxu0 0.0
    %5256 = vmatpush1.msra.mxu0 0.0
    %5257 = vmatprep.subr.mxu0 0.0
    %5258 = vmatpush1.msra.mxu0 0.0
    %5259 = vmatprep.subr.mxu0 0.0
    %5260 = vmatpush1.msra.mxu0 0.0
    %5261 = vmatprep.subr.mxu0 0.0
    %5262 = vmatpush1.msra.mxu0 0.0
    %5263 = vmatprep.subr.mxu0 0.0
    %5264 = vmatpush1.msra.mxu0 0.0
    %5265 = vmatprep.subr.mxu0 0.0
    %5266 = vmatpush1.msra.mxu0 0.0
    %5267 = vmatprep.subr.mxu0 0.0
    %5268 = vmatpush1.msra.mxu0 0.0
    %5269 = vmatprep.subr.mxu0 0.0
    %5270 = vmatpush1.msra.mxu0 0.0
    %5271 = vmatprep.subr.mxu0 0.0
    %5272 = vmatpush1.msra.mxu0 0.0
    %5273 = vmatprep.subr.mxu0 0.0
    %5274 = vmatpush1.msra.mxu0 0.0
    %5275 = vmatprep.subr.mxu0 0.0
    %5276 = vmatpush1.msra.mxu0 0.0
    %5277 = vmatprep.mubr.f32.mxu0 0.0
    %5278 = vmatmul.mubr.f32.gmra.mrb[0].mxu0 %v5148
    %v5279 = vpop.f32.mrb[0].mxu0
    %v5280 = vadd.f32 0.0, %v5279
    %v5281 = vpop.f32.mrb[0].mxu0
    %v5282 = vadd.f32 0.0, %v5281
    %5283 = vdwg.mxu0
    %5284 = vmatprep.subr.mxu0 %v5152
    %5285 = vmatpush1.msra.mxu0 %v5151
    %5286 = vmatprep.subr.mxu0 %v5156
    %5287 = vmatpush1.msra.mxu0 %v5155
    %5288 = vmatprep.subr.mxu0 %v5160
    %5289 = vmatpush1.msra.mxu0 %v5159
    %5290 = vmatprep.subr.mxu0 %v5164
    %5291 = vmatpush1.msra.mxu0 %v5163
    %5292 = vmatprep.subr.mxu0 %v5168
    %5293 = vmatpush1.msra.mxu0 %v5167
    %5294 = vmatprep.subr.mxu0 %v5172
    %5295 = vmatpush1.msra.mxu0 %v5171
    %5296 = vmatprep.subr.mxu0 %v5176
    %5297 = vmatpush1.msra.mxu0 %v5175
    %5298 = vmatprep.subr.mxu0 %v5180
    %5299 = vmatpush1.msra.mxu0 %v5179
    %5300 = vmatprep.subr.mxu0 %v5184
    %5301 = vmatpush1.msra.mxu0 %v5183
    %5302 = vmatprep.subr.mxu0 %v5188
    %5303 = vmatpush1.msra.mxu0 %v5187
    %5304 = vmatprep.subr.mxu0 %v5192
    %5305 = vmatpush1.msra.mxu0 %v5191
    %5306 = vmatprep.subr.mxu0 %v5196
    %5307 = vmatpush1.msra.mxu0 %v5195
    %5308 = vmatprep.subr.mxu0 %v5200
    %5309 = vmatpush1.msra.mxu0 %v5199
    %5310 = vmatprep.subr.mxu0 %v5204
    %5311 = vmatpush1.msra.mxu0 %v5203
    %5312 = vmatprep.subr.mxu0 %v5208
    %5313 = vmatpush1.msra.mxu0 %v5207
    %5314 = vmatprep.subr.mxu0 %v5212
    %5315 = vmatpush1.msra.mxu0 %v5211
    %5316 = vmatprep.subr.mxu0 0.0
    %5317 = vmatpush1.msra.mxu0 0.0
    %5318 = vmatprep.subr.mxu0 0.0
    %5319 = vmatpush1.msra.mxu0 0.0
    %5320 = vmatprep.subr.mxu0 0.0
    %5321 = vmatpush1.msra.mxu0 0.0
    %5322 = vmatprep.subr.mxu0 0.0
    %5323 = vmatpush1.msra.mxu0 0.0
    %5324 = vmatprep.subr.mxu0 0.0
    %5325 = vmatpush1.msra.mxu0 0.0
    %5326 = vmatprep.subr.mxu0 0.0
    %5327 = vmatpush1.msra.mxu0 0.0
    %5328 = vmatprep.subr.mxu0 0.0
    %5329 = vmatpush1.msra.mxu0 0.0
    %5330 = vmatprep.subr.mxu0 0.0
    %5331 = vmatpush1.msra.mxu0 0.0
    %5332 = vmatprep.subr.mxu0 0.0
    %5333 = vmatpush1.msra.mxu0 0.0
    %5334 = vmatprep.subr.mxu0 0.0
    %5335 = vmatpush1.msra.mxu0 0.0
    %5336 = vmatprep.subr.mxu0 0.0
    %5337 = vmatpush1.msra.mxu0 0.0
    %5338 = vmatprep.subr.mxu0 0.0
    %5339 = vmatpush1.msra.mxu0 0.0
    %5340 = vmatprep.subr.mxu0 0.0
    %5341 = vmatpush1.msra.mxu0 0.0
    %5342 = vmatprep.subr.mxu0 0.0
    %5343 = vmatpush1.msra.mxu0 0.0
    %5344 = vmatprep.subr.mxu0 0.0
    %5345 = vmatpush1.msra.mxu0 0.0
    %5346 = vmatprep.subr.mxu0 0.0
    %5347 = vmatpush1.msra.mxu0 0.0
    %5348 = vmatprep.mubr.f32.mxu0 0.0
    %5349 = vmatmul.mubr.f32.gmra.mrb[0].mxu0 %v5148
    %v5350 = vpop.f32.mrb[0].mxu0
    %v5351 = vadd.f32 0.0, %v5350
    %v5352 = vpop.f32.mrb[0].mxu0
    %v5353 = vadd.f32 0.0, %v5352
    %5354 = vdwg.mxu0
    %5355 = vmatprep.subr.mxu0 %v5085
    %5356 = vmatpush1.msra.mxu0 %v5084
    %5357 = vmatprep.subr.mxu0 %v5089
    %5358 = vmatpush1.msra.mxu0 %v5088
    %5359 = vmatprep.subr.mxu0 %v5093
    %5360 = vmatpush1.msra.mxu0 %v5092
    %5361 = vmatprep.subr.mxu0 %v5097
    %5362 = vmatpush1.msra.mxu0 %v5096
    %5363 = vmatprep.subr.mxu0 %v5101
    %5364 = vmatpush1.msra.mxu0 %v5100
    %5365 = vmatprep.subr.mxu0 %v5105
    %5366 = vmatpush1.msra.mxu0 %v5104
    %5367 = vmatprep.subr.mxu0 %v5109
    %5368 = vmatpush1.msra.mxu0 %v5108
    %5369 = vmatprep.subr.mxu0 %v5113
    %5370 = vmatpush1.msra.mxu0 %v5112
    %5371 = vmatprep.subr.mxu0 %v5117
    %5372 = vmatpush1.msra.mxu0 %v5116
    %5373 = vmatprep.subr.mxu0 %v5121
    %5374 = vmatpush1.msra.mxu0 %v5120
    %5375 = vmatprep.subr.mxu0 %v5125
    %5376 = vmatpush1.msra.mxu0 %v5124
    %5377 = vmatprep.subr.mxu0 %v5129
    %5378 = vmatpush1.msra.mxu0 %v5128
    %5379 = vmatprep.subr.mxu0 %v5133
    %5380 = vmatpush1.msra.mxu0 %v5132
    %5381 = vmatprep.subr.mxu0 %v5137
    %5382 = vmatpush1.msra.mxu0 %v5136
    %5383 = vmatprep.subr.mxu0 %v5141
    %5384 = vmatpush1.msra.mxu0 %v5140
    %5385 = vmatprep.subr.mxu0 %v5145
    %5386 = vmatpush1.msra.mxu0 %v5144
    %5387 = vmatprep.subr.mxu0 0.0
    %5388 = vmatpush1.msra.mxu0 0.0
    %5389 = vmatprep.subr.mxu0 0.0
    %5390 = vmatpush1.msra.mxu0 0.0
    %5391 = vmatprep.subr.mxu0 0.0
    %5392 = vmatpush1.msra.mxu0 0.0
    %5393 = vmatprep.subr.mxu0 0.0
    %5394 = vmatpush1.msra.mxu0 0.0
    %5395 = vmatprep.subr.mxu0 0.0
    %5396 = vmatpush1.msra.mxu0 0.0
    %5397 = vmatprep.subr.mxu0 0.0
    %5398 = vmatpush1.msra.mxu0 0.0
    %5399 = vmatprep.subr.mxu0 0.0
    %5400 = vmatpush1.msra.mxu0 0.0
    %5401 = vmatprep.subr.mxu0 0.0
    %5402 = vmatpush1.msra.mxu0 0.0
    %5403 = vmatprep.subr.mxu0 0.0
    %5404 = vmatpush1.msra.mxu0 0.0
    %5405 = vmatprep.subr.mxu0 0.0
    %5406 = vmatpush1.msra.mxu0 0.0
    %5407 = vmatprep.subr.mxu0 0.0
    %5408 = vmatpush1.msra.mxu0 0.0
    %5409 = vmatprep.subr.mxu0 0.0
    %5410 = vmatpush1.msra.mxu0 0.0
    %5411 = vmatprep.subr.mxu0 0.0
    %5412 = vmatpush1.msra.mxu0 0.0
    %5413 = vmatprep.subr.mxu0 0.0
    %5414 = vmatpush1.msra.mxu0 0.0
    %5415 = vmatprep.subr.mxu0 0.0
    %5416 = vmatpush1.msra.mxu0 0.0
    %5417 = vmatprep.subr.mxu0 0.0
    %5418 = vmatpush1.msra.mxu0 0.0
    %5419 = vmatprep.mubr.f32.mxu0 0.0
    %5420 = vmatmul.mubr.f32.gmra.mrb[0].mxu0 %v5083
    %v5421 = vpop.f32.mrb[0].mxu0
    %v5422 = vadd.f32 %v5280, %v5421
    %v5423 = vpop.f32.mrb[0].mxu0
    %v5424 = vadd.f32 %v5282, %v5423
    %5425 = vdwg.mxu0
    %5426 = vmatprep.subr.mxu0 %v5087
    %5427 = vmatpush1.msra.mxu0 %v5086
    %5428 = vmatprep.subr.mxu0 %v5091
    %5429 = vmatpush1.msra.mxu0 %v5090
    %5430 = vmatprep.subr.mxu0 %v5095
    %5431 = vmatpush1.msra.mxu0 %v5094
    %5432 = vmatprep.subr.mxu0 %v5099
    %5433 = vmatpush1.msra.mxu0 %v5098
    %5434 = vmatprep.subr.mxu0 %v5103
    %5435 = vmatpush1.msra.mxu0 %v5102
    %5436 = vmatprep.subr.mxu0 %v5107
    %5437 = vmatpush1.msra.mxu0 %v5106
    %5438 = vmatprep.subr.mxu0 %v5111
    %5439 = vmatpush1.msra.mxu0 %v5110
    %5440 = vmatprep.subr.mxu0 %v5115
    %5441 = vmatpush1.msra.mxu0 %v5114
    %5442 = vmatprep.subr.mxu0 %v5119
    %5443 = vmatpush1.msra.mxu0 %v5118
    %5444 = vmatprep.subr.mxu0 %v5123
    %5445 = vmatpush1.msra.mxu0 %v5122
    %5446 = vmatprep.subr.mxu0 %v5127
    %5447 = vmatpush1.msra.mxu0 %v5126
    %5448 = vmatprep.subr.mxu0 %v5131
    %5449 = vmatpush1.msra.mxu0 %v5130
    %5450 = vmatprep.subr.mxu0 %v5135
    %5451 = vmatpush1.msra.mxu0 %v5134
    %5452 = vmatprep.subr.mxu0 %v5139
    %5453 = vmatpush1.msra.mxu0 %v5138
    %5454 = vmatprep.subr.mxu0 %v5143
    %5455 = vmatpush1.msra.mxu0 %v5142
    %5456 = vmatprep.subr.mxu0 %v5147
    %5457 = vmatpush1.msra.mxu0 %v5146
    %5458 = vmatprep.subr.mxu0 0.0
    %5459 = vmatpush1.msra.mxu0 0.0
    %5460 = vmatprep.subr.mxu0 0.0
    %5461 = vmatpush1.msra.mxu0 0.0
    %5462 = vmatprep.subr.mxu0 0.0
    %5463 = vmatpush1.msra.mxu0 0.0
    %5464 = vmatprep.subr.mxu0 0.0
    %5465 = vmatpush1.msra.mxu0 0.0
    %5466 = vmatprep.subr.mxu0 0.0
    %5467 = vmatpush1.msra.mxu0 0.0
    %5468 = vmatprep.subr.mxu0 0.0
    %5469 = vmatpush1.msra.mxu0 0.0
    %5470 = vmatprep.subr.mxu0 0.0
    %5471 = vmatpush1.msra.mxu0 0.0
    %5472 = vmatprep.subr.mxu0 0.0
    %5473 = vmatpush1.msra.mxu0 0.0
    %5474 = vmatprep.subr.mxu0 0.0
    %5475 = vmatpush1.msra.mxu0 0.0
    %5476 = vmatprep.subr.mxu0 0.0
    %5477 = vmatpush1.msra.mxu0 0.0
    %5478 = vmatprep.subr.mxu0 0.0
    %5479 = vmatpush1.msra.mxu0 0.0
    %5480 = vmatprep.subr.mxu0 0.0
    %5481 = vmatpush1.msra.mxu0 0.0
    %5482 = vmatprep.subr.mxu0 0.0
    %5483 = vmatpush1.msra.mxu0 0.0
    %5484 = vmatprep.subr.mxu0 0.0
    %5485 = vmatpush1.msra.mxu0 0.0
    %5486 = vmatprep.subr.mxu0 0.0
    %5487 = vmatpush1.msra.mxu0 0.0
    %5488 = vmatprep.subr.mxu0 0.0
    %5489 = vmatpush1.msra.mxu0 0.0
    %5490 = vmatprep.mubr.f32.mxu0 0.0
    %5491 = vmatmul.mubr.f32.gmra.mrb[0].mxu0 %v5083
    %v5492 = vpop.f32.mrb[0].mxu0
    %v5493 = vadd.f32 %v5351, %v5492
    %v5494 = vpop.f32.mrb[0].mxu0
    %v5495 = vadd.f32 %v5353, %v5494
    %5496 = vdwg.mxu0
    %v5497 = vadd.f32 %v5422, %v3728
    %v5498 = vadd.f32 %v5424, %v3732
    %v5499 = vadd.f32 %v5493, %v3736
    %v5500 = vadd.f32 %v5495, %v3740
    %v5501 = vxor.u32 %v5497, 2147483648
    %v5502 = vmul.f32 %v5501, 1.442695
    %v5503 = vpow.pop %v5502
    %v5504 = vadd.f32 %v5503, 1.0
    %v5505 = vrcp.pop %v5504
    %v5506 = vmul.f32 1.0, %v5505
    %v5507 = vxor.u32 %v5498, 2147483648
    %v5508 = vmul.f32 %v5507, 1.442695
    %v5509 = vpow.pop %v5508
    %v5510 = vadd.f32 %v5509, 1.0
    %v5511 = vrcp.pop %v5510
    %v5512 = vmul.f32 1.0, %v5511
    %v5513 = vtanh.pop %v5499
    %v5514 = vxor.u32 %v5500, 2147483648
    %v5515 = vmul.f32 %v5514, 1.442695
    %v5516 = vpow.pop %v5515
    %v5517 = vadd.f32 %v5516, 1.0
    %v5518 = vrcp.pop %v5517
    %v5519 = vmul.f32 1.0, %v5518
    %v5520 = vld [vmem:[#allocation4] sm:$0xff]
    %v5521 = vmul.f32 %v5512, %v5520
    %v5522 = vmul.f32 %v5506, %v5513
    %v5523 = vadd.f32 %v5521, %v5522
    %v5524 = vtanh.pop %v5523
    %v5525 = vmul.f32 %v5519, %v5524
    %5526 = vst [vmem:[#allocation4] sm:$0xff] %v5523
    %5527 = vst [vmem:[#allocation3] sm:$0xff] %v5525
    %5528 = vst [vmem:[%s1927] sm:$0xff] %v5525
    %v5529 = vld [vmem:[%s2375] sm:$0xff]
    %v5530 = vld [vmem:[#allocation11] sm:$0xff]
    %v5531 = vld [vmem:[#allocation11 + $0x8] sm:$0xff]
    %v5532 = vld [vmem:[#allocation11 + $0x10] sm:$0xff]
    %v5533 = vld [vmem:[#allocation11 + $0x18] sm:$0xff]
    %v5534 = vld [vmem:[#allocation11 + $0x20] sm:$0xff]
    %v5535 = vld [vmem:[#allocation11 + $0x28] sm:$0xff]
    %v5536 = vld [vmem:[#allocation11 + $0x30] sm:$0xff]
    %v5537 = vld [vmem:[#allocation11 + $0x38] sm:$0xff]
    %v5538 = vld [vmem:[#allocation11 + $0x40] sm:$0xff]
    %v5539 = vld [vmem:[#allocation11 + $0x48] sm:$0xff]
    %v5540 = vld [vmem:[#allocation11 + $0x50] sm:$0xff]
    %v5541 = vld [vmem:[#allocation11 + $0x58] sm:$0xff]
    %v5542 = vld [vmem:[#allocation11 + $0x60] sm:$0xff]
    %v5543 = vld [vmem:[#allocation11 + $0x68] sm:$0xff]
    %v5544 = vld [vmem:[#allocation11 + $0x70] sm:$0xff]
    %v5545 = vld [vmem:[#allocation11 + $0x78] sm:$0xff]
    %v5546 = vld [vmem:[#allocation11 + $0x80] sm:$0xff]
    %v5547 = vld [vmem:[#allocation11 + $0x88] sm:$0xff]
    %v5548 = vld [vmem:[#allocation11 + $0x90] sm:$0xff]
    %v5549 = vld [vmem:[#allocation11 + $0x98] sm:$0xff]
    %v5550 = vld [vmem:[#allocation11 + $0xa0] sm:$0xff]
    %v5551 = vld [vmem:[#allocation11 + $0xa8] sm:$0xff]
    %v5552 = vld [vmem:[#allocation11 + $0xb0] sm:$0xff]
    %v5553 = vld [vmem:[#allocation11 + $0xb8] sm:$0xff]
    %v5554 = vld [vmem:[#allocation11 + $0xc0] sm:$0xff]
    %v5555 = vld [vmem:[#allocation11 + $0xc8] sm:$0xff]
    %v5556 = vld [vmem:[#allocation11 + $0xd0] sm:$0xff]
    %v5557 = vld [vmem:[#allocation11 + $0xd8] sm:$0xff]
    %v5558 = vld [vmem:[#allocation11 + $0xe0] sm:$0xff]
    %v5559 = vld [vmem:[#allocation11 + $0xe8] sm:$0xff]
    %v5560 = vld [vmem:[#allocation11 + $0xf0] sm:$0xff]
    %v5561 = vld [vmem:[#allocation11 + $0xf8] sm:$0xff]
    %v5562 = vld [vmem:[#allocation11 + $0x100] sm:$0xff]
    %v5563 = vld [vmem:[#allocation11 + $0x108] sm:$0xff]
    %v5564 = vld [vmem:[#allocation11 + $0x110] sm:$0xff]
    %v5565 = vld [vmem:[#allocation11 + $0x118] sm:$0xff]
    %v5566 = vld [vmem:[#allocation11 + $0x120] sm:$0xff]
    %v5567 = vld [vmem:[#allocation11 + $0x128] sm:$0xff]
    %v5568 = vld [vmem:[#allocation11 + $0x130] sm:$0xff]
    %v5569 = vld [vmem:[#allocation11 + $0x138] sm:$0xff]
    %v5570 = vld [vmem:[#allocation11 + $0x140] sm:$0xff]
    %v5571 = vld [vmem:[#allocation11 + $0x148] sm:$0xff]
    %v5572 = vld [vmem:[#allocation11 + $0x150] sm:$0xff]
    %v5573 = vld [vmem:[#allocation11 + $0x158] sm:$0xff]
    %v5574 = vld [vmem:[#allocation11 + $0x160] sm:$0xff]
    %v5575 = vld [vmem:[#allocation11 + $0x168] sm:$0xff]
    %v5576 = vld [vmem:[#allocation11 + $0x170] sm:$0xff]
    %v5577 = vld [vmem:[#allocation11 + $0x178] sm:$0xff]
    %v5578 = vld [vmem:[#allocation11 + $0x180] sm:$0xff]
    %v5579 = vld [vmem:[#allocation11 + $0x188] sm:$0xff]
    %v5580 = vld [vmem:[#allocation11 + $0x190] sm:$0xff]
    %v5581 = vld [vmem:[#allocation11 + $0x198] sm:$0xff]
    %v5582 = vld [vmem:[#allocation11 + $0x1a0] sm:$0xff]
    %v5583 = vld [vmem:[#allocation11 + $0x1a8] sm:$0xff]
    %v5584 = vld [vmem:[#allocation11 + $0x1b0] sm:$0xff]
    %v5585 = vld [vmem:[#allocation11 + $0x1b8] sm:$0xff]
    %v5586 = vld [vmem:[#allocation11 + $0x1c0] sm:$0xff]
    %v5587 = vld [vmem:[#allocation11 + $0x1c8] sm:$0xff]
    %v5588 = vld [vmem:[#allocation11 + $0x1d0] sm:$0xff]
    %v5589 = vld [vmem:[#allocation11 + $0x1d8] sm:$0xff]
    %v5590 = vld [vmem:[#allocation11 + $0x1e0] sm:$0xff]
    %v5591 = vld [vmem:[#allocation11 + $0x1e8] sm:$0xff]
    %v5592 = vld [vmem:[#allocation11 + $0x1f0] sm:$0xff]
    %v5593 = vld [vmem:[#allocation11 + $0x1f8] sm:$0xff]
    %v5594 = vld [vmem:[#allocation3] sm:$0xff]
    %v5595 = vld [vmem:[#allocation13] sm:$0xff]
    %v5596 = vld [vmem:[#allocation13 + $0x8] sm:$0xff]
    %v5597 = vld [vmem:[#allocation13 + $0x10] sm:$0xff]
    %v5598 = vld [vmem:[#allocation13 + $0x18] sm:$0xff]
    %v5599 = vld [vmem:[#allocation13 + $0x20] sm:$0xff]
    %v5600 = vld [vmem:[#allocation13 + $0x28] sm:$0xff]
    %v5601 = vld [vmem:[#allocation13 + $0x30] sm:$0xff]
    %v5602 = vld [vmem:[#allocation13 + $0x38] sm:$0xff]
    %v5603 = vld [vmem:[#allocation13 + $0x40] sm:$0xff]
    %v5604 = vld [vmem:[#allocation13 + $0x48] sm:$0xff]
    %v5605 = vld [vmem:[#allocation13 + $0x50] sm:$0xff]
    %v5606 = vld [vmem:[#allocation13 + $0x58] sm:$0xff]
    %v5607 = vld [vmem:[#allocation13 + $0x60] sm:$0xff]
    %v5608 = vld [vmem:[#allocation13 + $0x68] sm:$0xff]
    %v5609 = vld [vmem:[#allocation13 + $0x70] sm:$0xff]
    %v5610 = vld [vmem:[#allocation13 + $0x78] sm:$0xff]
    %v5611 = vld [vmem:[#allocation13 + $0x80] sm:$0xff]
    %v5612 = vld [vmem:[#allocation13 + $0x88] sm:$0xff]
    %v5613 = vld [vmem:[#allocation13 + $0x90] sm:$0xff]
    %v5614 = vld [vmem:[#allocation13 + $0x98] sm:$0xff]
    %v5615 = vld [vmem:[#allocation13 + $0xa0] sm:$0xff]
    %v5616 = vld [vmem:[#allocation13 + $0xa8] sm:$0xff]
    %v5617 = vld [vmem:[#allocation13 + $0xb0] sm:$0xff]
    %v5618 = vld [vmem:[#allocation13 + $0xb8] sm:$0xff]
    %v5619 = vld [vmem:[#allocation13 + $0xc0] sm:$0xff]
    %v5620 = vld [vmem:[#allocation13 + $0xc8] sm:$0xff]
    %v5621 = vld [vmem:[#allocation13 + $0xd0] sm:$0xff]
    %v5622 = vld [vmem:[#allocation13 + $0xd8] sm:$0xff]
    %v5623 = vld [vmem:[#allocation13 + $0xe0] sm:$0xff]
    %v5624 = vld [vmem:[#allocation13 + $0xe8] sm:$0xff]
    %v5625 = vld [vmem:[#allocation13 + $0xf0] sm:$0xff]
    %v5626 = vld [vmem:[#allocation13 + $0xf8] sm:$0xff]
    %v5627 = vld [vmem:[#allocation13 + $0x100] sm:$0xff]
    %v5628 = vld [vmem:[#allocation13 + $0x108] sm:$0xff]
    %v5629 = vld [vmem:[#allocation13 + $0x110] sm:$0xff]
    %v5630 = vld [vmem:[#allocation13 + $0x118] sm:$0xff]
    %v5631 = vld [vmem:[#allocation13 + $0x120] sm:$0xff]
    %v5632 = vld [vmem:[#allocation13 + $0x128] sm:$0xff]
    %v5633 = vld [vmem:[#allocation13 + $0x130] sm:$0xff]
    %v5634 = vld [vmem:[#allocation13 + $0x138] sm:$0xff]
    %v5635 = vld [vmem:[#allocation13 + $0x140] sm:$0xff]
    %v5636 = vld [vmem:[#allocation13 + $0x148] sm:$0xff]
    %v5637 = vld [vmem:[#allocation13 + $0x150] sm:$0xff]
    %v5638 = vld [vmem:[#allocation13 + $0x158] sm:$0xff]
    %v5639 = vld [vmem:[#allocation13 + $0x160] sm:$0xff]
    %v5640 = vld [vmem:[#allocation13 + $0x168] sm:$0xff]
    %v5641 = vld [vmem:[#allocation13 + $0x170] sm:$0xff]
    %v5642 = vld [vmem:[#allocation13 + $0x178] sm:$0xff]
    %v5643 = vld [vmem:[#allocation13 + $0x180] sm:$0xff]
    %v5644 = vld [vmem:[#allocation13 + $0x188] sm:$0xff]
    %v5645 = vld [vmem:[#allocation13 + $0x190] sm:$0xff]
    %v5646 = vld [vmem:[#allocation13 + $0x198] sm:$0xff]
    %v5647 = vld [vmem:[#allocation13 + $0x1a0] sm:$0xff]
    %v5648 = vld [vmem:[#allocation13 + $0x1a8] sm:$0xff]
    %v5649 = vld [vmem:[#allocation13 + $0x1b0] sm:$0xff]
    %v5650 = vld [vmem:[#allocation13 + $0x1b8] sm:$0xff]
    %v5651 = vld [vmem:[#allocation13 + $0x1c0] sm:$0xff]
    %v5652 = vld [vmem:[#allocation13 + $0x1c8] sm:$0xff]
    %v5653 = vld [vmem:[#allocation13 + $0x1d0] sm:$0xff]
    %v5654 = vld [vmem:[#allocation13 + $0x1d8] sm:$0xff]
    %v5655 = vld [vmem:[#allocation13 + $0x1e0] sm:$0xff]
    %v5656 = vld [vmem:[#allocation13 + $0x1e8] sm:$0xff]
    %v5657 = vld [vmem:[#allocation13 + $0x1f0] sm:$0xff]
    %v5658 = vld [vmem:[#allocation13 + $0x1f8] sm:$0xff]
    %5659 = vmatprep.subr.mxu0 %v5596
    %5660 = vmatpush1.msra.mxu0 %v5595
    %5661 = vmatprep.subr.mxu0 %v5600
    %5662 = vmatpush1.msra.mxu0 %v5599
    %5663 = vmatprep.subr.mxu0 %v5604
    %5664 = vmatpush1.msra.mxu0 %v5603
    %5665 = vmatprep.subr.mxu0 %v5608
    %5666 = vmatpush1.msra.mxu0 %v5607
    %5667 = vmatprep.subr.mxu0 %v5612
    %5668 = vmatpush1.msra.mxu0 %v5611
    %5669 = vmatprep.subr.mxu0 %v5616
    %5670 = vmatpush1.msra.mxu0 %v5615
    %5671 = vmatprep.subr.mxu0 %v5620
    %5672 = vmatpush1.msra.mxu0 %v5619
    %5673 = vmatprep.subr.mxu0 %v5624
    %5674 = vmatpush1.msra.mxu0 %v5623
    %5675 = vmatprep.subr.mxu0 %v5628
    %5676 = vmatpush1.msra.mxu0 %v5627
    %5677 = vmatprep.subr.mxu0 %v5632
    %5678 = vmatpush1.msra.mxu0 %v5631
    %5679 = vmatprep.subr.mxu0 %v5636
    %5680 = vmatpush1.msra.mxu0 %v5635
    %5681 = vmatprep.subr.mxu0 %v5640
    %5682 = vmatpush1.msra.mxu0 %v5639
    %5683 = vmatprep.subr.mxu0 %v5644
    %5684 = vmatpush1.msra.mxu0 %v5643
    %5685 = vmatprep.subr.mxu0 %v5648
    %5686 = vmatpush1.msra.mxu0 %v5647
    %5687 = vmatprep.subr.mxu0 %v5652
    %5688 = vmatpush1.msra.mxu0 %v5651
    %5689 = vmatprep.subr.mxu0 %v5656
    %5690 = vmatpush1.msra.mxu0 %v5655
    %5691 = vmatprep.subr.mxu0 0.0
    %5692 = vmatpush1.msra.mxu0 0.0
    %5693 = vmatprep.subr.mxu0 0.0
    %5694 = vmatpush1.msra.mxu0 0.0
    %5695 = vmatprep.subr.mxu0 0.0
    %5696 = vmatpush1.msra.mxu0 0.0
    %5697 = vmatprep.subr.mxu0 0.0
    %5698 = vmatpush1.msra.mxu0 0.0
    %5699 = vmatprep.subr.mxu0 0.0
    %5700 = vmatpush1.msra.mxu0 0.0
    %5701 = vmatprep.subr.mxu0 0.0
    %5702 = vmatpush1.msra.mxu0 0.0
    %5703 = vmatprep.subr.mxu0 0.0
    %5704 = vmatpush1.msra.mxu0 0.0
    %5705 = vmatprep.subr.mxu0 0.0
    %5706 = vmatpush1.msra.mxu0 0.0
    %5707 = vmatprep.subr.mxu0 0.0
    %5708 = vmatpush1.msra.mxu0 0.0
    %5709 = vmatprep.subr.mxu0 0.0
    %5710 = vmatpush1.msra.mxu0 0.0
    %5711 = vmatprep.subr.mxu0 0.0
    %5712 = vmatpush1.msra.mxu0 0.0
    %5713 = vmatprep.subr.mxu0 0.0
    %5714 = vmatpush1.msra.mxu0 0.0
    %5715 = vmatprep.subr.mxu0 0.0
    %5716 = vmatpush1.msra.mxu0 0.0
    %5717 = vmatprep.subr.mxu0 0.0
    %5718 = vmatpush1.msra.mxu0 0.0
    %5719 = vmatprep.subr.mxu0 0.0
    %5720 = vmatpush1.msra.mxu0 0.0
    %5721 = vmatprep.subr.mxu0 0.0
    %5722 = vmatpush1.msra.mxu0 0.0
    %5723 = vmatprep.mubr.f32.mxu0 0.0
    %5724 = vmatmul.mubr.f32.gmra.mrb[0].mxu0 %v5594
    %v5725 = vpop.f32.mrb[0].mxu0
    %v5726 = vadd.f32 0.0, %v5725
    %v5727 = vpop.f32.mrb[0].mxu0
    %v5728 = vadd.f32 0.0, %v5727
    %5729 = vdwg.mxu0
    %5730 = vmatprep.subr.mxu0 %v5598
    %5731 = vmatpush1.msra.mxu0 %v5597
    %5732 = vmatprep.subr.mxu0 %v5602
    %5733 = vmatpush1.msra.mxu0 %v5601
    %5734 = vmatprep.subr.mxu0 %v5606
    %5735 = vmatpush1.msra.mxu0 %v5605
    %5736 = vmatprep.subr.mxu0 %v5610
    %5737 = vmatpush1.msra.mxu0 %v5609
    %5738 = vmatprep.subr.mxu0 %v5614
    %5739 = vmatpush1.msra.mxu0 %v5613
    %5740 = vmatprep.subr.mxu0 %v5618
    %5741 = vmatpush1.msra.mxu0 %v5617
    %5742 = vmatprep.subr.mxu0 %v5622
    %5743 = vmatpush1.msra.mxu0 %v5621
    %5744 = vmatprep.subr.mxu0 %v5626
    %5745 = vmatpush1.msra.mxu0 %v5625
    %5746 = vmatprep.subr.mxu0 %v5630
    %5747 = vmatpush1.msra.mxu0 %v5629
    %5748 = vmatprep.subr.mxu0 %v5634
    %5749 = vmatpush1.msra.mxu0 %v5633
    %5750 = vmatprep.subr.mxu0 %v5638
    %5751 = vmatpush1.msra.mxu0 %v5637
    %5752 = vmatprep.subr.mxu0 %v5642
    %5753 = vmatpush1.msra.mxu0 %v5641
    %5754 = vmatprep.subr.mxu0 %v5646
    %5755 = vmatpush1.msra.mxu0 %v5645
    %5756 = vmatprep.subr.mxu0 %v5650
    %5757 = vmatpush1.msra.mxu0 %v5649
    %5758 = vmatprep.subr.mxu0 %v5654
    %5759 = vmatpush1.msra.mxu0 %v5653
    %5760 = vmatprep.subr.mxu0 %v5658
    %5761 = vmatpush1.msra.mxu0 %v5657
    %5762 = vmatprep.subr.mxu0 0.0
    %5763 = vmatpush1.msra.mxu0 0.0
    %5764 = vmatprep.subr.mxu0 0.0
    %5765 = vmatpush1.msra.mxu0 0.0
    %5766 = vmatprep.subr.mxu0 0.0
    %5767 = vmatpush1.msra.mxu0 0.0
    %5768 = vmatprep.subr.mxu0 0.0
    %5769 = vmatpush1.msra.mxu0 0.0
    %5770 = vmatprep.subr.mxu0 0.0
    %5771 = vmatpush1.msra.mxu0 0.0
    %5772 = vmatprep.subr.mxu0 0.0
    %5773 = vmatpush1.msra.mxu0 0.0
    %5774 = vmatprep.subr.mxu0 0.0
    %5775 = vmatpush1.msra.mxu0 0.0
    %5776 = vmatprep.subr.mxu0 0.0
    %5777 = vmatpush1.msra.mxu0 0.0
    %5778 = vmatprep.subr.mxu0 0.0
    %5779 = vmatpush1.msra.mxu0 0.0
    %5780 = vmatprep.subr.mxu0 0.0
    %5781 = vmatpush1.msra.mxu0 0.0
    %5782 = vmatprep.subr.mxu0 0.0
    %5783 = vmatpush1.msra.mxu0 0.0
    %5784 = vmatprep.subr.mxu0 0.0
    %5785 = vmatpush1.msra.mxu0 0.0
    %5786 = vmatprep.subr.mxu0 0.0
    %5787 = vmatpush1.msra.mxu0 0.0
    %5788 = vmatprep.subr.mxu0 0.0
    %5789 = vmatpush1.msra.mxu0 0.0
    %5790 = vmatprep.subr.mxu0 0.0
    %5791 = vmatpush1.msra.mxu0 0.0
    %5792 = vmatprep.subr.mxu0 0.0
    %5793 = vmatpush1.msra.mxu0 0.0
    %5794 = vmatprep.mubr.f32.mxu0 0.0
    %5795 = vmatmul.mubr.f32.gmra.mrb[0].mxu0 %v5594
    %v5796 = vpop.f32.mrb[0].mxu0
    %v5797 = vadd.f32 0.0, %v5796
    %v5798 = vpop.f32.mrb[0].mxu0
    %v5799 = vadd.f32 0.0, %v5798
    %5800 = vdwg.mxu0
    %5801 = vmatprep.subr.mxu0 %v5531
    %5802 = vmatpush1.msra.mxu0 %v5530
    %5803 = vmatprep.subr.mxu0 %v5535
    %5804 = vmatpush1.msra.mxu0 %v5534
    %5805 = vmatprep.subr.mxu0 %v5539
    %5806 = vmatpush1.msra.mxu0 %v5538
    %5807 = vmatprep.subr.mxu0 %v5543
    %5808 = vmatpush1.msra.mxu0 %v5542
    %5809 = vmatprep.subr.mxu0 %v5547
    %5810 = vmatpush1.msra.mxu0 %v5546
    %5811 = vmatprep.subr.mxu0 %v5551
    %5812 = vmatpush1.msra.mxu0 %v5550
    %5813 = vmatprep.subr.mxu0 %v5555
    %5814 = vmatpush1.msra.mxu0 %v5554
    %5815 = vmatprep.subr.mxu0 %v5559
    %5816 = vmatpush1.msra.mxu0 %v5558
    %5817 = vmatprep.subr.mxu0 %v5563
    %5818 = vmatpush1.msra.mxu0 %v5562
    %5819 = vmatprep.subr.mxu0 %v5567
    %5820 = vmatpush1.msra.mxu0 %v5566
    %5821 = vmatprep.subr.mxu0 %v5571
    %5822 = vmatpush1.msra.mxu0 %v5570
    %5823 = vmatprep.subr.mxu0 %v5575
    %5824 = vmatpush1.msra.mxu0 %v5574
    %5825 = vmatprep.subr.mxu0 %v5579
    %5826 = vmatpush1.msra.mxu0 %v5578
    %5827 = vmatprep.subr.mxu0 %v5583
    %5828 = vmatpush1.msra.mxu0 %v5582
    %5829 = vmatprep.subr.mxu0 %v5587
    %5830 = vmatpush1.msra.mxu0 %v5586
    %5831 = vmatprep.subr.mxu0 %v5591
    %5832 = vmatpush1.msra.mxu0 %v5590
    %5833 = vmatprep.subr.mxu0 0.0
    %5834 = vmatpush1.msra.mxu0 0.0
    %5835 = vmatprep.subr.mxu0 0.0
    %5836 = vmatpush1.msra.mxu0 0.0
    %5837 = vmatprep.subr.mxu0 0.0
    %5838 = vmatpush1.msra.mxu0 0.0
    %5839 = vmatprep.subr.mxu0 0.0
    %5840 = vmatpush1.msra.mxu0 0.0
    %5841 = vmatprep.subr.mxu0 0.0
    %5842 = vmatpush1.msra.mxu0 0.0
    %5843 = vmatprep.subr.mxu0 0.0
    %5844 = vmatpush1.msra.mxu0 0.0
    %5845 = vmatprep.subr.mxu0 0.0
    %5846 = vmatpush1.msra.mxu0 0.0
    %5847 = vmatprep.subr.mxu0 0.0
    %5848 = vmatpush1.msra.mxu0 0.0
    %5849 = vmatprep.subr.mxu0 0.0
    %5850 = vmatpush1.msra.mxu0 0.0
    %5851 = vmatprep.subr.mxu0 0.0
    %5852 = vmatpush1.msra.mxu0 0.0
    %5853 = vmatprep.subr.mxu0 0.0
    %5854 = vmatpush1.msra.mxu0 0.0
    %5855 = vmatprep.subr.mxu0 0.0
    %5856 = vmatpush1.msra.mxu0 0.0
    %5857 = vmatprep.subr.mxu0 0.0
    %5858 = vmatpush1.msra.mxu0 0.0
    %5859 = vmatprep.subr.mxu0 0.0
    %5860 = vmatpush1.msra.mxu0 0.0
    %5861 = vmatprep.subr.mxu0 0.0
    %5862 = vmatpush1.msra.mxu0 0.0
    %5863 = vmatprep.subr.mxu0 0.0
    %5864 = vmatpush1.msra.mxu0 0.0
    %5865 = vmatprep.mubr.f32.mxu0 0.0
    %5866 = vmatmul.mubr.f32.gmra.mrb[0].mxu0 %v5529
    %v5867 = vpop.f32.mrb[0].mxu0
    %v5868 = vadd.f32 %v5726, %v5867
    %v5869 = vpop.f32.mrb[0].mxu0
    %v5870 = vadd.f32 %v5728, %v5869
    %5871 = vdwg.mxu0
    %5872 = vmatprep.subr.mxu0 %v5533
    %5873 = vmatpush1.msra.mxu0 %v5532
    %5874 = vmatprep.subr.mxu0 %v5537
    %5875 = vmatpush1.msra.mxu0 %v5536
    %5876 = vmatprep.subr.mxu0 %v5541
    %5877 = vmatpush1.msra.mxu0 %v5540
    %5878 = vmatprep.subr.mxu0 %v5545
    %5879 = vmatpush1.msra.mxu0 %v5544
    %5880 = vmatprep.subr.mxu0 %v5549
    %5881 = vmatpush1.msra.mxu0 %v5548
    %5882 = vmatprep.subr.mxu0 %v5553
    %5883 = vmatpush1.msra.mxu0 %v5552
    %5884 = vmatprep.subr.mxu0 %v5557
    %5885 = vmatpush1.msra.mxu0 %v5556
    %5886 = vmatprep.subr.mxu0 %v5561
    %5887 = vmatpush1.msra.mxu0 %v5560
    %5888 = vmatprep.subr.mxu0 %v5565
    %5889 = vmatpush1.msra.mxu0 %v5564
    %5890 = vmatprep.subr.mxu0 %v5569
    %5891 = vmatpush1.msra.mxu0 %v5568
    %5892 = vmatprep.subr.mxu0 %v5573
    %5893 = vmatpush1.msra.mxu0 %v5572
    %5894 = vmatprep.subr.mxu0 %v5577
    %5895 = vmatpush1.msra.mxu0 %v5576
    %5896 = vmatprep.subr.mxu0 %v5581
    %5897 = vmatpush1.msra.mxu0 %v5580
    %5898 = vmatprep.subr.mxu0 %v5585
    %5899 = vmatpush1.msra.mxu0 %v5584
    %5900 = vmatprep.subr.mxu0 %v5589
    %5901 = vmatpush1.msra.mxu0 %v5588
    %5902 = vmatprep.subr.mxu0 %v5593
    %5903 = vmatpush1.msra.mxu0 %v5592
    %5904 = vmatprep.subr.mxu0 0.0
    %5905 = vmatpush1.msra.mxu0 0.0
    %5906 = vmatprep.subr.mxu0 0.0
    %5907 = vmatpush1.msra.mxu0 0.0
    %5908 = vmatprep.subr.mxu0 0.0
    %5909 = vmatpush1.msra.mxu0 0.0
    %5910 = vmatprep.subr.mxu0 0.0
    %5911 = vmatpush1.msra.mxu0 0.0
    %5912 = vmatprep.subr.mxu0 0.0
    %5913 = vmatpush1.msra.mxu0 0.0
    %5914 = vmatprep.subr.mxu0 0.0
    %5915 = vmatpush1.msra.mxu0 0.0
    %5916 = vmatprep.subr.mxu0 0.0
    %5917 = vmatpush1.msra.mxu0 0.0
    %5918 = vmatprep.subr.mxu0 0.0
    %5919 = vmatpush1.msra.mxu0 0.0
    %5920 = vmatprep.subr.mxu0 0.0
    %5921 = vmatpush1.msra.mxu0 0.0
    %5922 = vmatprep.subr.mxu0 0.0
    %5923 = vmatpush1.msra.mxu0 0.0
    %5924 = vmatprep.subr.mxu0 0.0
    %5925 = vmatpush1.msra.mxu0 0.0
    %5926 = vmatprep.subr.mxu0 0.0
    %5927 = vmatpush1.msra.mxu0 0.0
    %5928 = vmatprep.subr.mxu0 0.0
    %5929 = vmatpush1.msra.mxu0 0.0
    %5930 = vmatprep.subr.mxu0 0.0
    %5931 = vmatpush1.msra.mxu0 0.0
    %5932 = vmatprep.subr.mxu0 0.0
    %5933 = vmatpush1.msra.mxu0 0.0
    %5934 = vmatprep.subr.mxu0 0.0
    %5935 = vmatpush1.msra.mxu0 0.0
    %5936 = vmatprep.mubr.f32.mxu0 0.0
    %5937 = vmatmul.mubr.f32.gmra.mrb[0].mxu0 %v5529
    %v5938 = vpop.f32.mrb[0].mxu0
    %v5939 = vadd.f32 %v5797, %v5938
    %v5940 = vpop.f32.mrb[0].mxu0
    %v5941 = vadd.f32 %v5799, %v5940
    %5942 = vdwg.mxu0
    %v5943 = vadd.f32 %v5868, %v3728
    %v5944 = vadd.f32 %v5870, %v3732
    %v5945 = vadd.f32 %v5939, %v3736
    %v5946 = vadd.f32 %v5941, %v3740
    %v5947 = vxor.u32 %v5943, 2147483648
    %v5948 = vmul.f32 %v5947, 1.442695
    %v5949 = vpow.pop %v5948
    %v5950 = vadd.f32 %v5949, 1.0
    %v5951 = vrcp.pop %v5950
    %v5952 = vmul.f32 1.0, %v5951
    %v5953 = vxor.u32 %v5944, 2147483648
    %v5954 = vmul.f32 %v5953, 1.442695
    %v5955 = vpow.pop %v5954
    %v5956 = vadd.f32 %v5955, 1.0
    %v5957 = vrcp.pop %v5956
    %v5958 = vmul.f32 1.0, %v5957
    %v5959 = vtanh.pop %v5945
    %v5960 = vxor.u32 %v5946, 2147483648
    %v5961 = vmul.f32 %v5960, 1.442695
    %v5962 = vpow.pop %v5961
    %v5963 = vadd.f32 %v5962, 1.0
    %v5964 = vrcp.pop %v5963
    %v5965 = vmul.f32 1.0, %v5964
    %v5966 = vld [vmem:[#allocation4] sm:$0xff]
    %v5967 = vmul.f32 %v5958, %v5966
    %v5968 = vmul.f32 %v5952, %v5959
    %v5969 = vadd.f32 %v5967, %v5968
    %v5970 = vtanh.pop %v5969
    %v5971 = vmul.f32 %v5965, %v5970
    %5972 = vst [vmem:[#allocation4] sm:$0xff] %v5969
    %5973 = vst [vmem:[#allocation3] sm:$0xff] %v5971
    %5974 = vst [vmem:[%s2375] sm:$0xff] %v5971
    %v5975 = vld [vmem:[%s2823] sm:$0xff]
    %v5976 = vld [vmem:[#allocation11] sm:$0xff]
    %v5977 = vld [vmem:[#allocation11 + $0x8] sm:$0xff]
    %v5978 = vld [vmem:[#allocation11 + $0x10] sm:$0xff]
    %v5979 = vld [vmem:[#allocation11 + $0x18] sm:$0xff]
    %v5980 = vld [vmem:[#allocation11 + $0x20] sm:$0xff]
    %v5981 = vld [vmem:[#allocation11 + $0x28] sm:$0xff]
    %v5982 = vld [vmem:[#allocation11 + $0x30] sm:$0xff]
    %v5983 = vld [vmem:[#allocation11 + $0x38] sm:$0xff]
    %v5984 = vld [vmem:[#allocation11 + $0x40] sm:$0xff]
    %v5985 = vld [vmem:[#allocation11 + $0x48] sm:$0xff]
    %v5986 = vld [vmem:[#allocation11 + $0x50] sm:$0xff]
    %v5987 = vld [vmem:[#allocation11 + $0x58] sm:$0xff]
    %v5988 = vld [vmem:[#allocation11 + $0x60] sm:$0xff]
    %v5989 = vld [vmem:[#allocation11 + $0x68] sm:$0xff]
    %v5990 = vld [vmem:[#allocation11 + $0x70] sm:$0xff]
    %v5991 = vld [vmem:[#allocation11 + $0x78] sm:$0xff]
    %v5992 = vld [vmem:[#allocation11 + $0x80] sm:$0xff]
    %v5993 = vld [vmem:[#allocation11 + $0x88] sm:$0xff]
    %v5994 = vld [vmem:[#allocation11 + $0x90] sm:$0xff]
    %v5995 = vld [vmem:[#allocation11 + $0x98] sm:$0xff]
    %v5996 = vld [vmem:[#allocation11 + $0xa0] sm:$0xff]
    %v5997 = vld [vmem:[#allocation11 + $0xa8] sm:$0xff]
    %v5998 = vld [vmem:[#allocation11 + $0xb0] sm:$0xff]
    %v5999 = vld [vmem:[#allocation11 + $0xb8] sm:$0xff]
    %v6000 = vld [vmem:[#allocation11 + $0xc0] sm:$0xff]
    %v6001 = vld [vmem:[#allocation11 + $0xc8] sm:$0xff]
    %v6002 = vld [vmem:[#allocation11 + $0xd0] sm:$0xff]
    %v6003 = vld [vmem:[#allocation11 + $0xd8] sm:$0xff]
    %v6004 = vld [vmem:[#allocation11 + $0xe0] sm:$0xff]
    %v6005 = vld [vmem:[#allocation11 + $0xe8] sm:$0xff]
    %v6006 = vld [vmem:[#allocation11 + $0xf0] sm:$0xff]
    %v6007 = vld [vmem:[#allocation11 + $0xf8] sm:$0xff]
    %v6008 = vld [vmem:[#allocation11 + $0x100] sm:$0xff]
    %v6009 = vld [vmem:[#allocation11 + $0x108] sm:$0xff]
    %v6010 = vld [vmem:[#allocation11 + $0x110] sm:$0xff]
    %v6011 = vld [vmem:[#allocation11 + $0x118] sm:$0xff]
    %v6012 = vld [vmem:[#allocation11 + $0x120] sm:$0xff]
    %v6013 = vld [vmem:[#allocation11 + $0x128] sm:$0xff]
    %v6014 = vld [vmem:[#allocation11 + $0x130] sm:$0xff]
    %v6015 = vld [vmem:[#allocation11 + $0x138] sm:$0xff]
    %v6016 = vld [vmem:[#allocation11 + $0x140] sm:$0xff]
    %v6017 = vld [vmem:[#allocation11 + $0x148] sm:$0xff]
    %v6018 = vld [vmem:[#allocation11 + $0x150] sm:$0xff]
    %v6019 = vld [vmem:[#allocation11 + $0x158] sm:$0xff]
    %v6020 = vld [vmem:[#allocation11 + $0x160] sm:$0xff]
    %v6021 = vld [vmem:[#allocation11 + $0x168] sm:$0xff]
    %v6022 = vld [vmem:[#allocation11 + $0x170] sm:$0xff]
    %v6023 = vld [vmem:[#allocation11 + $0x178] sm:$0xff]
    %v6024 = vld [vmem:[#allocation11 + $0x180] sm:$0xff]
    %v6025 = vld [vmem:[#allocation11 + $0x188] sm:$0xff]
    %v6026 = vld [vmem:[#allocation11 + $0x190] sm:$0xff]
    %v6027 = vld [vmem:[#allocation11 + $0x198] sm:$0xff]
    %v6028 = vld [vmem:[#allocation11 + $0x1a0] sm:$0xff]
    %v6029 = vld [vmem:[#allocation11 + $0x1a8] sm:$0xff]
    %v6030 = vld [vmem:[#allocation11 + $0x1b0] sm:$0xff]
    %v6031 = vld [vmem:[#allocation11 + $0x1b8] sm:$0xff]
    %v6032 = vld [vmem:[#allocation11 + $0x1c0] sm:$0xff]
    %v6033 = vld [vmem:[#allocation11 + $0x1c8] sm:$0xff]
    %v6034 = vld [vmem:[#allocation11 + $0x1d0] sm:$0xff]
    %v6035 = vld [vmem:[#allocation11 + $0x1d8] sm:$0xff]
    %v6036 = vld [vmem:[#allocation11 + $0x1e0] sm:$0xff]
    %v6037 = vld [vmem:[#allocation11 + $0x1e8] sm:$0xff]
    %v6038 = vld [vmem:[#allocation11 + $0x1f0] sm:$0xff]
    %v6039 = vld [vmem:[#allocation11 + $0x1f8] sm:$0xff]
    %v6040 = vld [vmem:[#allocation3] sm:$0xff]
    %v6041 = vld [vmem:[#allocation13] sm:$0xff]
    %v6042 = vld [vmem:[#allocation13 + $0x8] sm:$0xff]
    %v6043 = vld [vmem:[#allocation13 + $0x10] sm:$0xff]
    %v6044 = vld [vmem:[#allocation13 + $0x18] sm:$0xff]
    %v6045 = vld [vmem:[#allocation13 + $0x20] sm:$0xff]
    %v6046 = vld [vmem:[#allocation13 + $0x28] sm:$0xff]
    %v6047 = vld [vmem:[#allocation13 + $0x30] sm:$0xff]
    %v6048 = vld [vmem:[#allocation13 + $0x38] sm:$0xff]
    %v6049 = vld [vmem:[#allocation13 + $0x40] sm:$0xff]
    %v6050 = vld [vmem:[#allocation13 + $0x48] sm:$0xff]
    %v6051 = vld [vmem:[#allocation13 + $0x50] sm:$0xff]
    %v6052 = vld [vmem:[#allocation13 + $0x58] sm:$0xff]
    %v6053 = vld [vmem:[#allocation13 + $0x60] sm:$0xff]
    %v6054 = vld [vmem:[#allocation13 + $0x68] sm:$0xff]
    %v6055 = vld [vmem:[#allocation13 + $0x70] sm:$0xff]
    %v6056 = vld [vmem:[#allocation13 + $0x78] sm:$0xff]
    %v6057 = vld [vmem:[#allocation13 + $0x80] sm:$0xff]
    %v6058 = vld [vmem:[#allocation13 + $0x88] sm:$0xff]
    %v6059 = vld [vmem:[#allocation13 + $0x90] sm:$0xff]
    %v6060 = vld [vmem:[#allocation13 + $0x98] sm:$0xff]
    %v6061 = vld [vmem:[#allocation13 + $0xa0] sm:$0xff]
    %v6062 = vld [vmem:[#allocation13 + $0xa8] sm:$0xff]
    %v6063 = vld [vmem:[#allocation13 + $0xb0] sm:$0xff]
    %v6064 = vld [vmem:[#allocation13 + $0xb8] sm:$0xff]
    %v6065 = vld [vmem:[#allocation13 + $0xc0] sm:$0xff]
    %v6066 = vld [vmem:[#allocation13 + $0xc8] sm:$0xff]
    %v6067 = vld [vmem:[#allocation13 + $0xd0] sm:$0xff]
    %v6068 = vld [vmem:[#allocation13 + $0xd8] sm:$0xff]
    %v6069 = vld [vmem:[#allocation13 + $0xe0] sm:$0xff]
    %v6070 = vld [vmem:[#allocation13 + $0xe8] sm:$0xff]
    %v6071 = vld [vmem:[#allocation13 + $0xf0] sm:$0xff]
    %v6072 = vld [vmem:[#allocation13 + $0xf8] sm:$0xff]
    %v6073 = vld [vmem:[#allocation13 + $0x100] sm:$0xff]
    %v6074 = vld [vmem:[#allocation13 + $0x108] sm:$0xff]
    %v6075 = vld [vmem:[#allocation13 + $0x110] sm:$0xff]
    %v6076 = vld [vmem:[#allocation13 + $0x118] sm:$0xff]
    %v6077 = vld [vmem:[#allocation13 + $0x120] sm:$0xff]
    %v6078 = vld [vmem:[#allocation13 + $0x128] sm:$0xff]
    %v6079 = vld [vmem:[#allocation13 + $0x130] sm:$0xff]
    %v6080 = vld [vmem:[#allocation13 + $0x138] sm:$0xff]
    %v6081 = vld [vmem:[#allocation13 + $0x140] sm:$0xff]
    %v6082 = vld [vmem:[#allocation13 + $0x148] sm:$0xff]
    %v6083 = vld [vmem:[#allocation13 + $0x150] sm:$0xff]
    %v6084 = vld [vmem:[#allocation13 + $0x158] sm:$0xff]
    %v6085 = vld [vmem:[#allocation13 + $0x160] sm:$0xff]
    %v6086 = vld [vmem:[#allocation13 + $0x168] sm:$0xff]
    %v6087 = vld [vmem:[#allocation13 + $0x170] sm:$0xff]
    %v6088 = vld [vmem:[#allocation13 + $0x178] sm:$0xff]
    %v6089 = vld [vmem:[#allocation13 + $0x180] sm:$0xff]
    %v6090 = vld [vmem:[#allocation13 + $0x188] sm:$0xff]
    %v6091 = vld [vmem:[#allocation13 + $0x190] sm:$0xff]
    %v6092 = vld [vmem:[#allocation13 + $0x198] sm:$0xff]
    %v6093 = vld [vmem:[#allocation13 + $0x1a0] sm:$0xff]
    %v6094 = vld [vmem:[#allocation13 + $0x1a8] sm:$0xff]
    %v6095 = vld [vmem:[#allocation13 + $0x1b0] sm:$0xff]
    %v6096 = vld [vmem:[#allocation13 + $0x1b8] sm:$0xff]
    %v6097 = vld [vmem:[#allocation13 + $0x1c0] sm:$0xff]
    %v6098 = vld [vmem:[#allocation13 + $0x1c8] sm:$0xff]
    %v6099 = vld [vmem:[#allocation13 + $0x1d0] sm:$0xff]
    %v6100 = vld [vmem:[#allocation13 + $0x1d8] sm:$0xff]
    %v6101 = vld [vmem:[#allocation13 + $0x1e0] sm:$0xff]
    %v6102 = vld [vmem:[#allocation13 + $0x1e8] sm:$0xff]
    %v6103 = vld [vmem:[#allocation13 + $0x1f0] sm:$0xff]
    %v6104 = vld [vmem:[#allocation13 + $0x1f8] sm:$0xff]
    %6105 = vmatprep.subr.mxu0 %v6042
    %6106 = vmatpush1.msra.mxu0 %v6041
    %6107 = vmatprep.subr.mxu0 %v6046
    %6108 = vmatpush1.msra.mxu0 %v6045
    %6109 = vmatprep.subr.mxu0 %v6050
    %6110 = vmatpush1.msra.mxu0 %v6049
    %6111 = vmatprep.subr.mxu0 %v6054
    %6112 = vmatpush1.msra.mxu0 %v6053
    %6113 = vmatprep.subr.mxu0 %v6058
    %6114 = vmatpush1.msra.mxu0 %v6057
    %6115 = vmatprep.subr.mxu0 %v6062
    %6116 = vmatpush1.msra.mxu0 %v6061
    %6117 = vmatprep.subr.mxu0 %v6066
    %6118 = vmatpush1.msra.mxu0 %v6065
    %6119 = vmatprep.subr.mxu0 %v6070
    %6120 = vmatpush1.msra.mxu0 %v6069
    %6121 = vmatprep.subr.mxu0 %v6074
    %6122 = vmatpush1.msra.mxu0 %v6073
    %6123 = vmatprep.subr.mxu0 %v6078
    %6124 = vmatpush1.msra.mxu0 %v6077
    %6125 = vmatprep.subr.mxu0 %v6082
    %6126 = vmatpush1.msra.mxu0 %v6081
    %6127 = vmatprep.subr.mxu0 %v6086
    %6128 = vmatpush1.msra.mxu0 %v6085
    %6129 = vmatprep.subr.mxu0 %v6090
    %6130 = vmatpush1.msra.mxu0 %v6089
    %6131 = vmatprep.subr.mxu0 %v6094
    %6132 = vmatpush1.msra.mxu0 %v6093
    %6133 = vmatprep.subr.mxu0 %v6098
    %6134 = vmatpush1.msra.mxu0 %v6097
    %6135 = vmatprep.subr.mxu0 %v6102
    %6136 = vmatpush1.msra.mxu0 %v6101
    %6137 = vmatprep.subr.mxu0 0.0
    %6138 = vmatpush1.msra.mxu0 0.0
    %6139 = vmatprep.subr.mxu0 0.0
    %6140 = vmatpush1.msra.mxu0 0.0
    %6141 = vmatprep.subr.mxu0 0.0
    %6142 = vmatpush1.msra.mxu0 0.0
    %6143 = vmatprep.subr.mxu0 0.0
    %6144 = vmatpush1.msra.mxu0 0.0
    %6145 = vmatprep.subr.mxu0 0.0
    %6146 = vmatpush1.msra.mxu0 0.0
    %6147 = vmatprep.subr.mxu0 0.0
    %6148 = vmatpush1.msra.mxu0 0.0
    %6149 = vmatprep.subr.mxu0 0.0
    %6150 = vmatpush1.msra.mxu0 0.0
    %6151 = vmatprep.subr.mxu0 0.0
    %6152 = vmatpush1.msra.mxu0 0.0
    %6153 = vmatprep.subr.mxu0 0.0
    %6154 = vmatpush1.msra.mxu0 0.0
    %6155 = vmatprep.subr.mxu0 0.0
    %6156 = vmatpush1.msra.mxu0 0.0
    %6157 = vmatprep.subr.mxu0 0.0
    %6158 = vmatpush1.msra.mxu0 0.0
    %6159 = vmatprep.subr.mxu0 0.0
    %6160 = vmatpush1.msra.mxu0 0.0
    %6161 = vmatprep.subr.mxu0 0.0
    %6162 = vmatpush1.msra.mxu0 0.0
    %6163 = vmatprep.subr.mxu0 0.0
    %6164 = vmatpush1.msra.mxu0 0.0
    %6165 = vmatprep.subr.mxu0 0.0
    %6166 = vmatpush1.msra.mxu0 0.0
    %6167 = vmatprep.subr.mxu0 0.0
    %6168 = vmatpush1.msra.mxu0 0.0
    %6169 = vmatprep.mubr.f32.mxu0 0.0
    %6170 = vmatmul.mubr.f32.gmra.mrb[0].mxu0 %v6040
    %v6171 = vpop.f32.mrb[0].mxu0
    %v6172 = vadd.f32 0.0, %v6171
    %v6173 = vpop.f32.mrb[0].mxu0
    %v6174 = vadd.f32 0.0, %v6173
    %6175 = vdwg.mxu0
    %6176 = vmatprep.subr.mxu0 %v6044
    %6177 = vmatpush1.msra.mxu0 %v6043
    %6178 = vmatprep.subr.mxu0 %v6048
    %6179 = vmatpush1.msra.mxu0 %v6047
    %6180 = vmatprep.subr.mxu0 %v6052
    %6181 = vmatpush1.msra.mxu0 %v6051
    %6182 = vmatprep.subr.mxu0 %v6056
    %6183 = vmatpush1.msra.mxu0 %v6055
    %6184 = vmatprep.subr.mxu0 %v6060
    %6185 = vmatpush1.msra.mxu0 %v6059
    %6186 = vmatprep.subr.mxu0 %v6064
    %6187 = vmatpush1.msra.mxu0 %v6063
    %6188 = vmatprep.subr.mxu0 %v6068
    %6189 = vmatpush1.msra.mxu0 %v6067
    %6190 = vmatprep.subr.mxu0 %v6072
    %6191 = vmatpush1.msra.mxu0 %v6071
    %6192 = vmatprep.subr.mxu0 %v6076
    %6193 = vmatpush1.msra.mxu0 %v6075
    %6194 = vmatprep.subr.mxu0 %v6080
    %6195 = vmatpush1.msra.mxu0 %v6079
    %6196 = vmatprep.subr.mxu0 %v6084
    %6197 = vmatpush1.msra.mxu0 %v6083
    %6198 = vmatprep.subr.mxu0 %v6088
    %6199 = vmatpush1.msra.mxu0 %v6087
    %6200 = vmatprep.subr.mxu0 %v6092
    %6201 = vmatpush1.msra.mxu0 %v6091
    %6202 = vmatprep.subr.mxu0 %v6096
    %6203 = vmatpush1.msra.mxu0 %v6095
    %6204 = vmatprep.subr.mxu0 %v6100
    %6205 = vmatpush1.msra.mxu0 %v6099
    %6206 = vmatprep.subr.mxu0 %v6104
    %6207 = vmatpush1.msra.mxu0 %v6103
    %6208 = vmatprep.subr.mxu0 0.0
    %6209 = vmatpush1.msra.mxu0 0.0
    %6210 = vmatprep.subr.mxu0 0.0
    %6211 = vmatpush1.msra.mxu0 0.0
    %6212 = vmatprep.subr.mxu0 0.0
    %6213 = vmatpush1.msra.mxu0 0.0
    %6214 = vmatprep.subr.mxu0 0.0
    %6215 = vmatpush1.msra.mxu0 0.0
    %6216 = vmatprep.subr.mxu0 0.0
    %6217 = vmatpush1.msra.mxu0 0.0
    %6218 = vmatprep.subr.mxu0 0.0
    %6219 = vmatpush1.msra.mxu0 0.0
    %6220 = vmatprep.subr.mxu0 0.0
    %6221 = vmatpush1.msra.mxu0 0.0
    %6222 = vmatprep.subr.mxu0 0.0
    %6223 = vmatpush1.msra.mxu0 0.0
    %6224 = vmatprep.subr.mxu0 0.0
    %6225 = vmatpush1.msra.mxu0 0.0
    %6226 = vmatprep.subr.mxu0 0.0
    %6227 = vmatpush1.msra.mxu0 0.0
    %6228 = vmatprep.subr.mxu0 0.0
    %6229 = vmatpush1.msra.mxu0 0.0
    %6230 = vmatprep.subr.mxu0 0.0
    %6231 = vmatpush1.msra.mxu0 0.0
    %6232 = vmatprep.subr.mxu0 0.0
    %6233 = vmatpush1.msra.mxu0 0.0
    %6234 = vmatprep.subr.mxu0 0.0
    %6235 = vmatpush1.msra.mxu0 0.0
    %6236 = vmatprep.subr.mxu0 0.0
    %6237 = vmatpush1.msra.mxu0 0.0
    %6238 = vmatprep.subr.mxu0 0.0
    %6239 = vmatpush1.msra.mxu0 0.0
    %6240 = vmatprep.mubr.f32.mxu0 0.0
    %6241 = vmatmul.mubr.f32.gmra.mrb[0].mxu0 %v6040
    %v6242 = vpop.f32.mrb[0].mxu0
    %v6243 = vadd.f32 0.0, %v6242
    %v6244 = vpop.f32.mrb[0].mxu0
    %v6245 = vadd.f32 0.0, %v6244
    %6246 = vdwg.mxu0
    %6247 = vmatprep.subr.mxu0 %v5977
    %6248 = vmatpush1.msra.mxu0 %v5976
    %6249 = vmatprep.subr.mxu0 %v5981
    %6250 = vmatpush1.msra.mxu0 %v5980
    %6251 = vmatprep.subr.mxu0 %v5985
    %6252 = vmatpush1.msra.mxu0 %v5984
    %6253 = vmatprep.subr.mxu0 %v5989
    %6254 = vmatpush1.msra.mxu0 %v5988
    %6255 = vmatprep.subr.mxu0 %v5993
    %6256 = vmatpush1.msra.mxu0 %v5992
    %6257 = vmatprep.subr.mxu0 %v5997
    %6258 = vmatpush1.msra.mxu0 %v5996
    %6259 = vmatprep.subr.mxu0 %v6001
    %6260 = vmatpush1.msra.mxu0 %v6000
    %6261 = vmatprep.subr.mxu0 %v6005
    %6262 = vmatpush1.msra.mxu0 %v6004
    %6263 = vmatprep.subr.mxu0 %v6009
    %6264 = vmatpush1.msra.mxu0 %v6008
    %6265 = vmatprep.subr.mxu0 %v6013
    %6266 = vmatpush1.msra.mxu0 %v6012
    %6267 = vmatprep.subr.mxu0 %v6017
    %6268 = vmatpush1.msra.mxu0 %v6016
    %6269 = vmatprep.subr.mxu0 %v6021
    %6270 = vmatpush1.msra.mxu0 %v6020
    %6271 = vmatprep.subr.mxu0 %v6025
    %6272 = vmatpush1.msra.mxu0 %v6024
    %6273 = vmatprep.subr.mxu0 %v6029
    %6274 = vmatpush1.msra.mxu0 %v6028
    %6275 = vmatprep.subr.mxu0 %v6033
    %6276 = vmatpush1.msra.mxu0 %v6032
    %6277 = vmatprep.subr.mxu0 %v6037
    %6278 = vmatpush1.msra.mxu0 %v6036
    %6279 = vmatprep.subr.mxu0 0.0
    %6280 = vmatpush1.msra.mxu0 0.0
    %6281 = vmatprep.subr.mxu0 0.0
    %6282 = vmatpush1.msra.mxu0 0.0
    %6283 = vmatprep.subr.mxu0 0.0
    %6284 = vmatpush1.msra.mxu0 0.0
    %6285 = vmatprep.subr.mxu0 0.0
    %6286 = vmatpush1.msra.mxu0 0.0
    %6287 = vmatprep.subr.mxu0 0.0
    %6288 = vmatpush1.msra.mxu0 0.0
    %6289 = vmatprep.subr.mxu0 0.0
    %6290 = vmatpush1.msra.mxu0 0.0
    %6291 = vmatprep.subr.mxu0 0.0
    %6292 = vmatpush1.msra.mxu0 0.0
    %6293 = vmatprep.subr.mxu0 0.0
    %6294 = vmatpush1.msra.mxu0 0.0
    %6295 = vmatprep.subr.mxu0 0.0
    %6296 = vmatpush1.msra.mxu0 0.0
    %6297 = vmatprep.subr.mxu0 0.0
    %6298 = vmatpush1.msra.mxu0 0.0
    %6299 = vmatprep.subr.mxu0 0.0
    %6300 = vmatpush1.msra.mxu0 0.0
    %6301 = vmatprep.subr.mxu0 0.0
    %6302 = vmatpush1.msra.mxu0 0.0
    %6303 = vmatprep.subr.mxu0 0.0
    %6304 = vmatpush1.msra.mxu0 0.0
    %6305 = vmatprep.subr.mxu0 0.0
    %6306 = vmatpush1.msra.mxu0 0.0
    %6307 = vmatprep.subr.mxu0 0.0
    %6308 = vmatpush1.msra.mxu0 0.0
    %6309 = vmatprep.subr.mxu0 0.0
    %6310 = vmatpush1.msra.mxu0 0.0
    %6311 = vmatprep.mubr.f32.mxu0 0.0
    %6312 = vmatmul.mubr.f32.gmra.mrb[0].mxu0 %v5975
    %v6313 = vpop.f32.mrb[0].mxu0
    %v6314 = vadd.f32 %v6172, %v6313
    %v6315 = vpop.f32.mrb[0].mxu0
    %v6316 = vadd.f32 %v6174, %v6315
    %6317 = vdwg.mxu0
    %6318 = vmatprep.subr.mxu0 %v5979
    %6319 = vmatpush1.msra.mxu0 %v5978
    %6320 = vmatprep.subr.mxu0 %v5983
    %6321 = vmatpush1.msra.mxu0 %v5982
    %6322 = vmatprep.subr.mxu0 %v5987
    %6323 = vmatpush1.msra.mxu0 %v5986
    %6324 = vmatprep.subr.mxu0 %v5991
    %6325 = vmatpush1.msra.mxu0 %v5990
    %6326 = vmatprep.subr.mxu0 %v5995
    %6327 = vmatpush1.msra.mxu0 %v5994
    %6328 = vmatprep.subr.mxu0 %v5999
    %6329 = vmatpush1.msra.mxu0 %v5998
    %6330 = vmatprep.subr.mxu0 %v6003
    %6331 = vmatpush1.msra.mxu0 %v6002
    %6332 = vmatprep.subr.mxu0 %v6007
    %6333 = vmatpush1.msra.mxu0 %v6006
    %6334 = vmatprep.subr.mxu0 %v6011
    %6335 = vmatpush1.msra.mxu0 %v6010
    %6336 = vmatprep.subr.mxu0 %v6015
    %6337 = vmatpush1.msra.mxu0 %v6014
    %6338 = vmatprep.subr.mxu0 %v6019
    %6339 = vmatpush1.msra.mxu0 %v6018
    %6340 = vmatprep.subr.mxu0 %v6023
    %6341 = vmatpush1.msra.mxu0 %v6022
    %6342 = vmatprep.subr.mxu0 %v6027
    %6343 = vmatpush1.msra.mxu0 %v6026
    %6344 = vmatprep.subr.mxu0 %v6031
    %6345 = vmatpush1.msra.mxu0 %v6030
    %6346 = vmatprep.subr.mxu0 %v6035
    %6347 = vmatpush1.msra.mxu0 %v6034
    %6348 = vmatprep.subr.mxu0 %v6039
    %6349 = vmatpush1.msra.mxu0 %v6038
    %6350 = vmatprep.subr.mxu0 0.0
    %6351 = vmatpush1.msra.mxu0 0.0
    %6352 = vmatprep.subr.mxu0 0.0
    %6353 = vmatpush1.msra.mxu0 0.0
    %6354 = vmatprep.subr.mxu0 0.0
    %6355 = vmatpush1.msra.mxu0 0.0
    %6356 = vmatprep.subr.mxu0 0.0
    %6357 = vmatpush1.msra.mxu0 0.0
    %6358 = vmatprep.subr.mxu0 0.0
    %6359 = vmatpush1.msra.mxu0 0.0
    %6360 = vmatprep.subr.mxu0 0.0
    %6361 = vmatpush1.msra.mxu0 0.0
    %6362 = vmatprep.subr.mxu0 0.0
    %6363 = vmatpush1.msra.mxu0 0.0
    %6364 = vmatprep.subr.mxu0 0.0
    %6365 = vmatpush1.msra.mxu0 0.0
    %6366 = vmatprep.subr.mxu0 0.0
    %6367 = vmatpush1.msra.mxu0 0.0
    %6368 = vmatprep.subr.mxu0 0.0
    %6369 = vmatpush1.msra.mxu0 0.0
    %6370 = vmatprep.subr.mxu0 0.0
    %6371 = vmatpush1.msra.mxu0 0.0
    %6372 = vmatprep.subr.mxu0 0.0
    %6373 = vmatpush1.msra.mxu0 0.0
    %6374 = vmatprep.subr.mxu0 0.0
    %6375 = vmatpush1.msra.mxu0 0.0
    %6376 = vmatprep.subr.mxu0 0.0
    %6377 = vmatpush1.msra.mxu0 0.0
    %6378 = vmatprep.subr.mxu0 0.0
    %6379 = vmatpush1.msra.mxu0 0.0
    %6380 = vmatprep.subr.mxu0 0.0
    %6381 = vmatpush1.msra.mxu0 0.0
    %6382 = vmatprep.mubr.f32.mxu0 0.0
    %6383 = vmatmul.mubr.f32.gmra.mrb[0].mxu0 %v5975
    %v6384 = vpop.f32.mrb[0].mxu0
    %v6385 = vadd.f32 %v6243, %v6384
    %v6386 = vpop.f32.mrb[0].mxu0
    %v6387 = vadd.f32 %v6245, %v6386
    %6388 = vdwg.mxu0
    %v6389 = vadd.f32 %v6314, %v3728
    %v6390 = vadd.f32 %v6316, %v3732
    %v6391 = vadd.f32 %v6385, %v3736
    %v6392 = vadd.f32 %v6387, %v3740
    %v6393 = vxor.u32 %v6389, 2147483648
    %v6394 = vmul.f32 %v6393, 1.442695
    %v6395 = vpow.pop %v6394
    %v6396 = vadd.f32 %v6395, 1.0
    %v6397 = vrcp.pop %v6396
    %v6398 = vmul.f32 1.0, %v6397
    %v6399 = vxor.u32 %v6390, 2147483648
    %v6400 = vmul.f32 %v6399, 1.442695
    %v6401 = vpow.pop %v6400
    %v6402 = vadd.f32 %v6401, 1.0
    %v6403 = vrcp.pop %v6402
    %v6404 = vmul.f32 1.0, %v6403
    %v6405 = vtanh.pop %v6391
    %v6406 = vxor.u32 %v6392, 2147483648
    %v6407 = vmul.f32 %v6406, 1.442695
    %v6408 = vpow.pop %v6407
    %v6409 = vadd.f32 %v6408, 1.0
    %v6410 = vrcp.pop %v6409
    %v6411 = vmul.f32 1.0, %v6410
    %v6412 = vld [vmem:[#allocation4] sm:$0xff]
    %v6413 = vmul.f32 %v6404, %v6412
    %v6414 = vmul.f32 %v6398, %v6405
    %v6415 = vadd.f32 %v6413, %v6414
    %v6416 = vtanh.pop %v6415
    %v6417 = vmul.f32 %v6411, %v6416
    %6418 = vst [vmem:[#allocation4] sm:$0xff] %v6415
    %6419 = vst [vmem:[#allocation3] sm:$0xff] %v6417
    %6420 = vst [vmem:[%s2823] sm:$0xff] %v6417
    %v6421 = vld [vmem:[%s3271] sm:$0xff]
    %v6422 = vld [vmem:[#allocation11] sm:$0xff]
    %v6423 = vld [vmem:[#allocation11 + $0x8] sm:$0xff]
    %v6424 = vld [vmem:[#allocation11 + $0x10] sm:$0xff]
    %v6425 = vld [vmem:[#allocation11 + $0x18] sm:$0xff]
    %v6426 = vld [vmem:[#allocation11 + $0x20] sm:$0xff]
    %v6427 = vld [vmem:[#allocation11 + $0x28] sm:$0xff]
    %v6428 = vld [vmem:[#allocation11 + $0x30] sm:$0xff]
    %v6429 = vld [vmem:[#allocation11 + $0x38] sm:$0xff]
    %v6430 = vld [vmem:[#allocation11 + $0x40] sm:$0xff]
    %v6431 = vld [vmem:[#allocation11 + $0x48] sm:$0xff]
    %v6432 = vld [vmem:[#allocation11 + $0x50] sm:$0xff]
    %v6433 = vld [vmem:[#allocation11 + $0x58] sm:$0xff]
    %v6434 = vld [vmem:[#allocation11 + $0x60] sm:$0xff]
    %v6435 = vld [vmem:[#allocation11 + $0x68] sm:$0xff]
    %v6436 = vld [vmem:[#allocation11 + $0x70] sm:$0xff]
    %v6437 = vld [vmem:[#allocation11 + $0x78] sm:$0xff]
    %v6438 = vld [vmem:[#allocation11 + $0x80] sm:$0xff]
    %v6439 = vld [vmem:[#allocation11 + $0x88] sm:$0xff]
    %v6440 = vld [vmem:[#allocation11 + $0x90] sm:$0xff]
    %v6441 = vld [vmem:[#allocation11 + $0x98] sm:$0xff]
    %v6442 = vld [vmem:[#allocation11 + $0xa0] sm:$0xff]
    %v6443 = vld [vmem:[#allocation11 + $0xa8] sm:$0xff]
    %v6444 = vld [vmem:[#allocation11 + $0xb0] sm:$0xff]
    %v6445 = vld [vmem:[#allocation11 + $0xb8] sm:$0xff]
    %v6446 = vld [vmem:[#allocation11 + $0xc0] sm:$0xff]
    %v6447 = vld [vmem:[#allocation11 + $0xc8] sm:$0xff]
    %v6448 = vld [vmem:[#allocation11 + $0xd0] sm:$0xff]
    %v6449 = vld [vmem:[#allocation11 + $0xd8] sm:$0xff]
    %v6450 = vld [vmem:[#allocation11 + $0xe0] sm:$0xff]
    %v6451 = vld [vmem:[#allocation11 + $0xe8] sm:$0xff]
    %v6452 = vld [vmem:[#allocation11 + $0xf0] sm:$0xff]
    %v6453 = vld [vmem:[#allocation11 + $0xf8] sm:$0xff]
    %v6454 = vld [vmem:[#allocation11 + $0x100] sm:$0xff]
    %v6455 = vld [vmem:[#allocation11 + $0x108] sm:$0xff]
    %v6456 = vld [vmem:[#allocation11 + $0x110] sm:$0xff]
    %v6457 = vld [vmem:[#allocation11 + $0x118] sm:$0xff]
    %v6458 = vld [vmem:[#allocation11 + $0x120] sm:$0xff]
    %v6459 = vld [vmem:[#allocation11 + $0x128] sm:$0xff]
    %v6460 = vld [vmem:[#allocation11 + $0x130] sm:$0xff]
    %v6461 = vld [vmem:[#allocation11 + $0x138] sm:$0xff]
    %v6462 = vld [vmem:[#allocation11 + $0x140] sm:$0xff]
    %v6463 = vld [vmem:[#allocation11 + $0x148] sm:$0xff]
    %v6464 = vld [vmem:[#allocation11 + $0x150] sm:$0xff]
    %v6465 = vld [vmem:[#allocation11 + $0x158] sm:$0xff]
    %v6466 = vld [vmem:[#allocation11 + $0x160] sm:$0xff]
    %v6467 = vld [vmem:[#allocation11 + $0x168] sm:$0xff]
    %v6468 = vld [vmem:[#allocation11 + $0x170] sm:$0xff]
    %v6469 = vld [vmem:[#allocation11 + $0x178] sm:$0xff]
    %v6470 = vld [vmem:[#allocation11 + $0x180] sm:$0xff]
    %v6471 = vld [vmem:[#allocation11 + $0x188] sm:$0xff]
    %v6472 = vld [vmem:[#allocation11 + $0x190] sm:$0xff]
    %v6473 = vld [vmem:[#allocation11 + $0x198] sm:$0xff]
    %v6474 = vld [vmem:[#allocation11 + $0x1a0] sm:$0xff]
    %v6475 = vld [vmem:[#allocation11 + $0x1a8] sm:$0xff]
    %v6476 = vld [vmem:[#allocation11 + $0x1b0] sm:$0xff]
    %v6477 = vld [vmem:[#allocation11 + $0x1b8] sm:$0xff]
    %v6478 = vld [vmem:[#allocation11 + $0x1c0] sm:$0xff]
    %v6479 = vld [vmem:[#allocation11 + $0x1c8] sm:$0xff]
    %v6480 = vld [vmem:[#allocation11 + $0x1d0] sm:$0xff]
    %v6481 = vld [vmem:[#allocation11 + $0x1d8] sm:$0xff]
    %v6482 = vld [vmem:[#allocation11 + $0x1e0] sm:$0xff]
    %v6483 = vld [vmem:[#allocation11 + $0x1e8] sm:$0xff]
    %v6484 = vld [vmem:[#allocation11 + $0x1f0] sm:$0xff]
    %v6485 = vld [vmem:[#allocation11 + $0x1f8] sm:$0xff]
    %v6486 = vld [vmem:[#allocation3] sm:$0xff]
    %v6487 = vld [vmem:[#allocation13] sm:$0xff]
    %v6488 = vld [vmem:[#allocation13 + $0x8] sm:$0xff]
    %v6489 = vld [vmem:[#allocation13 + $0x10] sm:$0xff]
    %v6490 = vld [vmem:[#allocation13 + $0x18] sm:$0xff]
    %v6491 = vld [vmem:[#allocation13 + $0x20] sm:$0xff]
    %v6492 = vld [vmem:[#allocation13 + $0x28] sm:$0xff]
    %v6493 = vld [vmem:[#allocation13 + $0x30] sm:$0xff]
    %v6494 = vld [vmem:[#allocation13 + $0x38] sm:$0xff]
    %v6495 = vld [vmem:[#allocation13 + $0x40] sm:$0xff]
    %v6496 = vld [vmem:[#allocation13 + $0x48] sm:$0xff]
    %v6497 = vld [vmem:[#allocation13 + $0x50] sm:$0xff]
    %v6498 = vld [vmem:[#allocation13 + $0x58] sm:$0xff]
    %v6499 = vld [vmem:[#allocation13 + $0x60] sm:$0xff]
    %v6500 = vld [vmem:[#allocation13 + $0x68] sm:$0xff]
    %v6501 = vld [vmem:[#allocation13 + $0x70] sm:$0xff]
    %v6502 = vld [vmem:[#allocation13 + $0x78] sm:$0xff]
    %v6503 = vld [vmem:[#allocation13 + $0x80] sm:$0xff]
    %v6504 = vld [vmem:[#allocation13 + $0x88] sm:$0xff]
    %v6505 = vld [vmem:[#allocation13 + $0x90] sm:$0xff]
    %v6506 = vld [vmem:[#allocation13 + $0x98] sm:$0xff]
    %v6507 = vld [vmem:[#allocation13 + $0xa0] sm:$0xff]
    %v6508 = vld [vmem:[#allocation13 + $0xa8] sm:$0xff]
    %v6509 = vld [vmem:[#allocation13 + $0xb0] sm:$0xff]
    %v6510 = vld [vmem:[#allocation13 + $0xb8] sm:$0xff]
    %v6511 = vld [vmem:[#allocation13 + $0xc0] sm:$0xff]
    %v6512 = vld [vmem:[#allocation13 + $0xc8] sm:$0xff]
    %v6513 = vld [vmem:[#allocation13 + $0xd0] sm:$0xff]
    %v6514 = vld [vmem:[#allocation13 + $0xd8] sm:$0xff]
    %v6515 = vld [vmem:[#allocation13 + $0xe0] sm:$0xff]
    %v6516 = vld [vmem:[#allocation13 + $0xe8] sm:$0xff]
    %v6517 = vld [vmem:[#allocation13 + $0xf0] sm:$0xff]
    %v6518 = vld [vmem:[#allocation13 + $0xf8] sm:$0xff]
    %v6519 = vld [vmem:[#allocation13 + $0x100] sm:$0xff]
    %v6520 = vld [vmem:[#allocation13 + $0x108] sm:$0xff]
    %v6521 = vld [vmem:[#allocation13 + $0x110] sm:$0xff]
    %v6522 = vld [vmem:[#allocation13 + $0x118] sm:$0xff]
    %v6523 = vld [vmem:[#allocation13 + $0x120] sm:$0xff]
    %v6524 = vld [vmem:[#allocation13 + $0x128] sm:$0xff]
    %v6525 = vld [vmem:[#allocation13 + $0x130] sm:$0xff]
    %v6526 = vld [vmem:[#allocation13 + $0x138] sm:$0xff]
    %v6527 = vld [vmem:[#allocation13 + $0x140] sm:$0xff]
    %v6528 = vld [vmem:[#allocation13 + $0x148] sm:$0xff]
    %v6529 = vld [vmem:[#allocation13 + $0x150] sm:$0xff]
    %v6530 = vld [vmem:[#allocation13 + $0x158] sm:$0xff]
    %v6531 = vld [vmem:[#allocation13 + $0x160] sm:$0xff]
    %v6532 = vld [vmem:[#allocation13 + $0x168] sm:$0xff]
    %v6533 = vld [vmem:[#allocation13 + $0x170] sm:$0xff]
    %v6534 = vld [vmem:[#allocation13 + $0x178] sm:$0xff]
    %v6535 = vld [vmem:[#allocation13 + $0x180] sm:$0xff]
    %v6536 = vld [vmem:[#allocation13 + $0x188] sm:$0xff]
    %v6537 = vld [vmem:[#allocation13 + $0x190] sm:$0xff]
    %v6538 = vld [vmem:[#allocation13 + $0x198] sm:$0xff]
    %v6539 = vld [vmem:[#allocation13 + $0x1a0] sm:$0xff]
    %v6540 = vld [vmem:[#allocation13 + $0x1a8] sm:$0xff]
    %v6541 = vld [vmem:[#allocation13 + $0x1b0] sm:$0xff]
    %v6542 = vld [vmem:[#allocation13 + $0x1b8] sm:$0xff]
    %v6543 = vld [vmem:[#allocation13 + $0x1c0] sm:$0xff]
    %v6544 = vld [vmem:[#allocation13 + $0x1c8] sm:$0xff]
    %v6545 = vld [vmem:[#allocation13 + $0x1d0] sm:$0xff]
    %v6546 = vld [vmem:[#allocation13 + $0x1d8] sm:$0xff]
    %v6547 = vld [vmem:[#allocation13 + $0x1e0] sm:$0xff]
    %v6548 = vld [vmem:[#allocation13 + $0x1e8] sm:$0xff]
    %v6549 = vld [vmem:[#allocation13 + $0x1f0] sm:$0xff]
    %v6550 = vld [vmem:[#allocation13 + $0x1f8] sm:$0xff]
    %6551 = vmatprep.subr.mxu0 %v6488
    %6552 = vmatpush1.msra.mxu0 %v6487
    %6553 = vmatprep.subr.mxu0 %v6492
    %6554 = vmatpush1.msra.mxu0 %v6491
    %6555 = vmatprep.subr.mxu0 %v6496
    %6556 = vmatpush1.msra.mxu0 %v6495
    %6557 = vmatprep.subr.mxu0 %v6500
    %6558 = vmatpush1.msra.mxu0 %v6499
    %6559 = vmatprep.subr.mxu0 %v6504
    %6560 = vmatpush1.msra.mxu0 %v6503
    %6561 = vmatprep.subr.mxu0 %v6508
    %6562 = vmatpush1.msra.mxu0 %v6507
    %6563 = vmatprep.subr.mxu0 %v6512
    %6564 = vmatpush1.msra.mxu0 %v6511
    %6565 = vmatprep.subr.mxu0 %v6516
    %6566 = vmatpush1.msra.mxu0 %v6515
    %6567 = vmatprep.subr.mxu0 %v6520
    %6568 = vmatpush1.msra.mxu0 %v6519
    %6569 = vmatprep.subr.mxu0 %v6524
    %6570 = vmatpush1.msra.mxu0 %v6523
    %6571 = vmatprep.subr.mxu0 %v6528
    %6572 = vmatpush1.msra.mxu0 %v6527
    %6573 = vmatprep.subr.mxu0 %v6532
    %6574 = vmatpush1.msra.mxu0 %v6531
    %6575 = vmatprep.subr.mxu0 %v6536
    %6576 = vmatpush1.msra.mxu0 %v6535
    %6577 = vmatprep.subr.mxu0 %v6540
    %6578 = vmatpush1.msra.mxu0 %v6539
    %6579 = vmatprep.subr.mxu0 %v6544
    %6580 = vmatpush1.msra.mxu0 %v6543
    %6581 = vmatprep.subr.mxu0 %v6548
    %6582 = vmatpush1.msra.mxu0 %v6547
    %6583 = vmatprep.subr.mxu0 0.0
    %6584 = vmatpush1.msra.mxu0 0.0
    %6585 = vmatprep.subr.mxu0 0.0
    %6586 = vmatpush1.msra.mxu0 0.0
    %6587 = vmatprep.subr.mxu0 0.0
    %6588 = vmatpush1.msra.mxu0 0.0
    %6589 = vmatprep.subr.mxu0 0.0
    %6590 = vmatpush1.msra.mxu0 0.0
    %6591 = vmatprep.subr.mxu0 0.0
    %6592 = vmatpush1.msra.mxu0 0.0
    %6593 = vmatprep.subr.mxu0 0.0
    %6594 = vmatpush1.msra.mxu0 0.0
    %6595 = vmatprep.subr.mxu0 0.0
    %6596 = vmatpush1.msra.mxu0 0.0
    %6597 = vmatprep.subr.mxu0 0.0
    %6598 = vmatpush1.msra.mxu0 0.0
    %6599 = vmatprep.subr.mxu0 0.0
    %6600 = vmatpush1.msra.mxu0 0.0
    %6601 = vmatprep.subr.mxu0 0.0
    %6602 = vmatpush1.msra.mxu0 0.0
    %6603 = vmatprep.subr.mxu0 0.0
    %6604 = vmatpush1.msra.mxu0 0.0
    %6605 = vmatprep.subr.mxu0 0.0
    %6606 = vmatpush1.msra.mxu0 0.0
    %6607 = vmatprep.subr.mxu0 0.0
    %6608 = vmatpush1.msra.mxu0 0.0
    %6609 = vmatprep.subr.mxu0 0.0
    %6610 = vmatpush1.msra.mxu0 0.0
    %6611 = vmatprep.subr.mxu0 0.0
    %6612 = vmatpush1.msra.mxu0 0.0
    %6613 = vmatprep.subr.mxu0 0.0
    %6614 = vmatpush1.msra.mxu0 0.0
    %6615 = vmatprep.mubr.f32.mxu0 0.0
    %6616 = vmatmul.mubr.f32.gmra.mrb[0].mxu0 %v6486
    %v6617 = vpop.f32.mrb[0].mxu0
    %v6618 = vadd.f32 0.0, %v6617
    %v6619 = vpop.f32.mrb[0].mxu0
    %v6620 = vadd.f32 0.0, %v6619
    %6621 = vdwg.mxu0
    %6622 = vmatprep.subr.mxu0 %v6490
    %6623 = vmatpush1.msra.mxu0 %v6489
    %6624 = vmatprep.subr.mxu0 %v6494
    %6625 = vmatpush1.msra.mxu0 %v6493
    %6626 = vmatprep.subr.mxu0 %v6498
    %6627 = vmatpush1.msra.mxu0 %v6497
    %6628 = vmatprep.subr.mxu0 %v6502
    %6629 = vmatpush1.msra.mxu0 %v6501
    %6630 = vmatprep.subr.mxu0 %v6506
    %6631 = vmatpush1.msra.mxu0 %v6505
    %6632 = vmatprep.subr.mxu0 %v6510
    %6633 = vmatpush1.msra.mxu0 %v6509
    %6634 = vmatprep.subr.mxu0 %v6514
    %6635 = vmatpush1.msra.mxu0 %v6513
    %6636 = vmatprep.subr.mxu0 %v6518
    %6637 = vmatpush1.msra.mxu0 %v6517
    %6638 = vmatprep.subr.mxu0 %v6522
    %6639 = vmatpush1.msra.mxu0 %v6521
    %6640 = vmatprep.subr.mxu0 %v6526
    %6641 = vmatpush1.msra.mxu0 %v6525
    %6642 = vmatprep.subr.mxu0 %v6530
    %6643 = vmatpush1.msra.mxu0 %v6529
    %6644 = vmatprep.subr.mxu0 %v6534
    %6645 = vmatpush1.msra.mxu0 %v6533
    %6646 = vmatprep.subr.mxu0 %v6538
    %6647 = vmatpush1.msra.mxu0 %v6537
    %6648 = vmatprep.subr.mxu0 %v6542
    %6649 = vmatpush1.msra.mxu0 %v6541
    %6650 = vmatprep.subr.mxu0 %v6546
    %6651 = vmatpush1.msra.mxu0 %v6545
    %6652 = vmatprep.subr.mxu0 %v6550
    %6653 = vmatpush1.msra.mxu0 %v6549
    %6654 = vmatprep.subr.mxu0 0.0
    %6655 = vmatpush1.msra.mxu0 0.0
    %6656 = vmatprep.subr.mxu0 0.0
    %6657 = vmatpush1.msra.mxu0 0.0
    %6658 = vmatprep.subr.mxu0 0.0
    %6659 = vmatpush1.msra.mxu0 0.0
    %6660 = vmatprep.subr.mxu0 0.0
    %6661 = vmatpush1.msra.mxu0 0.0
    %6662 = vmatprep.subr.mxu0 0.0
    %6663 = vmatpush1.msra.mxu0 0.0
    %6664 = vmatprep.subr.mxu0 0.0
    %6665 = vmatpush1.msra.mxu0 0.0
    %6666 = vmatprep.subr.mxu0 0.0
    %6667 = vmatpush1.msra.mxu0 0.0
    %6668 = vmatprep.subr.mxu0 0.0
    %6669 = vmatpush1.msra.mxu0 0.0
    %6670 = vmatprep.subr.mxu0 0.0
    %6671 = vmatpush1.msra.mxu0 0.0
    %6672 = vmatprep.subr.mxu0 0.0
    %6673 = vmatpush1.msra.mxu0 0.0
    %6674 = vmatprep.subr.mxu0 0.0
    %6675 = vmatpush1.msra.mxu0 0.0
    %6676 = vmatprep.subr.mxu0 0.0
    %6677 = vmatpush1.msra.mxu0 0.0
    %6678 = vmatprep.subr.mxu0 0.0
    %6679 = vmatpush1.msra.mxu0 0.0
    %6680 = vmatprep.subr.mxu0 0.0
    %6681 = vmatpush1.msra.mxu0 0.0
    %6682 = vmatprep.subr.mxu0 0.0
    %6683 = vmatpush1.msra.mxu0 0.0
    %6684 = vmatprep.subr.mxu0 0.0
    %6685 = vmatpush1.msra.mxu0 0.0
    %6686 = vmatprep.mubr.f32.mxu0 0.0
    %6687 = vmatmul.mubr.f32.gmra.mrb[0].mxu0 %v6486
    %v6688 = vpop.f32.mrb[0].mxu0
    %v6689 = vadd.f32 0.0, %v6688
    %v6690 = vpop.f32.mrb[0].mxu0
    %v6691 = vadd.f32 0.0, %v6690
    %6692 = vdwg.mxu0
    %6693 = vmatprep.subr.mxu0 %v6423
    %6694 = vmatpush1.msra.mxu0 %v6422
    %6695 = vmatprep.subr.mxu0 %v6427
    %6696 = vmatpush1.msra.mxu0 %v6426
    %6697 = vmatprep.subr.mxu0 %v6431
    %6698 = vmatpush1.msra.mxu0 %v6430
    %6699 = vmatprep.subr.mxu0 %v6435
    %6700 = vmatpush1.msra.mxu0 %v6434
    %6701 = vmatprep.subr.mxu0 %v6439
    %6702 = vmatpush1.msra.mxu0 %v6438
    %6703 = vmatprep.subr.mxu0 %v6443
    %6704 = vmatpush1.msra.mxu0 %v6442
    %6705 = vmatprep.subr.mxu0 %v6447
    %6706 = vmatpush1.msra.mxu0 %v6446
    %6707 = vmatprep.subr.mxu0 %v6451
    %6708 = vmatpush1.msra.mxu0 %v6450
    %6709 = vmatprep.subr.mxu0 %v6455
    %6710 = vmatpush1.msra.mxu0 %v6454
    %6711 = vmatprep.subr.mxu0 %v6459
    %6712 = vmatpush1.msra.mxu0 %v6458
    %6713 = vmatprep.subr.mxu0 %v6463
    %6714 = vmatpush1.msra.mxu0 %v6462
    %6715 = vmatprep.subr.mxu0 %v6467
    %6716 = vmatpush1.msra.mxu0 %v6466
    %6717 = vmatprep.subr.mxu0 %v6471
    %6718 = vmatpush1.msra.mxu0 %v6470
    %6719 = vmatprep.subr.mxu0 %v6475
    %6720 = vmatpush1.msra.mxu0 %v6474
    %6721 = vmatprep.subr.mxu0 %v6479
    %6722 = vmatpush1.msra.mxu0 %v6478
    %6723 = vmatprep.subr.mxu0 %v6483
    %6724 = vmatpush1.msra.mxu0 %v6482
    %6725 = vmatprep.subr.mxu0 0.0
    %6726 = vmatpush1.msra.mxu0 0.0
    %6727 = vmatprep.subr.mxu0 0.0
    %6728 = vmatpush1.msra.mxu0 0.0
    %6729 = vmatprep.subr.mxu0 0.0
    %6730 = vmatpush1.msra.mxu0 0.0
    %6731 = vmatprep.subr.mxu0 0.0
    %6732 = vmatpush1.msra.mxu0 0.0
    %6733 = vmatprep.subr.mxu0 0.0
    %6734 = vmatpush1.msra.mxu0 0.0
    %6735 = vmatprep.subr.mxu0 0.0
    %6736 = vmatpush1.msra.mxu0 0.0
    %6737 = vmatprep.subr.mxu0 0.0
    %6738 = vmatpush1.msra.mxu0 0.0
    %6739 = vmatprep.subr.mxu0 0.0
    %6740 = vmatpush1.msra.mxu0 0.0
    %6741 = vmatprep.subr.mxu0 0.0
    %6742 = vmatpush1.msra.mxu0 0.0
    %6743 = vmatprep.subr.mxu0 0.0
    %6744 = vmatpush1.msra.mxu0 0.0
    %6745 = vmatprep.subr.mxu0 0.0
    %6746 = vmatpush1.msra.mxu0 0.0
    %6747 = vmatprep.subr.mxu0 0.0
    %6748 = vmatpush1.msra.mxu0 0.0
    %6749 = vmatprep.subr.mxu0 0.0
    %6750 = vmatpush1.msra.mxu0 0.0
    %6751 = vmatprep.subr.mxu0 0.0
    %6752 = vmatpush1.msra.mxu0 0.0
    %6753 = vmatprep.subr.mxu0 0.0
    %6754 = vmatpush1.msra.mxu0 0.0
    %6755 = vmatprep.subr.mxu0 0.0
    %6756 = vmatpush1.msra.mxu0 0.0
    %6757 = vmatprep.mubr.f32.mxu0 0.0
    %6758 = vmatmul.mubr.f32.gmra.mrb[0].mxu0 %v6421
    %v6759 = vpop.f32.mrb[0].mxu0
    %v6760 = vadd.f32 %v6618, %v6759
    %v6761 = vpop.f32.mrb[0].mxu0
    %v6762 = vadd.f32 %v6620, %v6761
    %6763 = vdwg.mxu0
    %6764 = vmatprep.subr.mxu0 %v6425
    %6765 = vmatpush1.msra.mxu0 %v6424
    %6766 = vmatprep.subr.mxu0 %v6429
    %6767 = vmatpush1.msra.mxu0 %v6428
    %6768 = vmatprep.subr.mxu0 %v6433
    %6769 = vmatpush1.msra.mxu0 %v6432
    %6770 = vmatprep.subr.mxu0 %v6437
    %6771 = vmatpush1.msra.mxu0 %v6436
    %6772 = vmatprep.subr.mxu0 %v6441
    %6773 = vmatpush1.msra.mxu0 %v6440
    %6774 = vmatprep.subr.mxu0 %v6445
    %6775 = vmatpush1.msra.mxu0 %v6444
    %6776 = vmatprep.subr.mxu0 %v6449
    %6777 = vmatpush1.msra.mxu0 %v6448
    %6778 = vmatprep.subr.mxu0 %v6453
    %6779 = vmatpush1.msra.mxu0 %v6452
    %6780 = vmatprep.subr.mxu0 %v6457
    %6781 = vmatpush1.msra.mxu0 %v6456
    %6782 = vmatprep.subr.mxu0 %v6461
    %6783 = vmatpush1.msra.mxu0 %v6460
    %6784 = vmatprep.subr.mxu0 %v6465
    %6785 = vmatpush1.msra.mxu0 %v6464
    %6786 = vmatprep.subr.mxu0 %v6469
    %6787 = vmatpush1.msra.mxu0 %v6468
    %6788 = vmatprep.subr.mxu0 %v6473
    %6789 = vmatpush1.msra.mxu0 %v6472
    %6790 = vmatprep.subr.mxu0 %v6477
    %6791 = vmatpush1.msra.mxu0 %v6476
    %6792 = vmatprep.subr.mxu0 %v6481
    %6793 = vmatpush1.msra.mxu0 %v6480
    %6794 = vmatprep.subr.mxu0 %v6485
    %6795 = vmatpush1.msra.mxu0 %v6484
    %6796 = vmatprep.subr.mxu0 0.0
    %6797 = vmatpush1.msra.mxu0 0.0
    %6798 = vmatprep.subr.mxu0 0.0
    %6799 = vmatpush1.msra.mxu0 0.0
    %6800 = vmatprep.subr.mxu0 0.0
    %6801 = vmatpush1.msra.mxu0 0.0
    %6802 = vmatprep.subr.mxu0 0.0
    %6803 = vmatpush1.msra.mxu0 0.0
    %6804 = vmatprep.subr.mxu0 0.0
    %6805 = vmatpush1.msra.mxu0 0.0
    %6806 = vmatprep.subr.mxu0 0.0
    %6807 = vmatpush1.msra.mxu0 0.0
    %6808 = vmatprep.subr.mxu0 0.0
    %6809 = vmatpush1.msra.mxu0 0.0
    %6810 = vmatprep.subr.mxu0 0.0
    %6811 = vmatpush1.msra.mxu0 0.0
    %6812 = vmatprep.subr.mxu0 0.0
    %6813 = vmatpush1.msra.mxu0 0.0
    %6814 = vmatprep.subr.mxu0 0.0
    %6815 = vmatpush1.msra.mxu0 0.0
    %6816 = vmatprep.subr.mxu0 0.0
    %6817 = vmatpush1.msra.mxu0 0.0
    %6818 = vmatprep.subr.mxu0 0.0
    %6819 = vmatpush1.msra.mxu0 0.0
    %6820 = vmatprep.subr.mxu0 0.0
    %6821 = vmatpush1.msra.mxu0 0.0
    %6822 = vmatprep.subr.mxu0 0.0
    %6823 = vmatpush1.msra.mxu0 0.0
    %6824 = vmatprep.subr.mxu0 0.0
    %6825 = vmatpush1.msra.mxu0 0.0
    %6826 = vmatprep.subr.mxu0 0.0
    %6827 = vmatpush1.msra.mxu0 0.0
    %6828 = vmatprep.mubr.f32.mxu0 0.0
    %6829 = vmatmul.mubr.f32.gmra.mrb[0].mxu0 %v6421
    %v6830 = vpop.f32.mrb[0].mxu0
    %v6831 = vadd.f32 %v6689, %v6830
    %v6832 = vpop.f32.mrb[0].mxu0
    %v6833 = vadd.f32 %v6691, %v6832
    %6834 = vdwg.mxu0
    %v6835 = vadd.f32 %v6760, %v3728
    %v6836 = vadd.f32 %v6762, %v3732
    %v6837 = vadd.f32 %v6831, %v3736
    %v6838 = vadd.f32 %v6833, %v3740
    %v6839 = vxor.u32 %v6835, 2147483648
    %v6840 = vmul.f32 %v6839, 1.442695
    %v6841 = vpow.pop %v6840
    %v6842 = vadd.f32 %v6841, 1.0
    %v6843 = vrcp.pop %v6842
    %v6844 = vmul.f32 1.0, %v6843
    %v6845 = vxor.u32 %v6836, 2147483648
    %v6846 = vmul.f32 %v6845, 1.442695
    %v6847 = vpow.pop %v6846
    %v6848 = vadd.f32 %v6847, 1.0
    %v6849 = vrcp.pop %v6848
    %v6850 = vmul.f32 1.0, %v6849
    %v6851 = vtanh.pop %v6837
    %v6852 = vxor.u32 %v6838, 2147483648
    %v6853 = vmul.f32 %v6852, 1.442695
    %v6854 = vpow.pop %v6853
    %v6855 = vadd.f32 %v6854, 1.0
    %v6856 = vrcp.pop %v6855
    %v6857 = vmul.f32 1.0, %v6856
    %v6858 = vld [vmem:[#allocation4] sm:$0xff]
    %v6859 = vmul.f32 %v6850, %v6858
    %v6860 = vmul.f32 %v6844, %v6851
    %v6861 = vadd.f32 %v6859, %v6860
    %v6862 = vtanh.pop %v6861
    %v6863 = vmul.f32 %v6857, %v6862
    %6864 = vst [vmem:[#allocation4] sm:$0xff] %v6861
    %6865 = vst [vmem:[#allocation3] sm:$0xff] %v6863
    %6866 = vst [vmem:[%s3271] sm:$0xff] %v6863
    %v6867 = vld [vmem:[%s3719] sm:$0xff]
    %v6868 = vld [vmem:[#allocation11] sm:$0xff]
    %v6869 = vld [vmem:[#allocation11 + $0x8] sm:$0xff]
    %v6870 = vld [vmem:[#allocation11 + $0x10] sm:$0xff]
    %v6871 = vld [vmem:[#allocation11 + $0x18] sm:$0xff]
    %v6872 = vld [vmem:[#allocation11 + $0x20] sm:$0xff]
    %v6873 = vld [vmem:[#allocation11 + $0x28] sm:$0xff]
    %v6874 = vld [vmem:[#allocation11 + $0x30] sm:$0xff]
    %v6875 = vld [vmem:[#allocation11 + $0x38] sm:$0xff]
    %v6876 = vld [vmem:[#allocation11 + $0x40] sm:$0xff]
    %v6877 = vld [vmem:[#allocation11 + $0x48] sm:$0xff]
    %v6878 = vld [vmem:[#allocation11 + $0x50] sm:$0xff]
    %v6879 = vld [vmem:[#allocation11 + $0x58] sm:$0xff]
    %v6880 = vld [vmem:[#allocation11 + $0x60] sm:$0xff]
    %v6881 = vld [vmem:[#allocation11 + $0x68] sm:$0xff]
    %v6882 = vld [vmem:[#allocation11 + $0x70] sm:$0xff]
    %v6883 = vld [vmem:[#allocation11 + $0x78] sm:$0xff]
    %v6884 = vld [vmem:[#allocation11 + $0x80] sm:$0xff]
    %v6885 = vld [vmem:[#allocation11 + $0x88] sm:$0xff]
    %v6886 = vld [vmem:[#allocation11 + $0x90] sm:$0xff]
    %v6887 = vld [vmem:[#allocation11 + $0x98] sm:$0xff]
    %v6888 = vld [vmem:[#allocation11 + $0xa0] sm:$0xff]
    %v6889 = vld [vmem:[#allocation11 + $0xa8] sm:$0xff]
    %v6890 = vld [vmem:[#allocation11 + $0xb0] sm:$0xff]
    %v6891 = vld [vmem:[#allocation11 + $0xb8] sm:$0xff]
    %v6892 = vld [vmem:[#allocation11 + $0xc0] sm:$0xff]
    %v6893 = vld [vmem:[#allocation11 + $0xc8] sm:$0xff]
    %v6894 = vld [vmem:[#allocation11 + $0xd0] sm:$0xff]
    %v6895 = vld [vmem:[#allocation11 + $0xd8] sm:$0xff]
    %v6896 = vld [vmem:[#allocation11 + $0xe0] sm:$0xff]
    %v6897 = vld [vmem:[#allocation11 + $0xe8] sm:$0xff]
    %v6898 = vld [vmem:[#allocation11 + $0xf0] sm:$0xff]
    %v6899 = vld [vmem:[#allocation11 + $0xf8] sm:$0xff]
    %v6900 = vld [vmem:[#allocation11 + $0x100] sm:$0xff]
    %v6901 = vld [vmem:[#allocation11 + $0x108] sm:$0xff]
    %v6902 = vld [vmem:[#allocation11 + $0x110] sm:$0xff]
    %v6903 = vld [vmem:[#allocation11 + $0x118] sm:$0xff]
    %v6904 = vld [vmem:[#allocation11 + $0x120] sm:$0xff]
    %v6905 = vld [vmem:[#allocation11 + $0x128] sm:$0xff]
    %v6906 = vld [vmem:[#allocation11 + $0x130] sm:$0xff]
    %v6907 = vld [vmem:[#allocation11 + $0x138] sm:$0xff]
    %v6908 = vld [vmem:[#allocation11 + $0x140] sm:$0xff]
    %v6909 = vld [vmem:[#allocation11 + $0x148] sm:$0xff]
    %v6910 = vld [vmem:[#allocation11 + $0x150] sm:$0xff]
    %v6911 = vld [vmem:[#allocation11 + $0x158] sm:$0xff]
    %v6912 = vld [vmem:[#allocation11 + $0x160] sm:$0xff]
    %v6913 = vld [vmem:[#allocation11 + $0x168] sm:$0xff]
    %v6914 = vld [vmem:[#allocation11 + $0x170] sm:$0xff]
    %v6915 = vld [vmem:[#allocation11 + $0x178] sm:$0xff]
    %v6916 = vld [vmem:[#allocation11 + $0x180] sm:$0xff]
    %v6917 = vld [vmem:[#allocation11 + $0x188] sm:$0xff]
    %v6918 = vld [vmem:[#allocation11 + $0x190] sm:$0xff]
    %v6919 = vld [vmem:[#allocation11 + $0x198] sm:$0xff]
    %v6920 = vld [vmem:[#allocation11 + $0x1a0] sm:$0xff]
    %v6921 = vld [vmem:[#allocation11 + $0x1a8] sm:$0xff]
    %v6922 = vld [vmem:[#allocation11 + $0x1b0] sm:$0xff]
    %v6923 = vld [vmem:[#allocation11 + $0x1b8] sm:$0xff]
    %v6924 = vld [vmem:[#allocation11 + $0x1c0] sm:$0xff]
    %v6925 = vld [vmem:[#allocation11 + $0x1c8] sm:$0xff]
    %v6926 = vld [vmem:[#allocation11 + $0x1d0] sm:$0xff]
    %v6927 = vld [vmem:[#allocation11 + $0x1d8] sm:$0xff]
    %v6928 = vld [vmem:[#allocation11 + $0x1e0] sm:$0xff]
    %v6929 = vld [vmem:[#allocation11 + $0x1e8] sm:$0xff]
    %v6930 = vld [vmem:[#allocation11 + $0x1f0] sm:$0xff]
    %v6931 = vld [vmem:[#allocation11 + $0x1f8] sm:$0xff]
    %v6932 = vld [vmem:[#allocation3] sm:$0xff]
    %v6933 = vld [vmem:[#allocation13] sm:$0xff]
    %v6934 = vld [vmem:[#allocation13 + $0x8] sm:$0xff]
    %v6935 = vld [vmem:[#allocation13 + $0x10] sm:$0xff]
    %v6936 = vld [vmem:[#allocation13 + $0x18] sm:$0xff]
    %v6937 = vld [vmem:[#allocation13 + $0x20] sm:$0xff]
    %v6938 = vld [vmem:[#allocation13 + $0x28] sm:$0xff]
    %v6939 = vld [vmem:[#allocation13 + $0x30] sm:$0xff]
    %v6940 = vld [vmem:[#allocation13 + $0x38] sm:$0xff]
    %v6941 = vld [vmem:[#allocation13 + $0x40] sm:$0xff]
    %v6942 = vld [vmem:[#allocation13 + $0x48] sm:$0xff]
    %v6943 = vld [vmem:[#allocation13 + $0x50] sm:$0xff]
    %v6944 = vld [vmem:[#allocation13 + $0x58] sm:$0xff]
    %v6945 = vld [vmem:[#allocation13 + $0x60] sm:$0xff]
    %v6946 = vld [vmem:[#allocation13 + $0x68] sm:$0xff]
    %v6947 = vld [vmem:[#allocation13 + $0x70] sm:$0xff]
    %v6948 = vld [vmem:[#allocation13 + $0x78] sm:$0xff]
    %v6949 = vld [vmem:[#allocation13 + $0x80] sm:$0xff]
    %v6950 = vld [vmem:[#allocation13 + $0x88] sm:$0xff]
    %v6951 = vld [vmem:[#allocation13 + $0x90] sm:$0xff]
    %v6952 = vld [vmem:[#allocation13 + $0x98] sm:$0xff]
    %v6953 = vld [vmem:[#allocation13 + $0xa0] sm:$0xff]
    %v6954 = vld [vmem:[#allocation13 + $0xa8] sm:$0xff]
    %v6955 = vld [vmem:[#allocation13 + $0xb0] sm:$0xff]
    %v6956 = vld [vmem:[#allocation13 + $0xb8] sm:$0xff]
    %v6957 = vld [vmem:[#allocation13 + $0xc0] sm:$0xff]
    %v6958 = vld [vmem:[#allocation13 + $0xc8] sm:$0xff]
    %v6959 = vld [vmem:[#allocation13 + $0xd0] sm:$0xff]
    %v6960 = vld [vmem:[#allocation13 + $0xd8] sm:$0xff]
    %v6961 = vld [vmem:[#allocation13 + $0xe0] sm:$0xff]
    %v6962 = vld [vmem:[#allocation13 + $0xe8] sm:$0xff]
    %v6963 = vld [vmem:[#allocation13 + $0xf0] sm:$0xff]
    %v6964 = vld [vmem:[#allocation13 + $0xf8] sm:$0xff]
    %v6965 = vld [vmem:[#allocation13 + $0x100] sm:$0xff]
    %v6966 = vld [vmem:[#allocation13 + $0x108] sm:$0xff]
    %v6967 = vld [vmem:[#allocation13 + $0x110] sm:$0xff]
    %v6968 = vld [vmem:[#allocation13 + $0x118] sm:$0xff]
    %v6969 = vld [vmem:[#allocation13 + $0x120] sm:$0xff]
    %v6970 = vld [vmem:[#allocation13 + $0x128] sm:$0xff]
    %v6971 = vld [vmem:[#allocation13 + $0x130] sm:$0xff]
    %v6972 = vld [vmem:[#allocation13 + $0x138] sm:$0xff]
    %v6973 = vld [vmem:[#allocation13 + $0x140] sm:$0xff]
    %v6974 = vld [vmem:[#allocation13 + $0x148] sm:$0xff]
    %v6975 = vld [vmem:[#allocation13 + $0x150] sm:$0xff]
    %v6976 = vld [vmem:[#allocation13 + $0x158] sm:$0xff]
    %v6977 = vld [vmem:[#allocation13 + $0x160] sm:$0xff]
    %v6978 = vld [vmem:[#allocation13 + $0x168] sm:$0xff]
    %v6979 = vld [vmem:[#allocation13 + $0x170] sm:$0xff]
    %v6980 = vld [vmem:[#allocation13 + $0x178] sm:$0xff]
    %v6981 = vld [vmem:[#allocation13 + $0x180] sm:$0xff]
    %v6982 = vld [vmem:[#allocation13 + $0x188] sm:$0xff]
    %v6983 = vld [vmem:[#allocation13 + $0x190] sm:$0xff]
    %v6984 = vld [vmem:[#allocation13 + $0x198] sm:$0xff]
    %v6985 = vld [vmem:[#allocation13 + $0x1a0] sm:$0xff]
    %v6986 = vld [vmem:[#allocation13 + $0x1a8] sm:$0xff]
    %v6987 = vld [vmem:[#allocation13 + $0x1b0] sm:$0xff]
    %v6988 = vld [vmem:[#allocation13 + $0x1b8] sm:$0xff]
    %v6989 = vld [vmem:[#allocation13 + $0x1c0] sm:$0xff]
    %v6990 = vld [vmem:[#allocation13 + $0x1c8] sm:$0xff]
    %v6991 = vld [vmem:[#allocation13 + $0x1d0] sm:$0xff]
    %v6992 = vld [vmem:[#allocation13 + $0x1d8] sm:$0xff]
    %v6993 = vld [vmem:[#allocation13 + $0x1e0] sm:$0xff]
    %v6994 = vld [vmem:[#allocation13 + $0x1e8] sm:$0xff]
    %v6995 = vld [vmem:[#allocation13 + $0x1f0] sm:$0xff]
    %v6996 = vld [vmem:[#allocation13 + $0x1f8] sm:$0xff]
    %6997 = vmatprep.subr.mxu0 %v6934
    %6998 = vmatpush1.msra.mxu0 %v6933
    %6999 = vmatprep.subr.mxu0 %v6938
    %7000 = vmatpush1.msra.mxu0 %v6937
    %7001 = vmatprep.subr.mxu0 %v6942
    %7002 = vmatpush1.msra.mxu0 %v6941
    %7003 = vmatprep.subr.mxu0 %v6946
    %7004 = vmatpush1.msra.mxu0 %v6945
    %7005 = vmatprep.subr.mxu0 %v6950
    %7006 = vmatpush1.msra.mxu0 %v6949
    %7007 = vmatprep.subr.mxu0 %v6954
    %7008 = vmatpush1.msra.mxu0 %v6953
    %7009 = vmatprep.subr.mxu0 %v6958
    %7010 = vmatpush1.msra.mxu0 %v6957
    %7011 = vmatprep.subr.mxu0 %v6962
    %7012 = vmatpush1.msra.mxu0 %v6961
    %7013 = vmatprep.subr.mxu0 %v6966
    %7014 = vmatpush1.msra.mxu0 %v6965
    %7015 = vmatprep.subr.mxu0 %v6970
    %7016 = vmatpush1.msra.mxu0 %v6969
    %7017 = vmatprep.subr.mxu0 %v6974
    %7018 = vmatpush1.msra.mxu0 %v6973
    %7019 = vmatprep.subr.mxu0 %v6978
    %7020 = vmatpush1.msra.mxu0 %v6977
    %7021 = vmatprep.subr.mxu0 %v6982
    %7022 = vmatpush1.msra.mxu0 %v6981
    %7023 = vmatprep.subr.mxu0 %v6986
    %7024 = vmatpush1.msra.mxu0 %v6985
    %7025 = vmatprep.subr.mxu0 %v6990
    %7026 = vmatpush1.msra.mxu0 %v6989
    %7027 = vmatprep.subr.mxu0 %v6994
    %7028 = vmatpush1.msra.mxu0 %v6993
    %7029 = vmatprep.subr.mxu0 0.0
    %7030 = vmatpush1.msra.mxu0 0.0
    %7031 = vmatprep.subr.mxu0 0.0
    %7032 = vmatpush1.msra.mxu0 0.0
    %7033 = vmatprep.subr.mxu0 0.0
    %7034 = vmatpush1.msra.mxu0 0.0
    %7035 = vmatprep.subr.mxu0 0.0
    %7036 = vmatpush1.msra.mxu0 0.0
    %7037 = vmatprep.subr.mxu0 0.0
    %7038 = vmatpush1.msra.mxu0 0.0
    %7039 = vmatprep.subr.mxu0 0.0
    %7040 = vmatpush1.msra.mxu0 0.0
    %7041 = vmatprep.subr.mxu0 0.0
    %7042 = vmatpush1.msra.mxu0 0.0
    %7043 = vmatprep.subr.mxu0 0.0
    %7044 = vmatpush1.msra.mxu0 0.0
    %7045 = vmatprep.subr.mxu0 0.0
    %7046 = vmatpush1.msra.mxu0 0.0
    %7047 = vmatprep.subr.mxu0 0.0
    %7048 = vmatpush1.msra.mxu0 0.0
    %7049 = vmatprep.subr.mxu0 0.0
    %7050 = vmatpush1.msra.mxu0 0.0
    %7051 = vmatprep.subr.mxu0 0.0
    %7052 = vmatpush1.msra.mxu0 0.0
    %7053 = vmatprep.subr.mxu0 0.0
    %7054 = vmatpush1.msra.mxu0 0.0
    %7055 = vmatprep.subr.mxu0 0.0
    %7056 = vmatpush1.msra.mxu0 0.0
    %7057 = vmatprep.subr.mxu0 0.0
    %7058 = vmatpush1.msra.mxu0 0.0
    %7059 = vmatprep.subr.mxu0 0.0
    %7060 = vmatpush1.msra.mxu0 0.0
    %7061 = vmatprep.mubr.f32.mxu0 0.0
    %7062 = vmatmul.mubr.f32.gmra.mrb[0].mxu0 %v6932
    %v7063 = vpop.f32.mrb[0].mxu0
    %v7064 = vadd.f32 0.0, %v7063
    %v7065 = vpop.f32.mrb[0].mxu0
    %v7066 = vadd.f32 0.0, %v7065
    %7067 = vdwg.mxu0
    %7068 = vmatprep.subr.mxu0 %v6936
    %7069 = vmatpush1.msra.mxu0 %v6935
    %7070 = vmatprep.subr.mxu0 %v6940
    %7071 = vmatpush1.msra.mxu0 %v6939
    %7072 = vmatprep.subr.mxu0 %v6944
    %7073 = vmatpush1.msra.mxu0 %v6943
    %7074 = vmatprep.subr.mxu0 %v6948
    %7075 = vmatpush1.msra.mxu0 %v6947
    %7076 = vmatprep.subr.mxu0 %v6952
    %7077 = vmatpush1.msra.mxu0 %v6951
    %7078 = vmatprep.subr.mxu0 %v6956
    %7079 = vmatpush1.msra.mxu0 %v6955
    %7080 = vmatprep.subr.mxu0 %v6960
    %7081 = vmatpush1.msra.mxu0 %v6959
    %7082 = vmatprep.subr.mxu0 %v6964
    %7083 = vmatpush1.msra.mxu0 %v6963
    %7084 = vmatprep.subr.mxu0 %v6968
    %7085 = vmatpush1.msra.mxu0 %v6967
    %7086 = vmatprep.subr.mxu0 %v6972
    %7087 = vmatpush1.msra.mxu0 %v6971
    %7088 = vmatprep.subr.mxu0 %v6976
    %7089 = vmatpush1.msra.mxu0 %v6975
    %7090 = vmatprep.subr.mxu0 %v6980
    %7091 = vmatpush1.msra.mxu0 %v6979
    %7092 = vmatprep.subr.mxu0 %v6984
    %7093 = vmatpush1.msra.mxu0 %v6983
    %7094 = vmatprep.subr.mxu0 %v6988
    %7095 = vmatpush1.msra.mxu0 %v6987
    %7096 = vmatprep.subr.mxu0 %v6992
    %7097 = vmatpush1.msra.mxu0 %v6991
    %7098 = vmatprep.subr.mxu0 %v6996
    %7099 = vmatpush1.msra.mxu0 %v6995
    %7100 = vmatprep.subr.mxu0 0.0
    %7101 = vmatpush1.msra.mxu0 0.0
    %7102 = vmatprep.subr.mxu0 0.0
    %7103 = vmatpush1.msra.mxu0 0.0
    %7104 = vmatprep.subr.mxu0 0.0
    %7105 = vmatpush1.msra.mxu0 0.0
    %7106 = vmatprep.subr.mxu0 0.0
    %7107 = vmatpush1.msra.mxu0 0.0
    %7108 = vmatprep.subr.mxu0 0.0
    %7109 = vmatpush1.msra.mxu0 0.0
    %7110 = vmatprep.subr.mxu0 0.0
    %7111 = vmatpush1.msra.mxu0 0.0
    %7112 = vmatprep.subr.mxu0 0.0
    %7113 = vmatpush1.msra.mxu0 0.0
    %7114 = vmatprep.subr.mxu0 0.0
    %7115 = vmatpush1.msra.mxu0 0.0
    %7116 = vmatprep.subr.mxu0 0.0
    %7117 = vmatpush1.msra.mxu0 0.0
    %7118 = vmatprep.subr.mxu0 0.0
    %7119 = vmatpush1.msra.mxu0 0.0
    %7120 = vmatprep.subr.mxu0 0.0
    %7121 = vmatpush1.msra.mxu0 0.0
    %7122 = vmatprep.subr.mxu0 0.0
    %7123 = vmatpush1.msra.mxu0 0.0
    %7124 = vmatprep.subr.mxu0 0.0
    %7125 = vmatpush1.msra.mxu0 0.0
    %7126 = vmatprep.subr.mxu0 0.0
    %7127 = vmatpush1.msra.mxu0 0.0
    %7128 = vmatprep.subr.mxu0 0.0
    %7129 = vmatpush1.msra.mxu0 0.0
    %7130 = vmatprep.subr.mxu0 0.0
    %7131 = vmatpush1.msra.mxu0 0.0
    %7132 = vmatprep.mubr.f32.mxu0 0.0
    %7133 = vmatmul.mubr.f32.gmra.mrb[0].mxu0 %v6932
    %v7134 = vpop.f32.mrb[0].mxu0
    %v7135 = vadd.f32 0.0, %v7134
    %v7136 = vpop.f32.mrb[0].mxu0
    %v7137 = vadd.f32 0.0, %v7136
    %7138 = vdwg.mxu0
    %7139 = vmatprep.subr.mxu0 %v6869
    %7140 = vmatpush1.msra.mxu0 %v6868
    %7141 = vmatprep.subr.mxu0 %v6873
    %7142 = vmatpush1.msra.mxu0 %v6872
    %7143 = vmatprep.subr.mxu0 %v6877
    %7144 = vmatpush1.msra.mxu0 %v6876
    %7145 = vmatprep.subr.mxu0 %v6881
    %7146 = vmatpush1.msra.mxu0 %v6880
    %7147 = vmatprep.subr.mxu0 %v6885
    %7148 = vmatpush1.msra.mxu0 %v6884
    %7149 = vmatprep.subr.mxu0 %v6889
    %7150 = vmatpush1.msra.mxu0 %v6888
    %7151 = vmatprep.subr.mxu0 %v6893
    %7152 = vmatpush1.msra.mxu0 %v6892
    %7153 = vmatprep.subr.mxu0 %v6897
    %7154 = vmatpush1.msra.mxu0 %v6896
    %7155 = vmatprep.subr.mxu0 %v6901
    %7156 = vmatpush1.msra.mxu0 %v6900
    %7157 = vmatprep.subr.mxu0 %v6905
    %7158 = vmatpush1.msra.mxu0 %v6904
    %7159 = vmatprep.subr.mxu0 %v6909
    %7160 = vmatpush1.msra.mxu0 %v6908
    %7161 = vmatprep.subr.mxu0 %v6913
    %7162 = vmatpush1.msra.mxu0 %v6912
    %7163 = vmatprep.subr.mxu0 %v6917
    %7164 = vmatpush1.msra.mxu0 %v6916
    %7165 = vmatprep.subr.mxu0 %v6921
    %7166 = vmatpush1.msra.mxu0 %v6920
    %7167 = vmatprep.subr.mxu0 %v6925
    %7168 = vmatpush1.msra.mxu0 %v6924
    %7169 = vmatprep.subr.mxu0 %v6929
    %7170 = vmatpush1.msra.mxu0 %v6928
    %7171 = vmatprep.subr.mxu0 0.0
    %7172 = vmatpush1.msra.mxu0 0.0
    %7173 = vmatprep.subr.mxu0 0.0
    %7174 = vmatpush1.msra.mxu0 0.0
    %7175 = vmatprep.subr.mxu0 0.0
    %7176 = vmatpush1.msra.mxu0 0.0
    %7177 = vmatprep.subr.mxu0 0.0
    %7178 = vmatpush1.msra.mxu0 0.0
    %7179 = vmatprep.subr.mxu0 0.0
    %7180 = vmatpush1.msra.mxu0 0.0
    %7181 = vmatprep.subr.mxu0 0.0
    %7182 = vmatpush1.msra.mxu0 0.0
    %7183 = vmatprep.subr.mxu0 0.0
    %7184 = vmatpush1.msra.mxu0 0.0
    %7185 = vmatprep.subr.mxu0 0.0
    %7186 = vmatpush1.msra.mxu0 0.0
    %7187 = vmatprep.subr.mxu0 0.0
    %7188 = vmatpush1.msra.mxu0 0.0
    %7189 = vmatprep.subr.mxu0 0.0
    %7190 = vmatpush1.msra.mxu0 0.0
    %7191 = vmatprep.subr.mxu0 0.0
    %7192 = vmatpush1.msra.mxu0 0.0
    %7193 = vmatprep.subr.mxu0 0.0
    %7194 = vmatpush1.msra.mxu0 0.0
    %7195 = vmatprep.subr.mxu0 0.0
    %7196 = vmatpush1.msra.mxu0 0.0
    %7197 = vmatprep.subr.mxu0 0.0
    %7198 = vmatpush1.msra.mxu0 0.0
    %7199 = vmatprep.subr.mxu0 0.0
    %7200 = vmatpush1.msra.mxu0 0.0
    %7201 = vmatprep.subr.mxu0 0.0
    %7202 = vmatpush1.msra.mxu0 0.0
    %7203 = vmatprep.mubr.f32.mxu0 0.0
    %7204 = vmatmul.mubr.f32.gmra.mrb[0].mxu0 %v6867
    %v7205 = vpop.f32.mrb[0].mxu0
    %v7206 = vadd.f32 %v7064, %v7205
    %v7207 = vpop.f32.mrb[0].mxu0
    %v7208 = vadd.f32 %v7066, %v7207
    %7209 = vdwg.mxu0
    %7210 = vmatprep.subr.mxu0 %v6871
    %7211 = vmatpush1.msra.mxu0 %v6870
    %7212 = vmatprep.subr.mxu0 %v6875
    %7213 = vmatpush1.msra.mxu0 %v6874
    %7214 = vmatprep.subr.mxu0 %v6879
    %7215 = vmatpush1.msra.mxu0 %v6878
    %7216 = vmatprep.subr.mxu0 %v6883
    %7217 = vmatpush1.msra.mxu0 %v6882
    %7218 = vmatprep.subr.mxu0 %v6887
    %7219 = vmatpush1.msra.mxu0 %v6886
    %7220 = vmatprep.subr.mxu0 %v6891
    %7221 = vmatpush1.msra.mxu0 %v6890
    %7222 = vmatprep.subr.mxu0 %v6895
    %7223 = vmatpush1.msra.mxu0 %v6894
    %7224 = vmatprep.subr.mxu0 %v6899
    %7225 = vmatpush1.msra.mxu0 %v6898
    %7226 = vmatprep.subr.mxu0 %v6903
    %7227 = vmatpush1.msra.mxu0 %v6902
    %7228 = vmatprep.subr.mxu0 %v6907
    %7229 = vmatpush1.msra.mxu0 %v6906
    %7230 = vmatprep.subr.mxu0 %v6911
    %7231 = vmatpush1.msra.mxu0 %v6910
    %7232 = vmatprep.subr.mxu0 %v6915
    %7233 = vmatpush1.msra.mxu0 %v6914
    %7234 = vmatprep.subr.mxu0 %v6919
    %7235 = vmatpush1.msra.mxu0 %v6918
    %7236 = vmatprep.subr.mxu0 %v6923
    %7237 = vmatpush1.msra.mxu0 %v6922
    %7238 = vmatprep.subr.mxu0 %v6927
    %7239 = vmatpush1.msra.mxu0 %v6926
    %7240 = vmatprep.subr.mxu0 %v6931
    %7241 = vmatpush1.msra.mxu0 %v6930
    %7242 = vmatprep.subr.mxu0 0.0
    %7243 = vmatpush1.msra.mxu0 0.0
    %7244 = vmatprep.subr.mxu0 0.0
    %7245 = vmatpush1.msra.mxu0 0.0
    %7246 = vmatprep.subr.mxu0 0.0
    %7247 = vmatpush1.msra.mxu0 0.0
    %7248 = vmatprep.subr.mxu0 0.0
    %7249 = vmatpush1.msra.mxu0 0.0
    %7250 = vmatprep.subr.mxu0 0.0
    %7251 = vmatpush1.msra.mxu0 0.0
    %7252 = vmatprep.subr.mxu0 0.0
    %7253 = vmatpush1.msra.mxu0 0.0
    %7254 = vmatprep.subr.mxu0 0.0
    %7255 = vmatpush1.msra.mxu0 0.0
    %7256 = vmatprep.subr.mxu0 0.0
    %7257 = vmatpush1.msra.mxu0 0.0
    %7258 = vmatprep.subr.mxu0 0.0
    %7259 = vmatpush1.msra.mxu0 0.0
    %7260 = vmatprep.subr.mxu0 0.0
    %7261 = vmatpush1.msra.mxu0 0.0
    %7262 = vmatprep.subr.mxu0 0.0
    %7263 = vmatpush1.msra.mxu0 0.0
    %7264 = vmatprep.subr.mxu0 0.0
    %7265 = vmatpush1.msra.mxu0 0.0
    %7266 = vmatprep.subr.mxu0 0.0
    %7267 = vmatpush1.msra.mxu0 0.0
    %7268 = vmatprep.subr.mxu0 0.0
    %7269 = vmatpush1.msra.mxu0 0.0
    %7270 = vmatprep.subr.mxu0 0.0
    %7271 = vmatpush1.msra.mxu0 0.0
    %7272 = vmatprep.subr.mxu0 0.0
    %7273 = vmatpush1.msra.mxu0 0.0
    %7274 = vmatprep.mubr.f32.mxu0 0.0
    %7275 = vmatmul.mubr.f32.gmra.mrb[0].mxu0 %v6867
    %v7276 = vpop.f32.mrb[0].mxu0
    %v7277 = vadd.f32 %v7135, %v7276
    %v7278 = vpop.f32.mrb[0].mxu0
    %v7279 = vadd.f32 %v7137, %v7278
    %7280 = vdwg.mxu0
    %v7281 = vadd.f32 %v7206, %v3728
    %v7282 = vadd.f32 %v7208, %v3732
    %v7283 = vadd.f32 %v7277, %v3736
    %v7284 = vadd.f32 %v7279, %v3740
    %v7285 = vxor.u32 %v7281, 2147483648
    %v7286 = vmul.f32 %v7285, 1.442695
    %v7287 = vpow.pop %v7286
    %v7288 = vadd.f32 %v7287, 1.0
    %v7289 = vrcp.pop %v7288
    %v7290 = vmul.f32 1.0, %v7289
    %v7291 = vxor.u32 %v7282, 2147483648
    %v7292 = vmul.f32 %v7291, 1.442695
    %v7293 = vpow.pop %v7292
    %v7294 = vadd.f32 %v7293, 1.0
    %v7295 = vrcp.pop %v7294
    %v7296 = vmul.f32 1.0, %v7295
    %v7297 = vtanh.pop %v7283
    %v7298 = vxor.u32 %v7284, 2147483648
    %v7299 = vmul.f32 %v7298, 1.442695
    %v7300 = vpow.pop %v7299
    %v7301 = vadd.f32 %v7300, 1.0
    %v7302 = vrcp.pop %v7301
    %v7303 = vmul.f32 1.0, %v7302
    %v7304 = vld [vmem:[#allocation4] sm:$0xff]
    %v7305 = vmul.f32 %v7296, %v7304
    %v7306 = vmul.f32 %v7290, %v7297
    %v7307 = vadd.f32 %v7305, %v7306
    %v7308 = vtanh.pop %v7307
    %v7309 = vmul.f32 %v7303, %v7308
    %7310 = vst [vmem:[#allocation4] sm:$0xff] %v7307
    %7311 = vst [vmem:[#allocation3] sm:$0xff] %v7309
    %7312 = vst [vmem:[%s3719] sm:$0xff] %v7309
    %v7313 = vld [vmem:[#allocation3] sm:$0xff]
    %v7314 = vld [vmem:[#allocation14] sm:$0xff]
    %v7315 = vld [vmem:[#allocation14 + $0x8] sm:$0xff]
    %v7316 = vld [vmem:[#allocation14 + $0x10] sm:$0xff]
    %v7317 = vld [vmem:[#allocation14 + $0x18] sm:$0xff]
    %v7318 = vld [vmem:[#allocation14 + $0x20] sm:$0xff]
    %v7319 = vld [vmem:[#allocation14 + $0x28] sm:$0xff]
    %v7320 = vld [vmem:[#allocation14 + $0x30] sm:$0xff]
    %v7321 = vld [vmem:[#allocation14 + $0x38] sm:$0xff]
    %v7322 = vld [vmem:[#allocation14 + $0x40] sm:$0xff]
    %v7323 = vld [vmem:[#allocation14 + $0x48] sm:$0xff]
    %v7324 = vld [vmem:[#allocation14 + $0x50] sm:$0xff]
    %v7325 = vld [vmem:[#allocation14 + $0x58] sm:$0xff]
    %v7326 = vld [vmem:[#allocation14 + $0x60] sm:$0xff]
    %v7327 = vld [vmem:[#allocation14 + $0x68] sm:$0xff]
    %v7328 = vld [vmem:[#allocation14 + $0x70] sm:$0xff]
    %v7329 = vld [vmem:[#allocation14 + $0x78] sm:$0xff]
    %v7330 = vld [vmem:[%s8] sm:$0x1]
    %v7332 = vlaneseq
    %v7333 = vshrl.u32 %v7332, 7
    %v7334 = vsub.s32 0, %v7333
    %v7335 = vrot.slane %v7330, %v7334
    %7337 = vmatprep.subr.mxu0 0.0
    %7338 = vmatpush1.msra.mxu0 %v7314
    %7339 = vmatprep.subr.mxu0 0.0
    %7340 = vmatpush1.msra.mxu0 %v7315
    %7341 = vmatprep.subr.mxu0 0.0
    %7342 = vmatpush1.msra.mxu0 %v7316
    %7343 = vmatprep.subr.mxu0 0.0
    %7344 = vmatpush1.msra.mxu0 %v7317
    %7345 = vmatprep.subr.mxu0 0.0
    %7346 = vmatpush1.msra.mxu0 %v7318
    %7347 = vmatprep.subr.mxu0 0.0
    %7348 = vmatpush1.msra.mxu0 %v7319
    %7349 = vmatprep.subr.mxu0 0.0
    %7350 = vmatpush1.msra.mxu0 %v7320
    %7351 = vmatprep.subr.mxu0 0.0
    %7352 = vmatpush1.msra.mxu0 %v7321
    %7353 = vmatprep.subr.mxu0 0.0
    %7354 = vmatpush1.msra.mxu0 %v7322
    %7355 = vmatprep.subr.mxu0 0.0
    %7356 = vmatpush1.msra.mxu0 %v7323
    %7357 = vmatprep.subr.mxu0 0.0
    %7358 = vmatpush1.msra.mxu0 %v7324
    %7359 = vmatprep.subr.mxu0 0.0
    %7360 = vmatpush1.msra.mxu0 %v7325
    %7361 = vmatprep.subr.mxu0 0.0
    %7362 = vmatpush1.msra.mxu0 %v7326
    %7363 = vmatprep.subr.mxu0 0.0
    %7364 = vmatpush1.msra.mxu0 %v7327
    %7365 = vmatprep.subr.mxu0 0.0
    %7366 = vmatpush1.msra.mxu0 %v7328
    %7367 = vmatprep.subr.mxu0 0.0
    %7368 = vmatpush1.msra.mxu0 %v7329
    %7369 = vmatprep.subr.mxu0 0.0
    %7370 = vmatpush1.msra.mxu0 0.0
    %7371 = vmatprep.subr.mxu0 0.0
    %7372 = vmatpush1.msra.mxu0 0.0
    %7373 = vmatprep.subr.mxu0 0.0
    %7374 = vmatpush1.msra.mxu0 0.0
    %7375 = vmatprep.subr.mxu0 0.0
    %7376 = vmatpush1.msra.mxu0 0.0
    %7377 = vmatprep.subr.mxu0 0.0
    %7378 = vmatpush1.msra.mxu0 0.0
    %7379 = vmatprep.subr.mxu0 0.0
    %7380 = vmatpush1.msra.mxu0 0.0
    %7381 = vmatprep.subr.mxu0 0.0
    %7382 = vmatpush1.msra.mxu0 0.0
    %7383 = vmatprep.subr.mxu0 0.0
    %7384 = vmatpush1.msra.mxu0 0.0
    %7385 = vmatprep.subr.mxu0 0.0
    %7386 = vmatpush1.msra.mxu0 0.0
    %7387 = vmatprep.subr.mxu0 0.0
    %7388 = vmatpush1.msra.mxu0 0.0
    %7389 = vmatprep.subr.mxu0 0.0
    %7390 = vmatpush1.msra.mxu0 0.0
    %7391 = vmatprep.subr.mxu0 0.0
    %7392 = vmatpush1.msra.mxu0 0.0
    %7393 = vmatprep.subr.mxu0 0.0
    %7394 = vmatpush1.msra.mxu0 0.0
    %7395 = vmatprep.subr.mxu0 0.0
    %7396 = vmatpush1.msra.mxu0 0.0
    %7397 = vmatprep.subr.mxu0 0.0
    %7398 = vmatpush1.msra.mxu0 0.0
    %7399 = vmatprep.subr.mxu0 0.0
    %7400 = vmatpush1.msra.mxu0 0.0
    %7401 = vmatprep.mubr.f32.mxu0 0.0
    %7402 = vmatmul.mubr.f32.gmra.mrb[0].mxu0 %v7313
    %v7403 = vpop.f32.mrb[0].mxu0
    %v7404 = vadd.f32 %v7335, %v7403
    %v7405 = vpop.f32.mrb[0].mxu0
    %7406 = vdwg.mxu0
    %7407 = vst [vmem:[#allocation16] sm:$0xff] %v7404
    // Predicated region
    $region62: #{tpu_custom_call.1} parent=1 // pred_check
      _
    $region63: #{tpu_custom_call.1} parent=1 // pred_check_branch
      %7409 = sbr.rel (0) target = $region65
    $region64: #{tpu_custom_call.1} parent=1 // pred_region
      %s7411 = ssub.s32 128, 128
      %7412 = vsyncadd [#allocation7], %s7411
      %s7414 = sshll.u32 [#allocation16], 4
      %s7415 = int_to_ptr.vmem [resolvable:$true] %s7414
      %7417 = dma.vmem_to_hbm [thread:$0]  %s7415, 128, %s9, [#allocation7]
    $region65: #{tpu_custom_call.1} parent=1 // pred_fallthru
      _
    // Predicated region
    $region66: #{tpu_custom_call.1} parent=1 // pred_check
      _
    $region67: #{tpu_custom_call.1} parent=1 // pred_check_branch
      %7419 = sbr.rel (0) target = $region69
    $region68: #{tpu_custom_call.1} parent=1 // pred_region
      %7420 = dma.done [#allocation7], 128
    $region69: #{tpu_custom_call.1} parent=1 // pred_fallthru
      _
    %7421 = vsyncpa [#allocation6], 1
    %7422 = vsyncpa [#allocation9], 1
    %7423 = vsyncpa [#allocation12], 1
    %7424 = vsyncpa [#allocation15], 1
    %7425 = vsyncpa [#allocation7], 1

</llo_original>
